<compile_context>
chip_gen: v6e
topology: v6e:2x2x1
jax: 0.10.0
libtpu: 0.0.40
codegen_flags: <defaults>
</compile_context>

<pallas_src>
import functools

import jax
import jax.numpy as jnp
from jax.experimental import pallas as pl
from jax.experimental.pallas import tpu as pltpu

_VMEM_LIMIT = 48 * 1024 * 1024  # leave headroom on v7x (64 MiB physical per TC)


# ------------------------------ tiling helpers ------------------------------ #
def _largest_divisor(n, cap, multiple=1):
    """Largest d <= cap with n % d == 0 and d % multiple == 0 (0 if none)."""
    best = 0
    for d in range(1, min(n, cap) + 1):
        if n % d == 0 and d % multiple == 0:
            best = d
    return best


def _choose_row_tile(H, W):
    """Row tile th | H with th*W <= 1024 (amortize per-step overhead), 8-aligned."""
    divs = [d for d in range(1, H + 1) if H % d == 0]
    fitting = [d for d in divs if d * W <= 1024] or [divs[0]]
    aligned = [d for d in fitting if (d * W) % 8 == 0]
    return max(aligned) if aligned else max(fitting)


# --------------------------- conv3x3 kernel bodies --------------------------- #
def _accumulate_taps(w_ref, xpad_ref, *, row0, th, W, Cin):
    """Sum of 9 shifted-tap MXU dots: (th*W, Cin) x (Cin, Cout), f32 accumulate."""
    acc = None
    for kh in range(3):
        for kw in range(3):
            tap = xpad_ref[pl.ds(row0 + kh, th), pl.ds(kw, W), :]      # (th, W, Cin)
            part = jnp.dot(tap.reshape(th * W, Cin), w_ref[kh * 3 + kw],
                           preferred_element_type=jnp.float32)          # (th*W, Cout)
            acc = part if acc is None else acc + part
    return acc


def _emit_tile(out_ref, stats_ref, acc, *, th, W):
    """Write the raw conv tile + per-tile BN partials (tile mean, tile M2)."""
    out_ref[...] = acc
    inv_cnt = 1.0 / float(th * W)
    mean_t = jnp.sum(acc, axis=0, keepdims=True) * inv_cnt              # (1, Cout)
    m2_t = jnp.sum(jnp.square(acc - mean_t), axis=0, keepdims=True)     # (1, Cout)
    stats_ref[:, 0:1, :] = mean_t[None]
    stats_ref[:, 1:2, :] = m2_t[None]


def _conv3x3_kernel(x_ref, w_ref, out_ref, stats_ref, xpad_ref,
                    *, th, H, W, Cin):
    """3x3 conv (pad=1, stride=1) for one (image n, row-tile t) grid step."""
    t = pl.program_id(1)

    @pl.when(t == 0)
    def _():
        # Build the zero-padded image once per image (scratch persists over t).
        xpad_ref[...] = jnp.zeros_like(xpad_ref)
        xpad_ref[1:H + 1, 1:W + 1, :] = x_ref[...]

    row0 = t * th
    if th % 8 == 0:
        row0 = pl.multiple_of(row0, 8)
    acc = _accumulate_taps(w_ref, xpad_ref, row0=row0, th=th, W=W, Cin=Cin)
    _emit_tile(out_ref, stats_ref, acc, th=th, W=W)


def _conv3x3_bnrelu_kernel(x_ref, scale_ref, shift_ref, w_ref, out_ref, stats_ref,
                           xpad_ref, *, th, H, W, Cin):
    """Same as above, but fuses relu(x*scale + shift) (BN1 apply) into the
    padded-image prologue, so the intermediate activation never hits HBM."""
    t = pl.program_id(1)

    @pl.when(t == 0)
    def _():
        xpad_ref[...] = jnp.zeros_like(xpad_ref)
        act = jnp.maximum(x_ref[...] * scale_ref[...] + shift_ref[...], 0.0)
        xpad_ref[1:H + 1, 1:W + 1, :] = act

    row0 = t * th
    if th % 8 == 0:
        row0 = pl.multiple_of(row0, 8)
    acc = _accumulate_taps(w_ref, xpad_ref, row0=row0, th=th, W=W, Cin=Cin)
    _emit_tile(out_ref, stats_ref, acc, th=th, W=W)


# ------------------------------ conv3x3 stage ------------------------------- #
def _conv3x3_stage(x_img3, w_pack, *, N, H, W, Cin, Cout, scale=None, shift=None):
    """conv3x3(pad=1, stride=1) (+ optional fused BN/ReLU input prologue).

    x_img3 : (N*H, W, Cin) activation (contiguous NHWC view)
    w_pack : (9, Cin, Cout) taps
    returns: raw conv output (N*H*W, Cout), BN partials (N*n_t, 2, Cout)
    """
    th = _choose_row_tile(H, W)
    n_t = H // th

    img_spec = pl.BlockSpec((H, W, Cin), lambda n, t: (n, 0, 0))
    w_spec = pl.BlockSpec((9, Cin, Cout), lambda n, t: (0, 0, 0))
    out_spec = pl.BlockSpec((th * W, Cout), lambda n, t: (n * n_t + t, 0))
    st_spec = pl.BlockSpec((1, 2, Cout), lambda n, t: (n * n_t + t, 0, 0))

    static = dict(th=th, H=H, W=W, Cin=Cin)
    if scale is None:
        kern = functools.partial(_conv3x3_kernel, **static)
        in_specs = [img_spec, w_spec]
        args = (x_img3, w_pack)
    else:
        kern = functools.partial(_conv3x3_bnrelu_kernel, **static)
        vec_spec = pl.BlockSpec((1, 1, Cin), lambda n, t: (0, 0, 0))
        in_specs = [img_spec, vec_spec, vec_spec, w_spec]
        args = (x_img3, scale.reshape(1, 1, Cin), shift.reshape(1, 1, Cin), w_pack)

    conv_out, stats = pl.pallas_call(
        kern,
        grid=(N, n_t),
        in_specs=in_specs,
        out_specs=(out_spec, st_spec),
        out_shape=(jax.ShapeDtypeStruct((N * H * W, Cout), jnp.float32),
                   jax.ShapeDtypeStruct((N * n_t, 2, Cout), jnp.float32)),
        scratch_shapes=[pltpu.VMEM((H + 2, W + 2, Cin), jnp.float32)],
        compiler_params=pltpu.CompilerParams(
            # Only the image axis is "parallel": the per-image padded-scratch
            # init at t==0 must not be split across TensorCores.
            dimension_semantics=("parallel", "arbitrary"),
            vmem_limit_bytes=_VMEM_LIMIT),
        cost_estimate=pl.CostEstimate(
            flops=2 * N * H * W * 9 * Cin * Cout,
            transcendentals=0,
            bytes_accessed=4 * (N * H * W * (Cin + Cout) + 9 * Cin * Cout
                                + N * n_t * 2 * Cout)),
    )(*args)
    return conv_out, stats


# ------------------------ BN stat combine (Chan/Welford) --------------------- #
def _bn_scale_shift(stats, gamma, beta, tile_cnt, total_cnt, eps):
    """Combine per-tile (mean, M2) partials into BN scale/shift (batch stats)."""
    mean_t = stats[:, 0, :]                         # (T, C) tile means
    m2_t = stats[:, 1, :]                           # (T, C) tile sum((x-mean_t)^2)
    mean = jnp.mean(mean_t, axis=0)                 # equal-sized tiles
    m2 = jnp.sum(m2_t, axis=0) + tile_cnt * jnp.sum(
        jnp.square(mean_t - mean[None, :]), axis=0)
    var = jnp.maximum(m2 / total_cnt, 0.0)          # biased batch variance
    scale = gamma * jax.lax.rsqrt(var + eps)
    shift = beta - mean * scale
    return scale, shift


# -------------------- BN2 apply + residual + ReLU (lane-dense) --------------- #
def _bn_add_relu_kernel(y_ref, scale_ref, shift_ref, res_ref, out_ref):
    out_ref[...] = jnp.maximum(
        y_ref[...] * scale_ref[...] + shift_ref[...] + res_ref[...], 0.0)


def _bn_add_relu(y2d, scale_row, shift_row, res2d):
    """relu(y*scale + shift + residual) on a lane-dense (N*H, W*C) layout."""
    R, L = y2d.shape
    cap = max(8, (1 << 20) // (4 * L))               # ~1 MiB per operand block
    tr = _largest_divisor(R, min(R, cap), 8) or R
    grid = (R // tr,)
    row_spec = pl.BlockSpec((tr, L), lambda i: (i, 0))
    vec_spec = pl.BlockSpec((1, L), lambda i: (0, 0))
    return pl.pallas_call(
        _bn_add_relu_kernel,
        grid=grid,
        in_specs=[row_spec, vec_spec, vec_spec, row_spec],
        out_specs=row_spec,
        out_shape=jax.ShapeDtypeStruct((R, L), jnp.float32),
        compiler_params=pltpu.CompilerParams(
            dimension_semantics=("parallel",),
            vmem_limit_bytes=_VMEM_LIMIT),
        cost_estimate=pl.CostEstimate(flops=3 * R * L, transcendentals=0,
                                      bytes_accessed=4 * 3 * R * L),
    )(y2d, scale_row, shift_row, res2d)


# ---------------------------------- glue ------------------------------------ #
def _pack_weight(w_oihw):
    """(O,I,3,3) -> (9, I, O): tap-major packing matching w_ref[kh*3+kw]."""
    o, i, kh, kw = w_oihw.shape
    return jnp.transpose(w_oihw, (2, 3, 1, 0)).reshape(kh * kw, i, o)


def _tile_channels(v, w):
    """(C,) per-channel vector -> (1, W*C) row matching the (W*C) lane layout."""
    return jnp.tile(v, w).reshape(1, w * v.shape[0])


def basic_block_forward(x_nchw, params, eps=1e-5):
    """BasicBlock.forward (stride=1, downsample=None: the module defaults).

    Note: the reference module declares conv2 with in_channels=inplanes but
    applies it to a planes-channel tensor, so it only runs when
    inplanes == planes, which is what we instantiate here.
    """
    x_nhwc = jnp.transpose(x_nchw, (0, 2, 3, 1)).astype(jnp.float32)  # NCHW->NHWC
    N, H, W, Cin = x_nhwc.shape
    w1 = _pack_weight(params["conv1_w"])
    w2 = _pack_weight(params["conv2_w"])
    Cout = w1.shape[2]
    total = N * H * W

    # All of the reshapes below are contiguous row-major views (free bitcasts),
    # never cross-kernel relayouts.
    x3 = x_nhwc.reshape(N * H, W, Cin)

    # ---- conv1 (raw) + BN1 partial stats ----
    c1, st1 = _conv3x3_stage(x3, w1, N=N, H=H, W=W, Cin=Cin, Cout=Cout)
    tile_cnt1 = total // st1.shape[0]
    sc1, sh1 = _bn_scale_shift(st1, params["bn1_gamma"], params["bn1_beta"],
                               tile_cnt1, total, eps)

    # ---- conv2 with fused BN1-apply + ReLU prologue, + BN2 partial stats ----
    c2, st2 = _conv3x3_stage(c1.reshape(N * H, W, Cout), w2,
                             N=N, H=H, W=W, Cin=Cout, Cout=Cout,
                             scale=sc1, shift=sh1)
    tile_cnt2 = total // st2.shape[0]
    sc2, sh2 = _bn_scale_shift(st2, params["bn2_gamma"], params["bn2_beta"],
                               tile_cnt2, total, eps)

    # ---- BN2 apply + residual + ReLU (lane-dense elementwise pass) ----
    out2d = _bn_add_relu(c2.reshape(N * H, W * Cout),
                         _tile_channels(sc2, W), _tile_channels(sh2, W),
                         x_nhwc.reshape(N * H, W * Cin))
    return jnp.transpose(out2d.reshape(N, H, W, Cout), (0, 3, 1, 2))


# --------------------------- pure-JAX reference ------------------------------ #
def _ref_forward(x, params, eps=1e-5):
    def conv(h, w):
        return jax.lax.conv_general_dilated(
            h, w, (1, 1), ((1, 1), (1, 1)),
            dimension_numbers=("NCHW", "OIHW", "NCHW"),
            precision=jax.lax.Precision.HIGHEST)

    def bn(h, g, b):
        mean = jnp.mean(h, axis=(0, 2, 3), keepdims=True)
        var = jnp.mean((h - mean) ** 2, axis=(0, 2, 3), keepdims=True)
        return ((h - mean) * jax.lax.rsqrt(var + eps)
                * g.reshape(1, -1, 1, 1) + b.reshape(1, -1, 1, 1))

    out = jnp.maximum(bn(conv(x, params["conv1_w"]),
                         params["bn1_gamma"], params["bn1_beta"]), 0.0)
    out = bn(conv(out, params["conv2_w"]),
             params["bn2_gamma"], params["bn2_beta"])
    out = out + x
    return jnp.maximum(out, 0.0)


# ----------------------------------- main ------------------------------------ #
if __name__ == "__main__":
    inplanes = planes = 4
    N, H, W = 2, 16, 16

    key = jax.random.PRNGKey(0)
    kx, k1, k2, k3, k4, k5, k6 = jax.random.split(key, 7)

    x = jax.random.normal(kx, (N, inplanes, H, W), jnp.float32)
    params = {
        "conv1_w": 0.2 * jax.random.normal(k1, (planes, inplanes, 3, 3), jnp.float32),
        "conv2_w": 0.2 * jax.random.normal(k2, (planes, inplanes, 3, 3), jnp.float32),
        "bn1_gamma": 1.0 + 0.1 * jax.random.normal(k3, (planes,), jnp.float32),
        "bn1_beta": 0.1 * jax.random.normal(k4, (planes,), jnp.float32),
        "bn2_gamma": 1.0 + 0.1 * jax.random.normal(k5, (planes,), jnp.float32),
        "bn2_beta": 0.1 * jax.random.normal(k6, (planes,), jnp.float32),
    }

    out = jax.block_until_ready(jax.jit(basic_block_forward)(x, params))
    ref = jax.block_until_ready(_ref_forward(x, params))

    assert out.shape == (N, planes, H, W), out.shape
    err = float(jnp.max(jnp.abs(out - ref)))
    assert jnp.allclose(out, ref, atol=2e-3, rtol=2e-3), err
    print("KERNEL_OK")
</pallas_src>

<mosaic_0001>
module attributes {stable_mosaic.version = 11 : i64} {
  func.func @_conv3x3_kernel(%arg0: i32, %arg1: i32, %arg2: memref<16x16x4xf32, #tpu.memory_space<vmem>>, %arg3: memref<9x4x4xf32, #tpu.memory_space<vmem>>, %arg4: memref<256x4xf32, #tpu.memory_space<vmem>>, %arg5: memref<1x2x4xf32, #tpu.memory_space<vmem>>, %arg6: memref<18x18x4xf32, #tpu.memory_space<vmem>>) attributes {dimension_semantics = [#tpu.dimension_semantics<parallel>, #tpu.dimension_semantics<arbitrary>], iteration_bounds = array<i64: 2, 1>, scalar_prefetch = 0 : i64, scratch_operands = 1 : i64, tpu.core_type = #tpu.core_type<tc>, window_params = [{transform_indices = @transform_0, window_bounds = array<i64: 16, 16, 4>}, {pipeline_mode = #tpu.pipeline_mode<synchronous>, transform_indices = @transform_1, window_bounds = array<i64: 9, 4, 4>}, {transform_indices = @transform_2, window_bounds = array<i64: 256, 4>}, {transform_indices = @transform_3, window_bounds = array<i64: 1, 2, 4>}]} {
    %c0_i32 = arith.constant 0 : i32
    %0 = arith.cmpi eq, %arg1, %c0_i32 : i32
    %1 = arith.extui %0 : i1 to i32
    %c0_i32_0 = arith.constant 0 : i32
    %2 = arith.cmpi ne, %1, %c0_i32_0 : i32
    scf.if %2 {
      %cst_63 = arith.constant 0.000000e+00 : f32
      %90 = vector.broadcast %cst_63 : f32 to vector<18x18x4xf32>
      %c0_64 = arith.constant 0 : index
      %c0_65 = arith.constant 0 : index
      %c0_66 = arith.constant 0 : index
      %91 = vector.load %arg6[%c0_64, %c0_65, %c0_66] : memref<18x18x4xf32, #tpu.memory_space<vmem>>, vector<18x18x4xf32>
      tpu.vector_store %arg6[%c0_64, %c0_65, %c0_66], %90 {strides = array<i32>} : memref<18x18x4xf32, #tpu.memory_space<vmem>>, vector<18x18x4xf32>,
      %c0_67 = arith.constant 0 : index
      %c0_68 = arith.constant 0 : index
      %c0_69 = arith.constant 0 : index
      %92 = vector.load %arg2[%c0_67, %c0_68, %c0_69] : memref<16x16x4xf32, #tpu.memory_space<vmem>>, vector<16x16x4xf32>
      %c1_70 = arith.constant 1 : index
      %c1_71 = arith.constant 1 : index
      %c0_72 = arith.constant 0 : index
      %93 = vector.load %arg6[%c1_70, %c1_71, %c0_72] : memref<18x18x4xf32, #tpu.memory_space<vmem>>, vector<16x16x4xf32>
      tpu.vector_store %arg6[%c1_70, %c1_71, %c0_72], %92 {strides = array<i32>} : memref<18x18x4xf32, #tpu.memory_space<vmem>>, vector<16x16x4xf32>,
    } else {
    }
    %c16_i32 = arith.constant 16 : i32
    %3 = arith.muli %arg1, %c16_i32 : i32
    %4 = tpu.assume_multiple %3, 8 : i32
    %c0_i32_1 = arith.constant 0 : i32
    %5 = arith.addi %4, %c0_i32_1 : i32
    %6 = arith.index_cast %5 : i32 to index
    %c0 = arith.constant 0 : index
    %c0_2 = arith.constant 0 : index
    %7 = vector.load %arg6[%6, %c0, %c0_2] : memref<18x18x4xf32, #tpu.memory_space<vmem>>, vector<16x16x4xf32>
    %8 = vector.shape_cast %7 : vector<16x16x4xf32> to vector<256x4xf32>
    %c0_3 = arith.constant 0 : index
    %c0_4 = arith.constant 0 : index
    %c0_5 = arith.constant 0 : index
    %9 = vector.load %arg3[%c0_3, %c0_4, %c0_5] : memref<9x4x4xf32, #tpu.memory_space<vmem>>, vector<1x4x4xf32>
    %10 = vector.shape_cast %9 : vector<1x4x4xf32> to vector<4x4xf32>
    %cst = arith.constant dense<0.000000e+00> : vector<256x4xf32>
    %11 = tpu.matmul %8, %10, %cst {dimension_numbers = #tpu.dot_dimension_numbers<[1], [0], [0], [1], [0, 0, 1, 1], [], []>} : vector<256x4xf32>, vector<4x4xf32>, vector<256x4xf32> -> vector<256x4xf32>
    %c0_i32_6 = arith.constant 0 : i32
    %12 = arith.addi %4, %c0_i32_6 : i32
    %13 = arith.index_cast %12 : i32 to index
    %c1 = arith.constant 1 : index
    %c0_7 = arith.constant 0 : index
    %14 = vector.load %arg6[%13, %c1, %c0_7] : memref<18x18x4xf32, #tpu.memory_space<vmem>>, vector<16x16x4xf32>
    %15 = vector.shape_cast %14 : vector<16x16x4xf32> to vector<256x4xf32>
    %c1_8 = arith.constant 1 : index
    %c0_9 = arith.constant 0 : index
    %c0_10 = arith.constant 0 : index
    %16 = vector.load %arg3[%c1_8, %c0_9, %c0_10] : memref<9x4x4xf32, #tpu.memory_space<vmem>>, vector<1x4x4xf32>
    %17 = vector.shape_cast %16 : vector<1x4x4xf32> to vector<4x4xf32>
    %cst_11 = arith.constant dense<0.000000e+00> : vector<256x4xf32>
    %18 = tpu.matmul %15, %17, %cst_11 {dimension_numbers = #tpu.dot_dimension_numbers<[1], [0], [0], [1], [0, 0, 1, 1], [], []>} : vector<256x4xf32>, vector<4x4xf32>, vector<256x4xf32> -> vector<256x4xf32>
    %19 = arith.addf %11, %18 : vector<256x4xf32>
    %c0_i32_12 = arith.constant 0 : i32
    %20 = arith.addi %4, %c0_i32_12 : i32
    %21 = arith.index_cast %20 : i32 to index
    %c2 = arith.constant 2 : index
    %c0_13 = arith.constant 0 : index
    %22 = vector.load %arg6[%21, %c2, %c0_13] : memref<18x18x4xf32, #tpu.memory_space<vmem>>, vector<16x16x4xf32>
    %23 = vector.shape_cast %22 : vector<16x16x4xf32> to vector<256x4xf32>
    %c2_14 = arith.constant 2 : index
    %c0_15 = arith.constant 0 : index
    %c0_16 = arith.constant 0 : index
    %24 = vector.load %arg3[%c2_14, %c0_15, %c0_16] : memref<9x4x4xf32, #tpu.memory_space<vmem>>, vector<1x4x4xf32>
    %25 = vector.shape_cast %24 : vector<1x4x4xf32> to vector<4x4xf32>
    %cst_17 = arith.constant dense<0.000000e+00> : vector<256x4xf32>
    %26 = tpu.matmul %23, %25, %cst_17 {dimension_numbers = #tpu.dot_dimension_numbers<[1], [0], [0], [1], [0, 0, 1, 1], [], []>} : vector<256x4xf32>, vector<4x4xf32>, vector<256x4xf32> -> vector<256x4xf32>
    %27 = arith.addf %19, %26 : vector<256x4xf32>
    %c1_i32 = arith.constant 1 : i32
    %28 = arith.addi %4, %c1_i32 : i32
    %29 = arith.index_cast %28 : i32 to index
    %c0_18 = arith.constant 0 : index
    %c0_19 = arith.constant 0 : index
    %30 = vector.load %arg6[%29, %c0_18, %c0_19] : memref<18x18x4xf32, #tpu.memory_space<vmem>>, vector<16x16x4xf32>
    %31 = vector.shape_cast %30 : vector<16x16x4xf32> to vector<256x4xf32>
    %c3 = arith.constant 3 : index
    %c0_20 = arith.constant 0 : index
    %c0_21 = arith.constant 0 : index
    %32 = vector.load %arg3[%c3, %c0_20, %c0_21] : memref<9x4x4xf32, #tpu.memory_space<vmem>>, vector<1x4x4xf32>
    %33 = vector.shape_cast %32 : vector<1x4x4xf32> to vector<4x4xf32>
    %cst_22 = arith.constant dense<0.000000e+00> : vector<256x4xf32>
    %34 = tpu.matmul %31, %33, %cst_22 {dimension_numbers = #tpu.dot_dimension_numbers<[1], [0], [0], [1], [0, 0, 1, 1], [], []>} : vector<256x4xf32>, vector<4x4xf32>, vector<256x4xf32> -> vector<256x4xf32>
    %35 = arith.addf %27, %34 : vector<256x4xf32>
    %c1_i32_23 = arith.constant 1 : i32
    %36 = arith.addi %4, %c1_i32_23 : i32
    %37 = arith.index_cast %36 : i32 to index
    %c1_24 = arith.constant 1 : index
    %c0_25 = arith.constant 0 : index
    %38 = vector.load %arg6[%37, %c1_24, %c0_25] : memref<18x18x4xf32, #tpu.memory_space<vmem>>, vector<16x16x4xf32>
    %39 = vector.shape_cast %38 : vector<16x16x4xf32> to vector<256x4xf32>
    %c4 = arith.constant 4 : index
    %c0_26 = arith.constant 0 : index
    %c0_27 = arith.constant 0 : index
    %40 = vector.load %arg3[%c4, %c0_26, %c0_27] : memref<9x4x4xf32, #tpu.memory_space<vmem>>, vector<1x4x4xf32>
    %41 = vector.shape_cast %40 : vector<1x4x4xf32> to vector<4x4xf32>
    %cst_28 = arith.constant dense<0.000000e+00> : vector<256x4xf32>
    %42 = tpu.matmul %39, %41, %cst_28 {dimension_numbers = #tpu.dot_dimension_numbers<[1], [0], [0], [1], [0, 0, 1, 1], [], []>} : vector<256x4xf32>, vector<4x4xf32>, vector<256x4xf32> -> vector<256x4xf32>
    %43 = arith.addf %35, %42 : vector<256x4xf32>
    %c1_i32_29 = arith.constant 1 : i32
    %44 = arith.addi %4, %c1_i32_29 : i32
    %45 = arith.index_cast %44 : i32 to index
    %c2_30 = arith.constant 2 : index
    %c0_31 = arith.constant 0 : index
    %46 = vector.load %arg6[%45, %c2_30, %c0_31] : memref<18x18x4xf32, #tpu.memory_space<vmem>>, vector<16x16x4xf32>
    %47 = vector.shape_cast %46 : vector<16x16x4xf32> to vector<256x4xf32>
    %c5 = arith.constant 5 : index
    %c0_32 = arith.constant 0 : index
    %c0_33 = arith.constant 0 : index
    %48 = vector.load %arg3[%c5, %c0_32, %c0_33] : memref<9x4x4xf32, #tpu.memory_space<vmem>>, vector<1x4x4xf32>
    %49 = vector.shape_cast %48 : vector<1x4x4xf32> to vector<4x4xf32>
    %cst_34 = arith.constant dense<0.000000e+00> : vector<256x4xf32>
    %50 = tpu.matmul %47, %49, %cst_34 {dimension_numbers = #tpu.dot_dimension_numbers<[1], [0], [0], [1], [0, 0, 1, 1], [], []>} : vector<256x4xf32>, vector<4x4xf32>, vector<256x4xf32> -> vector<256x4xf32>
    %51 = arith.addf %43, %50 : vector<256x4xf32>
    %c2_i32 = arith.constant 2 : i32
    %52 = arith.addi %4, %c2_i32 : i32
    %53 = arith.index_cast %52 : i32 to index
    %c0_35 = arith.constant 0 : index
    %c0_36 = arith.constant 0 : index
    %54 = vector.load %arg6[%53, %c0_35, %c0_36] : memref<18x18x4xf32, #tpu.memory_space<vmem>>, vector<16x16x4xf32>
    %55 = vector.shape_cast %54 : vector<16x16x4xf32> to vector<256x4xf32>
    %c6 = arith.constant 6 : index
    %c0_37 = arith.constant 0 : index
    %c0_38 = arith.constant 0 : index
    %56 = vector.load %arg3[%c6, %c0_37, %c0_38] : memref<9x4x4xf32, #tpu.memory_space<vmem>>, vector<1x4x4xf32>
    %57 = vector.shape_cast %56 : vector<1x4x4xf32> to vector<4x4xf32>
    %cst_39 = arith.constant dense<0.000000e+00> : vector<256x4xf32>
    %58 = tpu.matmul %55, %57, %cst_39 {dimension_numbers = #tpu.dot_dimension_numbers<[1], [0], [0], [1], [0, 0, 1, 1], [], []>} : vector<256x4xf32>, vector<4x4xf32>, vector<256x4xf32> -> vector<256x4xf32>
    %59 = arith.addf %51, %58 : vector<256x4xf32>
    %c2_i32_40 = arith.constant 2 : i32
    %60 = arith.addi %4, %c2_i32_40 : i32
    %61 = arith.index_cast %60 : i32 to index
    %c1_41 = arith.constant 1 : index
    %c0_42 = arith.constant 0 : index
    %62 = vector.load %arg6[%61, %c1_41, %c0_42] : memref<18x18x4xf32, #tpu.memory_space<vmem>>, vector<16x16x4xf32>
    %63 = vector.shape_cast %62 : vector<16x16x4xf32> to vector<256x4xf32>
    %c7 = arith.constant 7 : index
    %c0_43 = arith.constant 0 : index
    %c0_44 = arith.constant 0 : index
    %64 = vector.load %arg3[%c7, %c0_43, %c0_44] : memref<9x4x4xf32, #tpu.memory_space<vmem>>, vector<1x4x4xf32>
    %65 = vector.shape_cast %64 : vector<1x4x4xf32> to vector<4x4xf32>
    %cst_45 = arith.constant dense<0.000000e+00> : vector<256x4xf32>
    %66 = tpu.matmul %63, %65, %cst_45 {dimension_numbers = #tpu.dot_dimension_numbers<[1], [0], [0], [1], [0, 0, 1, 1], [], []>} : vector<256x4xf32>, vector<4x4xf32>, vector<256x4xf32> -> vector<256x4xf32>
    %67 = arith.addf %59, %66 : vector<256x4xf32>
    %c2_i32_46 = arith.constant 2 : i32
    %68 = arith.addi %4, %c2_i32_46 : i32
    %69 = arith.index_cast %68 : i32 to index
    %c2_47 = arith.constant 2 : index
    %c0_48 = arith.constant 0 : index
    %70 = vector.load %arg6[%69, %c2_47, %c0_48] : memref<18x18x4xf32, #tpu.memory_space<vmem>>, vector<16x16x4xf32>
    %71 = vector.shape_cast %70 : vector<16x16x4xf32> to vector<256x4xf32>
    %c8 = arith.constant 8 : index
    %c0_49 = arith.constant 0 : index
    %c0_50 = arith.constant 0 : index
    %72 = vector.load %arg3[%c8, %c0_49, %c0_50] : memref<9x4x4xf32, #tpu.memory_space<vmem>>, vector<1x4x4xf32>
    %73 = vector.shape_cast %72 : vector<1x4x4xf32> to vector<4x4xf32>
    %cst_51 = arith.constant dense<0.000000e+00> : vector<256x4xf32>
    %74 = tpu.matmul %71, %73, %cst_51 {dimension_numbers = #tpu.dot_dimension_numbers<[1], [0], [0], [1], [0, 0, 1, 1], [], []>} : vector<256x4xf32>, vector<4x4xf32>, vector<256x4xf32> -> vector<256x4xf32>
    %75 = arith.addf %67, %74 : vector<256x4xf32>
    %c0_52 = arith.constant 0 : index
    %c0_53 = arith.constant 0 : index
    %76 = vector.load %arg4[%c0_52, %c0_53] : memref<256x4xf32, #tpu.memory_space<vmem>>, vector<256x4xf32>
    tpu.vector_store %arg4[%c0_52, %c0_53], %75 {strides = array<i32>} : memref<256x4xf32, #tpu.memory_space<vmem>>, vector<256x4xf32>,
    %cst_54 = arith.constant dense<0.000000e+00> : vector<4xf32>
    %77 = vector.multi_reduction <add>, %75, %cst_54 [0] : vector<256x4xf32> to vector<4xf32>
    %78 = vector.shape_cast %77 : vector<4xf32> to vector<1x4xf32>
    %cst_55 = arith.constant 3.906250e-03 : f32
    %79 = vector.broadcast %cst_55 : f32 to vector<1x4xf32>
    %80 = arith.mulf %78, %79 : vector<1x4xf32>
    %81 = vector.broadcast %80 : vector<1x4xf32> to vector<256x4xf32>
    %82 = arith.subf %75, %81 : vector<256x4xf32>
    %83 = arith.mulf %82, %82 : vector<256x4xf32>
    %cst_56 = arith.constant dense<0.000000e+00> : vector<4xf32>
    %84 = vector.multi_reduction <add>, %83, %cst_56 [0] : vector<256x4xf32> to vector<4xf32>
    %85 = vector.shape_cast %84 : vector<4xf32> to vector<1x4xf32>
    %86 = vector.shape_cast %80 : vector<1x4xf32> to vector<1x1x4xf32>
    %c0_57 = arith.constant 0 : index
    %c0_58 = arith.constant 0 : index
    %c0_59 = arith.constant 0 : index
    %87 = vector.load %arg5[%c0_57, %c0_58, %c0_59] : memref<1x2x4xf32, #tpu.memory_space<vmem>>, vector<1x1x4xf32>
    tpu.vector_store %arg5[%c0_57, %c0_58, %c0_59], %86 {strides = array<i32>} : memref<1x2x4xf32, #tpu.memory_space<vmem>>, vector<1x1x4xf32>,
    %88 = vector.shape_cast %85 : vector<1x4xf32> to vector<1x1x4xf32>
    %c0_60 = arith.constant 0 : index
    %c1_61 = arith.constant 1 : index
    %c0_62 = arith.constant 0 : index
    %89 = vector.load %arg5[%c0_60, %c1_61, %c0_62] : memref<1x2x4xf32, #tpu.memory_space<vmem>>, vector<1x1x4xf32>
    tpu.vector_store %arg5[%c0_60, %c1_61, %c0_62], %88 {strides = array<i32>} : memref<1x2x4xf32, #tpu.memory_space<vmem>>, vector<1x1x4xf32>,
    return
  }
  func.func @transform_0(%arg0: i32, %arg1: i32) -> (i32, i32, i32) {
    %c0_i32 = arith.constant 0 : i32
    %c0_i32_0 = arith.constant 0 : i32
    %c0_i32_1 = arith.constant 0 : i32
    return %arg0, %c0_i32, %c0_i32_0 : i32, i32, i32
  }
  func.func @transform_1(%arg0: i32, %arg1: i32) -> (i32, i32, i32) {
    %c0_i32 = arith.constant 0 : i32
    %c0_i32_0 = arith.constant 0 : i32
    %c0_i32_1 = arith.constant 0 : i32
    %c0_i32_2 = arith.constant 0 : i32
    return %c0_i32, %c0_i32_0, %c0_i32_1 : i32, i32, i32
  }
  func.func @transform_2(%arg0: i32, %arg1: i32) -> (i32, i32) {
    %c1_i32 = arith.constant 1 : i32
    %0 = arith.muli %arg0, %c1_i32 : i32
    %1 = arith.addi %0, %arg1 : i32
    %c0_i32 = arith.constant 0 : i32
    %c0_i32_0 = arith.constant 0 : i32
    return %1, %c0_i32 : i32, i32
  }
  func.func @transform_3(%arg0: i32, %arg1: i32) -> (i32, i32, i32) {
    %c1_i32 = arith.constant 1 : i32
    %0 = arith.muli %arg0, %c1_i32 : i32
    %1 = arith.addi %0, %arg1 : i32
    %c0_i32 = arith.constant 0 : i32
    %c0_i32_0 = arith.constant 0 : i32
    %c0_i32_1 = arith.constant 0 : i32
    return %1, %c0_i32, %c0_i32_0 : i32, i32, i32
  }
}

module attributes {stable_mosaic.version = 11 : i64} {
  func.func @_conv3x3_bnrelu_kernel(%arg0: i32, %arg1: i32, %arg2: memref<16x16x4xf32, #tpu.memory_space<vmem>>, %arg3: memref<1x1x4xf32, #tpu.memory_space<vmem>>, %arg4: memref<1x1x4xf32, #tpu.memory_space<vmem>>, %arg5: memref<9x4x4xf32, #tpu.memory_space<vmem>>, %arg6: memref<256x4xf32, #tpu.memory_space<vmem>>, %arg7: memref<1x2x4xf32, #tpu.memory_space<vmem>>, %arg8: memref<18x18x4xf32, #tpu.memory_space<vmem>>) attributes {dimension_semantics = [#tpu.dimension_semantics<parallel>, #tpu.dimension_semantics<arbitrary>], iteration_bounds = array<i64: 2, 1>, scalar_prefetch = 0 : i64, scratch_operands = 1 : i64, tpu.core_type = #tpu.core_type<tc>, window_params = [{transform_indices = @transform_0, window_bounds = array<i64: 16, 16, 4>}, {pipeline_mode = #tpu.pipeline_mode<synchronous>, transform_indices = @transform_1, window_bounds = array<i64: 1, 1, 4>}, {pipeline_mode = #tpu.pipeline_mode<synchronous>, transform_indices = @transform_2, window_bounds = array<i64: 1, 1, 4>}, {pipeline_mode = #tpu.pipeline_mode<synchronous>, transform_indices = @transform_3, window_bounds = array<i64: 9, 4, 4>}, {transform_indices = @transform_4, window_bounds = array<i64: 256, 4>}, {transform_indices = @transform_5, window_bounds = array<i64: 1, 2, 4>}]} {
    %c0_i32 = arith.constant 0 : i32
    %0 = arith.cmpi eq, %arg1, %c0_i32 : i32
    %1 = arith.extui %0 : i1 to i32
    %c0_i32_0 = arith.constant 0 : i32
    %2 = arith.cmpi ne, %1, %c0_i32_0 : i32
    scf.if %2 {
      %cst_63 = arith.constant 0.000000e+00 : f32
      %90 = vector.broadcast %cst_63 : f32 to vector<18x18x4xf32>
      %c0_64 = arith.constant 0 : index
      %c0_65 = arith.constant 0 : index
      %c0_66 = arith.constant 0 : index
      %91 = vector.load %arg8[%c0_64, %c0_65, %c0_66] : memref<18x18x4xf32, #tpu.memory_space<vmem>>, vector<18x18x4xf32>
      tpu.vector_store %arg8[%c0_64, %c0_65, %c0_66], %90 {strides = array<i32>} : memref<18x18x4xf32, #tpu.memory_space<vmem>>, vector<18x18x4xf32>,
      %c0_67 = arith.constant 0 : index
      %c0_68 = arith.constant 0 : index
      %c0_69 = arith.constant 0 : index
      %92 = vector.load %arg2[%c0_67, %c0_68, %c0_69] : memref<16x16x4xf32, #tpu.memory_space<vmem>>, vector<16x16x4xf32>
      %c0_70 = arith.constant 0 : index
      %c0_71 = arith.constant 0 : index
      %c0_72 = arith.constant 0 : index
      %93 = vector.load %arg3[%c0_70, %c0_71, %c0_72] : memref<1x1x4xf32, #tpu.memory_space<vmem>>, vector<1x1x4xf32>
      %94 = vector.broadcast %93 : vector<1x1x4xf32> to vector<16x16x4xf32>
      %95 = arith.mulf %92, %94 : vector<16x16x4xf32>
      %c0_73 = arith.constant 0 : index
      %c0_74 = arith.constant 0 : index
      %c0_75 = arith.constant 0 : index
      %96 = vector.load %arg4[%c0_73, %c0_74, %c0_75] : memref<1x1x4xf32, #tpu.memory_space<vmem>>, vector<1x1x4xf32>
      %97 = vector.broadcast %96 : vector<1x1x4xf32> to vector<16x16x4xf32>
      %98 = arith.addf %95, %97 : vector<16x16x4xf32>
      %cst_76 = arith.constant 0.000000e+00 : f32
      %99 = vector.broadcast %cst_76 : f32 to vector<16x16x4xf32>
      %100 = arith.maximumf %98, %99 : vector<16x16x4xf32>
      %c1_77 = arith.constant 1 : index
      %c1_78 = arith.constant 1 : index
      %c0_79 = arith.constant 0 : index
      %101 = vector.load %arg8[%c1_77, %c1_78, %c0_79] : memref<18x18x4xf32, #tpu.memory_space<vmem>>, vector<16x16x4xf32>
      tpu.vector_store %arg8[%c1_77, %c1_78, %c0_79], %100 {strides = array<i32>} : memref<18x18x4xf32, #tpu.memory_space<vmem>>, vector<16x16x4xf32>,
    } else {
    }
    %c16_i32 = arith.constant 16 : i32
    %3 = arith.muli %arg1, %c16_i32 : i32
    %4 = tpu.assume_multiple %3, 8 : i32
    %c0_i32_1 = arith.constant 0 : i32
    %5 = arith.addi %4, %c0_i32_1 : i32
    %6 = arith.index_cast %5 : i32 to index
    %c0 = arith.constant 0 : index
    %c0_2 = arith.constant 0 : index
    %7 = vector.load %arg8[%6, %c0, %c0_2] : memref<18x18x4xf32, #tpu.memory_space<vmem>>, vector<16x16x4xf32>
    %8 = vector.shape_cast %7 : vector<16x16x4xf32> to vector<256x4xf32>
    %c0_3 = arith.constant 0 : index
    %c0_4 = arith.constant 0 : index
    %c0_5 = arith.constant 0 : index
    %9 = vector.load %arg5[%c0_3, %c0_4, %c0_5] : memref<9x4x4xf32, #tpu.memory_space<vmem>>, vector<1x4x4xf32>
    %10 = vector.shape_cast %9 : vector<1x4x4xf32> to vector<4x4xf32>
    %cst = arith.constant dense<0.000000e+00> : vector<256x4xf32>
    %11 = tpu.matmul %8, %10, %cst {dimension_numbers = #tpu.dot_dimension_numbers<[1], [0], [0], [1], [0, 0, 1, 1], [], []>} : vector<256x4xf32>, vector<4x4xf32>, vector<256x4xf32> -> vector<256x4xf32>
    %c0_i32_6 = arith.constant 0 : i32
    %12 = arith.addi %4, %c0_i32_6 : i32
    %13 = arith.index_cast %12 : i32 to index
    %c1 = arith.constant 1 : index
    %c0_7 = arith.constant 0 : index
    %14 = vector.load %arg8[%13, %c1, %c0_7] : memref<18x18x4xf32, #tpu.memory_space<vmem>>, vector<16x16x4xf32>
    %15 = vector.shape_cast %14 : vector<16x16x4xf32> to vector<256x4xf32>
    %c1_8 = arith.constant 1 : index
    %c0_9 = arith.constant 0 : index
    %c0_10 = arith.constant 0 : index
    %16 = vector.load %arg5[%c1_8, %c0_9, %c0_10] : memref<9x4x4xf32, #tpu.memory_space<vmem>>, vector<1x4x4xf32>
    %17 = vector.shape_cast %16 : vector<1x4x4xf32> to vector<4x4xf32>
    %cst_11 = arith.constant dense<0.000000e+00> : vector<256x4xf32>
    %18 = tpu.matmul %15, %17, %cst_11 {dimension_numbers = #tpu.dot_dimension_numbers<[1], [0], [0], [1], [0, 0, 1, 1], [], []>} : vector<256x4xf32>, vector<4x4xf32>, vector<256x4xf32> -> vector<256x4xf32>
    %19 = arith.addf %11, %18 : vector<256x4xf32>
    %c0_i32_12 = arith.constant 0 : i32
    %20 = arith.addi %4, %c0_i32_12 : i32
    %21 = arith.index_cast %20 : i32 to index
    %c2 = arith.constant 2 : index
    %c0_13 = arith.constant 0 : index
    %22 = vector.load %arg8[%21, %c2, %c0_13] : memref<18x18x4xf32, #tpu.memory_space<vmem>>, vector<16x16x4xf32>
    %23 = vector.shape_cast %22 : vector<16x16x4xf32> to vector<256x4xf32>
    %c2_14 = arith.constant 2 : index
    %c0_15 = arith.constant 0 : index
    %c0_16 = arith.constant 0 : index
    %24 = vector.load %arg5[%c2_14, %c0_15, %c0_16] : memref<9x4x4xf32, #tpu.memory_space<vmem>>, vector<1x4x4xf32>
    %25 = vector.shape_cast %24 : vector<1x4x4xf32> to vector<4x4xf32>
    %cst_17 = arith.constant dense<0.000000e+00> : vector<256x4xf32>
    %26 = tpu.matmul %23, %25, %cst_17 {dimension_numbers = #tpu.dot_dimension_numbers<[1], [0], [0], [1], [0, 0, 1, 1], [], []>} : vector<256x4xf32>, vector<4x4xf32>, vector<256x4xf32> -> vector<256x4xf32>
    %27 = arith.addf %19, %26 : vector<256x4xf32>
    %c1_i32 = arith.constant 1 : i32
    %28 = arith.addi %4, %c1_i32 : i32
    %29 = arith.index_cast %28 : i32 to index
    %c0_18 = arith.constant 0 : index
    %c0_19 = arith.constant 0 : index
    %30 = vector.load %arg8[%29, %c0_18, %c0_19] : memref<18x18x4xf32, #tpu.memory_space<vmem>>, vector<16x16x4xf32>
    %31 = vector.shape_cast %30 : vector<16x16x4xf32> to vector<256x4xf32>
    %c3 = arith.constant 3 : index
    %c0_20 = arith.constant 0 : index
    %c0_21 = arith.constant 0 : index
    %32 = vector.load %arg5[%c3, %c0_20, %c0_21] : memref<9x4x4xf32, #tpu.memory_space<vmem>>, vector<1x4x4xf32>
    %33 = vector.shape_cast %32 : vector<1x4x4xf32> to vector<4x4xf32>
    %cst_22 = arith.constant dense<0.000000e+00> : vector<256x4xf32>
    %34 = tpu.matmul %31, %33, %cst_22 {dimension_numbers = #tpu.dot_dimension_numbers<[1], [0], [0], [1], [0, 0, 1, 1], [], []>} : vector<256x4xf32>, vector<4x4xf32>, vector<256x4xf32> -> vector<256x4xf32>
    %35 = arith.addf %27, %34 : vector<256x4xf32>
    %c1_i32_23 = arith.constant 1 : i32
    %36 = arith.addi %4, %c1_i32_23 : i32
    %37 = arith.index_cast %36 : i32 to index
    %c1_24 = arith.constant 1 : index
    %c0_25 = arith.constant 0 : index
    %38 = vector.load %arg8[%37, %c1_24, %c0_25] : memref<18x18x4xf32, #tpu.memory_space<vmem>>, vector<16x16x4xf32>
    %39 = vector.shape_cast %38 : vector<16x16x4xf32> to vector<256x4xf32>
    %c4 = arith.constant 4 : index
    %c0_26 = arith.constant 0 : index
    %c0_27 = arith.constant 0 : index
    %40 = vector.load %arg5[%c4, %c0_26, %c0_27] : memref<9x4x4xf32, #tpu.memory_space<vmem>>, vector<1x4x4xf32>
    %41 = vector.shape_cast %40 : vector<1x4x4xf32> to vector<4x4xf32>
    %cst_28 = arith.constant dense<0.000000e+00> : vector<256x4xf32>
    %42 = tpu.matmul %39, %41, %cst_28 {dimension_numbers = #tpu.dot_dimension_numbers<[1], [0], [0], [1], [0, 0, 1, 1], [], []>} : vector<256x4xf32>, vector<4x4xf32>, vector<256x4xf32> -> vector<256x4xf32>
    %43 = arith.addf %35, %42 : vector<256x4xf32>
    %c1_i32_29 = arith.constant 1 : i32
    %44 = arith.addi %4, %c1_i32_29 : i32
    %45 = arith.index_cast %44 : i32 to index
    %c2_30 = arith.constant 2 : index
    %c0_31 = arith.constant 0 : index
    %46 = vector.load %arg8[%45, %c2_30, %c0_31] : memref<18x18x4xf32, #tpu.memory_space<vmem>>, vector<16x16x4xf32>
    %47 = vector.shape_cast %46 : vector<16x16x4xf32> to vector<256x4xf32>
    %c5 = arith.constant 5 : index
    %c0_32 = arith.constant 0 : index
    %c0_33 = arith.constant 0 : index
    %48 = vector.load %arg5[%c5, %c0_32, %c0_33] : memref<9x4x4xf32, #tpu.memory_space<vmem>>, vector<1x4x4xf32>
    %49 = vector.shape_cast %48 : vector<1x4x4xf32> to vector<4x4xf32>
    %cst_34 = arith.constant dense<0.000000e+00> : vector<256x4xf32>
    %50 = tpu.matmul %47, %49, %cst_34 {dimension_numbers = #tpu.dot_dimension_numbers<[1], [0], [0], [1], [0, 0, 1, 1], [], []>} : vector<256x4xf32>, vector<4x4xf32>, vector<256x4xf32> -> vector<256x4xf32>
    %51 = arith.addf %43, %50 : vector<256x4xf32>
    %c2_i32 = arith.constant 2 : i32
    %52 = arith.addi %4, %c2_i32 : i32
    %53 = arith.index_cast %52 : i32 to index
    %c0_35 = arith.constant 0 : index
    %c0_36 = arith.constant 0 : index
    %54 = vector.load %arg8[%53, %c0_35, %c0_36] : memref<18x18x4xf32, #tpu.memory_space<vmem>>, vector<16x16x4xf32>
    %55 = vector.shape_cast %54 : vector<16x16x4xf32> to vector<256x4xf32>
    %c6 = arith.constant 6 : index
    %c0_37 = arith.constant 0 : index
    %c0_38 = arith.constant 0 : index
    %56 = vector.load %arg5[%c6, %c0_37, %c0_38] : memref<9x4x4xf32, #tpu.memory_space<vmem>>, vector<1x4x4xf32>
    %57 = vector.shape_cast %56 : vector<1x4x4xf32> to vector<4x4xf32>
    %cst_39 = arith.constant dense<0.000000e+00> : vector<256x4xf32>
    %58 = tpu.matmul %55, %57, %cst_39 {dimension_numbers = #tpu.dot_dimension_numbers<[1], [0], [0], [1], [0, 0, 1, 1], [], []>} : vector<256x4xf32>, vector<4x4xf32>, vector<256x4xf32> -> vector<256x4xf32>
    %59 = arith.addf %51, %58 : vector<256x4xf32>
    %c2_i32_40 = arith.constant 2 : i32
    %60 = arith.addi %4, %c2_i32_40 : i32
    %61 = arith.index_cast %60 : i32 to index
    %c1_41 = arith.constant 1 : index
    %c0_42 = arith.constant 0 : index
    %62 = vector.load %arg8[%61, %c1_41, %c0_42] : memref<18x18x4xf32, #tpu.memory_space<vmem>>, vector<16x16x4xf32>
    %63 = vector.shape_cast %62 : vector<16x16x4xf32> to vector<256x4xf32>
    %c7 = arith.constant 7 : index
    %c0_43 = arith.constant 0 : index
    %c0_44 = arith.constant 0 : index
    %64 = vector.load %arg5[%c7, %c0_43, %c0_44] : memref<9x4x4xf32, #tpu.memory_space<vmem>>, vector<1x4x4xf32>
    %65 = vector.shape_cast %64 : vector<1x4x4xf32> to vector<4x4xf32>
    %cst_45 = arith.constant dense<0.000000e+00> : vector<256x4xf32>
    %66 = tpu.matmul %63, %65, %cst_45 {dimension_numbers = #tpu.dot_dimension_numbers<[1], [0], [0], [1], [0, 0, 1, 1], [], []>} : vector<256x4xf32>, vector<4x4xf32>, vector<256x4xf32> -> vector<256x4xf32>
    %67 = arith.addf %59, %66 : vector<256x4xf32>
    %c2_i32_46 = arith.constant 2 : i32
    %68 = arith.addi %4, %c2_i32_46 : i32
    %69 = arith.index_cast %68 : i32 to index
    %c2_47 = arith.constant 2 : index
    %c0_48 = arith.constant 0 : index
    %70 = vector.load %arg8[%69, %c2_47, %c0_48] : memref<18x18x4xf32, #tpu.memory_space<vmem>>, vector<16x16x4xf32>
    %71 = vector.shape_cast %70 : vector<16x16x4xf32> to vector<256x4xf32>
    %c8 = arith.constant 8 : index
    %c0_49 = arith.constant 0 : index
    %c0_50 = arith.constant 0 : index
    %72 = vector.load %arg5[%c8, %c0_49, %c0_50] : memref<9x4x4xf32, #tpu.memory_space<vmem>>, vector<1x4x4xf32>
    %73 = vector.shape_cast %72 : vector<1x4x4xf32> to vector<4x4xf32>
    %cst_51 = arith.constant dense<0.000000e+00> : vector<256x4xf32>
    %74 = tpu.matmul %71, %73, %cst_51 {dimension_numbers = #tpu.dot_dimension_numbers<[1], [0], [0], [1], [0, 0, 1, 1], [], []>} : vector<256x4xf32>, vector<4x4xf32>, vector<256x4xf32> -> vector<256x4xf32>
    %75 = arith.addf %67, %74 : vector<256x4xf32>
    %c0_52 = arith.constant 0 : index
    %c0_53 = arith.constant 0 : index
    %76 = vector.load %arg6[%c0_52, %c0_53] : memref<256x4xf32, #tpu.memory_space<vmem>>, vector<256x4xf32>
    tpu.vector_store %arg6[%c0_52, %c0_53], %75 {strides = array<i32>} : memref<256x4xf32, #tpu.memory_space<vmem>>, vector<256x4xf32>,
    %cst_54 = arith.constant dense<0.000000e+00> : vector<4xf32>
    %77 = vector.multi_reduction <add>, %75, %cst_54 [0] : vector<256x4xf32> to vector<4xf32>
    %78 = vector.shape_cast %77 : vector<4xf32> to vector<1x4xf32>
    %cst_55 = arith.constant 3.906250e-03 : f32
    %79 = vector.broadcast %cst_55 : f32 to vector<1x4xf32>
    %80 = arith.mulf %78, %79 : vector<1x4xf32>
    %81 = vector.broadcast %80 : vector<1x4xf32> to vector<256x4xf32>
    %82 = arith.subf %75, %81 : vector<256x4xf32>
    %83 = arith.mulf %82, %82 : vector<256x4xf32>
    %cst_56 = arith.constant dense<0.000000e+00> : vector<4xf32>
    %84 = vector.multi_reduction <add>, %83, %cst_56 [0] : vector<256x4xf32> to vector<4xf32>
    %85 = vector.shape_cast %84 : vector<4xf32> to vector<1x4xf32>
    %86 = vector.shape_cast %80 : vector<1x4xf32> to vector<1x1x4xf32>
    %c0_57 = arith.constant 0 : index
    %c0_58 = arith.constant 0 : index
    %c0_59 = arith.constant 0 : index
    %87 = vector.load %arg7[%c0_57, %c0_58, %c0_59] : memref<1x2x4xf32, #tpu.memory_space<vmem>>, vector<1x1x4xf32>
    tpu.vector_store %arg7[%c0_57, %c0_58, %c0_59], %86 {strides = array<i32>} : memref<1x2x4xf32, #tpu.memory_space<vmem>>, vector<1x1x4xf32>,
    %88 = vector.shape_cast %85 : vector<1x4xf32> to vector<1x1x4xf32>
    %c0_60 = arith.constant 0 : index
    %c1_61 = arith.constant 1 : index
    %c0_62 = arith.constant 0 : index
    %89 = vector.load %arg7[%c0_60, %c1_61, %c0_62] : memref<1x2x4xf32, #tpu.memory_space<vmem>>, vector<1x1x4xf32>
    tpu.vector_store %arg7[%c0_60, %c1_61, %c0_62], %88 {strides = array<i32>} : memref<1x2x4xf32, #tpu.memory_space<vmem>>, vector<1x1x4xf32>,
    return
  }
  func.func @transform_0(%arg0: i32, %arg1: i32) -> (i32, i32, i32) {
    %c0_i32 = arith.constant 0 : i32
    %c0_i32_0 = arith.constant 0 : i32
    %c0_i32_1 = arith.constant 0 : i32
    return %arg0, %c0_i32, %c0_i32_0 : i32, i32, i32
  }
  func.func @transform_1(%arg0: i32, %arg1: i32) -> (i32, i32, i32) {
    %c0_i32 = arith.constant 0 : i32
    %c0_i32_0 = arith.constant 0 : i32
    %c0_i32_1 = arith.constant 0 : i32
    %c0_i32_2 = arith.constant 0 : i32
    return %c0_i32, %c0_i32_0, %c0_i32_1 : i32, i32, i32
  }
  func.func @transform_2(%arg0: i32, %arg1: i32) -> (i32, i32, i32) {
    %c0_i32 = arith.constant 0 : i32
    %c0_i32_0 = arith.constant 0 : i32
    %c0_i32_1 = arith.constant 0 : i32
    %c0_i32_2 = arith.constant 0 : i32
    return %c0_i32, %c0_i32_0, %c0_i32_1 : i32, i32, i32
  }
  func.func @transform_3(%arg0: i32, %arg1: i32) -> (i32, i32, i32) {
    %c0_i32 = arith.constant 0 : i32
    %c0_i32_0 = arith.constant 0 : i32
    %c0_i32_1 = arith.constant 0 : i32
    %c0_i32_2 = arith.constant 0 : i32
    return %c0_i32, %c0_i32_0, %c0_i32_1 : i32, i32, i32
  }
  func.func @transform_4(%arg0: i32, %arg1: i32) -> (i32, i32) {
    %c1_i32 = arith.constant 1 : i32
    %0 = arith.muli %arg0, %c1_i32 : i32
    %1 = arith.addi %0, %arg1 : i32
    %c0_i32 = arith.constant 0 : i32
    %c0_i32_0 = arith.constant 0 : i32
    return %1, %c0_i32 : i32, i32
  }
  func.func @transform_5(%arg0: i32, %arg1: i32) -> (i32, i32, i32) {
    %c1_i32 = arith.constant 1 : i32
    %0 = arith.muli %arg0, %c1_i32 : i32
    %1 = arith.addi %0, %arg1 : i32
    %c0_i32 = arith.constant 0 : i32
    %c0_i32_0 = arith.constant 0 : i32
    %c0_i32_1 = arith.constant 0 : i32
    return %1, %c0_i32, %c0_i32_0 : i32, i32, i32
  }
}

module attributes {stable_mosaic.version = 11 : i64} {
  func.func @_bn_add_relu_kernel(%arg0: i32, %arg1: memref<32x64xf32, #tpu.memory_space<vmem>>, %arg2: memref<1x64xf32, #tpu.memory_space<vmem>>, %arg3: memref<1x64xf32, #tpu.memory_space<vmem>>, %arg4: memref<32x64xf32, #tpu.memory_space<vmem>>, %arg5: memref<32x64xf32, #tpu.memory_space<vmem>>) attributes {dimension_semantics = [#tpu.dimension_semantics<parallel>], iteration_bounds = array<i64: 1>, scalar_prefetch = 0 : i64, scratch_operands = 0 : i64, tpu.core_type = #tpu.core_type<tc>, window_params = [{transform_indices = @transform_0, window_bounds = array<i64: 32, 64>}, {pipeline_mode = #tpu.pipeline_mode<synchronous>, transform_indices = @transform_1, window_bounds = array<i64: 1, 64>}, {pipeline_mode = #tpu.pipeline_mode<synchronous>, transform_indices = @transform_2, window_bounds = array<i64: 1, 64>}, {transform_indices = @transform_3, window_bounds = array<i64: 32, 64>}, {transform_indices = @transform_4, window_bounds = array<i64: 32, 64>}]} {
    %c0 = arith.constant 0 : index
    %c0_0 = arith.constant 0 : index
    %0 = vector.load %arg1[%c0, %c0_0] : memref<32x64xf32, #tpu.memory_space<vmem>>, vector<32x64xf32>
    %c0_1 = arith.constant 0 : index
    %c0_2 = arith.constant 0 : index
    %1 = vector.load %arg2[%c0_1, %c0_2] : memref<1x64xf32, #tpu.memory_space<vmem>>, vector<1x64xf32>
    %2 = vector.broadcast %1 : vector<1x64xf32> to vector<32x64xf32>
    %3 = arith.mulf %0, %2 : vector<32x64xf32>
    %c0_3 = arith.constant 0 : index
    %c0_4 = arith.constant 0 : index
    %4 = vector.load %arg3[%c0_3, %c0_4] : memref<1x64xf32, #tpu.memory_space<vmem>>, vector<1x64xf32>
    %5 = vector.broadcast %4 : vector<1x64xf32> to vector<32x64xf32>
    %6 = arith.addf %3, %5 : vector<32x64xf32>
    %c0_5 = arith.constant 0 : index
    %c0_6 = arith.constant 0 : index
    %7 = vector.load %arg4[%c0_5, %c0_6] : memref<32x64xf32, #tpu.memory_space<vmem>>, vector<32x64xf32>
    %8 = arith.addf %6, %7 : vector<32x64xf32>
    %cst = arith.constant 0.000000e+00 : f32
    %9 = vector.broadcast %cst : f32 to vector<32x64xf32>
    %10 = arith.maximumf %8, %9 : vector<32x64xf32>
    %c0_7 = arith.constant 0 : index
    %c0_8 = arith.constant 0 : index
    %11 = vector.load %arg5[%c0_7, %c0_8] : memref<32x64xf32, #tpu.memory_space<vmem>>, vector<32x64xf32>
    tpu.vector_store %arg5[%c0_7, %c0_8], %10 {strides = array<i32>} : memref<32x64xf32, #tpu.memory_space<vmem>>, vector<32x64xf32>,
    return
  }
  func.func @transform_0(%arg0: i32) -> (i32, i32) {
    %c0_i32 = arith.constant 0 : i32
    %c0_i32_0 = arith.constant 0 : i32
    return %arg0, %c0_i32 : i32, i32
  }
  func.func @transform_1(%arg0: i32) -> (i32, i32) {
    %c0_i32 = arith.constant 0 : i32
    %c0_i32_0 = arith.constant 0 : i32
    %c0_i32_1 = arith.constant 0 : i32
    return %c0_i32, %c0_i32_0 : i32, i32
  }
  func.func @transform_2(%arg0: i32) -> (i32, i32) {
    %c0_i32 = arith.constant 0 : i32
    %c0_i32_0 = arith.constant 0 : i32
    %c0_i32_1 = arith.constant 0 : i32
    return %c0_i32, %c0_i32_0 : i32, i32
  }
  func.func @transform_3(%arg0: i32) -> (i32, i32) {
    %c0_i32 = arith.constant 0 : i32
    %c0_i32_0 = arith.constant 0 : i32
    return %arg0, %c0_i32 : i32, i32
  }
  func.func @transform_4(%arg0: i32) -> (i32, i32) {
    %c0_i32 = arith.constant 0 : i32
    %c0_i32_0 = arith.constant 0 : i32
    return %arg0, %c0_i32 : i32, i32
  }
}

</mosaic_0001>

<llo_original>
// kernel: tile.13
$region0: #{tile.13}
  #allocation0 [shape = 's32[1]{0}', space=sflag, size = 0x4, scoped, tag = 'scoped memory for tile.13']
  %s0 = inlined_call_operand.vmem [shape: f32[4], index: 0, kind: input, shape index: {}]
  %s1 = inlined_call_operand.vmem [shape: f32[16,4], index: 1, kind: output, shape index: {}]
  // Predicated region
  $region2: #{tile.13} parent=0 // pred_check
    _
  $region3: #{tile.13} parent=0 // pred_check_branch
    %3 = sbr.rel (0) target = $region5
  $region4: #{tile.13} parent=0 // pred_region
    _
  $region5: #{tile.13} parent=0 // pred_fallthru
    _
  %v4 = vld [vmem:[%s0] ss:$0 sm:$0xff]
  %5 = vst [vmem:[%s1] sm:$0xff] %v4
  %s6 = scalar_lea.vmem %s1, 8
  %7 = vst [vmem:[%s6] sm:$0xff] %v4

// kernel: tile.14
$region0: #{tile.14}
  %s0 = inlined_call_operand.vmem [shape: f32[16,4], index: 0, kind: input, shape index: {}]
  %s1 = inlined_call_operand.vmem [shape: f32[1,64], index: 1, kind: output, shape index: {}]
  $region1: #{tile.14} parent=0
    #allocation0 [shape = 'u8[4096]{0}', space=vmem, size = 0x1000, scoped, tag = 'scoped mem for output reshape']
    %v2 = vld [vmem:[%s0] sm:$0x1]
    %vm3 = vcmask 31744
    %4 = vst.msk [vmem:[#allocation0] sm:$0x1] %vm3, %v2
    %s5 = scalar_lea.vmem %s0, 15
    %v6 = vld [vmem:[%s5] sm:$0x1]
    %7 = vrot.lane.b32.xlu0 %v6, 60
    %v8 = vpop.permute.xlu0 %7
    %vm9 = vcmask 523744
    %10 = vst.msk [vmem:[#allocation0] sm:$0x1] %vm9, %v8
    %s11 = scalar_lea.vmem %s0, 14
    %v12 = vld [vmem:[%s11] sm:$0x1]
    %13 = vrot.lane.b32.xlu0 %v12, 56
    %v14 = vpop.permute.xlu0 %13
    %vm15 = vcmask 490944
    %16 = vst.msk [vmem:[#allocation0] sm:$0x1] %vm15, %v14
    %s17 = scalar_lea.vmem %s0, 13
    %v18 = vld [vmem:[%s17] sm:$0x1]
    %19 = vrot.lane.b32.xlu0 %v18, 52
    %v20 = vpop.permute.xlu0 %19
    %vm21 = vcmask 458144
    %22 = vst.msk [vmem:[#allocation0] sm:$0x1] %vm21, %v20
    %s23 = scalar_lea.vmem %s0, 12
    %v24 = vld [vmem:[%s23] sm:$0x1]
    %25 = vrot.lane.b32.xlu0 %v24, 48
    %v26 = vpop.permute.xlu0 %25
    %vm27 = vcmask 425344
    %28 = vst.msk [vmem:[#allocation0] sm:$0x1] %vm27, %v26
    %s29 = scalar_lea.vmem %s0, 11
    %v30 = vld [vmem:[%s29] sm:$0x1]
    %31 = vrot.lane.b32.xlu0 %v30, 44
    %v32 = vpop.permute.xlu0 %31
    %vm33 = vcmask 392544
    %34 = vst.msk [vmem:[#allocation0] sm:$0x1] %vm33, %v32
    %s35 = scalar_lea.vmem %s0, 10
    %v36 = vld [vmem:[%s35] sm:$0x1]
    %37 = vrot.lane.b32.xlu0 %v36, 40
    %v38 = vpop.permute.xlu0 %37
    %vm39 = vcmask 359744
    %40 = vst.msk [vmem:[#allocation0] sm:$0x1] %vm39, %v38
    %s41 = scalar_lea.vmem %s0, 9
    %v42 = vld [vmem:[%s41] sm:$0x1]
    %43 = vrot.lane.b32.xlu0 %v42, 36
    %v44 = vpop.permute.xlu0 %43
    %vm45 = vcmask 326944
    %46 = vst.msk [vmem:[#allocation0] sm:$0x1] %vm45, %v44
    %s47 = scalar_lea.vmem %s0, 8
    %v48 = vld [vmem:[%s47] sm:$0x1]
    %49 = vrot.lane.b32.xlu0 %v48, 32
    %v50 = vpop.permute.xlu0 %49
    %vm51 = vcmask 294144
    %52 = vst.msk [vmem:[#allocation0] sm:$0x1] %vm51, %v50
    %s53 = scalar_lea.vmem %s0, 7
    %v54 = vld [vmem:[%s53] sm:$0x1]
    %55 = vrot.lane.b32.xlu0 %v54, 28
    %v56 = vpop.permute.xlu0 %55
    %vm57 = vcmask 261344
    %58 = vst.msk [vmem:[#allocation0] sm:$0x1] %vm57, %v56
    %s59 = scalar_lea.vmem %s0, 6
    %v60 = vld [vmem:[%s59] sm:$0x1]
    %61 = vrot.lane.b32.xlu0 %v60, 24
    %v62 = vpop.permute.xlu0 %61
    %vm63 = vcmask 228544
    %64 = vst.msk [vmem:[#allocation0] sm:$0x1] %vm63, %v62
    %s65 = scalar_lea.vmem %s0, 5
    %v66 = vld [vmem:[%s65] sm:$0x1]
    %67 = vrot.lane.b32.xlu0 %v66, 20
    %v68 = vpop.permute.xlu0 %67
    %vm69 = vcmask 195744
    %70 = vst.msk [vmem:[#allocation0] sm:$0x1] %vm69, %v68
    %s71 = scalar_lea.vmem %s0, 4
    %v72 = vld [vmem:[%s71] sm:$0x1]
    %73 = vrot.lane.b32.xlu0 %v72, 16
    %v74 = vpop.permute.xlu0 %73
    %vm75 = vcmask 162944
    %76 = vst.msk [vmem:[#allocation0] sm:$0x1] %vm75, %v74
    %s77 = scalar_lea.vmem %s0, 3
    %v78 = vld [vmem:[%s77] sm:$0x1]
    %79 = vrot.lane.b32.xlu0 %v78, 12
    %v80 = vpop.permute.xlu0 %79
    %vm81 = vcmask 130144
    %82 = vst.msk [vmem:[#allocation0] sm:$0x1] %vm81, %v80
    %s83 = scalar_lea.vmem %s0, 2
    %v84 = vld [vmem:[%s83] sm:$0x1]
    %85 = vrot.lane.b32.xlu0 %v84, 8
    %v86 = vpop.permute.xlu0 %85
    %vm87 = vcmask 97344
    %88 = vst.msk [vmem:[#allocation0] sm:$0x1] %vm87, %v86
    %s89 = scalar_lea.vmem %s0, 1
    %v90 = vld [vmem:[%s89] sm:$0x1]
    %91 = vrot.lane.b32.xlu0 %v90, 4
    %v92 = vpop.permute.xlu0 %91
    %vm93 = vcmask 64544
    %94 = vst.msk [vmem:[#allocation0] sm:$0x1] %vm93, %v92
    %s96 = sshll.u32 1, 1
    %s97 = ssub.s32 %s96, 1
    %v99 = vld [vmem:[#allocation0] sm:%s97]
    %s100 = sshll.u32 1, 1
    %s101 = ssub.s32 %s100, 1
    %102 = vst [vmem:[%s1] sm:%s101] %v99

// kernel: basic_block_forward.5
$region0: #{basic_block_forward.5}
  #allocation0 [shape = 'u32[]', space=smem, size = 0x4, offset = 0x4, fixed_abs, tag = 'smem constant byte address 0x4 - core index']
  #allocation1 [shape = 'u32[144,128]{1,0:T(1,128)}', space=vmem, size = 0x12000, scoped, tag = 'internal scratch']
  %s0 = inlined_call_operand.vmem [shape: f32[32,64], index: 0, kind: input, shape index: {}]
  %s1 = inlined_call_operand.vmem [shape: f32[1,64], index: 1, kind: input, shape index: {}]
  %s2 = inlined_call_operand.vmem [shape: f32[1,64], index: 2, kind: input, shape index: {}]
  %s3 = inlined_call_operand.vmem [shape: f32[32,64], index: 3, kind: input, shape index: {}]
  %s4 = inlined_call_operand.vmem [shape: f32[32,64], index: 4, kind: output, shape index: {}]
  %s5 = sld [smem:[#allocation0]]
  $region26: #{basic_block_forward.5} parent=0
    _
  %s7 = ssub.s32 1, %s5
  %s8 = scalar_select 0, %s7, %s5
  // Predicated region
  $region2: #{basic_block_forward.5} parent=0 // pred_check
    _
  $region3: #{basic_block_forward.5} parent=0 // pred_check_branch
    %10 = sbr.rel (0) target = $region5
  $region4: #{basic_block_forward.5} parent=0 // pred_region
    _
  $region5: #{basic_block_forward.5} parent=0 // pred_fallthru
    _
  // Predicated region
  $region6: #{basic_block_forward.5} parent=0 // pred_check
    _
  $region7: #{basic_block_forward.5} parent=0 // pred_check_branch
    %12 = sbr.rel (0) target = $region9
  $region8: #{basic_block_forward.5} parent=0 // pred_region
    _
  $region9: #{basic_block_forward.5} parent=0 // pred_fallthru
    _
  // Predicated region
  $region10: #{basic_block_forward.5} parent=0 // pred_check
    _
  $region11: #{basic_block_forward.5} parent=0 // pred_check_branch
    %14 = sbr.rel (0) target = $region13
  $region12: #{basic_block_forward.5} parent=0 // pred_region
    _
  $region13: #{basic_block_forward.5} parent=0 // pred_fallthru
    _
  // Predicated region
  $region14: #{basic_block_forward.5} parent=0 // pred_check
    _
  $region15: #{basic_block_forward.5} parent=0 // pred_check_branch
    %16 = sbr.rel (0) target = $region17
  $region16: #{basic_block_forward.5} parent=0 // pred_region
    _
  $region17: #{basic_block_forward.5} parent=0 // pred_fallthru
    _
  %v17 = vld [vmem:[%s0] sm:$0xff]
  %v18 = vld [vmem:[%s0 + $0x8] sm:$0xff]
  %v19 = vld [vmem:[%s0 + $0x10] sm:$0xff]
  %v20 = vld [vmem:[%s0 + $0x18] sm:$0xff]
  %v21 = vld [vmem:[%s1] sm:$0x1]
  %v23 = vlaneseq
  %v24 = vshrl.u32 %v23, 7
  %v25 = vsub.s32 0, %v24
  %v26 = vrot.slane %v21, %v25
  %v28 = vmul.f32 %v17, %v26
  %v29 = vmul.f32 %v18, %v26
  %v30 = vmul.f32 %v19, %v26
  %v31 = vmul.f32 %v20, %v26
  %v32 = vld [vmem:[%s2] sm:$0x1]
  %v34 = vlaneseq
  %v35 = vshrl.u32 %v34, 7
  %v36 = vsub.s32 0, %v35
  %v37 = vrot.slane %v32, %v36
  %v39 = vadd.f32 %v28, %v37
  %v40 = vadd.f32 %v29, %v37
  %v41 = vadd.f32 %v30, %v37
  %v42 = vadd.f32 %v31, %v37
  %v43 = vld [vmem:[%s3] sm:$0xff]
  %v44 = vld [vmem:[%s3 + $0x8] sm:$0xff]
  %v45 = vld [vmem:[%s3 + $0x10] sm:$0xff]
  %v46 = vld [vmem:[%s3 + $0x18] sm:$0xff]
  %v47 = vadd.f32 %v39, %v43
  %v48 = vadd.f32 %v40, %v44
  %v49 = vadd.f32 %v41, %v45
  %v50 = vadd.f32 %v42, %v46
  %v51 = vmax.f32 %v47, 0.0
  %v52 = vmax.f32 %v48, 0.0
  %v53 = vmax.f32 %v49, 0.0
  %v54 = vmax.f32 %v50, 0.0
  %vm55 = vcmask 523264
  %56 = vst.msk [vmem:[%s4] sm:$0xff] %vm55, %v51
  %57 = vst.msk [vmem:[%s4 + $0x8] sm:$0xff] %vm55, %v52
  %58 = vst.msk [vmem:[%s4 + $0x10] sm:$0xff] %vm55, %v53
  %59 = vst.msk [vmem:[%s4 + $0x18] sm:$0xff] %vm55, %v54
  // Predicated region
  $region18: #{basic_block_forward.5} parent=0 // pred_check
    _
  $region19: #{basic_block_forward.5} parent=0 // pred_check_branch
    %61 = sbr.rel (0) target = $region21
  $region20: #{basic_block_forward.5} parent=0 // pred_region
    _
  $region21: #{basic_block_forward.5} parent=0 // pred_fallthru
    _
  // Predicated region
  $region22: #{basic_block_forward.5} parent=0 // pred_check
    _
  $region23: #{basic_block_forward.5} parent=0 // pred_check_branch
    %63 = sbr.rel (0) target = $region25
  $region24: #{basic_block_forward.5} parent=0 // pred_region
    _
  $region25: #{basic_block_forward.5} parent=0 // pred_fallthru
    _

// kernel: basic_block_forward.3
$region0: #{basic_block_forward.3}
  #allocation0 [shape = 'u32[]', space=smem, size = 0x4, offset = 0x4, fixed_abs, tag = 'smem constant byte address 0x4 - core index']
  #allocation1 [shape = 'u32[144,128]{1,0:T(1,128)}', space=vmem, size = 0x12000, scoped, tag = 'internal scratch']
  #allocation2 [shape = 'f32[18,18,4]{2,1,0:T(8,128)}', space=vmem, size = 0x36000, scoped, tag = 'scratch operand']
  %s0 = inlined_call_operand.vmem [shape: f32[32,16,4], index: 0, kind: input, shape index: {}]
  %s1 = inlined_call_operand.vmem [shape: f32[9,4,4], index: 1, kind: input, shape index: {}]
  %s2 = inlined_call_operand.vmem [shape: f32[512,4], index: 2, kind: output, shape index: {0}]
  %s3 = inlined_call_operand.vmem [shape: f32[2,2,4], index: 3, kind: output, shape index: {1}]
  %4 = xla_tuple %s2, %s3
  %s5 = sld [smem:[#allocation0]]
  $region53: #{basic_block_forward.3} parent=0
    _
  %s7 = ssub.s32 1, %s5
  %s8 = scalar_select 0, %s7, %s5
  loop: start=0, step=1, limit=4
  $region2: #{basic_block_forward.3} parent=0 // loop_pre_header
    _
  $region3: #{basic_block_forward.3} parent=0 // loop_header
    %s10 = sphi 0, %s14
    %p11 = scmp.ge.s32.totalorder %s10, 4
    %s17 = sphi 0, %s29
    %s18 = sphi 0, %s25
    %s19 = sphi 0, %s17
    %s20 = sphi 0, %s18
    %s21 = sphi 0, %s19
    %s22 = sphi 0, %s20
    %s32 = sphi 0, %s34
    %s35 = sphi 0, %s32
    %s36 = sphi 0, %s35
    %s52 = sphi 0, %s36
    %s56 = sphi 0, %s56
    %s58 = sphi 0, %s56
    %s59 = sphi 0, %s58
    %s73 = sphi 0, %s59
    %s81 = sphi 0, %s83
    %s84 = sphi 0, %s81
    %s85 = sphi 0, %s84
    %s101 = sphi 0, %s85
    %s109 = sphi 0, %s111
    %s112 = sphi 0, %s109
    %s113 = sphi 0, %s112
    %s129 = sphi 0, %s113
  $region4: #{basic_block_forward.3} parent=0 // loop_header_branch
    %13 = sbr.rel (%p11) target = $region8
  $region5: #{basic_block_forward.3} parent=0 // loop_body
    %s15 = ssub.s32 %s10, 1
    %s16 = ssub.s32 %s10, 2
    %s23 = sadd.s32 1, %s18
    %p24 = scmp.ge.s32.totalorder %s23, 1
    %s25 = scalar_select %p24, 0, %s23
    %s26 = sadd.s32 1, %s17
    %s27 = scalar_select %p24, %s26, %s17
    %p28 = scmp.ge.s32.totalorder %s27, 2
    %s29 = scalar_select %p28, 0, %s27
    %s30 = ssub.s32 %s17, %s29
    %p31 = scmp.eq.s32.totalorder %s30, 0
    %s33 = sadd.s32 %s32, 1
    %s34 = scalar_select %p31, %s32, %s33
    %p37 = pneg %p31
    %p38 = scmp.eq.s32.totalorder %s10, 1
    %p39 = por %p37, %p38
    %p40 = scmp.ne.s32.totalorder %s32, %s35
    %p41 = scmp.eq.s32.totalorder %s10, 0
    %p42 = por %p40, %p41
    %p43 = scmp.ne.s32.totalorder %s32, %s35
    %p44 = scmp.eq.s32.totalorder %s15, 1
    %p45 = por %p43, %p44
    %p46 = scmp.ne.s32.totalorder %s35, %s36
    %p47 = scmp.eq.s32.totalorder %s15, 0
    %p48 = por %p46, %p47
    %p49 = scmp.ne.s32.totalorder %s35, %s36
    %p50 = scmp.eq.s32.totalorder %s16, 1
    %p51 = por %p49, %p50
    %p53 = scmp.ne.s32.totalorder %s36, %s52
    %p54 = scmp.eq.s32.totalorder %s16, 0
    %p55 = por %p53, %p54
    %s57 = sadd.s32 %s56, 1
    %p60 = scmp.eq.s32.totalorder %s10, 1
    %p61 = scmp.ne.s32.totalorder %s56, %s58
    %p62 = scmp.eq.s32.totalorder %s10, 0
    %p63 = por %p61, %p62
    %p64 = scmp.ne.s32.totalorder %s56, %s58
    %p65 = scmp.eq.s32.totalorder %s15, 1
    %p66 = por %p64, %p65
    %p67 = scmp.ne.s32.totalorder %s58, %s59
    %p68 = scmp.eq.s32.totalorder %s15, 0
    %p69 = por %p67, %p68
    %p70 = scmp.ne.s32.totalorder %s58, %s59
    %p71 = scmp.eq.s32.totalorder %s16, 1
    %p72 = por %p70, %p71
    %p74 = scmp.ne.s32.totalorder %s59, %s73
    %p75 = scmp.eq.s32.totalorder %s16, 0
    %p76 = por %p74, %p75
    %s77 = sadd.s32 %s17, %s18
    %s78 = sadd.s32 %s29, %s25
    %s79 = ssub.s32 %s77, %s78
    %p80 = scmp.eq.s32.totalorder %s79, 0
    %s82 = sadd.s32 %s81, 1
    %s83 = scalar_select %p80, %s81, %s82
    %p86 = pneg %p80
    %p87 = scmp.eq.s32.totalorder %s10, 1
    %p88 = por %p86, %p87
    %p89 = scmp.ne.s32.totalorder %s81, %s84
    %p90 = scmp.eq.s32.totalorder %s10, 0
    %p91 = por %p89, %p90
    %p92 = scmp.ne.s32.totalorder %s81, %s84
    %p93 = scmp.eq.s32.totalorder %s15, 1
    %p94 = por %p92, %p93
    %p95 = scmp.ne.s32.totalorder %s84, %s85
    %p96 = scmp.eq.s32.totalorder %s15, 0
    %p97 = por %p95, %p96
    %p98 = scmp.ne.s32.totalorder %s84, %s85
    %p99 = scmp.eq.s32.totalorder %s16, 1
    %p100 = por %p98, %p99
    %p102 = scmp.ne.s32.totalorder %s85, %s101
    %p103 = scmp.eq.s32.totalorder %s16, 0
    %p104 = por %p102, %p103
    %s105 = sadd.s32 %s17, %s18
    %s106 = sadd.s32 %s29, %s25
    %s107 = ssub.s32 %s105, %s106
    %p108 = scmp.eq.s32.totalorder %s107, 0
    %s110 = sadd.s32 %s109, 1
    %s111 = scalar_select %p108, %s109, %s110
    %p114 = pneg %p108
    %p115 = scmp.eq.s32.totalorder %s10, 1
    %p116 = por %p114, %p115
    %p117 = scmp.ne.s32.totalorder %s109, %s112
    %p118 = scmp.eq.s32.totalorder %s10, 0
    %p119 = por %p117, %p118
    %p120 = scmp.ne.s32.totalorder %s109, %s112
    %p121 = scmp.eq.s32.totalorder %s15, 1
    %p122 = por %p120, %p121
    %p123 = scmp.ne.s32.totalorder %s112, %s113
    %p124 = scmp.eq.s32.totalorder %s15, 0
    %p125 = por %p123, %p124
    %p126 = scmp.ne.s32.totalorder %s112, %s113
    %p127 = scmp.eq.s32.totalorder %s16, 1
    %p128 = por %p126, %p127
    %p130 = scmp.ne.s32.totalorder %s113, %s129
    %p131 = scmp.eq.s32.totalorder %s16, 0
    %p132 = por %p130, %p131
    %p133 = scmp.le.s32.totalorder 1, %s10
    %p134 = scmp.lt.s32.totalorder %s10, 3
    %p135 = pnand %p133, %p134
    %p136 = pneg %p135
    // Predicated region
    $region9: #{basic_block_forward.3} parent=5 // pred_check
      _
    $region10: #{basic_block_forward.3} parent=5 // pred_check_branch
      %138 = sbr.rel (%p135) target = $region12
    $region11: #{basic_block_forward.3} parent=5 // pred_region
      %s139 = ssub.s32 %s10, 1
      // Predicated region
      $region13: #{basic_block_forward.3} parent=11 // pred_check
        %p140 = pneg %p69
      $region14: #{basic_block_forward.3} parent=11 // pred_check_branch
        %142 = sbr.rel (%p140) target = $region16
      $region15: #{basic_block_forward.3} parent=11 // pred_region
        _
      $region16: #{basic_block_forward.3} parent=11 // pred_fallthru
        _
    $region12: #{basic_block_forward.3} parent=5 // pred_fallthru
      _
    %p143 = scmp.lt.s32.totalorder %s10, 2
    // Predicated region
    $region17: #{basic_block_forward.3} parent=5 // pred_check
      %p144 = pneg %p143
    $region18: #{basic_block_forward.3} parent=5 // pred_check_branch
      %146 = sbr.rel (%p144) target = $region20
    $region19: #{basic_block_forward.3} parent=5 // pred_region
      // Predicated region
      $region21: #{basic_block_forward.3} parent=19 // pred_check
        %p147 = pneg %p42
      $region22: #{basic_block_forward.3} parent=19 // pred_check_branch
        %149 = sbr.rel (%p147) target = $region24
      $region23: #{basic_block_forward.3} parent=19 // pred_region
        %s150 = smul.u32 16, %s17
        %p151 = scmp.lt.s32.totalorder %s150, 31
        %s152 = scalar_select %p151, %s150, 31
        %s153 = smul.addr %s152, 2
        %s154 = smul.addr %s153, 8
        %s155 = scalar_lea.vmem %s0, %s154
        %s156 = smul.u32 16, %s17
      $region24: #{basic_block_forward.3} parent=19 // pred_fallthru
        _
    $region20: #{basic_block_forward.3} parent=5 // pred_fallthru
      _
    %p157 = scmp.le.s32.totalorder 1, %s10
    %p158 = scmp.lt.s32.totalorder %s10, 3
    %p159 = pnand %p157, %p158
    %p160 = pneg %p159
    // Predicated region
    $region25: #{basic_block_forward.3} parent=5 // pred_check
      _
    $region26: #{basic_block_forward.3} parent=5 // pred_check_branch
      %162 = sbr.rel (%p159) target = $region28
    $region27: #{basic_block_forward.3} parent=5 // pred_region
      %s163 = ssub.s32 %s10, 1
      %s164 = smul.u32 16, %s19
      %p165 = scmp.lt.s32.totalorder %s164, 31
      %s166 = scalar_select %p165, %s164, 31
      %s167 = smul.addr %s166, 2
      %s168 = smul.addr %s167, 8
      %s169 = scalar_lea.vmem %s0, %s168
      %p170 = pneg %p48
      %p171 = pneg %p45
      %p172 = pneg %p69
      %p173 = pneg %p66
      %p174 = pneg %p97
      %p175 = pneg %p94
      %s176 = sadd.s32 %s19, %s20
      %s177 = smul.u32 32, %s176
      %p178 = scmp.lt.s32.totalorder %s177, 63
      %s179 = scalar_select %p178, %s177, 63
      %s180 = smul.addr %s179, 8
      %s181 = scalar_lea.vmem %s2, %s180
      %p182 = pneg %p125
      %p183 = pneg %p122
      %s184 = sadd.s32 %s19, %s20
      %p185 = scmp.lt.s32.totalorder %s184, 1
      %s186 = scalar_select %p185, %s184, 1
      %s187 = smul.addr %s186, 2
      %s188 = scalar_lea.vmem %s3, %s187
      %s189 = smul.u32 16, %s19
      %p190 = scmp.lt.s32.totalorder %s189, 31
      %s191 = scalar_select %p190, %s189, 31
      %s192 = smul.addr %s191, 2
      %s193 = smul.addr %s192, 8
      %s194 = scalar_lea.vmem %s0, %s193
      %s195 = smul.u32 16, %s19
      %s196 = sadd.s32 %s19, %s20
      %s197 = smul.u32 32, %s196
      %p198 = scmp.lt.s32.totalorder %s197, 63
      %s199 = scalar_select %p198, %s197, 63
      %s200 = smul.addr %s199, 8
      %s201 = scalar_lea.vmem %s2, %s200
      %s202 = sadd.s32 %s19, %s20
      %s203 = smul.u32 32, %s202
      %s204 = sadd.s32 %s19, %s20
      %p205 = scmp.lt.s32.totalorder %s204, 1
      %s206 = scalar_select %p205, %s204, 1
      %s207 = smul.addr %s206, 2
      %s208 = scalar_lea.vmem %s3, %s207
      %s209 = sadd.s32 %s19, %s20
      %p210 = scmp.eq.s32.totalorder %s20, 0
      // Predicated region
      $region29: #{basic_block_forward.3} parent=27 // pred_check
        %p211 = pneg %p210
      $region30: #{basic_block_forward.3} parent=27 // pred_check_branch
        %213 = sbr.rel (%p211) target = $region32
      $region31: #{basic_block_forward.3} parent=27 // pred_region
        %vm214 = vcmask 31744
        %215 = vst.msk [vmem:[#allocation2] sm:$0xff] %vm214, 0.0
        %216 = vst.msk [vmem:[#allocation2 + $0x8] sm:$0xff] %vm214, 0.0
        %vm217 = vcmask 25600
        %218 = vst.msk [vmem:[#allocation2 + $0x10] sm:$0x3] %vm217, 0.0
        %219 = vst.msk [vmem:[#allocation2 + $0x18] sm:$0xff] %vm214, 0.0
        %220 = vst.msk [vmem:[#allocation2 + $0x20] sm:$0xff] %vm214, 0.0
        %221 = vst.msk [vmem:[#allocation2 + $0x28] sm:$0x3] %vm217, 0.0
        %222 = vst.msk [vmem:[#allocation2 + $0x30] sm:$0xff] %vm214, 0.0
        %223 = vst.msk [vmem:[#allocation2 + $0x38] sm:$0xff] %vm214, 0.0
        %224 = vst.msk [vmem:[#allocation2 + $0x40] sm:$0x3] %vm217, 0.0
        %225 = vst.msk [vmem:[#allocation2 + $0x48] sm:$0xff] %vm214, 0.0
        %226 = vst.msk [vmem:[#allocation2 + $0x50] sm:$0xff] %vm214, 0.0
        %227 = vst.msk [vmem:[#allocation2 + $0x58] sm:$0x3] %vm217, 0.0
        %228 = vst.msk [vmem:[#allocation2 + $0x60] sm:$0xff] %vm214, 0.0
        %229 = vst.msk [vmem:[#allocation2 + $0x68] sm:$0xff] %vm214, 0.0
        %230 = vst.msk [vmem:[#allocation2 + $0x70] sm:$0x3] %vm217, 0.0
        %231 = vst.msk [vmem:[#allocation2 + $0x78] sm:$0xff] %vm214, 0.0
        %232 = vst.msk [vmem:[#allocation2 + $0x80] sm:$0xff] %vm214, 0.0
        %233 = vst.msk [vmem:[#allocation2 + $0x88] sm:$0x3] %vm217, 0.0
        %234 = vst.msk [vmem:[#allocation2 + $0x90] sm:$0xff] %vm214, 0.0
        %235 = vst.msk [vmem:[#allocation2 + $0x98] sm:$0xff] %vm214, 0.0
        %236 = vst.msk [vmem:[#allocation2 + $0xa0] sm:$0x3] %vm217, 0.0
        %237 = vst.msk [vmem:[#allocation2 + $0xa8] sm:$0xff] %vm214, 0.0
        %238 = vst.msk [vmem:[#allocation2 + $0xb0] sm:$0xff] %vm214, 0.0
        %239 = vst.msk [vmem:[#allocation2 + $0xb8] sm:$0x3] %vm217, 0.0
        %240 = vst.msk [vmem:[#allocation2 + $0xc0] sm:$0xff] %vm214, 0.0
        %241 = vst.msk [vmem:[#allocation2 + $0xc8] sm:$0xff] %vm214, 0.0
        %242 = vst.msk [vmem:[#allocation2 + $0xd0] sm:$0x3] %vm217, 0.0
        %243 = vst.msk [vmem:[#allocation2 + $0xd8] sm:$0xff] %vm214, 0.0
        %244 = vst.msk [vmem:[#allocation2 + $0xe0] sm:$0xff] %vm214, 0.0
        %245 = vst.msk [vmem:[#allocation2 + $0xe8] sm:$0x3] %vm217, 0.0
        %246 = vst.msk [vmem:[#allocation2 + $0xf0] sm:$0xff] %vm214, 0.0
        %247 = vst.msk [vmem:[#allocation2 + $0xf8] sm:$0xff] %vm214, 0.0
        %248 = vst.msk [vmem:[#allocation2 + $0x100] sm:$0x3] %vm217, 0.0
        %249 = vst.msk [vmem:[#allocation2 + $0x108] sm:$0xff] %vm214, 0.0
        %250 = vst.msk [vmem:[#allocation2 + $0x110] sm:$0xff] %vm214, 0.0
        %251 = vst.msk [vmem:[#allocation2 + $0x118] sm:$0x3] %vm217, 0.0
        %252 = vst.msk [vmem:[#allocation2 + $0x120] sm:$0xff] %vm214, 0.0
        %253 = vst.msk [vmem:[#allocation2 + $0x128] sm:$0xff] %vm214, 0.0
        %254 = vst.msk [vmem:[#allocation2 + $0x130] sm:$0x3] %vm217, 0.0
        %255 = vst.msk [vmem:[#allocation2 + $0x138] sm:$0xff] %vm214, 0.0
        %256 = vst.msk [vmem:[#allocation2 + $0x140] sm:$0xff] %vm214, 0.0
        %257 = vst.msk [vmem:[#allocation2 + $0x148] sm:$0x3] %vm217, 0.0
        %258 = vst.msk [vmem:[#allocation2 + $0x150] sm:$0xff] %vm214, 0.0
        %259 = vst.msk [vmem:[#allocation2 + $0x158] sm:$0xff] %vm214, 0.0
        %260 = vst.msk [vmem:[#allocation2 + $0x160] sm:$0x3] %vm217, 0.0
        %261 = vst.msk [vmem:[#allocation2 + $0x168] sm:$0xff] %vm214, 0.0
        %262 = vst.msk [vmem:[#allocation2 + $0x170] sm:$0xff] %vm214, 0.0
        %263 = vst.msk [vmem:[#allocation2 + $0x178] sm:$0x3] %vm217, 0.0
        %264 = vst.msk [vmem:[#allocation2 + $0x180] sm:$0xff] %vm214, 0.0
        %265 = vst.msk [vmem:[#allocation2 + $0x188] sm:$0xff] %vm214, 0.0
        %266 = vst.msk [vmem:[#allocation2 + $0x190] sm:$0x3] %vm217, 0.0
        %267 = vst.msk [vmem:[#allocation2 + $0x198] sm:$0xff] %vm214, 0.0
        %268 = vst.msk [vmem:[#allocation2 + $0x1a0] sm:$0xff] %vm214, 0.0
        %269 = vst.msk [vmem:[#allocation2 + $0x1a8] sm:$0x3] %vm217, 0.0
        %v270 = vld [vmem:[%s194] sm:$0xff]
        %v271 = vld [vmem:[%s194 + $0x8] sm:$0xff]
        %v272 = vld [vmem:[%s194 + $0x10] sm:$0xff]
        %v273 = vld [vmem:[%s194 + $0x18] sm:$0xff]
        %v274 = vld [vmem:[%s194 + $0x20] sm:$0xff]
        %v275 = vld [vmem:[%s194 + $0x28] sm:$0xff]
        %v276 = vld [vmem:[%s194 + $0x30] sm:$0xff]
        %v277 = vld [vmem:[%s194 + $0x38] sm:$0xff]
        %v278 = vld [vmem:[%s194 + $0x40] sm:$0xff]
        %v279 = vld [vmem:[%s194 + $0x48] sm:$0xff]
        %v280 = vld [vmem:[%s194 + $0x50] sm:$0xff]
        %v281 = vld [vmem:[%s194 + $0x58] sm:$0xff]
        %v282 = vld [vmem:[%s194 + $0x60] sm:$0xff]
        %v283 = vld [vmem:[%s194 + $0x68] sm:$0xff]
        %v284 = vld [vmem:[%s194 + $0x70] sm:$0xff]
        %v285 = vld [vmem:[%s194 + $0x78] sm:$0xff]
        %v286 = vld [vmem:[%s194 + $0x80] sm:$0xff]
        %v287 = vld [vmem:[%s194 + $0x88] sm:$0xff]
        %v288 = vld [vmem:[%s194 + $0x90] sm:$0xff]
        %v289 = vld [vmem:[%s194 + $0x98] sm:$0xff]
        %v290 = vld [vmem:[%s194 + $0xa0] sm:$0xff]
        %v291 = vld [vmem:[%s194 + $0xa8] sm:$0xff]
        %v292 = vld [vmem:[%s194 + $0xb0] sm:$0xff]
        %v293 = vld [vmem:[%s194 + $0xb8] sm:$0xff]
        %v294 = vld [vmem:[%s194 + $0xc0] sm:$0xff]
        %v295 = vld [vmem:[%s194 + $0xc8] sm:$0xff]
        %v296 = vld [vmem:[%s194 + $0xd0] sm:$0xff]
        %v297 = vld [vmem:[%s194 + $0xd8] sm:$0xff]
        %v298 = vld [vmem:[%s194 + $0xe0] sm:$0xff]
        %v299 = vld [vmem:[%s194 + $0xe8] sm:$0xff]
        %v300 = vld [vmem:[%s194 + $0xf0] sm:$0xff]
        %v301 = vld [vmem:[%s194 + $0xf8] sm:$0xff]
        %s302 = scalar_lea.vmem [#allocation2], 24
        %303 = vst.msk [vmem:[%s302 + $0x1] sm:$0xff] %vm214, %v270
        %304 = vst.msk [vmem:[%s302 + $0x9] sm:$0xff] %vm214, %v271
        %305 = vst.msk [vmem:[%s302 + $0x19] sm:$0xff] %vm214, %v272
        %306 = vst.msk [vmem:[%s302 + $0x21] sm:$0xff] %vm214, %v273
        %307 = vst.msk [vmem:[%s302 + $0x31] sm:$0xff] %vm214, %v274
        %308 = vst.msk [vmem:[%s302 + $0x39] sm:$0xff] %vm214, %v275
        %309 = vst.msk [vmem:[%s302 + $0x49] sm:$0xff] %vm214, %v276
        %310 = vst.msk [vmem:[%s302 + $0x51] sm:$0xff] %vm214, %v277
        %311 = vst.msk [vmem:[%s302 + $0x61] sm:$0xff] %vm214, %v278
        %312 = vst.msk [vmem:[%s302 + $0x69] sm:$0xff] %vm214, %v279
        %313 = vst.msk [vmem:[%s302 + $0x79] sm:$0xff] %vm214, %v280
        %314 = vst.msk [vmem:[%s302 + $0x81] sm:$0xff] %vm214, %v281
        %315 = vst.msk [vmem:[%s302 + $0x91] sm:$0xff] %vm214, %v282
        %316 = vst.msk [vmem:[%s302 + $0x99] sm:$0xff] %vm214, %v283
        %317 = vst.msk [vmem:[%s302 + $0xa9] sm:$0xff] %vm214, %v284
        %318 = vst.msk [vmem:[%s302 + $0xb1] sm:$0xff] %vm214, %v285
        %319 = vst.msk [vmem:[%s302 + $0xc1] sm:$0xff] %vm214, %v286
        %320 = vst.msk [vmem:[%s302 + $0xc9] sm:$0xff] %vm214, %v287
        %321 = vst.msk [vmem:[%s302 + $0xd9] sm:$0xff] %vm214, %v288
        %322 = vst.msk [vmem:[%s302 + $0xe1] sm:$0xff] %vm214, %v289
        %323 = vst.msk [vmem:[%s302 + $0xf1] sm:$0xff] %vm214, %v290
        %324 = vst.msk [vmem:[%s302 + $0xf9] sm:$0xff] %vm214, %v291
        %325 = vst.msk [vmem:[%s302 + $0x109] sm:$0xff] %vm214, %v292
        %326 = vst.msk [vmem:[%s302 + $0x111] sm:$0xff] %vm214, %v293
        %327 = vst.msk [vmem:[%s302 + $0x121] sm:$0xff] %vm214, %v294
        %328 = vst.msk [vmem:[%s302 + $0x129] sm:$0xff] %vm214, %v295
        %329 = vst.msk [vmem:[%s302 + $0x139] sm:$0xff] %vm214, %v296
        %330 = vst.msk [vmem:[%s302 + $0x141] sm:$0xff] %vm214, %v297
        %331 = vst.msk [vmem:[%s302 + $0x151] sm:$0xff] %vm214, %v298
        %332 = vst.msk [vmem:[%s302 + $0x159] sm:$0xff] %vm214, %v299
        %333 = vst.msk [vmem:[%s302 + $0x169] sm:$0xff] %vm214, %v300
        %334 = vst.msk [vmem:[%s302 + $0x171] sm:$0xff] %vm214, %v301
      $region32: #{basic_block_forward.3} parent=27 // pred_fallthru
        _
      %s335 = smul.u32 %s20, 16
      %s336 = smul.u32 %s335, 24
      %s337 = scalar_lea.vmem [#allocation2], %s336
      %v338 = vld [vmem:[%s337] sm:$0xff]
      %v339 = vld [vmem:[%s337 + $0x8] sm:$0xff]
      %v340 = vld [vmem:[%s337 + $0x18] sm:$0xff]
      %v341 = vld [vmem:[%s337 + $0x20] sm:$0xff]
      %v342 = vld [vmem:[%s337 + $0x30] sm:$0xff]
      %v343 = vld [vmem:[%s337 + $0x38] sm:$0xff]
      %v344 = vld [vmem:[%s337 + $0x48] sm:$0xff]
      %v345 = vld [vmem:[%s337 + $0x50] sm:$0xff]
      %v346 = vld [vmem:[%s337 + $0x60] sm:$0xff]
      %v347 = vld [vmem:[%s337 + $0x68] sm:$0xff]
      %v348 = vld [vmem:[%s337 + $0x78] sm:$0xff]
      %v349 = vld [vmem:[%s337 + $0x80] sm:$0xff]
      %v350 = vld [vmem:[%s337 + $0x90] sm:$0xff]
      %v351 = vld [vmem:[%s337 + $0x98] sm:$0xff]
      %v352 = vld [vmem:[%s337 + $0xa8] sm:$0xff]
      %v353 = vld [vmem:[%s337 + $0xb0] sm:$0xff]
      %v354 = vld [vmem:[%s337 + $0xc0] sm:$0xff]
      %v355 = vld [vmem:[%s337 + $0xc8] sm:$0xff]
      %v356 = vld [vmem:[%s337 + $0xd8] sm:$0xff]
      %v357 = vld [vmem:[%s337 + $0xe0] sm:$0xff]
      %v358 = vld [vmem:[%s337 + $0xf0] sm:$0xff]
      %v359 = vld [vmem:[%s337 + $0xf8] sm:$0xff]
      %v360 = vld [vmem:[%s337 + $0x108] sm:$0xff]
      %v361 = vld [vmem:[%s337 + $0x110] sm:$0xff]
      %v362 = vld [vmem:[%s337 + $0x120] sm:$0xff]
      %v363 = vld [vmem:[%s337 + $0x128] sm:$0xff]
      %v364 = vld [vmem:[%s337 + $0x138] sm:$0xff]
      %v365 = vld [vmem:[%s337 + $0x140] sm:$0xff]
      %v366 = vld [vmem:[%s337 + $0x150] sm:$0xff]
      %v367 = vld [vmem:[%s337 + $0x158] sm:$0xff]
      %v368 = vld [vmem:[%s337 + $0x168] sm:$0xff]
      %v369 = vld [vmem:[%s337 + $0x170] sm:$0xff]
      %v370 = vld [vmem:[%s1] sm:$0xf]
      %v371 = vld [vmem:[%s337 + $0x1] sm:$0xff]
      %v372 = vld [vmem:[%s337 + $0x9] sm:$0xff]
      %v373 = vld [vmem:[%s337 + $0x19] sm:$0xff]
      %v374 = vld [vmem:[%s337 + $0x21] sm:$0xff]
      %v375 = vld [vmem:[%s337 + $0x31] sm:$0xff]
      %v376 = vld [vmem:[%s337 + $0x39] sm:$0xff]
      %v377 = vld [vmem:[%s337 + $0x49] sm:$0xff]
      %v378 = vld [vmem:[%s337 + $0x51] sm:$0xff]
      %v379 = vld [vmem:[%s337 + $0x61] sm:$0xff]
      %v380 = vld [vmem:[%s337 + $0x69] sm:$0xff]
      %v381 = vld [vmem:[%s337 + $0x79] sm:$0xff]
      %v382 = vld [vmem:[%s337 + $0x81] sm:$0xff]
      %v383 = vld [vmem:[%s337 + $0x91] sm:$0xff]
      %v384 = vld [vmem:[%s337 + $0x99] sm:$0xff]
      %v385 = vld [vmem:[%s337 + $0xa9] sm:$0xff]
      %v386 = vld [vmem:[%s337 + $0xb1] sm:$0xff]
      %v387 = vld [vmem:[%s337 + $0xc1] sm:$0xff]
      %v388 = vld [vmem:[%s337 + $0xc9] sm:$0xff]
      %v389 = vld [vmem:[%s337 + $0xd9] sm:$0xff]
      %v390 = vld [vmem:[%s337 + $0xe1] sm:$0xff]
      %v391 = vld [vmem:[%s337 + $0xf1] sm:$0xff]
      %v392 = vld [vmem:[%s337 + $0xf9] sm:$0xff]
      %v393 = vld [vmem:[%s337 + $0x109] sm:$0xff]
      %v394 = vld [vmem:[%s337 + $0x111] sm:$0xff]
      %v395 = vld [vmem:[%s337 + $0x121] sm:$0xff]
      %v396 = vld [vmem:[%s337 + $0x129] sm:$0xff]
      %v397 = vld [vmem:[%s337 + $0x139] sm:$0xff]
      %v398 = vld [vmem:[%s337 + $0x141] sm:$0xff]
      %v399 = vld [vmem:[%s337 + $0x151] sm:$0xff]
      %v400 = vld [vmem:[%s337 + $0x159] sm:$0xff]
      %v401 = vld [vmem:[%s337 + $0x169] sm:$0xff]
      %v402 = vld [vmem:[%s337 + $0x171] sm:$0xff]
      %s403 = scalar_lea.vmem %s1, 4
      %v404 = vld [vmem:[%s403] sm:$0xf]
      %vm405 = vcmask 31744
      %v407 = vsel %vm405, %v371, 0
      %v410 = vsel %vm405, %v372, 0
      %v413 = vsel %vm405, %v373, 0
      %v416 = vsel %vm405, %v374, 0
      %v419 = vsel %vm405, %v375, 0
      %v422 = vsel %vm405, %v376, 0
      %v425 = vsel %vm405, %v377, 0
      %v428 = vsel %vm405, %v378, 0
      %v431 = vsel %vm405, %v379, 0
      %v434 = vsel %vm405, %v380, 0
      %v437 = vsel %vm405, %v381, 0
      %v440 = vsel %vm405, %v382, 0
      %v443 = vsel %vm405, %v383, 0
      %v446 = vsel %vm405, %v384, 0
      %v449 = vsel %vm405, %v385, 0
      %v452 = vsel %vm405, %v386, 0
      %v455 = vsel %vm405, %v387, 0
      %v458 = vsel %vm405, %v388, 0
      %v461 = vsel %vm405, %v389, 0
      %v464 = vsel %vm405, %v390, 0
      %v467 = vsel %vm405, %v391, 0
      %v470 = vsel %vm405, %v392, 0
      %v473 = vsel %vm405, %v393, 0
      %v476 = vsel %vm405, %v394, 0
      %v479 = vsel %vm405, %v395, 0
      %v482 = vsel %vm405, %v396, 0
      %v485 = vsel %vm405, %v397, 0
      %v488 = vsel %vm405, %v398, 0
      %v491 = vsel %vm405, %v399, 0
      %v494 = vsel %vm405, %v400, 0
      %v497 = vsel %vm405, %v401, 0
      %v500 = vsel %vm405, %v402, 0
      %vm502 = vcmask 1043456
      %v504 = vsel %vm502, %v404, 0
      %506 = vmatprep.subr.mxu0 0.0
      %507 = vmatpush1.msra.mxu0 0.0
      %508 = vmatprep.subr.mxu0 0.0
      %509 = vmatpush1.msra.mxu0 0.0
      %510 = vmatprep.subr.mxu0 0.0
      %511 = vmatpush1.msra.mxu0 0.0
      %512 = vmatprep.subr.mxu0 0.0
      %513 = vmatpush1.msra.mxu0 0.0
      %514 = vmatprep.subr.mxu0 0.0
      %515 = vmatpush1.msra.mxu0 0.0
      %516 = vmatprep.subr.mxu0 0.0
      %517 = vmatpush1.msra.mxu0 0.0
      %518 = vmatprep.subr.mxu0 0.0
      %519 = vmatpush1.msra.mxu0 0.0
      %520 = vmatprep.subr.mxu0 0.0
      %521 = vmatpush1.msra.mxu0 0.0
      %522 = vmatprep.subr.mxu0 0.0
      %523 = vmatpush1.msra.mxu0 0.0
      %524 = vmatprep.subr.mxu0 0.0
      %525 = vmatpush1.msra.mxu0 0.0
      %526 = vmatprep.subr.mxu0 0.0
      %527 = vmatpush1.msra.mxu0 0.0
      %528 = vmatprep.subr.mxu0 0.0
      %529 = vmatpush1.msra.mxu0 0.0
      %530 = vmatprep.subr.mxu0 0.0
      %531 = vmatpush1.msra.mxu0 0.0
      %532 = vmatprep.subr.mxu0 0.0
      %533 = vmatpush1.msra.mxu0 0.0
      %534 = vmatprep.subr.mxu0 0.0
      %535 = vmatpush1.msra.mxu0 0.0
      %536 = vmatprep.subr.mxu0 0.0
      %537 = vmatpush1.msra.mxu0 %v504
      %538 = vmatprep.subr.mxu0 0.0
      %539 = vmatpush2.msra.mxu0 0.0
      %540 = vmatprep.subr.mxu0 0.0
      %541 = vmatpush2.msra.mxu0 0.0
      %542 = vmatprep.subr.mxu0 0.0
      %543 = vmatpush2.msra.mxu0 0.0
      %544 = vmatprep.subr.mxu0 0.0
      %545 = vmatpush2.msra.mxu0 0.0
      %546 = vmatprep.subr.mxu0 0.0
      %547 = vmatpush2.msra.mxu0 0.0
      %548 = vmatprep.subr.mxu0 0.0
      %549 = vmatpush2.msra.mxu0 0.0
      %550 = vmatprep.subr.mxu0 0.0
      %551 = vmatpush2.msra.mxu0 0.0
      %552 = vmatprep.subr.mxu0 0.0
      %553 = vmatpush2.msra.mxu0 0.0
      %554 = vmatprep.subr.mxu0 0.0
      %555 = vmatpush2.msra.mxu0 0.0
      %556 = vmatprep.subr.mxu0 0.0
      %557 = vmatpush2.msra.mxu0 0.0
      %558 = vmatprep.subr.mxu0 0.0
      %559 = vmatpush2.msra.mxu0 0.0
      %560 = vmatprep.subr.mxu0 0.0
      %561 = vmatpush2.msra.mxu0 0.0
      %562 = vmatprep.subr.mxu0 0.0
      %563 = vmatpush2.msra.mxu0 0.0
      %564 = vmatprep.subr.mxu0 0.0
      %565 = vmatpush2.msra.mxu0 0.0
      %566 = vmatprep.subr.mxu0 0.0
      %567 = vmatpush2.msra.mxu0 0.0
      %568 = vmatprep.subr.mxu0 0.0
      %569 = vmatpush2.msra.mxu0 0.0
      %570 = vmatprep.mubr.f32.mxu0 0.0
      %571 = vmatmul.mubr.f32.gmra.mxu0 %v407
      %v572 = vpop.f32.mrf.mxu0
      %v573 = vadd.f32 0.0, %v572
      %v574 = vpop.f32.mrf.mxu0
      %575 = vmatprep.mubr.f32.mxu0 0.0
      %576 = vmatmul.mubr.f32.gmra.mxu0 %v410
      %v577 = vpop.f32.mrf.mxu0
      %v578 = vadd.f32 0.0, %v577
      %v579 = vpop.f32.mrf.mxu0
      %580 = vmatprep.mubr.f32.mxu0 0.0
      %581 = vmatmul.mubr.f32.gmra.mxu0 %v413
      %v582 = vpop.f32.mrf.mxu0
      %v583 = vadd.f32 0.0, %v582
      %v584 = vpop.f32.mrf.mxu0
      %585 = vmatprep.mubr.f32.mxu0 0.0
      %586 = vmatmul.mubr.f32.gmra.mxu0 %v416
      %v587 = vpop.f32.mrf.mxu0
      %v588 = vadd.f32 0.0, %v587
      %v589 = vpop.f32.mrf.mxu0
      %590 = vmatprep.mubr.f32.mxu0 0.0
      %591 = vmatmul.mubr.f32.gmra.mxu0 %v419
      %v592 = vpop.f32.mrf.mxu0
      %v593 = vadd.f32 0.0, %v592
      %v594 = vpop.f32.mrf.mxu0
      %595 = vmatprep.mubr.f32.mxu0 0.0
      %596 = vmatmul.mubr.f32.gmra.mxu0 %v422
      %v597 = vpop.f32.mrf.mxu0
      %v598 = vadd.f32 0.0, %v597
      %v599 = vpop.f32.mrf.mxu0
      %600 = vmatprep.mubr.f32.mxu0 0.0
      %601 = vmatmul.mubr.f32.gmra.mxu0 %v425
      %v602 = vpop.f32.mrf.mxu0
      %v603 = vadd.f32 0.0, %v602
      %v604 = vpop.f32.mrf.mxu0
      %605 = vmatprep.mubr.f32.mxu0 0.0
      %606 = vmatmul.mubr.f32.gmra.mxu0 %v428
      %v607 = vpop.f32.mrf.mxu0
      %v608 = vadd.f32 0.0, %v607
      %v609 = vpop.f32.mrf.mxu0
      %610 = vmatprep.mubr.f32.mxu0 0.0
      %611 = vmatmul.mubr.f32.gmra.mxu0 %v431
      %v612 = vpop.f32.mrf.mxu0
      %v613 = vadd.f32 0.0, %v612
      %v614 = vpop.f32.mrf.mxu0
      %615 = vmatprep.mubr.f32.mxu0 0.0
      %616 = vmatmul.mubr.f32.gmra.mxu0 %v434
      %v617 = vpop.f32.mrf.mxu0
      %v618 = vadd.f32 0.0, %v617
      %v619 = vpop.f32.mrf.mxu0
      %620 = vmatprep.mubr.f32.mxu0 0.0
      %621 = vmatmul.mubr.f32.gmra.mxu0 %v437
      %v622 = vpop.f32.mrf.mxu0
      %v623 = vadd.f32 0.0, %v622
      %v624 = vpop.f32.mrf.mxu0
      %625 = vmatprep.mubr.f32.mxu0 0.0
      %626 = vmatmul.mubr.f32.gmra.mxu0 %v440
      %v627 = vpop.f32.mrf.mxu0
      %v628 = vadd.f32 0.0, %v627
      %v629 = vpop.f32.mrf.mxu0
      %630 = vmatprep.mubr.f32.mxu0 0.0
      %631 = vmatmul.mubr.f32.gmra.mxu0 %v443
      %v632 = vpop.f32.mrf.mxu0
      %v633 = vadd.f32 0.0, %v632
      %v634 = vpop.f32.mrf.mxu0
      %635 = vmatprep.mubr.f32.mxu0 0.0
      %636 = vmatmul.mubr.f32.gmra.mxu0 %v446
      %v637 = vpop.f32.mrf.mxu0
      %v638 = vadd.f32 0.0, %v637
      %v639 = vpop.f32.mrf.mxu0
      %640 = vmatprep.mubr.f32.mxu0 0.0
      %641 = vmatmul.mubr.f32.gmra.mxu0 %v449
      %v642 = vpop.f32.mrf.mxu0
      %v643 = vadd.f32 0.0, %v642
      %v644 = vpop.f32.mrf.mxu0
      %645 = vmatprep.mubr.f32.mxu0 0.0
      %646 = vmatmul.mubr.f32.gmra.mxu0 %v452
      %v647 = vpop.f32.mrf.mxu0
      %v648 = vadd.f32 0.0, %v647
      %v649 = vpop.f32.mrf.mxu0
      %650 = vmatprep.mubr.f32.mxu0 0.0
      %651 = vmatmul.mubr.f32.gmra.mxu0 %v455
      %v652 = vpop.f32.mrf.mxu0
      %v653 = vadd.f32 0.0, %v652
      %v654 = vpop.f32.mrf.mxu0
      %655 = vmatprep.mubr.f32.mxu0 0.0
      %656 = vmatmul.mubr.f32.gmra.mxu0 %v458
      %v657 = vpop.f32.mrf.mxu0
      %v658 = vadd.f32 0.0, %v657
      %v659 = vpop.f32.mrf.mxu0
      %660 = vmatprep.mubr.f32.mxu0 0.0
      %661 = vmatmul.mubr.f32.gmra.mxu0 %v461
      %v662 = vpop.f32.mrf.mxu0
      %v663 = vadd.f32 0.0, %v662
      %v664 = vpop.f32.mrf.mxu0
      %665 = vmatprep.mubr.f32.mxu0 0.0
      %666 = vmatmul.mubr.f32.gmra.mxu0 %v464
      %v667 = vpop.f32.mrf.mxu0
      %v668 = vadd.f32 0.0, %v667
      %v669 = vpop.f32.mrf.mxu0
      %670 = vmatprep.mubr.f32.mxu0 0.0
      %671 = vmatmul.mubr.f32.gmra.mxu0 %v467
      %v672 = vpop.f32.mrf.mxu0
      %v673 = vadd.f32 0.0, %v672
      %v674 = vpop.f32.mrf.mxu0
      %675 = vmatprep.mubr.f32.mxu0 0.0
      %676 = vmatmul.mubr.f32.gmra.mxu0 %v470
      %v677 = vpop.f32.mrf.mxu0
      %v678 = vadd.f32 0.0, %v677
      %v679 = vpop.f32.mrf.mxu0
      %680 = vmatprep.mubr.f32.mxu0 0.0
      %681 = vmatmul.mubr.f32.gmra.mxu0 %v473
      %v682 = vpop.f32.mrf.mxu0
      %v683 = vadd.f32 0.0, %v682
      %v684 = vpop.f32.mrf.mxu0
      %685 = vmatprep.mubr.f32.mxu0 0.0
      %686 = vmatmul.mubr.f32.gmra.mxu0 %v476
      %v687 = vpop.f32.mrf.mxu0
      %v688 = vadd.f32 0.0, %v687
      %v689 = vpop.f32.mrf.mxu0
      %690 = vmatprep.mubr.f32.mxu0 0.0
      %691 = vmatmul.mubr.f32.gmra.mxu0 %v479
      %v692 = vpop.f32.mrf.mxu0
      %v693 = vadd.f32 0.0, %v692
      %v694 = vpop.f32.mrf.mxu0
      %695 = vmatprep.mubr.f32.mxu0 0.0
      %696 = vmatmul.mubr.f32.gmra.mxu0 %v482
      %v697 = vpop.f32.mrf.mxu0
      %v698 = vadd.f32 0.0, %v697
      %v699 = vpop.f32.mrf.mxu0
      %700 = vmatprep.mubr.f32.mxu0 0.0
      %701 = vmatmul.mubr.f32.gmra.mxu0 %v485
      %v702 = vpop.f32.mrf.mxu0
      %v703 = vadd.f32 0.0, %v702
      %v704 = vpop.f32.mrf.mxu0
      %705 = vmatprep.mubr.f32.mxu0 0.0
      %706 = vmatmul.mubr.f32.gmra.mxu0 %v488
      %v707 = vpop.f32.mrf.mxu0
      %v708 = vadd.f32 0.0, %v707
      %v709 = vpop.f32.mrf.mxu0
      %710 = vmatprep.mubr.f32.mxu0 0.0
      %711 = vmatmul.mubr.f32.gmra.mxu0 %v491
      %v712 = vpop.f32.mrf.mxu0
      %v713 = vadd.f32 0.0, %v712
      %v714 = vpop.f32.mrf.mxu0
      %715 = vmatprep.mubr.f32.mxu0 0.0
      %716 = vmatmul.mubr.f32.gmra.mxu0 %v494
      %v717 = vpop.f32.mrf.mxu0
      %v718 = vadd.f32 0.0, %v717
      %v719 = vpop.f32.mrf.mxu0
      %720 = vmatprep.mubr.f32.mxu0 0.0
      %721 = vmatmul.mubr.f32.gmra.mxu0 %v497
      %v722 = vpop.f32.mrf.mxu0
      %v723 = vadd.f32 0.0, %v722
      %v724 = vpop.f32.mrf.mxu0
      %725 = vmatprep.mubr.f32.mxu0 0.0
      %726 = vmatmul.mubr.f32.gmra.mxu0 %v500
      %v727 = vpop.f32.mrf.mxu0
      %v728 = vadd.f32 0.0, %v727
      %v729 = vpop.f32.mrf.mxu0
      %730 = vdwg.mxu0
      %v732 = vsel %vm405, %v338, 0
      %v735 = vsel %vm405, %v339, 0
      %v738 = vsel %vm405, %v340, 0
      %v741 = vsel %vm405, %v341, 0
      %v744 = vsel %vm405, %v342, 0
      %v747 = vsel %vm405, %v343, 0
      %v750 = vsel %vm405, %v344, 0
      %v753 = vsel %vm405, %v345, 0
      %v756 = vsel %vm405, %v346, 0
      %v759 = vsel %vm405, %v347, 0
      %v762 = vsel %vm405, %v348, 0
      %v765 = vsel %vm405, %v349, 0
      %v768 = vsel %vm405, %v350, 0
      %v771 = vsel %vm405, %v351, 0
      %v774 = vsel %vm405, %v352, 0
      %v777 = vsel %vm405, %v353, 0
      %v780 = vsel %vm405, %v354, 0
      %v783 = vsel %vm405, %v355, 0
      %v786 = vsel %vm405, %v356, 0
      %v789 = vsel %vm405, %v357, 0
      %v792 = vsel %vm405, %v358, 0
      %v795 = vsel %vm405, %v359, 0
      %v798 = vsel %vm405, %v360, 0
      %v801 = vsel %vm405, %v361, 0
      %v804 = vsel %vm405, %v362, 0
      %v807 = vsel %vm405, %v363, 0
      %v810 = vsel %vm405, %v364, 0
      %v813 = vsel %vm405, %v365, 0
      %v816 = vsel %vm405, %v366, 0
      %v819 = vsel %vm405, %v367, 0
      %v822 = vsel %vm405, %v368, 0
      %v825 = vsel %vm405, %v369, 0
      %v828 = vsel %vm502, %v370, 0
      %830 = vmatprep.subr.mxu0 0.0
      %831 = vmatpush1.msra.mxu0 0.0
      %832 = vmatprep.subr.mxu0 0.0
      %833 = vmatpush1.msra.mxu0 0.0
      %834 = vmatprep.subr.mxu0 0.0
      %835 = vmatpush1.msra.mxu0 0.0
      %836 = vmatprep.subr.mxu0 0.0
      %837 = vmatpush1.msra.mxu0 0.0
      %838 = vmatprep.subr.mxu0 0.0
      %839 = vmatpush1.msra.mxu0 0.0
      %840 = vmatprep.subr.mxu0 0.0
      %841 = vmatpush1.msra.mxu0 0.0
      %842 = vmatprep.subr.mxu0 0.0
      %843 = vmatpush1.msra.mxu0 0.0
      %844 = vmatprep.subr.mxu0 0.0
      %845 = vmatpush1.msra.mxu0 0.0
      %846 = vmatprep.subr.mxu0 0.0
      %847 = vmatpush1.msra.mxu0 0.0
      %848 = vmatprep.subr.mxu0 0.0
      %849 = vmatpush1.msra.mxu0 0.0
      %850 = vmatprep.subr.mxu0 0.0
      %851 = vmatpush1.msra.mxu0 0.0
      %852 = vmatprep.subr.mxu0 0.0
      %853 = vmatpush1.msra.mxu0 0.0
      %854 = vmatprep.subr.mxu0 0.0
      %855 = vmatpush1.msra.mxu0 0.0
      %856 = vmatprep.subr.mxu0 0.0
      %857 = vmatpush1.msra.mxu0 0.0
      %858 = vmatprep.subr.mxu0 0.0
      %859 = vmatpush1.msra.mxu0 0.0
      %860 = vmatprep.subr.mxu0 0.0
      %861 = vmatpush1.msra.mxu0 %v828
      %862 = vmatprep.subr.mxu0 0.0
      %863 = vmatpush2.msra.mxu0 0.0
      %864 = vmatprep.subr.mxu0 0.0
      %865 = vmatpush2.msra.mxu0 0.0
      %866 = vmatprep.subr.mxu0 0.0
      %867 = vmatpush2.msra.mxu0 0.0
      %868 = vmatprep.subr.mxu0 0.0
      %869 = vmatpush2.msra.mxu0 0.0
      %870 = vmatprep.subr.mxu0 0.0
      %871 = vmatpush2.msra.mxu0 0.0
      %872 = vmatprep.subr.mxu0 0.0
      %873 = vmatpush2.msra.mxu0 0.0
      %874 = vmatprep.subr.mxu0 0.0
      %875 = vmatpush2.msra.mxu0 0.0
      %876 = vmatprep.subr.mxu0 0.0
      %877 = vmatpush2.msra.mxu0 0.0
      %878 = vmatprep.subr.mxu0 0.0
      %879 = vmatpush2.msra.mxu0 0.0
      %880 = vmatprep.subr.mxu0 0.0
      %881 = vmatpush2.msra.mxu0 0.0
      %882 = vmatprep.subr.mxu0 0.0
      %883 = vmatpush2.msra.mxu0 0.0
      %884 = vmatprep.subr.mxu0 0.0
      %885 = vmatpush2.msra.mxu0 0.0
      %886 = vmatprep.subr.mxu0 0.0
      %887 = vmatpush2.msra.mxu0 0.0
      %888 = vmatprep.subr.mxu0 0.0
      %889 = vmatpush2.msra.mxu0 0.0
      %890 = vmatprep.subr.mxu0 0.0
      %891 = vmatpush2.msra.mxu0 0.0
      %892 = vmatprep.subr.mxu0 0.0
      %893 = vmatpush2.msra.mxu0 0.0
      %894 = vmatprep.mubr.f32.mxu0 0.0
      %895 = vmatmul.mubr.f32.gmra.mxu0 %v732
      %v896 = vpop.f32.mrf.mxu0
      %v897 = vadd.f32 %v573, %v896
      %v898 = vpop.f32.mrf.mxu0
      %899 = vmatprep.mubr.f32.mxu0 0.0
      %900 = vmatmul.mubr.f32.gmra.mxu0 %v735
      %v901 = vpop.f32.mrf.mxu0
      %v902 = vadd.f32 %v578, %v901
      %v903 = vpop.f32.mrf.mxu0
      %904 = vmatprep.mubr.f32.mxu0 0.0
      %905 = vmatmul.mubr.f32.gmra.mxu0 %v738
      %v906 = vpop.f32.mrf.mxu0
      %v907 = vadd.f32 %v583, %v906
      %v908 = vpop.f32.mrf.mxu0
      %909 = vmatprep.mubr.f32.mxu0 0.0
      %910 = vmatmul.mubr.f32.gmra.mxu0 %v741
      %v911 = vpop.f32.mrf.mxu0
      %v912 = vadd.f32 %v588, %v911
      %v913 = vpop.f32.mrf.mxu0
      %914 = vmatprep.mubr.f32.mxu0 0.0
      %915 = vmatmul.mubr.f32.gmra.mxu0 %v744
      %v916 = vpop.f32.mrf.mxu0
      %v917 = vadd.f32 %v593, %v916
      %v918 = vpop.f32.mrf.mxu0
      %919 = vmatprep.mubr.f32.mxu0 0.0
      %920 = vmatmul.mubr.f32.gmra.mxu0 %v747
      %v921 = vpop.f32.mrf.mxu0
      %v922 = vadd.f32 %v598, %v921
      %v923 = vpop.f32.mrf.mxu0
      %924 = vmatprep.mubr.f32.mxu0 0.0
      %925 = vmatmul.mubr.f32.gmra.mxu0 %v750
      %v926 = vpop.f32.mrf.mxu0
      %v927 = vadd.f32 %v603, %v926
      %v928 = vpop.f32.mrf.mxu0
      %929 = vmatprep.mubr.f32.mxu0 0.0
      %930 = vmatmul.mubr.f32.gmra.mxu0 %v753
      %v931 = vpop.f32.mrf.mxu0
      %v932 = vadd.f32 %v608, %v931
      %v933 = vpop.f32.mrf.mxu0
      %934 = vmatprep.mubr.f32.mxu0 0.0
      %935 = vmatmul.mubr.f32.gmra.mxu0 %v756
      %v936 = vpop.f32.mrf.mxu0
      %v937 = vadd.f32 %v613, %v936
      %v938 = vpop.f32.mrf.mxu0
      %939 = vmatprep.mubr.f32.mxu0 0.0
      %940 = vmatmul.mubr.f32.gmra.mxu0 %v759
      %v941 = vpop.f32.mrf.mxu0
      %v942 = vadd.f32 %v618, %v941
      %v943 = vpop.f32.mrf.mxu0
      %944 = vmatprep.mubr.f32.mxu0 0.0
      %945 = vmatmul.mubr.f32.gmra.mxu0 %v762
      %v946 = vpop.f32.mrf.mxu0
      %v947 = vadd.f32 %v623, %v946
      %v948 = vpop.f32.mrf.mxu0
      %949 = vmatprep.mubr.f32.mxu0 0.0
      %950 = vmatmul.mubr.f32.gmra.mxu0 %v765
      %v951 = vpop.f32.mrf.mxu0
      %v952 = vadd.f32 %v628, %v951
      %v953 = vpop.f32.mrf.mxu0
      %954 = vmatprep.mubr.f32.mxu0 0.0
      %955 = vmatmul.mubr.f32.gmra.mxu0 %v768
      %v956 = vpop.f32.mrf.mxu0
      %v957 = vadd.f32 %v633, %v956
      %v958 = vpop.f32.mrf.mxu0
      %959 = vmatprep.mubr.f32.mxu0 0.0
      %960 = vmatmul.mubr.f32.gmra.mxu0 %v771
      %v961 = vpop.f32.mrf.mxu0
      %v962 = vadd.f32 %v638, %v961
      %v963 = vpop.f32.mrf.mxu0
      %964 = vmatprep.mubr.f32.mxu0 0.0
      %965 = vmatmul.mubr.f32.gmra.mxu0 %v774
      %v966 = vpop.f32.mrf.mxu0
      %v967 = vadd.f32 %v643, %v966
      %v968 = vpop.f32.mrf.mxu0
      %969 = vmatprep.mubr.f32.mxu0 0.0
      %970 = vmatmul.mubr.f32.gmra.mxu0 %v777
      %v971 = vpop.f32.mrf.mxu0
      %v972 = vadd.f32 %v648, %v971
      %v973 = vpop.f32.mrf.mxu0
      %974 = vmatprep.mubr.f32.mxu0 0.0
      %975 = vmatmul.mubr.f32.gmra.mxu0 %v780
      %v976 = vpop.f32.mrf.mxu0
      %v977 = vadd.f32 %v653, %v976
      %v978 = vpop.f32.mrf.mxu0
      %979 = vmatprep.mubr.f32.mxu0 0.0
      %980 = vmatmul.mubr.f32.gmra.mxu0 %v783
      %v981 = vpop.f32.mrf.mxu0
      %v982 = vadd.f32 %v658, %v981
      %v983 = vpop.f32.mrf.mxu0
      %984 = vmatprep.mubr.f32.mxu0 0.0
      %985 = vmatmul.mubr.f32.gmra.mxu0 %v786
      %v986 = vpop.f32.mrf.mxu0
      %v987 = vadd.f32 %v663, %v986
      %v988 = vpop.f32.mrf.mxu0
      %989 = vmatprep.mubr.f32.mxu0 0.0
      %990 = vmatmul.mubr.f32.gmra.mxu0 %v789
      %v991 = vpop.f32.mrf.mxu0
      %v992 = vadd.f32 %v668, %v991
      %v993 = vpop.f32.mrf.mxu0
      %994 = vmatprep.mubr.f32.mxu0 0.0
      %995 = vmatmul.mubr.f32.gmra.mxu0 %v792
      %v996 = vpop.f32.mrf.mxu0
      %v997 = vadd.f32 %v673, %v996
      %v998 = vpop.f32.mrf.mxu0
      %999 = vmatprep.mubr.f32.mxu0 0.0
      %1000 = vmatmul.mubr.f32.gmra.mxu0 %v795
      %v1001 = vpop.f32.mrf.mxu0
      %v1002 = vadd.f32 %v678, %v1001
      %v1003 = vpop.f32.mrf.mxu0
      %1004 = vmatprep.mubr.f32.mxu0 0.0
      %1005 = vmatmul.mubr.f32.gmra.mxu0 %v798
      %v1006 = vpop.f32.mrf.mxu0
      %v1007 = vadd.f32 %v683, %v1006
      %v1008 = vpop.f32.mrf.mxu0
      %1009 = vmatprep.mubr.f32.mxu0 0.0
      %1010 = vmatmul.mubr.f32.gmra.mxu0 %v801
      %v1011 = vpop.f32.mrf.mxu0
      %v1012 = vadd.f32 %v688, %v1011
      %v1013 = vpop.f32.mrf.mxu0
      %1014 = vmatprep.mubr.f32.mxu0 0.0
      %1015 = vmatmul.mubr.f32.gmra.mxu0 %v804
      %v1016 = vpop.f32.mrf.mxu0
      %v1017 = vadd.f32 %v693, %v1016
      %v1018 = vpop.f32.mrf.mxu0
      %1019 = vmatprep.mubr.f32.mxu0 0.0
      %1020 = vmatmul.mubr.f32.gmra.mxu0 %v807
      %v1021 = vpop.f32.mrf.mxu0
      %v1022 = vadd.f32 %v698, %v1021
      %v1023 = vpop.f32.mrf.mxu0
      %1024 = vmatprep.mubr.f32.mxu0 0.0
      %1025 = vmatmul.mubr.f32.gmra.mxu0 %v810
      %v1026 = vpop.f32.mrf.mxu0
      %v1027 = vadd.f32 %v703, %v1026
      %v1028 = vpop.f32.mrf.mxu0
      %1029 = vmatprep.mubr.f32.mxu0 0.0
      %1030 = vmatmul.mubr.f32.gmra.mxu0 %v813
      %v1031 = vpop.f32.mrf.mxu0
      %v1032 = vadd.f32 %v708, %v1031
      %v1033 = vpop.f32.mrf.mxu0
      %1034 = vmatprep.mubr.f32.mxu0 0.0
      %1035 = vmatmul.mubr.f32.gmra.mxu0 %v816
      %v1036 = vpop.f32.mrf.mxu0
      %v1037 = vadd.f32 %v713, %v1036
      %v1038 = vpop.f32.mrf.mxu0
      %1039 = vmatprep.mubr.f32.mxu0 0.0
      %1040 = vmatmul.mubr.f32.gmra.mxu0 %v819
      %v1041 = vpop.f32.mrf.mxu0
      %v1042 = vadd.f32 %v718, %v1041
      %v1043 = vpop.f32.mrf.mxu0
      %1044 = vmatprep.mubr.f32.mxu0 0.0
      %1045 = vmatmul.mubr.f32.gmra.mxu0 %v822
      %v1046 = vpop.f32.mrf.mxu0
      %v1047 = vadd.f32 %v723, %v1046
      %v1048 = vpop.f32.mrf.mxu0
      %1049 = vmatprep.mubr.f32.mxu0 0.0
      %1050 = vmatmul.mubr.f32.gmra.mxu0 %v825
      %v1051 = vpop.f32.mrf.mxu0
      %v1052 = vadd.f32 %v728, %v1051
      %v1053 = vpop.f32.mrf.mxu0
      %1054 = vdwg.mxu0
      %v1055 = vld [vmem:[%s337 + $0x2] sm:$0xff]
      %v1056 = vld [vmem:[%s337 + $0xa] sm:$0xff]
      %v1057 = vld [vmem:[%s337 + $0x1a] sm:$0xff]
      %v1058 = vld [vmem:[%s337 + $0x22] sm:$0xff]
      %v1059 = vld [vmem:[%s337 + $0x32] sm:$0xff]
      %v1060 = vld [vmem:[%s337 + $0x3a] sm:$0xff]
      %v1061 = vld [vmem:[%s337 + $0x4a] sm:$0xff]
      %v1062 = vld [vmem:[%s337 + $0x52] sm:$0xff]
      %v1063 = vld [vmem:[%s337 + $0x62] sm:$0xff]
      %v1064 = vld [vmem:[%s337 + $0x6a] sm:$0xff]
      %v1065 = vld [vmem:[%s337 + $0x7a] sm:$0xff]
      %v1066 = vld [vmem:[%s337 + $0x82] sm:$0xff]
      %v1067 = vld [vmem:[%s337 + $0x92] sm:$0xff]
      %v1068 = vld [vmem:[%s337 + $0x9a] sm:$0xff]
      %v1069 = vld [vmem:[%s337 + $0xaa] sm:$0xff]
      %v1070 = vld [vmem:[%s337 + $0xb2] sm:$0xff]
      %v1071 = vld [vmem:[%s337 + $0xc2] sm:$0xff]
      %v1072 = vld [vmem:[%s337 + $0xca] sm:$0xff]
      %v1073 = vld [vmem:[%s337 + $0xda] sm:$0xff]
      %v1074 = vld [vmem:[%s337 + $0xe2] sm:$0xff]
      %v1075 = vld [vmem:[%s337 + $0xf2] sm:$0xff]
      %v1076 = vld [vmem:[%s337 + $0xfa] sm:$0xff]
      %v1077 = vld [vmem:[%s337 + $0x10a] sm:$0xff]
      %v1078 = vld [vmem:[%s337 + $0x112] sm:$0xff]
      %v1079 = vld [vmem:[%s337 + $0x122] sm:$0xff]
      %v1080 = vld [vmem:[%s337 + $0x12a] sm:$0xff]
      %v1081 = vld [vmem:[%s337 + $0x13a] sm:$0xff]
      %v1082 = vld [vmem:[%s337 + $0x142] sm:$0xff]
      %v1083 = vld [vmem:[%s337 + $0x152] sm:$0xff]
      %v1084 = vld [vmem:[%s337 + $0x15a] sm:$0xff]
      %v1085 = vld [vmem:[%s337 + $0x16a] sm:$0xff]
      %v1086 = vld [vmem:[%s337 + $0x172] sm:$0xff]
      %s1087 = scalar_lea.vmem %s1, 8
      %v1088 = vld [vmem:[%s1087] sm:$0xf]
      %v1090 = vsel %vm405, %v1055, 0
      %v1093 = vsel %vm405, %v1056, 0
      %v1096 = vsel %vm405, %v1057, 0
      %v1099 = vsel %vm405, %v1058, 0
      %v1102 = vsel %vm405, %v1059, 0
      %v1105 = vsel %vm405, %v1060, 0
      %v1108 = vsel %vm405, %v1061, 0
      %v1111 = vsel %vm405, %v1062, 0
      %v1114 = vsel %vm405, %v1063, 0
      %v1117 = vsel %vm405, %v1064, 0
      %v1120 = vsel %vm405, %v1065, 0
      %v1123 = vsel %vm405, %v1066, 0
      %v1126 = vsel %vm405, %v1067, 0
      %v1129 = vsel %vm405, %v1068, 0
      %v1132 = vsel %vm405, %v1069, 0
      %v1135 = vsel %vm405, %v1070, 0
      %v1138 = vsel %vm405, %v1071, 0
      %v1141 = vsel %vm405, %v1072, 0
      %v1144 = vsel %vm405, %v1073, 0
      %v1147 = vsel %vm405, %v1074, 0
      %v1150 = vsel %vm405, %v1075, 0
      %v1153 = vsel %vm405, %v1076, 0
      %v1156 = vsel %vm405, %v1077, 0
      %v1159 = vsel %vm405, %v1078, 0
      %v1162 = vsel %vm405, %v1079, 0
      %v1165 = vsel %vm405, %v1080, 0
      %v1168 = vsel %vm405, %v1081, 0
      %v1171 = vsel %vm405, %v1082, 0
      %v1174 = vsel %vm405, %v1083, 0
      %v1177 = vsel %vm405, %v1084, 0
      %v1180 = vsel %vm405, %v1085, 0
      %v1183 = vsel %vm405, %v1086, 0
      %v1186 = vsel %vm502, %v1088, 0
      %1188 = vmatprep.subr.mxu0 0.0
      %1189 = vmatpush1.msra.mxu0 0.0
      %1190 = vmatprep.subr.mxu0 0.0
      %1191 = vmatpush1.msra.mxu0 0.0
      %1192 = vmatprep.subr.mxu0 0.0
      %1193 = vmatpush1.msra.mxu0 0.0
      %1194 = vmatprep.subr.mxu0 0.0
      %1195 = vmatpush1.msra.mxu0 0.0
      %1196 = vmatprep.subr.mxu0 0.0
      %1197 = vmatpush1.msra.mxu0 0.0
      %1198 = vmatprep.subr.mxu0 0.0
      %1199 = vmatpush1.msra.mxu0 0.0
      %1200 = vmatprep.subr.mxu0 0.0
      %1201 = vmatpush1.msra.mxu0 0.0
      %1202 = vmatprep.subr.mxu0 0.0
      %1203 = vmatpush1.msra.mxu0 0.0
      %1204 = vmatprep.subr.mxu0 0.0
      %1205 = vmatpush1.msra.mxu0 0.0
      %1206 = vmatprep.subr.mxu0 0.0
      %1207 = vmatpush1.msra.mxu0 0.0
      %1208 = vmatprep.subr.mxu0 0.0
      %1209 = vmatpush1.msra.mxu0 0.0
      %1210 = vmatprep.subr.mxu0 0.0
      %1211 = vmatpush1.msra.mxu0 0.0
      %1212 = vmatprep.subr.mxu0 0.0
      %1213 = vmatpush1.msra.mxu0 0.0
      %1214 = vmatprep.subr.mxu0 0.0
      %1215 = vmatpush1.msra.mxu0 0.0
      %1216 = vmatprep.subr.mxu0 0.0
      %1217 = vmatpush1.msra.mxu0 0.0
      %1218 = vmatprep.subr.mxu0 0.0
      %1219 = vmatpush1.msra.mxu0 %v1186
      %1220 = vmatprep.subr.mxu0 0.0
      %1221 = vmatpush2.msra.mxu0 0.0
      %1222 = vmatprep.subr.mxu0 0.0
      %1223 = vmatpush2.msra.mxu0 0.0
      %1224 = vmatprep.subr.mxu0 0.0
      %1225 = vmatpush2.msra.mxu0 0.0
      %1226 = vmatprep.subr.mxu0 0.0
      %1227 = vmatpush2.msra.mxu0 0.0
      %1228 = vmatprep.subr.mxu0 0.0
      %1229 = vmatpush2.msra.mxu0 0.0
      %1230 = vmatprep.subr.mxu0 0.0
      %1231 = vmatpush2.msra.mxu0 0.0
      %1232 = vmatprep.subr.mxu0 0.0
      %1233 = vmatpush2.msra.mxu0 0.0
      %1234 = vmatprep.subr.mxu0 0.0
      %1235 = vmatpush2.msra.mxu0 0.0
      %1236 = vmatprep.subr.mxu0 0.0
      %1237 = vmatpush2.msra.mxu0 0.0
      %1238 = vmatprep.subr.mxu0 0.0
      %1239 = vmatpush2.msra.mxu0 0.0
      %1240 = vmatprep.subr.mxu0 0.0
      %1241 = vmatpush2.msra.mxu0 0.0
      %1242 = vmatprep.subr.mxu0 0.0
      %1243 = vmatpush2.msra.mxu0 0.0
      %1244 = vmatprep.subr.mxu0 0.0
      %1245 = vmatpush2.msra.mxu0 0.0
      %1246 = vmatprep.subr.mxu0 0.0
      %1247 = vmatpush2.msra.mxu0 0.0
      %1248 = vmatprep.subr.mxu0 0.0
      %1249 = vmatpush2.msra.mxu0 0.0
      %1250 = vmatprep.subr.mxu0 0.0
      %1251 = vmatpush2.msra.mxu0 0.0
      %1252 = vmatprep.mubr.f32.mxu0 0.0
      %1253 = vmatmul.mubr.f32.gmra.mxu0 %v1090
      %v1254 = vpop.f32.mrf.mxu0
      %v1255 = vadd.f32 0.0, %v1254
      %v1256 = vpop.f32.mrf.mxu0
      %1257 = vmatprep.mubr.f32.mxu0 0.0
      %1258 = vmatmul.mubr.f32.gmra.mxu0 %v1093
      %v1259 = vpop.f32.mrf.mxu0
      %v1260 = vadd.f32 0.0, %v1259
      %v1261 = vpop.f32.mrf.mxu0
      %1262 = vmatprep.mubr.f32.mxu0 0.0
      %1263 = vmatmul.mubr.f32.gmra.mxu0 %v1096
      %v1264 = vpop.f32.mrf.mxu0
      %v1265 = vadd.f32 0.0, %v1264
      %v1266 = vpop.f32.mrf.mxu0
      %1267 = vmatprep.mubr.f32.mxu0 0.0
      %1268 = vmatmul.mubr.f32.gmra.mxu0 %v1099
      %v1269 = vpop.f32.mrf.mxu0
      %v1270 = vadd.f32 0.0, %v1269
      %v1271 = vpop.f32.mrf.mxu0
      %1272 = vmatprep.mubr.f32.mxu0 0.0
      %1273 = vmatmul.mubr.f32.gmra.mxu0 %v1102
      %v1274 = vpop.f32.mrf.mxu0
      %v1275 = vadd.f32 0.0, %v1274
      %v1276 = vpop.f32.mrf.mxu0
      %1277 = vmatprep.mubr.f32.mxu0 0.0
      %1278 = vmatmul.mubr.f32.gmra.mxu0 %v1105
      %v1279 = vpop.f32.mrf.mxu0
      %v1280 = vadd.f32 0.0, %v1279
      %v1281 = vpop.f32.mrf.mxu0
      %1282 = vmatprep.mubr.f32.mxu0 0.0
      %1283 = vmatmul.mubr.f32.gmra.mxu0 %v1108
      %v1284 = vpop.f32.mrf.mxu0
      %v1285 = vadd.f32 0.0, %v1284
      %v1286 = vpop.f32.mrf.mxu0
      %1287 = vmatprep.mubr.f32.mxu0 0.0
      %1288 = vmatmul.mubr.f32.gmra.mxu0 %v1111
      %v1289 = vpop.f32.mrf.mxu0
      %v1290 = vadd.f32 0.0, %v1289
      %v1291 = vpop.f32.mrf.mxu0
      %1292 = vmatprep.mubr.f32.mxu0 0.0
      %1293 = vmatmul.mubr.f32.gmra.mxu0 %v1114
      %v1294 = vpop.f32.mrf.mxu0
      %v1295 = vadd.f32 0.0, %v1294
      %v1296 = vpop.f32.mrf.mxu0
      %1297 = vmatprep.mubr.f32.mxu0 0.0
      %1298 = vmatmul.mubr.f32.gmra.mxu0 %v1117
      %v1299 = vpop.f32.mrf.mxu0
      %v1300 = vadd.f32 0.0, %v1299
      %v1301 = vpop.f32.mrf.mxu0
      %1302 = vmatprep.mubr.f32.mxu0 0.0
      %1303 = vmatmul.mubr.f32.gmra.mxu0 %v1120
      %v1304 = vpop.f32.mrf.mxu0
      %v1305 = vadd.f32 0.0, %v1304
      %v1306 = vpop.f32.mrf.mxu0
      %1307 = vmatprep.mubr.f32.mxu0 0.0
      %1308 = vmatmul.mubr.f32.gmra.mxu0 %v1123
      %v1309 = vpop.f32.mrf.mxu0
      %v1310 = vadd.f32 0.0, %v1309
      %v1311 = vpop.f32.mrf.mxu0
      %1312 = vmatprep.mubr.f32.mxu0 0.0
      %1313 = vmatmul.mubr.f32.gmra.mxu0 %v1126
      %v1314 = vpop.f32.mrf.mxu0
      %v1315 = vadd.f32 0.0, %v1314
      %v1316 = vpop.f32.mrf.mxu0
      %1317 = vmatprep.mubr.f32.mxu0 0.0
      %1318 = vmatmul.mubr.f32.gmra.mxu0 %v1129
      %v1319 = vpop.f32.mrf.mxu0
      %v1320 = vadd.f32 0.0, %v1319
      %v1321 = vpop.f32.mrf.mxu0
      %1322 = vmatprep.mubr.f32.mxu0 0.0
      %1323 = vmatmul.mubr.f32.gmra.mxu0 %v1132
      %v1324 = vpop.f32.mrf.mxu0
      %v1325 = vadd.f32 0.0, %v1324
      %v1326 = vpop.f32.mrf.mxu0
      %1327 = vmatprep.mubr.f32.mxu0 0.0
      %1328 = vmatmul.mubr.f32.gmra.mxu0 %v1135
      %v1329 = vpop.f32.mrf.mxu0
      %v1330 = vadd.f32 0.0, %v1329
      %v1331 = vpop.f32.mrf.mxu0
      %1332 = vmatprep.mubr.f32.mxu0 0.0
      %1333 = vmatmul.mubr.f32.gmra.mxu0 %v1138
      %v1334 = vpop.f32.mrf.mxu0
      %v1335 = vadd.f32 0.0, %v1334
      %v1336 = vpop.f32.mrf.mxu0
      %1337 = vmatprep.mubr.f32.mxu0 0.0
      %1338 = vmatmul.mubr.f32.gmra.mxu0 %v1141
      %v1339 = vpop.f32.mrf.mxu0
      %v1340 = vadd.f32 0.0, %v1339
      %v1341 = vpop.f32.mrf.mxu0
      %1342 = vmatprep.mubr.f32.mxu0 0.0
      %1343 = vmatmul.mubr.f32.gmra.mxu0 %v1144
      %v1344 = vpop.f32.mrf.mxu0
      %v1345 = vadd.f32 0.0, %v1344
      %v1346 = vpop.f32.mrf.mxu0
      %1347 = vmatprep.mubr.f32.mxu0 0.0
      %1348 = vmatmul.mubr.f32.gmra.mxu0 %v1147
      %v1349 = vpop.f32.mrf.mxu0
      %v1350 = vadd.f32 0.0, %v1349
      %v1351 = vpop.f32.mrf.mxu0
      %1352 = vmatprep.mubr.f32.mxu0 0.0
      %1353 = vmatmul.mubr.f32.gmra.mxu0 %v1150
      %v1354 = vpop.f32.mrf.mxu0
      %v1355 = vadd.f32 0.0, %v1354
      %v1356 = vpop.f32.mrf.mxu0
      %1357 = vmatprep.mubr.f32.mxu0 0.0
      %1358 = vmatmul.mubr.f32.gmra.mxu0 %v1153
      %v1359 = vpop.f32.mrf.mxu0
      %v1360 = vadd.f32 0.0, %v1359
      %v1361 = vpop.f32.mrf.mxu0
      %1362 = vmatprep.mubr.f32.mxu0 0.0
      %1363 = vmatmul.mubr.f32.gmra.mxu0 %v1156
      %v1364 = vpop.f32.mrf.mxu0
      %v1365 = vadd.f32 0.0, %v1364
      %v1366 = vpop.f32.mrf.mxu0
      %1367 = vmatprep.mubr.f32.mxu0 0.0
      %1368 = vmatmul.mubr.f32.gmra.mxu0 %v1159
      %v1369 = vpop.f32.mrf.mxu0
      %v1370 = vadd.f32 0.0, %v1369
      %v1371 = vpop.f32.mrf.mxu0
      %1372 = vmatprep.mubr.f32.mxu0 0.0
      %1373 = vmatmul.mubr.f32.gmra.mxu0 %v1162
      %v1374 = vpop.f32.mrf.mxu0
      %v1375 = vadd.f32 0.0, %v1374
      %v1376 = vpop.f32.mrf.mxu0
      %1377 = vmatprep.mubr.f32.mxu0 0.0
      %1378 = vmatmul.mubr.f32.gmra.mxu0 %v1165
      %v1379 = vpop.f32.mrf.mxu0
      %v1380 = vadd.f32 0.0, %v1379
      %v1381 = vpop.f32.mrf.mxu0
      %1382 = vmatprep.mubr.f32.mxu0 0.0
      %1383 = vmatmul.mubr.f32.gmra.mxu0 %v1168
      %v1384 = vpop.f32.mrf.mxu0
      %v1385 = vadd.f32 0.0, %v1384
      %v1386 = vpop.f32.mrf.mxu0
      %1387 = vmatprep.mubr.f32.mxu0 0.0
      %1388 = vmatmul.mubr.f32.gmra.mxu0 %v1171
      %v1389 = vpop.f32.mrf.mxu0
      %v1390 = vadd.f32 0.0, %v1389
      %v1391 = vpop.f32.mrf.mxu0
      %1392 = vmatprep.mubr.f32.mxu0 0.0
      %1393 = vmatmul.mubr.f32.gmra.mxu0 %v1174
      %v1394 = vpop.f32.mrf.mxu0
      %v1395 = vadd.f32 0.0, %v1394
      %v1396 = vpop.f32.mrf.mxu0
      %1397 = vmatprep.mubr.f32.mxu0 0.0
      %1398 = vmatmul.mubr.f32.gmra.mxu0 %v1177
      %v1399 = vpop.f32.mrf.mxu0
      %v1400 = vadd.f32 0.0, %v1399
      %v1401 = vpop.f32.mrf.mxu0
      %1402 = vmatprep.mubr.f32.mxu0 0.0
      %1403 = vmatmul.mubr.f32.gmra.mxu0 %v1180
      %v1404 = vpop.f32.mrf.mxu0
      %v1405 = vadd.f32 0.0, %v1404
      %v1406 = vpop.f32.mrf.mxu0
      %1407 = vmatprep.mubr.f32.mxu0 0.0
      %1408 = vmatmul.mubr.f32.gmra.mxu0 %v1183
      %v1409 = vpop.f32.mrf.mxu0
      %v1410 = vadd.f32 0.0, %v1409
      %v1411 = vpop.f32.mrf.mxu0
      %1412 = vdwg.mxu0
      %v1413 = vadd.f32 %v897, %v1255
      %v1414 = vadd.f32 %v902, %v1260
      %v1415 = vadd.f32 %v907, %v1265
      %v1416 = vadd.f32 %v912, %v1270
      %v1417 = vadd.f32 %v917, %v1275
      %v1418 = vadd.f32 %v922, %v1280
      %v1419 = vadd.f32 %v927, %v1285
      %v1420 = vadd.f32 %v932, %v1290
      %v1421 = vadd.f32 %v937, %v1295
      %v1422 = vadd.f32 %v942, %v1300
      %v1423 = vadd.f32 %v947, %v1305
      %v1424 = vadd.f32 %v952, %v1310
      %v1425 = vadd.f32 %v957, %v1315
      %v1426 = vadd.f32 %v962, %v1320
      %v1427 = vadd.f32 %v967, %v1325
      %v1428 = vadd.f32 %v972, %v1330
      %v1429 = vadd.f32 %v977, %v1335
      %v1430 = vadd.f32 %v982, %v1340
      %v1431 = vadd.f32 %v987, %v1345
      %v1432 = vadd.f32 %v992, %v1350
      %v1433 = vadd.f32 %v997, %v1355
      %v1434 = vadd.f32 %v1002, %v1360
      %v1435 = vadd.f32 %v1007, %v1365
      %v1436 = vadd.f32 %v1012, %v1370
      %v1437 = vadd.f32 %v1017, %v1375
      %v1438 = vadd.f32 %v1022, %v1380
      %v1439 = vadd.f32 %v1027, %v1385
      %v1440 = vadd.f32 %v1032, %v1390
      %v1441 = vadd.f32 %v1037, %v1395
      %v1442 = vadd.f32 %v1042, %v1400
      %v1443 = vadd.f32 %v1047, %v1405
      %v1444 = vadd.f32 %v1052, %v1410
      %s1445 = sadd.s32 %s335, 1
      %s1446 = smul.u32 %s1445, 24
      %s1447 = scalar_lea.vmem [#allocation2], %s1446
      %v1448 = vld [vmem:[%s1447] sm:$0xff]
      %v1449 = vld [vmem:[%s1447 + $0x8] sm:$0xff]
      %v1450 = vld [vmem:[%s1447 + $0x18] sm:$0xff]
      %v1451 = vld [vmem:[%s1447 + $0x20] sm:$0xff]
      %v1452 = vld [vmem:[%s1447 + $0x30] sm:$0xff]
      %v1453 = vld [vmem:[%s1447 + $0x38] sm:$0xff]
      %v1454 = vld [vmem:[%s1447 + $0x48] sm:$0xff]
      %v1455 = vld [vmem:[%s1447 + $0x50] sm:$0xff]
      %v1456 = vld [vmem:[%s1447 + $0x60] sm:$0xff]
      %v1457 = vld [vmem:[%s1447 + $0x68] sm:$0xff]
      %v1458 = vld [vmem:[%s1447 + $0x78] sm:$0xff]
      %v1459 = vld [vmem:[%s1447 + $0x80] sm:$0xff]
      %v1460 = vld [vmem:[%s1447 + $0x90] sm:$0xff]
      %v1461 = vld [vmem:[%s1447 + $0x98] sm:$0xff]
      %v1462 = vld [vmem:[%s1447 + $0xa8] sm:$0xff]
      %v1463 = vld [vmem:[%s1447 + $0xb0] sm:$0xff]
      %v1464 = vld [vmem:[%s1447 + $0xc0] sm:$0xff]
      %v1465 = vld [vmem:[%s1447 + $0xc8] sm:$0xff]
      %v1466 = vld [vmem:[%s1447 + $0xd8] sm:$0xff]
      %v1467 = vld [vmem:[%s1447 + $0xe0] sm:$0xff]
      %v1468 = vld [vmem:[%s1447 + $0xf0] sm:$0xff]
      %v1469 = vld [vmem:[%s1447 + $0xf8] sm:$0xff]
      %v1470 = vld [vmem:[%s1447 + $0x108] sm:$0xff]
      %v1471 = vld [vmem:[%s1447 + $0x110] sm:$0xff]
      %v1472 = vld [vmem:[%s1447 + $0x120] sm:$0xff]
      %v1473 = vld [vmem:[%s1447 + $0x128] sm:$0xff]
      %v1474 = vld [vmem:[%s1447 + $0x138] sm:$0xff]
      %v1475 = vld [vmem:[%s1447 + $0x140] sm:$0xff]
      %v1476 = vld [vmem:[%s1447 + $0x150] sm:$0xff]
      %v1477 = vld [vmem:[%s1447 + $0x158] sm:$0xff]
      %v1478 = vld [vmem:[%s1447 + $0x168] sm:$0xff]
      %v1479 = vld [vmem:[%s1447 + $0x170] sm:$0xff]
      %s1480 = scalar_lea.vmem %s1, 12
      %v1481 = vld [vmem:[%s1480] sm:$0xf]
      %v1483 = vsel %vm405, %v1448, 0
      %v1486 = vsel %vm405, %v1449, 0
      %v1489 = vsel %vm405, %v1450, 0
      %v1492 = vsel %vm405, %v1451, 0
      %v1495 = vsel %vm405, %v1452, 0
      %v1498 = vsel %vm405, %v1453, 0
      %v1501 = vsel %vm405, %v1454, 0
      %v1504 = vsel %vm405, %v1455, 0
      %v1507 = vsel %vm405, %v1456, 0
      %v1510 = vsel %vm405, %v1457, 0
      %v1513 = vsel %vm405, %v1458, 0
      %v1516 = vsel %vm405, %v1459, 0
      %v1519 = vsel %vm405, %v1460, 0
      %v1522 = vsel %vm405, %v1461, 0
      %v1525 = vsel %vm405, %v1462, 0
      %v1528 = vsel %vm405, %v1463, 0
      %v1531 = vsel %vm405, %v1464, 0
      %v1534 = vsel %vm405, %v1465, 0
      %v1537 = vsel %vm405, %v1466, 0
      %v1540 = vsel %vm405, %v1467, 0
      %v1543 = vsel %vm405, %v1468, 0
      %v1546 = vsel %vm405, %v1469, 0
      %v1549 = vsel %vm405, %v1470, 0
      %v1552 = vsel %vm405, %v1471, 0
      %v1555 = vsel %vm405, %v1472, 0
      %v1558 = vsel %vm405, %v1473, 0
      %v1561 = vsel %vm405, %v1474, 0
      %v1564 = vsel %vm405, %v1475, 0
      %v1567 = vsel %vm405, %v1476, 0
      %v1570 = vsel %vm405, %v1477, 0
      %v1573 = vsel %vm405, %v1478, 0
      %v1576 = vsel %vm405, %v1479, 0
      %v1579 = vsel %vm502, %v1481, 0
      %1581 = vmatprep.subr.mxu0 0.0
      %1582 = vmatpush1.msra.mxu0 0.0
      %1583 = vmatprep.subr.mxu0 0.0
      %1584 = vmatpush1.msra.mxu0 0.0
      %1585 = vmatprep.subr.mxu0 0.0
      %1586 = vmatpush1.msra.mxu0 0.0
      %1587 = vmatprep.subr.mxu0 0.0
      %1588 = vmatpush1.msra.mxu0 0.0
      %1589 = vmatprep.subr.mxu0 0.0
      %1590 = vmatpush1.msra.mxu0 0.0
      %1591 = vmatprep.subr.mxu0 0.0
      %1592 = vmatpush1.msra.mxu0 0.0
      %1593 = vmatprep.subr.mxu0 0.0
      %1594 = vmatpush1.msra.mxu0 0.0
      %1595 = vmatprep.subr.mxu0 0.0
      %1596 = vmatpush1.msra.mxu0 0.0
      %1597 = vmatprep.subr.mxu0 0.0
      %1598 = vmatpush1.msra.mxu0 0.0
      %1599 = vmatprep.subr.mxu0 0.0
      %1600 = vmatpush1.msra.mxu0 0.0
      %1601 = vmatprep.subr.mxu0 0.0
      %1602 = vmatpush1.msra.mxu0 0.0
      %1603 = vmatprep.subr.mxu0 0.0
      %1604 = vmatpush1.msra.mxu0 0.0
      %1605 = vmatprep.subr.mxu0 0.0
      %1606 = vmatpush1.msra.mxu0 0.0
      %1607 = vmatprep.subr.mxu0 0.0
      %1608 = vmatpush1.msra.mxu0 0.0
      %1609 = vmatprep.subr.mxu0 0.0
      %1610 = vmatpush1.msra.mxu0 0.0
      %1611 = vmatprep.subr.mxu0 0.0
      %1612 = vmatpush1.msra.mxu0 %v1579
      %1613 = vmatprep.subr.mxu0 0.0
      %1614 = vmatpush2.msra.mxu0 0.0
      %1615 = vmatprep.subr.mxu0 0.0
      %1616 = vmatpush2.msra.mxu0 0.0
      %1617 = vmatprep.subr.mxu0 0.0
      %1618 = vmatpush2.msra.mxu0 0.0
      %1619 = vmatprep.subr.mxu0 0.0
      %1620 = vmatpush2.msra.mxu0 0.0
      %1621 = vmatprep.subr.mxu0 0.0
      %1622 = vmatpush2.msra.mxu0 0.0
      %1623 = vmatprep.subr.mxu0 0.0
      %1624 = vmatpush2.msra.mxu0 0.0
      %1625 = vmatprep.subr.mxu0 0.0
      %1626 = vmatpush2.msra.mxu0 0.0
      %1627 = vmatprep.subr.mxu0 0.0
      %1628 = vmatpush2.msra.mxu0 0.0
      %1629 = vmatprep.subr.mxu0 0.0
      %1630 = vmatpush2.msra.mxu0 0.0
      %1631 = vmatprep.subr.mxu0 0.0
      %1632 = vmatpush2.msra.mxu0 0.0
      %1633 = vmatprep.subr.mxu0 0.0
      %1634 = vmatpush2.msra.mxu0 0.0
      %1635 = vmatprep.subr.mxu0 0.0
      %1636 = vmatpush2.msra.mxu0 0.0
      %1637 = vmatprep.subr.mxu0 0.0
      %1638 = vmatpush2.msra.mxu0 0.0
      %1639 = vmatprep.subr.mxu0 0.0
      %1640 = vmatpush2.msra.mxu0 0.0
      %1641 = vmatprep.subr.mxu0 0.0
      %1642 = vmatpush2.msra.mxu0 0.0
      %1643 = vmatprep.subr.mxu0 0.0
      %1644 = vmatpush2.msra.mxu0 0.0
      %1645 = vmatprep.mubr.f32.mxu0 0.0
      %1646 = vmatmul.mubr.f32.gmra.mxu0 %v1483
      %v1647 = vpop.f32.mrf.mxu0
      %v1648 = vadd.f32 0.0, %v1647
      %v1649 = vpop.f32.mrf.mxu0
      %1650 = vmatprep.mubr.f32.mxu0 0.0
      %1651 = vmatmul.mubr.f32.gmra.mxu0 %v1486
      %v1652 = vpop.f32.mrf.mxu0
      %v1653 = vadd.f32 0.0, %v1652
      %v1654 = vpop.f32.mrf.mxu0
      %1655 = vmatprep.mubr.f32.mxu0 0.0
      %1656 = vmatmul.mubr.f32.gmra.mxu0 %v1489
      %v1657 = vpop.f32.mrf.mxu0
      %v1658 = vadd.f32 0.0, %v1657
      %v1659 = vpop.f32.mrf.mxu0
      %1660 = vmatprep.mubr.f32.mxu0 0.0
      %1661 = vmatmul.mubr.f32.gmra.mxu0 %v1492
      %v1662 = vpop.f32.mrf.mxu0
      %v1663 = vadd.f32 0.0, %v1662
      %v1664 = vpop.f32.mrf.mxu0
      %1665 = vmatprep.mubr.f32.mxu0 0.0
      %1666 = vmatmul.mubr.f32.gmra.mxu0 %v1495
      %v1667 = vpop.f32.mrf.mxu0
      %v1668 = vadd.f32 0.0, %v1667
      %v1669 = vpop.f32.mrf.mxu0
      %1670 = vmatprep.mubr.f32.mxu0 0.0
      %1671 = vmatmul.mubr.f32.gmra.mxu0 %v1498
      %v1672 = vpop.f32.mrf.mxu0
      %v1673 = vadd.f32 0.0, %v1672
      %v1674 = vpop.f32.mrf.mxu0
      %1675 = vmatprep.mubr.f32.mxu0 0.0
      %1676 = vmatmul.mubr.f32.gmra.mxu0 %v1501
      %v1677 = vpop.f32.mrf.mxu0
      %v1678 = vadd.f32 0.0, %v1677
      %v1679 = vpop.f32.mrf.mxu0
      %1680 = vmatprep.mubr.f32.mxu0 0.0
      %1681 = vmatmul.mubr.f32.gmra.mxu0 %v1504
      %v1682 = vpop.f32.mrf.mxu0
      %v1683 = vadd.f32 0.0, %v1682
      %v1684 = vpop.f32.mrf.mxu0
      %1685 = vmatprep.mubr.f32.mxu0 0.0
      %1686 = vmatmul.mubr.f32.gmra.mxu0 %v1507
      %v1687 = vpop.f32.mrf.mxu0
      %v1688 = vadd.f32 0.0, %v1687
      %v1689 = vpop.f32.mrf.mxu0
      %1690 = vmatprep.mubr.f32.mxu0 0.0
      %1691 = vmatmul.mubr.f32.gmra.mxu0 %v1510
      %v1692 = vpop.f32.mrf.mxu0
      %v1693 = vadd.f32 0.0, %v1692
      %v1694 = vpop.f32.mrf.mxu0
      %1695 = vmatprep.mubr.f32.mxu0 0.0
      %1696 = vmatmul.mubr.f32.gmra.mxu0 %v1513
      %v1697 = vpop.f32.mrf.mxu0
      %v1698 = vadd.f32 0.0, %v1697
      %v1699 = vpop.f32.mrf.mxu0
      %1700 = vmatprep.mubr.f32.mxu0 0.0
      %1701 = vmatmul.mubr.f32.gmra.mxu0 %v1516
      %v1702 = vpop.f32.mrf.mxu0
      %v1703 = vadd.f32 0.0, %v1702
      %v1704 = vpop.f32.mrf.mxu0
      %1705 = vmatprep.mubr.f32.mxu0 0.0
      %1706 = vmatmul.mubr.f32.gmra.mxu0 %v1519
      %v1707 = vpop.f32.mrf.mxu0
      %v1708 = vadd.f32 0.0, %v1707
      %v1709 = vpop.f32.mrf.mxu0
      %1710 = vmatprep.mubr.f32.mxu0 0.0
      %1711 = vmatmul.mubr.f32.gmra.mxu0 %v1522
      %v1712 = vpop.f32.mrf.mxu0
      %v1713 = vadd.f32 0.0, %v1712
      %v1714 = vpop.f32.mrf.mxu0
      %1715 = vmatprep.mubr.f32.mxu0 0.0
      %1716 = vmatmul.mubr.f32.gmra.mxu0 %v1525
      %v1717 = vpop.f32.mrf.mxu0
      %v1718 = vadd.f32 0.0, %v1717
      %v1719 = vpop.f32.mrf.mxu0
      %1720 = vmatprep.mubr.f32.mxu0 0.0
      %1721 = vmatmul.mubr.f32.gmra.mxu0 %v1528
      %v1722 = vpop.f32.mrf.mxu0
      %v1723 = vadd.f32 0.0, %v1722
      %v1724 = vpop.f32.mrf.mxu0
      %1725 = vmatprep.mubr.f32.mxu0 0.0
      %1726 = vmatmul.mubr.f32.gmra.mxu0 %v1531
      %v1727 = vpop.f32.mrf.mxu0
      %v1728 = vadd.f32 0.0, %v1727
      %v1729 = vpop.f32.mrf.mxu0
      %1730 = vmatprep.mubr.f32.mxu0 0.0
      %1731 = vmatmul.mubr.f32.gmra.mxu0 %v1534
      %v1732 = vpop.f32.mrf.mxu0
      %v1733 = vadd.f32 0.0, %v1732
      %v1734 = vpop.f32.mrf.mxu0
      %1735 = vmatprep.mubr.f32.mxu0 0.0
      %1736 = vmatmul.mubr.f32.gmra.mxu0 %v1537
      %v1737 = vpop.f32.mrf.mxu0
      %v1738 = vadd.f32 0.0, %v1737
      %v1739 = vpop.f32.mrf.mxu0
      %1740 = vmatprep.mubr.f32.mxu0 0.0
      %1741 = vmatmul.mubr.f32.gmra.mxu0 %v1540
      %v1742 = vpop.f32.mrf.mxu0
      %v1743 = vadd.f32 0.0, %v1742
      %v1744 = vpop.f32.mrf.mxu0
      %1745 = vmatprep.mubr.f32.mxu0 0.0
      %1746 = vmatmul.mubr.f32.gmra.mxu0 %v1543
      %v1747 = vpop.f32.mrf.mxu0
      %v1748 = vadd.f32 0.0, %v1747
      %v1749 = vpop.f32.mrf.mxu0
      %1750 = vmatprep.mubr.f32.mxu0 0.0
      %1751 = vmatmul.mubr.f32.gmra.mxu0 %v1546
      %v1752 = vpop.f32.mrf.mxu0
      %v1753 = vadd.f32 0.0, %v1752
      %v1754 = vpop.f32.mrf.mxu0
      %1755 = vmatprep.mubr.f32.mxu0 0.0
      %1756 = vmatmul.mubr.f32.gmra.mxu0 %v1549
      %v1757 = vpop.f32.mrf.mxu0
      %v1758 = vadd.f32 0.0, %v1757
      %v1759 = vpop.f32.mrf.mxu0
      %1760 = vmatprep.mubr.f32.mxu0 0.0
      %1761 = vmatmul.mubr.f32.gmra.mxu0 %v1552
      %v1762 = vpop.f32.mrf.mxu0
      %v1763 = vadd.f32 0.0, %v1762
      %v1764 = vpop.f32.mrf.mxu0
      %1765 = vmatprep.mubr.f32.mxu0 0.0
      %1766 = vmatmul.mubr.f32.gmra.mxu0 %v1555
      %v1767 = vpop.f32.mrf.mxu0
      %v1768 = vadd.f32 0.0, %v1767
      %v1769 = vpop.f32.mrf.mxu0
      %1770 = vmatprep.mubr.f32.mxu0 0.0
      %1771 = vmatmul.mubr.f32.gmra.mxu0 %v1558
      %v1772 = vpop.f32.mrf.mxu0
      %v1773 = vadd.f32 0.0, %v1772
      %v1774 = vpop.f32.mrf.mxu0
      %1775 = vmatprep.mubr.f32.mxu0 0.0
      %1776 = vmatmul.mubr.f32.gmra.mxu0 %v1561
      %v1777 = vpop.f32.mrf.mxu0
      %v1778 = vadd.f32 0.0, %v1777
      %v1779 = vpop.f32.mrf.mxu0
      %1780 = vmatprep.mubr.f32.mxu0 0.0
      %1781 = vmatmul.mubr.f32.gmra.mxu0 %v1564
      %v1782 = vpop.f32.mrf.mxu0
      %v1783 = vadd.f32 0.0, %v1782
      %v1784 = vpop.f32.mrf.mxu0
      %1785 = vmatprep.mubr.f32.mxu0 0.0
      %1786 = vmatmul.mubr.f32.gmra.mxu0 %v1567
      %v1787 = vpop.f32.mrf.mxu0
      %v1788 = vadd.f32 0.0, %v1787
      %v1789 = vpop.f32.mrf.mxu0
      %1790 = vmatprep.mubr.f32.mxu0 0.0
      %1791 = vmatmul.mubr.f32.gmra.mxu0 %v1570
      %v1792 = vpop.f32.mrf.mxu0
      %v1793 = vadd.f32 0.0, %v1792
      %v1794 = vpop.f32.mrf.mxu0
      %1795 = vmatprep.mubr.f32.mxu0 0.0
      %1796 = vmatmul.mubr.f32.gmra.mxu0 %v1573
      %v1797 = vpop.f32.mrf.mxu0
      %v1798 = vadd.f32 0.0, %v1797
      %v1799 = vpop.f32.mrf.mxu0
      %1800 = vmatprep.mubr.f32.mxu0 0.0
      %1801 = vmatmul.mubr.f32.gmra.mxu0 %v1576
      %v1802 = vpop.f32.mrf.mxu0
      %v1803 = vadd.f32 0.0, %v1802
      %v1804 = vpop.f32.mrf.mxu0
      %1805 = vdwg.mxu0
      %v1806 = vadd.f32 %v1413, %v1648
      %v1807 = vadd.f32 %v1414, %v1653
      %v1808 = vadd.f32 %v1415, %v1658
      %v1809 = vadd.f32 %v1416, %v1663
      %v1810 = vadd.f32 %v1417, %v1668
      %v1811 = vadd.f32 %v1418, %v1673
      %v1812 = vadd.f32 %v1419, %v1678
      %v1813 = vadd.f32 %v1420, %v1683
      %v1814 = vadd.f32 %v1421, %v1688
      %v1815 = vadd.f32 %v1422, %v1693
      %v1816 = vadd.f32 %v1423, %v1698
      %v1817 = vadd.f32 %v1424, %v1703
      %v1818 = vadd.f32 %v1425, %v1708
      %v1819 = vadd.f32 %v1426, %v1713
      %v1820 = vadd.f32 %v1427, %v1718
      %v1821 = vadd.f32 %v1428, %v1723
      %v1822 = vadd.f32 %v1429, %v1728
      %v1823 = vadd.f32 %v1430, %v1733
      %v1824 = vadd.f32 %v1431, %v1738
      %v1825 = vadd.f32 %v1432, %v1743
      %v1826 = vadd.f32 %v1433, %v1748
      %v1827 = vadd.f32 %v1434, %v1753
      %v1828 = vadd.f32 %v1435, %v1758
      %v1829 = vadd.f32 %v1436, %v1763
      %v1830 = vadd.f32 %v1437, %v1768
      %v1831 = vadd.f32 %v1438, %v1773
      %v1832 = vadd.f32 %v1439, %v1778
      %v1833 = vadd.f32 %v1440, %v1783
      %v1834 = vadd.f32 %v1441, %v1788
      %v1835 = vadd.f32 %v1442, %v1793
      %v1836 = vadd.f32 %v1443, %v1798
      %v1837 = vadd.f32 %v1444, %v1803
      %v1838 = vld [vmem:[%s1447 + $0x1] sm:$0xff]
      %v1839 = vld [vmem:[%s1447 + $0x9] sm:$0xff]
      %v1840 = vld [vmem:[%s1447 + $0x19] sm:$0xff]
      %v1841 = vld [vmem:[%s1447 + $0x21] sm:$0xff]
      %v1842 = vld [vmem:[%s1447 + $0x31] sm:$0xff]
      %v1843 = vld [vmem:[%s1447 + $0x39] sm:$0xff]
      %v1844 = vld [vmem:[%s1447 + $0x49] sm:$0xff]
      %v1845 = vld [vmem:[%s1447 + $0x51] sm:$0xff]
      %v1846 = vld [vmem:[%s1447 + $0x61] sm:$0xff]
      %v1847 = vld [vmem:[%s1447 + $0x69] sm:$0xff]
      %v1848 = vld [vmem:[%s1447 + $0x79] sm:$0xff]
      %v1849 = vld [vmem:[%s1447 + $0x81] sm:$0xff]
      %v1850 = vld [vmem:[%s1447 + $0x91] sm:$0xff]
      %v1851 = vld [vmem:[%s1447 + $0x99] sm:$0xff]
      %v1852 = vld [vmem:[%s1447 + $0xa9] sm:$0xff]
      %v1853 = vld [vmem:[%s1447 + $0xb1] sm:$0xff]
      %v1854 = vld [vmem:[%s1447 + $0xc1] sm:$0xff]
      %v1855 = vld [vmem:[%s1447 + $0xc9] sm:$0xff]
      %v1856 = vld [vmem:[%s1447 + $0xd9] sm:$0xff]
      %v1857 = vld [vmem:[%s1447 + $0xe1] sm:$0xff]
      %v1858 = vld [vmem:[%s1447 + $0xf1] sm:$0xff]
      %v1859 = vld [vmem:[%s1447 + $0xf9] sm:$0xff]
      %v1860 = vld [vmem:[%s1447 + $0x109] sm:$0xff]
      %v1861 = vld [vmem:[%s1447 + $0x111] sm:$0xff]
      %v1862 = vld [vmem:[%s1447 + $0x121] sm:$0xff]
      %v1863 = vld [vmem:[%s1447 + $0x129] sm:$0xff]
      %v1864 = vld [vmem:[%s1447 + $0x139] sm:$0xff]
      %v1865 = vld [vmem:[%s1447 + $0x141] sm:$0xff]
      %v1866 = vld [vmem:[%s1447 + $0x151] sm:$0xff]
      %v1867 = vld [vmem:[%s1447 + $0x159] sm:$0xff]
      %v1868 = vld [vmem:[%s1447 + $0x169] sm:$0xff]
      %v1869 = vld [vmem:[%s1447 + $0x171] sm:$0xff]
      %s1870 = scalar_lea.vmem %s1, 16
      %v1871 = vld [vmem:[%s1870] sm:$0xf]
      %v1873 = vsel %vm405, %v1838, 0
      %v1876 = vsel %vm405, %v1839, 0
      %v1879 = vsel %vm405, %v1840, 0
      %v1882 = vsel %vm405, %v1841, 0
      %v1885 = vsel %vm405, %v1842, 0
      %v1888 = vsel %vm405, %v1843, 0
      %v1891 = vsel %vm405, %v1844, 0
      %v1894 = vsel %vm405, %v1845, 0
      %v1897 = vsel %vm405, %v1846, 0
      %v1900 = vsel %vm405, %v1847, 0
      %v1903 = vsel %vm405, %v1848, 0
      %v1906 = vsel %vm405, %v1849, 0
      %v1909 = vsel %vm405, %v1850, 0
      %v1912 = vsel %vm405, %v1851, 0
      %v1915 = vsel %vm405, %v1852, 0
      %v1918 = vsel %vm405, %v1853, 0
      %v1921 = vsel %vm405, %v1854, 0
      %v1924 = vsel %vm405, %v1855, 0
      %v1927 = vsel %vm405, %v1856, 0
      %v1930 = vsel %vm405, %v1857, 0
      %v1933 = vsel %vm405, %v1858, 0
      %v1936 = vsel %vm405, %v1859, 0
      %v1939 = vsel %vm405, %v1860, 0
      %v1942 = vsel %vm405, %v1861, 0
      %v1945 = vsel %vm405, %v1862, 0
      %v1948 = vsel %vm405, %v1863, 0
      %v1951 = vsel %vm405, %v1864, 0
      %v1954 = vsel %vm405, %v1865, 0
      %v1957 = vsel %vm405, %v1866, 0
      %v1960 = vsel %vm405, %v1867, 0
      %v1963 = vsel %vm405, %v1868, 0
      %v1966 = vsel %vm405, %v1869, 0
      %v1969 = vsel %vm502, %v1871, 0
      %1971 = vmatprep.subr.mxu0 0.0
      %1972 = vmatpush1.msra.mxu0 0.0
      %1973 = vmatprep.subr.mxu0 0.0
      %1974 = vmatpush1.msra.mxu0 0.0
      %1975 = vmatprep.subr.mxu0 0.0
      %1976 = vmatpush1.msra.mxu0 0.0
      %1977 = vmatprep.subr.mxu0 0.0
      %1978 = vmatpush1.msra.mxu0 0.0
      %1979 = vmatprep.subr.mxu0 0.0
      %1980 = vmatpush1.msra.mxu0 0.0
      %1981 = vmatprep.subr.mxu0 0.0
      %1982 = vmatpush1.msra.mxu0 0.0
      %1983 = vmatprep.subr.mxu0 0.0
      %1984 = vmatpush1.msra.mxu0 0.0
      %1985 = vmatprep.subr.mxu0 0.0
      %1986 = vmatpush1.msra.mxu0 0.0
      %1987 = vmatprep.subr.mxu0 0.0
      %1988 = vmatpush1.msra.mxu0 0.0
      %1989 = vmatprep.subr.mxu0 0.0
      %1990 = vmatpush1.msra.mxu0 0.0
      %1991 = vmatprep.subr.mxu0 0.0
      %1992 = vmatpush1.msra.mxu0 0.0
      %1993 = vmatprep.subr.mxu0 0.0
      %1994 = vmatpush1.msra.mxu0 0.0
      %1995 = vmatprep.subr.mxu0 0.0
      %1996 = vmatpush1.msra.mxu0 0.0
      %1997 = vmatprep.subr.mxu0 0.0
      %1998 = vmatpush1.msra.mxu0 0.0
      %1999 = vmatprep.subr.mxu0 0.0
      %2000 = vmatpush1.msra.mxu0 0.0
      %2001 = vmatprep.subr.mxu0 0.0
      %2002 = vmatpush1.msra.mxu0 %v1969
      %2003 = vmatprep.subr.mxu0 0.0
      %2004 = vmatpush2.msra.mxu0 0.0
      %2005 = vmatprep.subr.mxu0 0.0
      %2006 = vmatpush2.msra.mxu0 0.0
      %2007 = vmatprep.subr.mxu0 0.0
      %2008 = vmatpush2.msra.mxu0 0.0
      %2009 = vmatprep.subr.mxu0 0.0
      %2010 = vmatpush2.msra.mxu0 0.0
      %2011 = vmatprep.subr.mxu0 0.0
      %2012 = vmatpush2.msra.mxu0 0.0
      %2013 = vmatprep.subr.mxu0 0.0
      %2014 = vmatpush2.msra.mxu0 0.0
      %2015 = vmatprep.subr.mxu0 0.0
      %2016 = vmatpush2.msra.mxu0 0.0
      %2017 = vmatprep.subr.mxu0 0.0
      %2018 = vmatpush2.msra.mxu0 0.0
      %2019 = vmatprep.subr.mxu0 0.0
      %2020 = vmatpush2.msra.mxu0 0.0
      %2021 = vmatprep.subr.mxu0 0.0
      %2022 = vmatpush2.msra.mxu0 0.0
      %2023 = vmatprep.subr.mxu0 0.0
      %2024 = vmatpush2.msra.mxu0 0.0
      %2025 = vmatprep.subr.mxu0 0.0
      %2026 = vmatpush2.msra.mxu0 0.0
      %2027 = vmatprep.subr.mxu0 0.0
      %2028 = vmatpush2.msra.mxu0 0.0
      %2029 = vmatprep.subr.mxu0 0.0
      %2030 = vmatpush2.msra.mxu0 0.0
      %2031 = vmatprep.subr.mxu0 0.0
      %2032 = vmatpush2.msra.mxu0 0.0
      %2033 = vmatprep.subr.mxu0 0.0
      %2034 = vmatpush2.msra.mxu0 0.0
      %2035 = vmatprep.mubr.f32.mxu0 0.0
      %2036 = vmatmul.mubr.f32.gmra.mxu0 %v1873
      %v2037 = vpop.f32.mrf.mxu0
      %v2038 = vadd.f32 0.0, %v2037
      %v2039 = vpop.f32.mrf.mxu0
      %2040 = vmatprep.mubr.f32.mxu0 0.0
      %2041 = vmatmul.mubr.f32.gmra.mxu0 %v1876
      %v2042 = vpop.f32.mrf.mxu0
      %v2043 = vadd.f32 0.0, %v2042
      %v2044 = vpop.f32.mrf.mxu0
      %2045 = vmatprep.mubr.f32.mxu0 0.0
      %2046 = vmatmul.mubr.f32.gmra.mxu0 %v1879
      %v2047 = vpop.f32.mrf.mxu0
      %v2048 = vadd.f32 0.0, %v2047
      %v2049 = vpop.f32.mrf.mxu0
      %2050 = vmatprep.mubr.f32.mxu0 0.0
      %2051 = vmatmul.mubr.f32.gmra.mxu0 %v1882
      %v2052 = vpop.f32.mrf.mxu0
      %v2053 = vadd.f32 0.0, %v2052
      %v2054 = vpop.f32.mrf.mxu0
      %2055 = vmatprep.mubr.f32.mxu0 0.0
      %2056 = vmatmul.mubr.f32.gmra.mxu0 %v1885
      %v2057 = vpop.f32.mrf.mxu0
      %v2058 = vadd.f32 0.0, %v2057
      %v2059 = vpop.f32.mrf.mxu0
      %2060 = vmatprep.mubr.f32.mxu0 0.0
      %2061 = vmatmul.mubr.f32.gmra.mxu0 %v1888
      %v2062 = vpop.f32.mrf.mxu0
      %v2063 = vadd.f32 0.0, %v2062
      %v2064 = vpop.f32.mrf.mxu0
      %2065 = vmatprep.mubr.f32.mxu0 0.0
      %2066 = vmatmul.mubr.f32.gmra.mxu0 %v1891
      %v2067 = vpop.f32.mrf.mxu0
      %v2068 = vadd.f32 0.0, %v2067
      %v2069 = vpop.f32.mrf.mxu0
      %2070 = vmatprep.mubr.f32.mxu0 0.0
      %2071 = vmatmul.mubr.f32.gmra.mxu0 %v1894
      %v2072 = vpop.f32.mrf.mxu0
      %v2073 = vadd.f32 0.0, %v2072
      %v2074 = vpop.f32.mrf.mxu0
      %2075 = vmatprep.mubr.f32.mxu0 0.0
      %2076 = vmatmul.mubr.f32.gmra.mxu0 %v1897
      %v2077 = vpop.f32.mrf.mxu0
      %v2078 = vadd.f32 0.0, %v2077
      %v2079 = vpop.f32.mrf.mxu0
      %2080 = vmatprep.mubr.f32.mxu0 0.0
      %2081 = vmatmul.mubr.f32.gmra.mxu0 %v1900
      %v2082 = vpop.f32.mrf.mxu0
      %v2083 = vadd.f32 0.0, %v2082
      %v2084 = vpop.f32.mrf.mxu0
      %2085 = vmatprep.mubr.f32.mxu0 0.0
      %2086 = vmatmul.mubr.f32.gmra.mxu0 %v1903
      %v2087 = vpop.f32.mrf.mxu0
      %v2088 = vadd.f32 0.0, %v2087
      %v2089 = vpop.f32.mrf.mxu0
      %2090 = vmatprep.mubr.f32.mxu0 0.0
      %2091 = vmatmul.mubr.f32.gmra.mxu0 %v1906
      %v2092 = vpop.f32.mrf.mxu0
      %v2093 = vadd.f32 0.0, %v2092
      %v2094 = vpop.f32.mrf.mxu0
      %2095 = vmatprep.mubr.f32.mxu0 0.0
      %2096 = vmatmul.mubr.f32.gmra.mxu0 %v1909
      %v2097 = vpop.f32.mrf.mxu0
      %v2098 = vadd.f32 0.0, %v2097
      %v2099 = vpop.f32.mrf.mxu0
      %2100 = vmatprep.mubr.f32.mxu0 0.0
      %2101 = vmatmul.mubr.f32.gmra.mxu0 %v1912
      %v2102 = vpop.f32.mrf.mxu0
      %v2103 = vadd.f32 0.0, %v2102
      %v2104 = vpop.f32.mrf.mxu0
      %2105 = vmatprep.mubr.f32.mxu0 0.0
      %2106 = vmatmul.mubr.f32.gmra.mxu0 %v1915
      %v2107 = vpop.f32.mrf.mxu0
      %v2108 = vadd.f32 0.0, %v2107
      %v2109 = vpop.f32.mrf.mxu0
      %2110 = vmatprep.mubr.f32.mxu0 0.0
      %2111 = vmatmul.mubr.f32.gmra.mxu0 %v1918
      %v2112 = vpop.f32.mrf.mxu0
      %v2113 = vadd.f32 0.0, %v2112
      %v2114 = vpop.f32.mrf.mxu0
      %2115 = vmatprep.mubr.f32.mxu0 0.0
      %2116 = vmatmul.mubr.f32.gmra.mxu0 %v1921
      %v2117 = vpop.f32.mrf.mxu0
      %v2118 = vadd.f32 0.0, %v2117
      %v2119 = vpop.f32.mrf.mxu0
      %2120 = vmatprep.mubr.f32.mxu0 0.0
      %2121 = vmatmul.mubr.f32.gmra.mxu0 %v1924
      %v2122 = vpop.f32.mrf.mxu0
      %v2123 = vadd.f32 0.0, %v2122
      %v2124 = vpop.f32.mrf.mxu0
      %2125 = vmatprep.mubr.f32.mxu0 0.0
      %2126 = vmatmul.mubr.f32.gmra.mxu0 %v1927
      %v2127 = vpop.f32.mrf.mxu0
      %v2128 = vadd.f32 0.0, %v2127
      %v2129 = vpop.f32.mrf.mxu0
      %2130 = vmatprep.mubr.f32.mxu0 0.0
      %2131 = vmatmul.mubr.f32.gmra.mxu0 %v1930
      %v2132 = vpop.f32.mrf.mxu0
      %v2133 = vadd.f32 0.0, %v2132
      %v2134 = vpop.f32.mrf.mxu0
      %2135 = vmatprep.mubr.f32.mxu0 0.0
      %2136 = vmatmul.mubr.f32.gmra.mxu0 %v1933
      %v2137 = vpop.f32.mrf.mxu0
      %v2138 = vadd.f32 0.0, %v2137
      %v2139 = vpop.f32.mrf.mxu0
      %2140 = vmatprep.mubr.f32.mxu0 0.0
      %2141 = vmatmul.mubr.f32.gmra.mxu0 %v1936
      %v2142 = vpop.f32.mrf.mxu0
      %v2143 = vadd.f32 0.0, %v2142
      %v2144 = vpop.f32.mrf.mxu0
      %2145 = vmatprep.mubr.f32.mxu0 0.0
      %2146 = vmatmul.mubr.f32.gmra.mxu0 %v1939
      %v2147 = vpop.f32.mrf.mxu0
      %v2148 = vadd.f32 0.0, %v2147
      %v2149 = vpop.f32.mrf.mxu0
      %2150 = vmatprep.mubr.f32.mxu0 0.0
      %2151 = vmatmul.mubr.f32.gmra.mxu0 %v1942
      %v2152 = vpop.f32.mrf.mxu0
      %v2153 = vadd.f32 0.0, %v2152
      %v2154 = vpop.f32.mrf.mxu0
      %2155 = vmatprep.mubr.f32.mxu0 0.0
      %2156 = vmatmul.mubr.f32.gmra.mxu0 %v1945
      %v2157 = vpop.f32.mrf.mxu0
      %v2158 = vadd.f32 0.0, %v2157
      %v2159 = vpop.f32.mrf.mxu0
      %2160 = vmatprep.mubr.f32.mxu0 0.0
      %2161 = vmatmul.mubr.f32.gmra.mxu0 %v1948
      %v2162 = vpop.f32.mrf.mxu0
      %v2163 = vadd.f32 0.0, %v2162
      %v2164 = vpop.f32.mrf.mxu0
      %2165 = vmatprep.mubr.f32.mxu0 0.0
      %2166 = vmatmul.mubr.f32.gmra.mxu0 %v1951
      %v2167 = vpop.f32.mrf.mxu0
      %v2168 = vadd.f32 0.0, %v2167
      %v2169 = vpop.f32.mrf.mxu0
      %2170 = vmatprep.mubr.f32.mxu0 0.0
      %2171 = vmatmul.mubr.f32.gmra.mxu0 %v1954
      %v2172 = vpop.f32.mrf.mxu0
      %v2173 = vadd.f32 0.0, %v2172
      %v2174 = vpop.f32.mrf.mxu0
      %2175 = vmatprep.mubr.f32.mxu0 0.0
      %2176 = vmatmul.mubr.f32.gmra.mxu0 %v1957
      %v2177 = vpop.f32.mrf.mxu0
      %v2178 = vadd.f32 0.0, %v2177
      %v2179 = vpop.f32.mrf.mxu0
      %2180 = vmatprep.mubr.f32.mxu0 0.0
      %2181 = vmatmul.mubr.f32.gmra.mxu0 %v1960
      %v2182 = vpop.f32.mrf.mxu0
      %v2183 = vadd.f32 0.0, %v2182
      %v2184 = vpop.f32.mrf.mxu0
      %2185 = vmatprep.mubr.f32.mxu0 0.0
      %2186 = vmatmul.mubr.f32.gmra.mxu0 %v1963
      %v2187 = vpop.f32.mrf.mxu0
      %v2188 = vadd.f32 0.0, %v2187
      %v2189 = vpop.f32.mrf.mxu0
      %2190 = vmatprep.mubr.f32.mxu0 0.0
      %2191 = vmatmul.mubr.f32.gmra.mxu0 %v1966
      %v2192 = vpop.f32.mrf.mxu0
      %v2193 = vadd.f32 0.0, %v2192
      %v2194 = vpop.f32.mrf.mxu0
      %2195 = vdwg.mxu0
      %v2196 = vadd.f32 %v1806, %v2038
      %v2197 = vadd.f32 %v1807, %v2043
      %v2198 = vadd.f32 %v1808, %v2048
      %v2199 = vadd.f32 %v1809, %v2053
      %v2200 = vadd.f32 %v1810, %v2058
      %v2201 = vadd.f32 %v1811, %v2063
      %v2202 = vadd.f32 %v1812, %v2068
      %v2203 = vadd.f32 %v1813, %v2073
      %v2204 = vadd.f32 %v1814, %v2078
      %v2205 = vadd.f32 %v1815, %v2083
      %v2206 = vadd.f32 %v1816, %v2088
      %v2207 = vadd.f32 %v1817, %v2093
      %v2208 = vadd.f32 %v1818, %v2098
      %v2209 = vadd.f32 %v1819, %v2103
      %v2210 = vadd.f32 %v1820, %v2108
      %v2211 = vadd.f32 %v1821, %v2113
      %v2212 = vadd.f32 %v1822, %v2118
      %v2213 = vadd.f32 %v1823, %v2123
      %v2214 = vadd.f32 %v1824, %v2128
      %v2215 = vadd.f32 %v1825, %v2133
      %v2216 = vadd.f32 %v1826, %v2138
      %v2217 = vadd.f32 %v1827, %v2143
      %v2218 = vadd.f32 %v1828, %v2148
      %v2219 = vadd.f32 %v1829, %v2153
      %v2220 = vadd.f32 %v1830, %v2158
      %v2221 = vadd.f32 %v1831, %v2163
      %v2222 = vadd.f32 %v1832, %v2168
      %v2223 = vadd.f32 %v1833, %v2173
      %v2224 = vadd.f32 %v1834, %v2178
      %v2225 = vadd.f32 %v1835, %v2183
      %v2226 = vadd.f32 %v1836, %v2188
      %v2227 = vadd.f32 %v1837, %v2193
      %v2228 = vld [vmem:[%s1447 + $0x2] sm:$0xff]
      %v2229 = vld [vmem:[%s1447 + $0xa] sm:$0xff]
      %v2230 = vld [vmem:[%s1447 + $0x1a] sm:$0xff]
      %v2231 = vld [vmem:[%s1447 + $0x22] sm:$0xff]
      %v2232 = vld [vmem:[%s1447 + $0x32] sm:$0xff]
      %v2233 = vld [vmem:[%s1447 + $0x3a] sm:$0xff]
      %v2234 = vld [vmem:[%s1447 + $0x4a] sm:$0xff]
      %v2235 = vld [vmem:[%s1447 + $0x52] sm:$0xff]
      %v2236 = vld [vmem:[%s1447 + $0x62] sm:$0xff]
      %v2237 = vld [vmem:[%s1447 + $0x6a] sm:$0xff]
      %v2238 = vld [vmem:[%s1447 + $0x7a] sm:$0xff]
      %v2239 = vld [vmem:[%s1447 + $0x82] sm:$0xff]
      %v2240 = vld [vmem:[%s1447 + $0x92] sm:$0xff]
      %v2241 = vld [vmem:[%s1447 + $0x9a] sm:$0xff]
      %v2242 = vld [vmem:[%s1447 + $0xaa] sm:$0xff]
      %v2243 = vld [vmem:[%s1447 + $0xb2] sm:$0xff]
      %v2244 = vld [vmem:[%s1447 + $0xc2] sm:$0xff]
      %v2245 = vld [vmem:[%s1447 + $0xca] sm:$0xff]
      %v2246 = vld [vmem:[%s1447 + $0xda] sm:$0xff]
      %v2247 = vld [vmem:[%s1447 + $0xe2] sm:$0xff]
      %v2248 = vld [vmem:[%s1447 + $0xf2] sm:$0xff]
      %v2249 = vld [vmem:[%s1447 + $0xfa] sm:$0xff]
      %v2250 = vld [vmem:[%s1447 + $0x10a] sm:$0xff]
      %v2251 = vld [vmem:[%s1447 + $0x112] sm:$0xff]
      %v2252 = vld [vmem:[%s1447 + $0x122] sm:$0xff]
      %v2253 = vld [vmem:[%s1447 + $0x12a] sm:$0xff]
      %v2254 = vld [vmem:[%s1447 + $0x13a] sm:$0xff]
      %v2255 = vld [vmem:[%s1447 + $0x142] sm:$0xff]
      %v2256 = vld [vmem:[%s1447 + $0x152] sm:$0xff]
      %v2257 = vld [vmem:[%s1447 + $0x15a] sm:$0xff]
      %v2258 = vld [vmem:[%s1447 + $0x16a] sm:$0xff]
      %v2259 = vld [vmem:[%s1447 + $0x172] sm:$0xff]
      %s2260 = scalar_lea.vmem %s1, 20
      %v2261 = vld [vmem:[%s2260] sm:$0xf]
      %v2263 = vsel %vm405, %v2228, 0
      %v2266 = vsel %vm405, %v2229, 0
      %v2269 = vsel %vm405, %v2230, 0
      %v2272 = vsel %vm405, %v2231, 0
      %v2275 = vsel %vm405, %v2232, 0
      %v2278 = vsel %vm405, %v2233, 0
      %v2281 = vsel %vm405, %v2234, 0
      %v2284 = vsel %vm405, %v2235, 0
      %v2287 = vsel %vm405, %v2236, 0
      %v2290 = vsel %vm405, %v2237, 0
      %v2293 = vsel %vm405, %v2238, 0
      %v2296 = vsel %vm405, %v2239, 0
      %v2299 = vsel %vm405, %v2240, 0
      %v2302 = vsel %vm405, %v2241, 0
      %v2305 = vsel %vm405, %v2242, 0
      %v2308 = vsel %vm405, %v2243, 0
      %v2311 = vsel %vm405, %v2244, 0
      %v2314 = vsel %vm405, %v2245, 0
      %v2317 = vsel %vm405, %v2246, 0
      %v2320 = vsel %vm405, %v2247, 0
      %v2323 = vsel %vm405, %v2248, 0
      %v2326 = vsel %vm405, %v2249, 0
      %v2329 = vsel %vm405, %v2250, 0
      %v2332 = vsel %vm405, %v2251, 0
      %v2335 = vsel %vm405, %v2252, 0
      %v2338 = vsel %vm405, %v2253, 0
      %v2341 = vsel %vm405, %v2254, 0
      %v2344 = vsel %vm405, %v2255, 0
      %v2347 = vsel %vm405, %v2256, 0
      %v2350 = vsel %vm405, %v2257, 0
      %v2353 = vsel %vm405, %v2258, 0
      %v2356 = vsel %vm405, %v2259, 0
      %v2359 = vsel %vm502, %v2261, 0
      %2361 = vmatprep.subr.mxu0 0.0
      %2362 = vmatpush1.msra.mxu0 0.0
      %2363 = vmatprep.subr.mxu0 0.0
      %2364 = vmatpush1.msra.mxu0 0.0
      %2365 = vmatprep.subr.mxu0 0.0
      %2366 = vmatpush1.msra.mxu0 0.0
      %2367 = vmatprep.subr.mxu0 0.0
      %2368 = vmatpush1.msra.mxu0 0.0
      %2369 = vmatprep.subr.mxu0 0.0
      %2370 = vmatpush1.msra.mxu0 0.0
      %2371 = vmatprep.subr.mxu0 0.0
      %2372 = vmatpush1.msra.mxu0 0.0
      %2373 = vmatprep.subr.mxu0 0.0
      %2374 = vmatpush1.msra.mxu0 0.0
      %2375 = vmatprep.subr.mxu0 0.0
      %2376 = vmatpush1.msra.mxu0 0.0
      %2377 = vmatprep.subr.mxu0 0.0
      %2378 = vmatpush1.msra.mxu0 0.0
      %2379 = vmatprep.subr.mxu0 0.0
      %2380 = vmatpush1.msra.mxu0 0.0
      %2381 = vmatprep.subr.mxu0 0.0
      %2382 = vmatpush1.msra.mxu0 0.0
      %2383 = vmatprep.subr.mxu0 0.0
      %2384 = vmatpush1.msra.mxu0 0.0
      %2385 = vmatprep.subr.mxu0 0.0
      %2386 = vmatpush1.msra.mxu0 0.0
      %2387 = vmatprep.subr.mxu0 0.0
      %2388 = vmatpush1.msra.mxu0 0.0
      %2389 = vmatprep.subr.mxu0 0.0
      %2390 = vmatpush1.msra.mxu0 0.0
      %2391 = vmatprep.subr.mxu0 0.0
      %2392 = vmatpush1.msra.mxu0 %v2359
      %2393 = vmatprep.subr.mxu0 0.0
      %2394 = vmatpush2.msra.mxu0 0.0
      %2395 = vmatprep.subr.mxu0 0.0
      %2396 = vmatpush2.msra.mxu0 0.0
      %2397 = vmatprep.subr.mxu0 0.0
      %2398 = vmatpush2.msra.mxu0 0.0
      %2399 = vmatprep.subr.mxu0 0.0
      %2400 = vmatpush2.msra.mxu0 0.0
      %2401 = vmatprep.subr.mxu0 0.0
      %2402 = vmatpush2.msra.mxu0 0.0
      %2403 = vmatprep.subr.mxu0 0.0
      %2404 = vmatpush2.msra.mxu0 0.0
      %2405 = vmatprep.subr.mxu0 0.0
      %2406 = vmatpush2.msra.mxu0 0.0
      %2407 = vmatprep.subr.mxu0 0.0
      %2408 = vmatpush2.msra.mxu0 0.0
      %2409 = vmatprep.subr.mxu0 0.0
      %2410 = vmatpush2.msra.mxu0 0.0
      %2411 = vmatprep.subr.mxu0 0.0
      %2412 = vmatpush2.msra.mxu0 0.0
      %2413 = vmatprep.subr.mxu0 0.0
      %2414 = vmatpush2.msra.mxu0 0.0
      %2415 = vmatprep.subr.mxu0 0.0
      %2416 = vmatpush2.msra.mxu0 0.0
      %2417 = vmatprep.subr.mxu0 0.0
      %2418 = vmatpush2.msra.mxu0 0.0
      %2419 = vmatprep.subr.mxu0 0.0
      %2420 = vmatpush2.msra.mxu0 0.0
      %2421 = vmatprep.subr.mxu0 0.0
      %2422 = vmatpush2.msra.mxu0 0.0
      %2423 = vmatprep.subr.mxu0 0.0
      %2424 = vmatpush2.msra.mxu0 0.0
      %2425 = vmatprep.mubr.f32.mxu0 0.0
      %2426 = vmatmul.mubr.f32.gmra.mxu0 %v2263
      %v2427 = vpop.f32.mrf.mxu0
      %v2428 = vadd.f32 0.0, %v2427
      %v2429 = vpop.f32.mrf.mxu0
      %2430 = vmatprep.mubr.f32.mxu0 0.0
      %2431 = vmatmul.mubr.f32.gmra.mxu0 %v2266
      %v2432 = vpop.f32.mrf.mxu0
      %v2433 = vadd.f32 0.0, %v2432
      %v2434 = vpop.f32.mrf.mxu0
      %2435 = vmatprep.mubr.f32.mxu0 0.0
      %2436 = vmatmul.mubr.f32.gmra.mxu0 %v2269
      %v2437 = vpop.f32.mrf.mxu0
      %v2438 = vadd.f32 0.0, %v2437
      %v2439 = vpop.f32.mrf.mxu0
      %2440 = vmatprep.mubr.f32.mxu0 0.0
      %2441 = vmatmul.mubr.f32.gmra.mxu0 %v2272
      %v2442 = vpop.f32.mrf.mxu0
      %v2443 = vadd.f32 0.0, %v2442
      %v2444 = vpop.f32.mrf.mxu0
      %2445 = vmatprep.mubr.f32.mxu0 0.0
      %2446 = vmatmul.mubr.f32.gmra.mxu0 %v2275
      %v2447 = vpop.f32.mrf.mxu0
      %v2448 = vadd.f32 0.0, %v2447
      %v2449 = vpop.f32.mrf.mxu0
      %2450 = vmatprep.mubr.f32.mxu0 0.0
      %2451 = vmatmul.mubr.f32.gmra.mxu0 %v2278
      %v2452 = vpop.f32.mrf.mxu0
      %v2453 = vadd.f32 0.0, %v2452
      %v2454 = vpop.f32.mrf.mxu0
      %2455 = vmatprep.mubr.f32.mxu0 0.0
      %2456 = vmatmul.mubr.f32.gmra.mxu0 %v2281
      %v2457 = vpop.f32.mrf.mxu0
      %v2458 = vadd.f32 0.0, %v2457
      %v2459 = vpop.f32.mrf.mxu0
      %2460 = vmatprep.mubr.f32.mxu0 0.0
      %2461 = vmatmul.mubr.f32.gmra.mxu0 %v2284
      %v2462 = vpop.f32.mrf.mxu0
      %v2463 = vadd.f32 0.0, %v2462
      %v2464 = vpop.f32.mrf.mxu0
      %2465 = vmatprep.mubr.f32.mxu0 0.0
      %2466 = vmatmul.mubr.f32.gmra.mxu0 %v2287
      %v2467 = vpop.f32.mrf.mxu0
      %v2468 = vadd.f32 0.0, %v2467
      %v2469 = vpop.f32.mrf.mxu0
      %2470 = vmatprep.mubr.f32.mxu0 0.0
      %2471 = vmatmul.mubr.f32.gmra.mxu0 %v2290
      %v2472 = vpop.f32.mrf.mxu0
      %v2473 = vadd.f32 0.0, %v2472
      %v2474 = vpop.f32.mrf.mxu0
      %2475 = vmatprep.mubr.f32.mxu0 0.0
      %2476 = vmatmul.mubr.f32.gmra.mxu0 %v2293
      %v2477 = vpop.f32.mrf.mxu0
      %v2478 = vadd.f32 0.0, %v2477
      %v2479 = vpop.f32.mrf.mxu0
      %2480 = vmatprep.mubr.f32.mxu0 0.0
      %2481 = vmatmul.mubr.f32.gmra.mxu0 %v2296
      %v2482 = vpop.f32.mrf.mxu0
      %v2483 = vadd.f32 0.0, %v2482
      %v2484 = vpop.f32.mrf.mxu0
      %2485 = vmatprep.mubr.f32.mxu0 0.0
      %2486 = vmatmul.mubr.f32.gmra.mxu0 %v2299
      %v2487 = vpop.f32.mrf.mxu0
      %v2488 = vadd.f32 0.0, %v2487
      %v2489 = vpop.f32.mrf.mxu0
      %2490 = vmatprep.mubr.f32.mxu0 0.0
      %2491 = vmatmul.mubr.f32.gmra.mxu0 %v2302
      %v2492 = vpop.f32.mrf.mxu0
      %v2493 = vadd.f32 0.0, %v2492
      %v2494 = vpop.f32.mrf.mxu0
      %2495 = vmatprep.mubr.f32.mxu0 0.0
      %2496 = vmatmul.mubr.f32.gmra.mxu0 %v2305
      %v2497 = vpop.f32.mrf.mxu0
      %v2498 = vadd.f32 0.0, %v2497
      %v2499 = vpop.f32.mrf.mxu0
      %2500 = vmatprep.mubr.f32.mxu0 0.0
      %2501 = vmatmul.mubr.f32.gmra.mxu0 %v2308
      %v2502 = vpop.f32.mrf.mxu0
      %v2503 = vadd.f32 0.0, %v2502
      %v2504 = vpop.f32.mrf.mxu0
      %2505 = vmatprep.mubr.f32.mxu0 0.0
      %2506 = vmatmul.mubr.f32.gmra.mxu0 %v2311
      %v2507 = vpop.f32.mrf.mxu0
      %v2508 = vadd.f32 0.0, %v2507
      %v2509 = vpop.f32.mrf.mxu0
      %2510 = vmatprep.mubr.f32.mxu0 0.0
      %2511 = vmatmul.mubr.f32.gmra.mxu0 %v2314
      %v2512 = vpop.f32.mrf.mxu0
      %v2513 = vadd.f32 0.0, %v2512
      %v2514 = vpop.f32.mrf.mxu0
      %2515 = vmatprep.mubr.f32.mxu0 0.0
      %2516 = vmatmul.mubr.f32.gmra.mxu0 %v2317
      %v2517 = vpop.f32.mrf.mxu0
      %v2518 = vadd.f32 0.0, %v2517
      %v2519 = vpop.f32.mrf.mxu0
      %2520 = vmatprep.mubr.f32.mxu0 0.0
      %2521 = vmatmul.mubr.f32.gmra.mxu0 %v2320
      %v2522 = vpop.f32.mrf.mxu0
      %v2523 = vadd.f32 0.0, %v2522
      %v2524 = vpop.f32.mrf.mxu0
      %2525 = vmatprep.mubr.f32.mxu0 0.0
      %2526 = vmatmul.mubr.f32.gmra.mxu0 %v2323
      %v2527 = vpop.f32.mrf.mxu0
      %v2528 = vadd.f32 0.0, %v2527
      %v2529 = vpop.f32.mrf.mxu0
      %2530 = vmatprep.mubr.f32.mxu0 0.0
      %2531 = vmatmul.mubr.f32.gmra.mxu0 %v2326
      %v2532 = vpop.f32.mrf.mxu0
      %v2533 = vadd.f32 0.0, %v2532
      %v2534 = vpop.f32.mrf.mxu0
      %2535 = vmatprep.mubr.f32.mxu0 0.0
      %2536 = vmatmul.mubr.f32.gmra.mxu0 %v2329
      %v2537 = vpop.f32.mrf.mxu0
      %v2538 = vadd.f32 0.0, %v2537
      %v2539 = vpop.f32.mrf.mxu0
      %2540 = vmatprep.mubr.f32.mxu0 0.0
      %2541 = vmatmul.mubr.f32.gmra.mxu0 %v2332
      %v2542 = vpop.f32.mrf.mxu0
      %v2543 = vadd.f32 0.0, %v2542
      %v2544 = vpop.f32.mrf.mxu0
      %2545 = vmatprep.mubr.f32.mxu0 0.0
      %2546 = vmatmul.mubr.f32.gmra.mxu0 %v2335
      %v2547 = vpop.f32.mrf.mxu0
      %v2548 = vadd.f32 0.0, %v2547
      %v2549 = vpop.f32.mrf.mxu0
      %2550 = vmatprep.mubr.f32.mxu0 0.0
      %2551 = vmatmul.mubr.f32.gmra.mxu0 %v2338
      %v2552 = vpop.f32.mrf.mxu0
      %v2553 = vadd.f32 0.0, %v2552
      %v2554 = vpop.f32.mrf.mxu0
      %2555 = vmatprep.mubr.f32.mxu0 0.0
      %2556 = vmatmul.mubr.f32.gmra.mxu0 %v2341
      %v2557 = vpop.f32.mrf.mxu0
      %v2558 = vadd.f32 0.0, %v2557
      %v2559 = vpop.f32.mrf.mxu0
      %2560 = vmatprep.mubr.f32.mxu0 0.0
      %2561 = vmatmul.mubr.f32.gmra.mxu0 %v2344
      %v2562 = vpop.f32.mrf.mxu0
      %v2563 = vadd.f32 0.0, %v2562
      %v2564 = vpop.f32.mrf.mxu0
      %2565 = vmatprep.mubr.f32.mxu0 0.0
      %2566 = vmatmul.mubr.f32.gmra.mxu0 %v2347
      %v2567 = vpop.f32.mrf.mxu0
      %v2568 = vadd.f32 0.0, %v2567
      %v2569 = vpop.f32.mrf.mxu0
      %2570 = vmatprep.mubr.f32.mxu0 0.0
      %2571 = vmatmul.mubr.f32.gmra.mxu0 %v2350
      %v2572 = vpop.f32.mrf.mxu0
      %v2573 = vadd.f32 0.0, %v2572
      %v2574 = vpop.f32.mrf.mxu0
      %2575 = vmatprep.mubr.f32.mxu0 0.0
      %2576 = vmatmul.mubr.f32.gmra.mxu0 %v2353
      %v2577 = vpop.f32.mrf.mxu0
      %v2578 = vadd.f32 0.0, %v2577
      %v2579 = vpop.f32.mrf.mxu0
      %2580 = vmatprep.mubr.f32.mxu0 0.0
      %2581 = vmatmul.mubr.f32.gmra.mxu0 %v2356
      %v2582 = vpop.f32.mrf.mxu0
      %v2583 = vadd.f32 0.0, %v2582
      %v2584 = vpop.f32.mrf.mxu0
      %2585 = vdwg.mxu0
      %v2586 = vadd.f32 %v2196, %v2428
      %v2587 = vadd.f32 %v2197, %v2433
      %v2588 = vadd.f32 %v2198, %v2438
      %v2589 = vadd.f32 %v2199, %v2443
      %v2590 = vadd.f32 %v2200, %v2448
      %v2591 = vadd.f32 %v2201, %v2453
      %v2592 = vadd.f32 %v2202, %v2458
      %v2593 = vadd.f32 %v2203, %v2463
      %v2594 = vadd.f32 %v2204, %v2468
      %v2595 = vadd.f32 %v2205, %v2473
      %v2596 = vadd.f32 %v2206, %v2478
      %v2597 = vadd.f32 %v2207, %v2483
      %v2598 = vadd.f32 %v2208, %v2488
      %v2599 = vadd.f32 %v2209, %v2493
      %v2600 = vadd.f32 %v2210, %v2498
      %v2601 = vadd.f32 %v2211, %v2503
      %v2602 = vadd.f32 %v2212, %v2508
      %v2603 = vadd.f32 %v2213, %v2513
      %v2604 = vadd.f32 %v2214, %v2518
      %v2605 = vadd.f32 %v2215, %v2523
      %v2606 = vadd.f32 %v2216, %v2528
      %v2607 = vadd.f32 %v2217, %v2533
      %v2608 = vadd.f32 %v2218, %v2538
      %v2609 = vadd.f32 %v2219, %v2543
      %v2610 = vadd.f32 %v2220, %v2548
      %v2611 = vadd.f32 %v2221, %v2553
      %v2612 = vadd.f32 %v2222, %v2558
      %v2613 = vadd.f32 %v2223, %v2563
      %v2614 = vadd.f32 %v2224, %v2568
      %v2615 = vadd.f32 %v2225, %v2573
      %v2616 = vadd.f32 %v2226, %v2578
      %v2617 = vadd.f32 %v2227, %v2583
      %s2618 = sadd.s32 %s335, 2
      %s2619 = smul.u32 %s2618, 24
      %s2620 = scalar_lea.vmem [#allocation2], %s2619
      %v2621 = vld [vmem:[%s2620] sm:$0xff]
      %v2622 = vld [vmem:[%s2620 + $0x8] sm:$0xff]
      %v2623 = vld [vmem:[%s2620 + $0x18] sm:$0xff]
      %v2624 = vld [vmem:[%s2620 + $0x20] sm:$0xff]
      %v2625 = vld [vmem:[%s2620 + $0x30] sm:$0xff]
      %v2626 = vld [vmem:[%s2620 + $0x38] sm:$0xff]
      %v2627 = vld [vmem:[%s2620 + $0x48] sm:$0xff]
      %v2628 = vld [vmem:[%s2620 + $0x50] sm:$0xff]
      %v2629 = vld [vmem:[%s2620 + $0x60] sm:$0xff]
      %v2630 = vld [vmem:[%s2620 + $0x68] sm:$0xff]
      %v2631 = vld [vmem:[%s2620 + $0x78] sm:$0xff]
      %v2632 = vld [vmem:[%s2620 + $0x80] sm:$0xff]
      %v2633 = vld [vmem:[%s2620 + $0x90] sm:$0xff]
      %v2634 = vld [vmem:[%s2620 + $0x98] sm:$0xff]
      %v2635 = vld [vmem:[%s2620 + $0xa8] sm:$0xff]
      %v2636 = vld [vmem:[%s2620 + $0xb0] sm:$0xff]
      %v2637 = vld [vmem:[%s2620 + $0xc0] sm:$0xff]
      %v2638 = vld [vmem:[%s2620 + $0xc8] sm:$0xff]
      %v2639 = vld [vmem:[%s2620 + $0xd8] sm:$0xff]
      %v2640 = vld [vmem:[%s2620 + $0xe0] sm:$0xff]
      %v2641 = vld [vmem:[%s2620 + $0xf0] sm:$0xff]
      %v2642 = vld [vmem:[%s2620 + $0xf8] sm:$0xff]
      %v2643 = vld [vmem:[%s2620 + $0x108] sm:$0xff]
      %v2644 = vld [vmem:[%s2620 + $0x110] sm:$0xff]
      %v2645 = vld [vmem:[%s2620 + $0x120] sm:$0xff]
      %v2646 = vld [vmem:[%s2620 + $0x128] sm:$0xff]
      %v2647 = vld [vmem:[%s2620 + $0x138] sm:$0xff]
      %v2648 = vld [vmem:[%s2620 + $0x140] sm:$0xff]
      %v2649 = vld [vmem:[%s2620 + $0x150] sm:$0xff]
      %v2650 = vld [vmem:[%s2620 + $0x158] sm:$0xff]
      %v2651 = vld [vmem:[%s2620 + $0x168] sm:$0xff]
      %v2652 = vld [vmem:[%s2620 + $0x170] sm:$0xff]
      %s2653 = scalar_lea.vmem %s1, 24
      %v2654 = vld [vmem:[%s2653] sm:$0xf]
      %v2656 = vsel %vm405, %v2621, 0
      %v2659 = vsel %vm405, %v2622, 0
      %v2662 = vsel %vm405, %v2623, 0
      %v2665 = vsel %vm405, %v2624, 0
      %v2668 = vsel %vm405, %v2625, 0
      %v2671 = vsel %vm405, %v2626, 0
      %v2674 = vsel %vm405, %v2627, 0
      %v2677 = vsel %vm405, %v2628, 0
      %v2680 = vsel %vm405, %v2629, 0
      %v2683 = vsel %vm405, %v2630, 0
      %v2686 = vsel %vm405, %v2631, 0
      %v2689 = vsel %vm405, %v2632, 0
      %v2692 = vsel %vm405, %v2633, 0
      %v2695 = vsel %vm405, %v2634, 0
      %v2698 = vsel %vm405, %v2635, 0
      %v2701 = vsel %vm405, %v2636, 0
      %v2704 = vsel %vm405, %v2637, 0
      %v2707 = vsel %vm405, %v2638, 0
      %v2710 = vsel %vm405, %v2639, 0
      %v2713 = vsel %vm405, %v2640, 0
      %v2716 = vsel %vm405, %v2641, 0
      %v2719 = vsel %vm405, %v2642, 0
      %v2722 = vsel %vm405, %v2643, 0
      %v2725 = vsel %vm405, %v2644, 0
      %v2728 = vsel %vm405, %v2645, 0
      %v2731 = vsel %vm405, %v2646, 0
      %v2734 = vsel %vm405, %v2647, 0
      %v2737 = vsel %vm405, %v2648, 0
      %v2740 = vsel %vm405, %v2649, 0
      %v2743 = vsel %vm405, %v2650, 0
      %v2746 = vsel %vm405, %v2651, 0
      %v2749 = vsel %vm405, %v2652, 0
      %v2752 = vsel %vm502, %v2654, 0
      %2754 = vmatprep.subr.mxu0 0.0
      %2755 = vmatpush1.msra.mxu0 0.0
      %2756 = vmatprep.subr.mxu0 0.0
      %2757 = vmatpush1.msra.mxu0 0.0
      %2758 = vmatprep.subr.mxu0 0.0
      %2759 = vmatpush1.msra.mxu0 0.0
      %2760 = vmatprep.subr.mxu0 0.0
      %2761 = vmatpush1.msra.mxu0 0.0
      %2762 = vmatprep.subr.mxu0 0.0
      %2763 = vmatpush1.msra.mxu0 0.0
      %2764 = vmatprep.subr.mxu0 0.0
      %2765 = vmatpush1.msra.mxu0 0.0
      %2766 = vmatprep.subr.mxu0 0.0
      %2767 = vmatpush1.msra.mxu0 0.0
      %2768 = vmatprep.subr.mxu0 0.0
      %2769 = vmatpush1.msra.mxu0 0.0
      %2770 = vmatprep.subr.mxu0 0.0
      %2771 = vmatpush1.msra.mxu0 0.0
      %2772 = vmatprep.subr.mxu0 0.0
      %2773 = vmatpush1.msra.mxu0 0.0
      %2774 = vmatprep.subr.mxu0 0.0
      %2775 = vmatpush1.msra.mxu0 0.0
      %2776 = vmatprep.subr.mxu0 0.0
      %2777 = vmatpush1.msra.mxu0 0.0
      %2778 = vmatprep.subr.mxu0 0.0
      %2779 = vmatpush1.msra.mxu0 0.0
      %2780 = vmatprep.subr.mxu0 0.0
      %2781 = vmatpush1.msra.mxu0 0.0
      %2782 = vmatprep.subr.mxu0 0.0
      %2783 = vmatpush1.msra.mxu0 0.0
      %2784 = vmatprep.subr.mxu0 0.0
      %2785 = vmatpush1.msra.mxu0 %v2752
      %2786 = vmatprep.subr.mxu0 0.0
      %2787 = vmatpush2.msra.mxu0 0.0
      %2788 = vmatprep.subr.mxu0 0.0
      %2789 = vmatpush2.msra.mxu0 0.0
      %2790 = vmatprep.subr.mxu0 0.0
      %2791 = vmatpush2.msra.mxu0 0.0
      %2792 = vmatprep.subr.mxu0 0.0
      %2793 = vmatpush2.msra.mxu0 0.0
      %2794 = vmatprep.subr.mxu0 0.0
      %2795 = vmatpush2.msra.mxu0 0.0
      %2796 = vmatprep.subr.mxu0 0.0
      %2797 = vmatpush2.msra.mxu0 0.0
      %2798 = vmatprep.subr.mxu0 0.0
      %2799 = vmatpush2.msra.mxu0 0.0
      %2800 = vmatprep.subr.mxu0 0.0
      %2801 = vmatpush2.msra.mxu0 0.0
      %2802 = vmatprep.subr.mxu0 0.0
      %2803 = vmatpush2.msra.mxu0 0.0
      %2804 = vmatprep.subr.mxu0 0.0
      %2805 = vmatpush2.msra.mxu0 0.0
      %2806 = vmatprep.subr.mxu0 0.0
      %2807 = vmatpush2.msra.mxu0 0.0
      %2808 = vmatprep.subr.mxu0 0.0
      %2809 = vmatpush2.msra.mxu0 0.0
      %2810 = vmatprep.subr.mxu0 0.0
      %2811 = vmatpush2.msra.mxu0 0.0
      %2812 = vmatprep.subr.mxu0 0.0
      %2813 = vmatpush2.msra.mxu0 0.0
      %2814 = vmatprep.subr.mxu0 0.0
      %2815 = vmatpush2.msra.mxu0 0.0
      %2816 = vmatprep.subr.mxu0 0.0
      %2817 = vmatpush2.msra.mxu0 0.0
      %2818 = vmatprep.mubr.f32.mxu0 0.0
      %2819 = vmatmul.mubr.f32.gmra.mxu0 %v2656
      %v2820 = vpop.f32.mrf.mxu0
      %v2821 = vadd.f32 0.0, %v2820
      %v2822 = vpop.f32.mrf.mxu0
      %2823 = vmatprep.mubr.f32.mxu0 0.0
      %2824 = vmatmul.mubr.f32.gmra.mxu0 %v2659
      %v2825 = vpop.f32.mrf.mxu0
      %v2826 = vadd.f32 0.0, %v2825
      %v2827 = vpop.f32.mrf.mxu0
      %2828 = vmatprep.mubr.f32.mxu0 0.0
      %2829 = vmatmul.mubr.f32.gmra.mxu0 %v2662
      %v2830 = vpop.f32.mrf.mxu0
      %v2831 = vadd.f32 0.0, %v2830
      %v2832 = vpop.f32.mrf.mxu0
      %2833 = vmatprep.mubr.f32.mxu0 0.0
      %2834 = vmatmul.mubr.f32.gmra.mxu0 %v2665
      %v2835 = vpop.f32.mrf.mxu0
      %v2836 = vadd.f32 0.0, %v2835
      %v2837 = vpop.f32.mrf.mxu0
      %2838 = vmatprep.mubr.f32.mxu0 0.0
      %2839 = vmatmul.mubr.f32.gmra.mxu0 %v2668
      %v2840 = vpop.f32.mrf.mxu0
      %v2841 = vadd.f32 0.0, %v2840
      %v2842 = vpop.f32.mrf.mxu0
      %2843 = vmatprep.mubr.f32.mxu0 0.0
      %2844 = vmatmul.mubr.f32.gmra.mxu0 %v2671
      %v2845 = vpop.f32.mrf.mxu0
      %v2846 = vadd.f32 0.0, %v2845
      %v2847 = vpop.f32.mrf.mxu0
      %2848 = vmatprep.mubr.f32.mxu0 0.0
      %2849 = vmatmul.mubr.f32.gmra.mxu0 %v2674
      %v2850 = vpop.f32.mrf.mxu0
      %v2851 = vadd.f32 0.0, %v2850
      %v2852 = vpop.f32.mrf.mxu0
      %2853 = vmatprep.mubr.f32.mxu0 0.0
      %2854 = vmatmul.mubr.f32.gmra.mxu0 %v2677
      %v2855 = vpop.f32.mrf.mxu0
      %v2856 = vadd.f32 0.0, %v2855
      %v2857 = vpop.f32.mrf.mxu0
      %2858 = vmatprep.mubr.f32.mxu0 0.0
      %2859 = vmatmul.mubr.f32.gmra.mxu0 %v2680
      %v2860 = vpop.f32.mrf.mxu0
      %v2861 = vadd.f32 0.0, %v2860
      %v2862 = vpop.f32.mrf.mxu0
      %2863 = vmatprep.mubr.f32.mxu0 0.0
      %2864 = vmatmul.mubr.f32.gmra.mxu0 %v2683
      %v2865 = vpop.f32.mrf.mxu0
      %v2866 = vadd.f32 0.0, %v2865
      %v2867 = vpop.f32.mrf.mxu0
      %2868 = vmatprep.mubr.f32.mxu0 0.0
      %2869 = vmatmul.mubr.f32.gmra.mxu0 %v2686
      %v2870 = vpop.f32.mrf.mxu0
      %v2871 = vadd.f32 0.0, %v2870
      %v2872 = vpop.f32.mrf.mxu0
      %2873 = vmatprep.mubr.f32.mxu0 0.0
      %2874 = vmatmul.mubr.f32.gmra.mxu0 %v2689
      %v2875 = vpop.f32.mrf.mxu0
      %v2876 = vadd.f32 0.0, %v2875
      %v2877 = vpop.f32.mrf.mxu0
      %2878 = vmatprep.mubr.f32.mxu0 0.0
      %2879 = vmatmul.mubr.f32.gmra.mxu0 %v2692
      %v2880 = vpop.f32.mrf.mxu0
      %v2881 = vadd.f32 0.0, %v2880
      %v2882 = vpop.f32.mrf.mxu0
      %2883 = vmatprep.mubr.f32.mxu0 0.0
      %2884 = vmatmul.mubr.f32.gmra.mxu0 %v2695
      %v2885 = vpop.f32.mrf.mxu0
      %v2886 = vadd.f32 0.0, %v2885
      %v2887 = vpop.f32.mrf.mxu0
      %2888 = vmatprep.mubr.f32.mxu0 0.0
      %2889 = vmatmul.mubr.f32.gmra.mxu0 %v2698
      %v2890 = vpop.f32.mrf.mxu0
      %v2891 = vadd.f32 0.0, %v2890
      %v2892 = vpop.f32.mrf.mxu0
      %2893 = vmatprep.mubr.f32.mxu0 0.0
      %2894 = vmatmul.mubr.f32.gmra.mxu0 %v2701
      %v2895 = vpop.f32.mrf.mxu0
      %v2896 = vadd.f32 0.0, %v2895
      %v2897 = vpop.f32.mrf.mxu0
      %2898 = vmatprep.mubr.f32.mxu0 0.0
      %2899 = vmatmul.mubr.f32.gmra.mxu0 %v2704
      %v2900 = vpop.f32.mrf.mxu0
      %v2901 = vadd.f32 0.0, %v2900
      %v2902 = vpop.f32.mrf.mxu0
      %2903 = vmatprep.mubr.f32.mxu0 0.0
      %2904 = vmatmul.mubr.f32.gmra.mxu0 %v2707
      %v2905 = vpop.f32.mrf.mxu0
      %v2906 = vadd.f32 0.0, %v2905
      %v2907 = vpop.f32.mrf.mxu0
      %2908 = vmatprep.mubr.f32.mxu0 0.0
      %2909 = vmatmul.mubr.f32.gmra.mxu0 %v2710
      %v2910 = vpop.f32.mrf.mxu0
      %v2911 = vadd.f32 0.0, %v2910
      %v2912 = vpop.f32.mrf.mxu0
      %2913 = vmatprep.mubr.f32.mxu0 0.0
      %2914 = vmatmul.mubr.f32.gmra.mxu0 %v2713
      %v2915 = vpop.f32.mrf.mxu0
      %v2916 = vadd.f32 0.0, %v2915
      %v2917 = vpop.f32.mrf.mxu0
      %2918 = vmatprep.mubr.f32.mxu0 0.0
      %2919 = vmatmul.mubr.f32.gmra.mxu0 %v2716
      %v2920 = vpop.f32.mrf.mxu0
      %v2921 = vadd.f32 0.0, %v2920
      %v2922 = vpop.f32.mrf.mxu0
      %2923 = vmatprep.mubr.f32.mxu0 0.0
      %2924 = vmatmul.mubr.f32.gmra.mxu0 %v2719
      %v2925 = vpop.f32.mrf.mxu0
      %v2926 = vadd.f32 0.0, %v2925
      %v2927 = vpop.f32.mrf.mxu0
      %2928 = vmatprep.mubr.f32.mxu0 0.0
      %2929 = vmatmul.mubr.f32.gmra.mxu0 %v2722
      %v2930 = vpop.f32.mrf.mxu0
      %v2931 = vadd.f32 0.0, %v2930
      %v2932 = vpop.f32.mrf.mxu0
      %2933 = vmatprep.mubr.f32.mxu0 0.0
      %2934 = vmatmul.mubr.f32.gmra.mxu0 %v2725
      %v2935 = vpop.f32.mrf.mxu0
      %v2936 = vadd.f32 0.0, %v2935
      %v2937 = vpop.f32.mrf.mxu0
      %2938 = vmatprep.mubr.f32.mxu0 0.0
      %2939 = vmatmul.mubr.f32.gmra.mxu0 %v2728
      %v2940 = vpop.f32.mrf.mxu0
      %v2941 = vadd.f32 0.0, %v2940
      %v2942 = vpop.f32.mrf.mxu0
      %2943 = vmatprep.mubr.f32.mxu0 0.0
      %2944 = vmatmul.mubr.f32.gmra.mxu0 %v2731
      %v2945 = vpop.f32.mrf.mxu0
      %v2946 = vadd.f32 0.0, %v2945
      %v2947 = vpop.f32.mrf.mxu0
      %2948 = vmatprep.mubr.f32.mxu0 0.0
      %2949 = vmatmul.mubr.f32.gmra.mxu0 %v2734
      %v2950 = vpop.f32.mrf.mxu0
      %v2951 = vadd.f32 0.0, %v2950
      %v2952 = vpop.f32.mrf.mxu0
      %2953 = vmatprep.mubr.f32.mxu0 0.0
      %2954 = vmatmul.mubr.f32.gmra.mxu0 %v2737
      %v2955 = vpop.f32.mrf.mxu0
      %v2956 = vadd.f32 0.0, %v2955
      %v2957 = vpop.f32.mrf.mxu0
      %2958 = vmatprep.mubr.f32.mxu0 0.0
      %2959 = vmatmul.mubr.f32.gmra.mxu0 %v2740
      %v2960 = vpop.f32.mrf.mxu0
      %v2961 = vadd.f32 0.0, %v2960
      %v2962 = vpop.f32.mrf.mxu0
      %2963 = vmatprep.mubr.f32.mxu0 0.0
      %2964 = vmatmul.mubr.f32.gmra.mxu0 %v2743
      %v2965 = vpop.f32.mrf.mxu0
      %v2966 = vadd.f32 0.0, %v2965
      %v2967 = vpop.f32.mrf.mxu0
      %2968 = vmatprep.mubr.f32.mxu0 0.0
      %2969 = vmatmul.mubr.f32.gmra.mxu0 %v2746
      %v2970 = vpop.f32.mrf.mxu0
      %v2971 = vadd.f32 0.0, %v2970
      %v2972 = vpop.f32.mrf.mxu0
      %2973 = vmatprep.mubr.f32.mxu0 0.0
      %2974 = vmatmul.mubr.f32.gmra.mxu0 %v2749
      %v2975 = vpop.f32.mrf.mxu0
      %v2976 = vadd.f32 0.0, %v2975
      %v2977 = vpop.f32.mrf.mxu0
      %2978 = vdwg.mxu0
      %v2979 = vadd.f32 %v2586, %v2821
      %v2980 = vadd.f32 %v2587, %v2826
      %v2981 = vadd.f32 %v2588, %v2831
      %v2982 = vadd.f32 %v2589, %v2836
      %v2983 = vadd.f32 %v2590, %v2841
      %v2984 = vadd.f32 %v2591, %v2846
      %v2985 = vadd.f32 %v2592, %v2851
      %v2986 = vadd.f32 %v2593, %v2856
      %v2987 = vadd.f32 %v2594, %v2861
      %v2988 = vadd.f32 %v2595, %v2866
      %v2989 = vadd.f32 %v2596, %v2871
      %v2990 = vadd.f32 %v2597, %v2876
      %v2991 = vadd.f32 %v2598, %v2881
      %v2992 = vadd.f32 %v2599, %v2886
      %v2993 = vadd.f32 %v2600, %v2891
      %v2994 = vadd.f32 %v2601, %v2896
      %v2995 = vadd.f32 %v2602, %v2901
      %v2996 = vadd.f32 %v2603, %v2906
      %v2997 = vadd.f32 %v2604, %v2911
      %v2998 = vadd.f32 %v2605, %v2916
      %v2999 = vadd.f32 %v2606, %v2921
      %v3000 = vadd.f32 %v2607, %v2926
      %v3001 = vadd.f32 %v2608, %v2931
      %v3002 = vadd.f32 %v2609, %v2936
      %v3003 = vadd.f32 %v2610, %v2941
      %v3004 = vadd.f32 %v2611, %v2946
      %v3005 = vadd.f32 %v2612, %v2951
      %v3006 = vadd.f32 %v2613, %v2956
      %v3007 = vadd.f32 %v2614, %v2961
      %v3008 = vadd.f32 %v2615, %v2966
      %v3009 = vadd.f32 %v2616, %v2971
      %v3010 = vadd.f32 %v2617, %v2976
      %v3011 = vld [vmem:[%s2620 + $0x1] sm:$0xff]
      %v3012 = vld [vmem:[%s2620 + $0x9] sm:$0xff]
      %v3013 = vld [vmem:[%s2620 + $0x19] sm:$0xff]
      %v3014 = vld [vmem:[%s2620 + $0x21] sm:$0xff]
      %v3015 = vld [vmem:[%s2620 + $0x31] sm:$0xff]
      %v3016 = vld [vmem:[%s2620 + $0x39] sm:$0xff]
      %v3017 = vld [vmem:[%s2620 + $0x49] sm:$0xff]
      %v3018 = vld [vmem:[%s2620 + $0x51] sm:$0xff]
      %v3019 = vld [vmem:[%s2620 + $0x61] sm:$0xff]
      %v3020 = vld [vmem:[%s2620 + $0x69] sm:$0xff]
      %v3021 = vld [vmem:[%s2620 + $0x79] sm:$0xff]
      %v3022 = vld [vmem:[%s2620 + $0x81] sm:$0xff]
      %v3023 = vld [vmem:[%s2620 + $0x91] sm:$0xff]
      %v3024 = vld [vmem:[%s2620 + $0x99] sm:$0xff]
      %v3025 = vld [vmem:[%s2620 + $0xa9] sm:$0xff]
      %v3026 = vld [vmem:[%s2620 + $0xb1] sm:$0xff]
      %v3027 = vld [vmem:[%s2620 + $0xc1] sm:$0xff]
      %v3028 = vld [vmem:[%s2620 + $0xc9] sm:$0xff]
      %v3029 = vld [vmem:[%s2620 + $0xd9] sm:$0xff]
      %v3030 = vld [vmem:[%s2620 + $0xe1] sm:$0xff]
      %v3031 = vld [vmem:[%s2620 + $0xf1] sm:$0xff]
      %v3032 = vld [vmem:[%s2620 + $0xf9] sm:$0xff]
      %v3033 = vld [vmem:[%s2620 + $0x109] sm:$0xff]
      %v3034 = vld [vmem:[%s2620 + $0x111] sm:$0xff]
      %v3035 = vld [vmem:[%s2620 + $0x121] sm:$0xff]
      %v3036 = vld [vmem:[%s2620 + $0x129] sm:$0xff]
      %v3037 = vld [vmem:[%s2620 + $0x139] sm:$0xff]
      %v3038 = vld [vmem:[%s2620 + $0x141] sm:$0xff]
      %v3039 = vld [vmem:[%s2620 + $0x151] sm:$0xff]
      %v3040 = vld [vmem:[%s2620 + $0x159] sm:$0xff]
      %v3041 = vld [vmem:[%s2620 + $0x169] sm:$0xff]
      %v3042 = vld [vmem:[%s2620 + $0x171] sm:$0xff]
      %s3043 = scalar_lea.vmem %s1, 28
      %v3044 = vld [vmem:[%s3043] sm:$0xf]
      %v3046 = vsel %vm405, %v3011, 0
      %v3049 = vsel %vm405, %v3012, 0
      %v3052 = vsel %vm405, %v3013, 0
      %v3055 = vsel %vm405, %v3014, 0
      %v3058 = vsel %vm405, %v3015, 0
      %v3061 = vsel %vm405, %v3016, 0
      %v3064 = vsel %vm405, %v3017, 0
      %v3067 = vsel %vm405, %v3018, 0
      %v3070 = vsel %vm405, %v3019, 0
      %v3073 = vsel %vm405, %v3020, 0
      %v3076 = vsel %vm405, %v3021, 0
      %v3079 = vsel %vm405, %v3022, 0
      %v3082 = vsel %vm405, %v3023, 0
      %v3085 = vsel %vm405, %v3024, 0
      %v3088 = vsel %vm405, %v3025, 0
      %v3091 = vsel %vm405, %v3026, 0
      %v3094 = vsel %vm405, %v3027, 0
      %v3097 = vsel %vm405, %v3028, 0
      %v3100 = vsel %vm405, %v3029, 0
      %v3103 = vsel %vm405, %v3030, 0
      %v3106 = vsel %vm405, %v3031, 0
      %v3109 = vsel %vm405, %v3032, 0
      %v3112 = vsel %vm405, %v3033, 0
      %v3115 = vsel %vm405, %v3034, 0
      %v3118 = vsel %vm405, %v3035, 0
      %v3121 = vsel %vm405, %v3036, 0
      %v3124 = vsel %vm405, %v3037, 0
      %v3127 = vsel %vm405, %v3038, 0
      %v3130 = vsel %vm405, %v3039, 0
      %v3133 = vsel %vm405, %v3040, 0
      %v3136 = vsel %vm405, %v3041, 0
      %v3139 = vsel %vm405, %v3042, 0
      %v3142 = vsel %vm502, %v3044, 0
      %3144 = vmatprep.subr.mxu0 0.0
      %3145 = vmatpush1.msra.mxu0 0.0
      %3146 = vmatprep.subr.mxu0 0.0
      %3147 = vmatpush1.msra.mxu0 0.0
      %3148 = vmatprep.subr.mxu0 0.0
      %3149 = vmatpush1.msra.mxu0 0.0
      %3150 = vmatprep.subr.mxu0 0.0
      %3151 = vmatpush1.msra.mxu0 0.0
      %3152 = vmatprep.subr.mxu0 0.0
      %3153 = vmatpush1.msra.mxu0 0.0
      %3154 = vmatprep.subr.mxu0 0.0
      %3155 = vmatpush1.msra.mxu0 0.0
      %3156 = vmatprep.subr.mxu0 0.0
      %3157 = vmatpush1.msra.mxu0 0.0
      %3158 = vmatprep.subr.mxu0 0.0
      %3159 = vmatpush1.msra.mxu0 0.0
      %3160 = vmatprep.subr.mxu0 0.0
      %3161 = vmatpush1.msra.mxu0 0.0
      %3162 = vmatprep.subr.mxu0 0.0
      %3163 = vmatpush1.msra.mxu0 0.0
      %3164 = vmatprep.subr.mxu0 0.0
      %3165 = vmatpush1.msra.mxu0 0.0
      %3166 = vmatprep.subr.mxu0 0.0
      %3167 = vmatpush1.msra.mxu0 0.0
      %3168 = vmatprep.subr.mxu0 0.0
      %3169 = vmatpush1.msra.mxu0 0.0
      %3170 = vmatprep.subr.mxu0 0.0
      %3171 = vmatpush1.msra.mxu0 0.0
      %3172 = vmatprep.subr.mxu0 0.0
      %3173 = vmatpush1.msra.mxu0 0.0
      %3174 = vmatprep.subr.mxu0 0.0
      %3175 = vmatpush1.msra.mxu0 %v3142
      %3176 = vmatprep.subr.mxu0 0.0
      %3177 = vmatpush2.msra.mxu0 0.0
      %3178 = vmatprep.subr.mxu0 0.0
      %3179 = vmatpush2.msra.mxu0 0.0
      %3180 = vmatprep.subr.mxu0 0.0
      %3181 = vmatpush2.msra.mxu0 0.0
      %3182 = vmatprep.subr.mxu0 0.0
      %3183 = vmatpush2.msra.mxu0 0.0
      %3184 = vmatprep.subr.mxu0 0.0
      %3185 = vmatpush2.msra.mxu0 0.0
      %3186 = vmatprep.subr.mxu0 0.0
      %3187 = vmatpush2.msra.mxu0 0.0
      %3188 = vmatprep.subr.mxu0 0.0
      %3189 = vmatpush2.msra.mxu0 0.0
      %3190 = vmatprep.subr.mxu0 0.0
      %3191 = vmatpush2.msra.mxu0 0.0
      %3192 = vmatprep.subr.mxu0 0.0
      %3193 = vmatpush2.msra.mxu0 0.0
      %3194 = vmatprep.subr.mxu0 0.0
      %3195 = vmatpush2.msra.mxu0 0.0
      %3196 = vmatprep.subr.mxu0 0.0
      %3197 = vmatpush2.msra.mxu0 0.0
      %3198 = vmatprep.subr.mxu0 0.0
      %3199 = vmatpush2.msra.mxu0 0.0
      %3200 = vmatprep.subr.mxu0 0.0
      %3201 = vmatpush2.msra.mxu0 0.0
      %3202 = vmatprep.subr.mxu0 0.0
      %3203 = vmatpush2.msra.mxu0 0.0
      %3204 = vmatprep.subr.mxu0 0.0
      %3205 = vmatpush2.msra.mxu0 0.0
      %3206 = vmatprep.subr.mxu0 0.0
      %3207 = vmatpush2.msra.mxu0 0.0
      %3208 = vmatprep.mubr.f32.mxu0 0.0
      %3209 = vmatmul.mubr.f32.gmra.mxu0 %v3046
      %v3210 = vpop.f32.mrf.mxu0
      %v3211 = vadd.f32 0.0, %v3210
      %v3212 = vpop.f32.mrf.mxu0
      %3213 = vmatprep.mubr.f32.mxu0 0.0
      %3214 = vmatmul.mubr.f32.gmra.mxu0 %v3049
      %v3215 = vpop.f32.mrf.mxu0
      %v3216 = vadd.f32 0.0, %v3215
      %v3217 = vpop.f32.mrf.mxu0
      %3218 = vmatprep.mubr.f32.mxu0 0.0
      %3219 = vmatmul.mubr.f32.gmra.mxu0 %v3052
      %v3220 = vpop.f32.mrf.mxu0
      %v3221 = vadd.f32 0.0, %v3220
      %v3222 = vpop.f32.mrf.mxu0
      %3223 = vmatprep.mubr.f32.mxu0 0.0
      %3224 = vmatmul.mubr.f32.gmra.mxu0 %v3055
      %v3225 = vpop.f32.mrf.mxu0
      %v3226 = vadd.f32 0.0, %v3225
      %v3227 = vpop.f32.mrf.mxu0
      %3228 = vmatprep.mubr.f32.mxu0 0.0
      %3229 = vmatmul.mubr.f32.gmra.mxu0 %v3058
      %v3230 = vpop.f32.mrf.mxu0
      %v3231 = vadd.f32 0.0, %v3230
      %v3232 = vpop.f32.mrf.mxu0
      %3233 = vmatprep.mubr.f32.mxu0 0.0
      %3234 = vmatmul.mubr.f32.gmra.mxu0 %v3061
      %v3235 = vpop.f32.mrf.mxu0
      %v3236 = vadd.f32 0.0, %v3235
      %v3237 = vpop.f32.mrf.mxu0
      %3238 = vmatprep.mubr.f32.mxu0 0.0
      %3239 = vmatmul.mubr.f32.gmra.mxu0 %v3064
      %v3240 = vpop.f32.mrf.mxu0
      %v3241 = vadd.f32 0.0, %v3240
      %v3242 = vpop.f32.mrf.mxu0
      %3243 = vmatprep.mubr.f32.mxu0 0.0
      %3244 = vmatmul.mubr.f32.gmra.mxu0 %v3067
      %v3245 = vpop.f32.mrf.mxu0
      %v3246 = vadd.f32 0.0, %v3245
      %v3247 = vpop.f32.mrf.mxu0
      %3248 = vmatprep.mubr.f32.mxu0 0.0
      %3249 = vmatmul.mubr.f32.gmra.mxu0 %v3070
      %v3250 = vpop.f32.mrf.mxu0
      %v3251 = vadd.f32 0.0, %v3250
      %v3252 = vpop.f32.mrf.mxu0
      %3253 = vmatprep.mubr.f32.mxu0 0.0
      %3254 = vmatmul.mubr.f32.gmra.mxu0 %v3073
      %v3255 = vpop.f32.mrf.mxu0
      %v3256 = vadd.f32 0.0, %v3255
      %v3257 = vpop.f32.mrf.mxu0
      %3258 = vmatprep.mubr.f32.mxu0 0.0
      %3259 = vmatmul.mubr.f32.gmra.mxu0 %v3076
      %v3260 = vpop.f32.mrf.mxu0
      %v3261 = vadd.f32 0.0, %v3260
      %v3262 = vpop.f32.mrf.mxu0
      %3263 = vmatprep.mubr.f32.mxu0 0.0
      %3264 = vmatmul.mubr.f32.gmra.mxu0 %v3079
      %v3265 = vpop.f32.mrf.mxu0
      %v3266 = vadd.f32 0.0, %v3265
      %v3267 = vpop.f32.mrf.mxu0
      %3268 = vmatprep.mubr.f32.mxu0 0.0
      %3269 = vmatmul.mubr.f32.gmra.mxu0 %v3082
      %v3270 = vpop.f32.mrf.mxu0
      %v3271 = vadd.f32 0.0, %v3270
      %v3272 = vpop.f32.mrf.mxu0
      %3273 = vmatprep.mubr.f32.mxu0 0.0
      %3274 = vmatmul.mubr.f32.gmra.mxu0 %v3085
      %v3275 = vpop.f32.mrf.mxu0
      %v3276 = vadd.f32 0.0, %v3275
      %v3277 = vpop.f32.mrf.mxu0
      %3278 = vmatprep.mubr.f32.mxu0 0.0
      %3279 = vmatmul.mubr.f32.gmra.mxu0 %v3088
      %v3280 = vpop.f32.mrf.mxu0
      %v3281 = vadd.f32 0.0, %v3280
      %v3282 = vpop.f32.mrf.mxu0
      %3283 = vmatprep.mubr.f32.mxu0 0.0
      %3284 = vmatmul.mubr.f32.gmra.mxu0 %v3091
      %v3285 = vpop.f32.mrf.mxu0
      %v3286 = vadd.f32 0.0, %v3285
      %v3287 = vpop.f32.mrf.mxu0
      %3288 = vmatprep.mubr.f32.mxu0 0.0
      %3289 = vmatmul.mubr.f32.gmra.mxu0 %v3094
      %v3290 = vpop.f32.mrf.mxu0
      %v3291 = vadd.f32 0.0, %v3290
      %v3292 = vpop.f32.mrf.mxu0
      %3293 = vmatprep.mubr.f32.mxu0 0.0
      %3294 = vmatmul.mubr.f32.gmra.mxu0 %v3097
      %v3295 = vpop.f32.mrf.mxu0
      %v3296 = vadd.f32 0.0, %v3295
      %v3297 = vpop.f32.mrf.mxu0
      %3298 = vmatprep.mubr.f32.mxu0 0.0
      %3299 = vmatmul.mubr.f32.gmra.mxu0 %v3100
      %v3300 = vpop.f32.mrf.mxu0
      %v3301 = vadd.f32 0.0, %v3300
      %v3302 = vpop.f32.mrf.mxu0
      %3303 = vmatprep.mubr.f32.mxu0 0.0
      %3304 = vmatmul.mubr.f32.gmra.mxu0 %v3103
      %v3305 = vpop.f32.mrf.mxu0
      %v3306 = vadd.f32 0.0, %v3305
      %v3307 = vpop.f32.mrf.mxu0
      %3308 = vmatprep.mubr.f32.mxu0 0.0
      %3309 = vmatmul.mubr.f32.gmra.mxu0 %v3106
      %v3310 = vpop.f32.mrf.mxu0
      %v3311 = vadd.f32 0.0, %v3310
      %v3312 = vpop.f32.mrf.mxu0
      %3313 = vmatprep.mubr.f32.mxu0 0.0
      %3314 = vmatmul.mubr.f32.gmra.mxu0 %v3109
      %v3315 = vpop.f32.mrf.mxu0
      %v3316 = vadd.f32 0.0, %v3315
      %v3317 = vpop.f32.mrf.mxu0
      %3318 = vmatprep.mubr.f32.mxu0 0.0
      %3319 = vmatmul.mubr.f32.gmra.mxu0 %v3112
      %v3320 = vpop.f32.mrf.mxu0
      %v3321 = vadd.f32 0.0, %v3320
      %v3322 = vpop.f32.mrf.mxu0
      %3323 = vmatprep.mubr.f32.mxu0 0.0
      %3324 = vmatmul.mubr.f32.gmra.mxu0 %v3115
      %v3325 = vpop.f32.mrf.mxu0
      %v3326 = vadd.f32 0.0, %v3325
      %v3327 = vpop.f32.mrf.mxu0
      %3328 = vmatprep.mubr.f32.mxu0 0.0
      %3329 = vmatmul.mubr.f32.gmra.mxu0 %v3118
      %v3330 = vpop.f32.mrf.mxu0
      %v3331 = vadd.f32 0.0, %v3330
      %v3332 = vpop.f32.mrf.mxu0
      %3333 = vmatprep.mubr.f32.mxu0 0.0
      %3334 = vmatmul.mubr.f32.gmra.mxu0 %v3121
      %v3335 = vpop.f32.mrf.mxu0
      %v3336 = vadd.f32 0.0, %v3335
      %v3337 = vpop.f32.mrf.mxu0
      %3338 = vmatprep.mubr.f32.mxu0 0.0
      %3339 = vmatmul.mubr.f32.gmra.mxu0 %v3124
      %v3340 = vpop.f32.mrf.mxu0
      %v3341 = vadd.f32 0.0, %v3340
      %v3342 = vpop.f32.mrf.mxu0
      %3343 = vmatprep.mubr.f32.mxu0 0.0
      %3344 = vmatmul.mubr.f32.gmra.mxu0 %v3127
      %v3345 = vpop.f32.mrf.mxu0
      %v3346 = vadd.f32 0.0, %v3345
      %v3347 = vpop.f32.mrf.mxu0
      %3348 = vmatprep.mubr.f32.mxu0 0.0
      %3349 = vmatmul.mubr.f32.gmra.mxu0 %v3130
      %v3350 = vpop.f32.mrf.mxu0
      %v3351 = vadd.f32 0.0, %v3350
      %v3352 = vpop.f32.mrf.mxu0
      %3353 = vmatprep.mubr.f32.mxu0 0.0
      %3354 = vmatmul.mubr.f32.gmra.mxu0 %v3133
      %v3355 = vpop.f32.mrf.mxu0
      %v3356 = vadd.f32 0.0, %v3355
      %v3357 = vpop.f32.mrf.mxu0
      %3358 = vmatprep.mubr.f32.mxu0 0.0
      %3359 = vmatmul.mubr.f32.gmra.mxu0 %v3136
      %v3360 = vpop.f32.mrf.mxu0
      %v3361 = vadd.f32 0.0, %v3360
      %v3362 = vpop.f32.mrf.mxu0
      %3363 = vmatprep.mubr.f32.mxu0 0.0
      %3364 = vmatmul.mubr.f32.gmra.mxu0 %v3139
      %v3365 = vpop.f32.mrf.mxu0
      %v3366 = vadd.f32 0.0, %v3365
      %v3367 = vpop.f32.mrf.mxu0
      %3368 = vdwg.mxu0
      %v3369 = vadd.f32 %v2979, %v3211
      %v3370 = vadd.f32 %v2980, %v3216
      %v3371 = vadd.f32 %v2981, %v3221
      %v3372 = vadd.f32 %v2982, %v3226
      %v3373 = vadd.f32 %v2983, %v3231
      %v3374 = vadd.f32 %v2984, %v3236
      %v3375 = vadd.f32 %v2985, %v3241
      %v3376 = vadd.f32 %v2986, %v3246
      %v3377 = vadd.f32 %v2987, %v3251
      %v3378 = vadd.f32 %v2988, %v3256
      %v3379 = vadd.f32 %v2989, %v3261
      %v3380 = vadd.f32 %v2990, %v3266
      %v3381 = vadd.f32 %v2991, %v3271
      %v3382 = vadd.f32 %v2992, %v3276
      %v3383 = vadd.f32 %v2993, %v3281
      %v3384 = vadd.f32 %v2994, %v3286
      %v3385 = vadd.f32 %v2995, %v3291
      %v3386 = vadd.f32 %v2996, %v3296
      %v3387 = vadd.f32 %v2997, %v3301
      %v3388 = vadd.f32 %v2998, %v3306
      %v3389 = vadd.f32 %v2999, %v3311
      %v3390 = vadd.f32 %v3000, %v3316
      %v3391 = vadd.f32 %v3001, %v3321
      %v3392 = vadd.f32 %v3002, %v3326
      %v3393 = vadd.f32 %v3003, %v3331
      %v3394 = vadd.f32 %v3004, %v3336
      %v3395 = vadd.f32 %v3005, %v3341
      %v3396 = vadd.f32 %v3006, %v3346
      %v3397 = vadd.f32 %v3007, %v3351
      %v3398 = vadd.f32 %v3008, %v3356
      %v3399 = vadd.f32 %v3009, %v3361
      %v3400 = vadd.f32 %v3010, %v3366
      %v3401 = vld [vmem:[%s2620 + $0x2] sm:$0xff]
      %v3402 = vld [vmem:[%s2620 + $0xa] sm:$0xff]
      %v3403 = vld [vmem:[%s2620 + $0x1a] sm:$0xff]
      %v3404 = vld [vmem:[%s2620 + $0x22] sm:$0xff]
      %v3405 = vld [vmem:[%s2620 + $0x32] sm:$0xff]
      %v3406 = vld [vmem:[%s2620 + $0x3a] sm:$0xff]
      %v3407 = vld [vmem:[%s2620 + $0x4a] sm:$0xff]
      %v3408 = vld [vmem:[%s2620 + $0x52] sm:$0xff]
      %v3409 = vld [vmem:[%s2620 + $0x62] sm:$0xff]
      %v3410 = vld [vmem:[%s2620 + $0x6a] sm:$0xff]
      %v3411 = vld [vmem:[%s2620 + $0x7a] sm:$0xff]
      %v3412 = vld [vmem:[%s2620 + $0x82] sm:$0xff]
      %v3413 = vld [vmem:[%s2620 + $0x92] sm:$0xff]
      %v3414 = vld [vmem:[%s2620 + $0x9a] sm:$0xff]
      %v3415 = vld [vmem:[%s2620 + $0xaa] sm:$0xff]
      %v3416 = vld [vmem:[%s2620 + $0xb2] sm:$0xff]
      %v3417 = vld [vmem:[%s2620 + $0xc2] sm:$0xff]
      %v3418 = vld [vmem:[%s2620 + $0xca] sm:$0xff]
      %v3419 = vld [vmem:[%s2620 + $0xda] sm:$0xff]
      %v3420 = vld [vmem:[%s2620 + $0xe2] sm:$0xff]
      %v3421 = vld [vmem:[%s2620 + $0xf2] sm:$0xff]
      %v3422 = vld [vmem:[%s2620 + $0xfa] sm:$0xff]
      %v3423 = vld [vmem:[%s2620 + $0x10a] sm:$0xff]
      %v3424 = vld [vmem:[%s2620 + $0x112] sm:$0xff]
      %v3425 = vld [vmem:[%s2620 + $0x122] sm:$0xff]
      %v3426 = vld [vmem:[%s2620 + $0x12a] sm:$0xff]
      %v3427 = vld [vmem:[%s2620 + $0x13a] sm:$0xff]
      %v3428 = vld [vmem:[%s2620 + $0x142] sm:$0xff]
      %v3429 = vld [vmem:[%s2620 + $0x152] sm:$0xff]
      %v3430 = vld [vmem:[%s2620 + $0x15a] sm:$0xff]
      %v3431 = vld [vmem:[%s2620 + $0x16a] sm:$0xff]
      %v3432 = vld [vmem:[%s2620 + $0x172] sm:$0xff]
      %s3433 = scalar_lea.vmem %s1, 32
      %v3434 = vld [vmem:[%s3433] sm:$0xf]
      %v3436 = vsel %vm405, %v3401, 0
      %v3439 = vsel %vm405, %v3402, 0
      %v3442 = vsel %vm405, %v3403, 0
      %v3445 = vsel %vm405, %v3404, 0
      %v3448 = vsel %vm405, %v3405, 0
      %v3451 = vsel %vm405, %v3406, 0
      %v3454 = vsel %vm405, %v3407, 0
      %v3457 = vsel %vm405, %v3408, 0
      %v3460 = vsel %vm405, %v3409, 0
      %v3463 = vsel %vm405, %v3410, 0
      %v3466 = vsel %vm405, %v3411, 0
      %v3469 = vsel %vm405, %v3412, 0
      %v3472 = vsel %vm405, %v3413, 0
      %v3475 = vsel %vm405, %v3414, 0
      %v3478 = vsel %vm405, %v3415, 0
      %v3481 = vsel %vm405, %v3416, 0
      %v3484 = vsel %vm405, %v3417, 0
      %v3487 = vsel %vm405, %v3418, 0
      %v3490 = vsel %vm405, %v3419, 0
      %v3493 = vsel %vm405, %v3420, 0
      %v3496 = vsel %vm405, %v3421, 0
      %v3499 = vsel %vm405, %v3422, 0
      %v3502 = vsel %vm405, %v3423, 0
      %v3505 = vsel %vm405, %v3424, 0
      %v3508 = vsel %vm405, %v3425, 0
      %v3511 = vsel %vm405, %v3426, 0
      %v3514 = vsel %vm405, %v3427, 0
      %v3517 = vsel %vm405, %v3428, 0
      %v3520 = vsel %vm405, %v3429, 0
      %v3523 = vsel %vm405, %v3430, 0
      %v3526 = vsel %vm405, %v3431, 0
      %v3529 = vsel %vm405, %v3432, 0
      %v3532 = vsel %vm502, %v3434, 0
      %3534 = vmatprep.subr.mxu0 0.0
      %3535 = vmatpush1.msra.mxu0 0.0
      %3536 = vmatprep.subr.mxu0 0.0
      %3537 = vmatpush1.msra.mxu0 0.0
      %3538 = vmatprep.subr.mxu0 0.0
      %3539 = vmatpush1.msra.mxu0 0.0
      %3540 = vmatprep.subr.mxu0 0.0
      %3541 = vmatpush1.msra.mxu0 0.0
      %3542 = vmatprep.subr.mxu0 0.0
      %3543 = vmatpush1.msra.mxu0 0.0
      %3544 = vmatprep.subr.mxu0 0.0
      %3545 = vmatpush1.msra.mxu0 0.0
      %3546 = vmatprep.subr.mxu0 0.0
      %3547 = vmatpush1.msra.mxu0 0.0
      %3548 = vmatprep.subr.mxu0 0.0
      %3549 = vmatpush1.msra.mxu0 0.0
      %3550 = vmatprep.subr.mxu0 0.0
      %3551 = vmatpush1.msra.mxu0 0.0
      %3552 = vmatprep.subr.mxu0 0.0
      %3553 = vmatpush1.msra.mxu0 0.0
      %3554 = vmatprep.subr.mxu0 0.0
      %3555 = vmatpush1.msra.mxu0 0.0
      %3556 = vmatprep.subr.mxu0 0.0
      %3557 = vmatpush1.msra.mxu0 0.0
      %3558 = vmatprep.subr.mxu0 0.0
      %3559 = vmatpush1.msra.mxu0 0.0
      %3560 = vmatprep.subr.mxu0 0.0
      %3561 = vmatpush1.msra.mxu0 0.0
      %3562 = vmatprep.subr.mxu0 0.0
      %3563 = vmatpush1.msra.mxu0 0.0
      %3564 = vmatprep.subr.mxu0 0.0
      %3565 = vmatpush1.msra.mxu0 %v3532
      %3566 = vmatprep.subr.mxu0 0.0
      %3567 = vmatpush2.msra.mxu0 0.0
      %3568 = vmatprep.subr.mxu0 0.0
      %3569 = vmatpush2.msra.mxu0 0.0
      %3570 = vmatprep.subr.mxu0 0.0
      %3571 = vmatpush2.msra.mxu0 0.0
      %3572 = vmatprep.subr.mxu0 0.0
      %3573 = vmatpush2.msra.mxu0 0.0
      %3574 = vmatprep.subr.mxu0 0.0
      %3575 = vmatpush2.msra.mxu0 0.0
      %3576 = vmatprep.subr.mxu0 0.0
      %3577 = vmatpush2.msra.mxu0 0.0
      %3578 = vmatprep.subr.mxu0 0.0
      %3579 = vmatpush2.msra.mxu0 0.0
      %3580 = vmatprep.subr.mxu0 0.0
      %3581 = vmatpush2.msra.mxu0 0.0
      %3582 = vmatprep.subr.mxu0 0.0
      %3583 = vmatpush2.msra.mxu0 0.0
      %3584 = vmatprep.subr.mxu0 0.0
      %3585 = vmatpush2.msra.mxu0 0.0
      %3586 = vmatprep.subr.mxu0 0.0
      %3587 = vmatpush2.msra.mxu0 0.0
      %3588 = vmatprep.subr.mxu0 0.0
      %3589 = vmatpush2.msra.mxu0 0.0
      %3590 = vmatprep.subr.mxu0 0.0
      %3591 = vmatpush2.msra.mxu0 0.0
      %3592 = vmatprep.subr.mxu0 0.0
      %3593 = vmatpush2.msra.mxu0 0.0
      %3594 = vmatprep.subr.mxu0 0.0
      %3595 = vmatpush2.msra.mxu0 0.0
      %3596 = vmatprep.subr.mxu0 0.0
      %3597 = vmatpush2.msra.mxu0 0.0
      %3598 = vmatprep.mubr.f32.mxu0 0.0
      %3599 = vmatmul.mubr.f32.gmra.mxu0 %v3436
      %v3600 = vpop.f32.mrf.mxu0
      %v3601 = vadd.f32 0.0, %v3600
      %v3602 = vpop.f32.mrf.mxu0
      %3603 = vmatprep.mubr.f32.mxu0 0.0
      %3604 = vmatmul.mubr.f32.gmra.mxu0 %v3439
      %v3605 = vpop.f32.mrf.mxu0
      %v3606 = vadd.f32 0.0, %v3605
      %v3607 = vpop.f32.mrf.mxu0
      %3608 = vmatprep.mubr.f32.mxu0 0.0
      %3609 = vmatmul.mubr.f32.gmra.mxu0 %v3442
      %v3610 = vpop.f32.mrf.mxu0
      %v3611 = vadd.f32 0.0, %v3610
      %v3612 = vpop.f32.mrf.mxu0
      %3613 = vmatprep.mubr.f32.mxu0 0.0
      %3614 = vmatmul.mubr.f32.gmra.mxu0 %v3445
      %v3615 = vpop.f32.mrf.mxu0
      %v3616 = vadd.f32 0.0, %v3615
      %v3617 = vpop.f32.mrf.mxu0
      %3618 = vmatprep.mubr.f32.mxu0 0.0
      %3619 = vmatmul.mubr.f32.gmra.mxu0 %v3448
      %v3620 = vpop.f32.mrf.mxu0
      %v3621 = vadd.f32 0.0, %v3620
      %v3622 = vpop.f32.mrf.mxu0
      %3623 = vmatprep.mubr.f32.mxu0 0.0
      %3624 = vmatmul.mubr.f32.gmra.mxu0 %v3451
      %v3625 = vpop.f32.mrf.mxu0
      %v3626 = vadd.f32 0.0, %v3625
      %v3627 = vpop.f32.mrf.mxu0
      %3628 = vmatprep.mubr.f32.mxu0 0.0
      %3629 = vmatmul.mubr.f32.gmra.mxu0 %v3454
      %v3630 = vpop.f32.mrf.mxu0
      %v3631 = vadd.f32 0.0, %v3630
      %v3632 = vpop.f32.mrf.mxu0
      %3633 = vmatprep.mubr.f32.mxu0 0.0
      %3634 = vmatmul.mubr.f32.gmra.mxu0 %v3457
      %v3635 = vpop.f32.mrf.mxu0
      %v3636 = vadd.f32 0.0, %v3635
      %v3637 = vpop.f32.mrf.mxu0
      %3638 = vmatprep.mubr.f32.mxu0 0.0
      %3639 = vmatmul.mubr.f32.gmra.mxu0 %v3460
      %v3640 = vpop.f32.mrf.mxu0
      %v3641 = vadd.f32 0.0, %v3640
      %v3642 = vpop.f32.mrf.mxu0
      %3643 = vmatprep.mubr.f32.mxu0 0.0
      %3644 = vmatmul.mubr.f32.gmra.mxu0 %v3463
      %v3645 = vpop.f32.mrf.mxu0
      %v3646 = vadd.f32 0.0, %v3645
      %v3647 = vpop.f32.mrf.mxu0
      %3648 = vmatprep.mubr.f32.mxu0 0.0
      %3649 = vmatmul.mubr.f32.gmra.mxu0 %v3466
      %v3650 = vpop.f32.mrf.mxu0
      %v3651 = vadd.f32 0.0, %v3650
      %v3652 = vpop.f32.mrf.mxu0
      %3653 = vmatprep.mubr.f32.mxu0 0.0
      %3654 = vmatmul.mubr.f32.gmra.mxu0 %v3469
      %v3655 = vpop.f32.mrf.mxu0
      %v3656 = vadd.f32 0.0, %v3655
      %v3657 = vpop.f32.mrf.mxu0
      %3658 = vmatprep.mubr.f32.mxu0 0.0
      %3659 = vmatmul.mubr.f32.gmra.mxu0 %v3472
      %v3660 = vpop.f32.mrf.mxu0
      %v3661 = vadd.f32 0.0, %v3660
      %v3662 = vpop.f32.mrf.mxu0
      %3663 = vmatprep.mubr.f32.mxu0 0.0
      %3664 = vmatmul.mubr.f32.gmra.mxu0 %v3475
      %v3665 = vpop.f32.mrf.mxu0
      %v3666 = vadd.f32 0.0, %v3665
      %v3667 = vpop.f32.mrf.mxu0
      %3668 = vmatprep.mubr.f32.mxu0 0.0
      %3669 = vmatmul.mubr.f32.gmra.mxu0 %v3478
      %v3670 = vpop.f32.mrf.mxu0
      %v3671 = vadd.f32 0.0, %v3670
      %v3672 = vpop.f32.mrf.mxu0
      %3673 = vmatprep.mubr.f32.mxu0 0.0
      %3674 = vmatmul.mubr.f32.gmra.mxu0 %v3481
      %v3675 = vpop.f32.mrf.mxu0
      %v3676 = vadd.f32 0.0, %v3675
      %v3677 = vpop.f32.mrf.mxu0
      %3678 = vmatprep.mubr.f32.mxu0 0.0
      %3679 = vmatmul.mubr.f32.gmra.mxu0 %v3484
      %v3680 = vpop.f32.mrf.mxu0
      %v3681 = vadd.f32 0.0, %v3680
      %v3682 = vpop.f32.mrf.mxu0
      %3683 = vmatprep.mubr.f32.mxu0 0.0
      %3684 = vmatmul.mubr.f32.gmra.mxu0 %v3487
      %v3685 = vpop.f32.mrf.mxu0
      %v3686 = vadd.f32 0.0, %v3685
      %v3687 = vpop.f32.mrf.mxu0
      %3688 = vmatprep.mubr.f32.mxu0 0.0
      %3689 = vmatmul.mubr.f32.gmra.mxu0 %v3490
      %v3690 = vpop.f32.mrf.mxu0
      %v3691 = vadd.f32 0.0, %v3690
      %v3692 = vpop.f32.mrf.mxu0
      %3693 = vmatprep.mubr.f32.mxu0 0.0
      %3694 = vmatmul.mubr.f32.gmra.mxu0 %v3493
      %v3695 = vpop.f32.mrf.mxu0
      %v3696 = vadd.f32 0.0, %v3695
      %v3697 = vpop.f32.mrf.mxu0
      %3698 = vmatprep.mubr.f32.mxu0 0.0
      %3699 = vmatmul.mubr.f32.gmra.mxu0 %v3496
      %v3700 = vpop.f32.mrf.mxu0
      %v3701 = vadd.f32 0.0, %v3700
      %v3702 = vpop.f32.mrf.mxu0
      %3703 = vmatprep.mubr.f32.mxu0 0.0
      %3704 = vmatmul.mubr.f32.gmra.mxu0 %v3499
      %v3705 = vpop.f32.mrf.mxu0
      %v3706 = vadd.f32 0.0, %v3705
      %v3707 = vpop.f32.mrf.mxu0
      %3708 = vmatprep.mubr.f32.mxu0 0.0
      %3709 = vmatmul.mubr.f32.gmra.mxu0 %v3502
      %v3710 = vpop.f32.mrf.mxu0
      %v3711 = vadd.f32 0.0, %v3710
      %v3712 = vpop.f32.mrf.mxu0
      %3713 = vmatprep.mubr.f32.mxu0 0.0
      %3714 = vmatmul.mubr.f32.gmra.mxu0 %v3505
      %v3715 = vpop.f32.mrf.mxu0
      %v3716 = vadd.f32 0.0, %v3715
      %v3717 = vpop.f32.mrf.mxu0
      %3718 = vmatprep.mubr.f32.mxu0 0.0
      %3719 = vmatmul.mubr.f32.gmra.mxu0 %v3508
      %v3720 = vpop.f32.mrf.mxu0
      %v3721 = vadd.f32 0.0, %v3720
      %v3722 = vpop.f32.mrf.mxu0
      %3723 = vmatprep.mubr.f32.mxu0 0.0
      %3724 = vmatmul.mubr.f32.gmra.mxu0 %v3511
      %v3725 = vpop.f32.mrf.mxu0
      %v3726 = vadd.f32 0.0, %v3725
      %v3727 = vpop.f32.mrf.mxu0
      %3728 = vmatprep.mubr.f32.mxu0 0.0
      %3729 = vmatmul.mubr.f32.gmra.mxu0 %v3514
      %v3730 = vpop.f32.mrf.mxu0
      %v3731 = vadd.f32 0.0, %v3730
      %v3732 = vpop.f32.mrf.mxu0
      %3733 = vmatprep.mubr.f32.mxu0 0.0
      %3734 = vmatmul.mubr.f32.gmra.mxu0 %v3517
      %v3735 = vpop.f32.mrf.mxu0
      %v3736 = vadd.f32 0.0, %v3735
      %v3737 = vpop.f32.mrf.mxu0
      %3738 = vmatprep.mubr.f32.mxu0 0.0
      %3739 = vmatmul.mubr.f32.gmra.mxu0 %v3520
      %v3740 = vpop.f32.mrf.mxu0
      %v3741 = vadd.f32 0.0, %v3740
      %v3742 = vpop.f32.mrf.mxu0
      %3743 = vmatprep.mubr.f32.mxu0 0.0
      %3744 = vmatmul.mubr.f32.gmra.mxu0 %v3523
      %v3745 = vpop.f32.mrf.mxu0
      %v3746 = vadd.f32 0.0, %v3745
      %v3747 = vpop.f32.mrf.mxu0
      %3748 = vmatprep.mubr.f32.mxu0 0.0
      %3749 = vmatmul.mubr.f32.gmra.mxu0 %v3526
      %v3750 = vpop.f32.mrf.mxu0
      %v3751 = vadd.f32 0.0, %v3750
      %v3752 = vpop.f32.mrf.mxu0
      %3753 = vmatprep.mubr.f32.mxu0 0.0
      %3754 = vmatmul.mubr.f32.gmra.mxu0 %v3529
      %v3755 = vpop.f32.mrf.mxu0
      %v3756 = vadd.f32 0.0, %v3755
      %v3757 = vpop.f32.mrf.mxu0
      %3758 = vdwg.mxu0
      %v3759 = vadd.f32 %v3369, %v3601
      %v3760 = vadd.f32 %v3370, %v3606
      %v3761 = vadd.f32 %v3371, %v3611
      %v3762 = vadd.f32 %v3372, %v3616
      %v3763 = vadd.f32 %v3373, %v3621
      %v3764 = vadd.f32 %v3374, %v3626
      %v3765 = vadd.f32 %v3375, %v3631
      %v3766 = vadd.f32 %v3376, %v3636
      %v3767 = vadd.f32 %v3377, %v3641
      %v3768 = vadd.f32 %v3378, %v3646
      %v3769 = vadd.f32 %v3379, %v3651
      %v3770 = vadd.f32 %v3380, %v3656
      %v3771 = vadd.f32 %v3381, %v3661
      %v3772 = vadd.f32 %v3382, %v3666
      %v3773 = vadd.f32 %v3383, %v3671
      %v3774 = vadd.f32 %v3384, %v3676
      %v3775 = vadd.f32 %v3385, %v3681
      %v3776 = vadd.f32 %v3386, %v3686
      %v3777 = vadd.f32 %v3387, %v3691
      %v3778 = vadd.f32 %v3388, %v3696
      %v3779 = vadd.f32 %v3389, %v3701
      %v3780 = vadd.f32 %v3390, %v3706
      %v3781 = vadd.f32 %v3391, %v3711
      %v3782 = vadd.f32 %v3392, %v3716
      %v3783 = vadd.f32 %v3393, %v3721
      %v3784 = vadd.f32 %v3394, %v3726
      %v3785 = vadd.f32 %v3395, %v3731
      %v3786 = vadd.f32 %v3396, %v3736
      %v3787 = vadd.f32 %v3397, %v3741
      %v3788 = vadd.f32 %v3398, %v3746
      %v3789 = vadd.f32 %v3399, %v3751
      %v3790 = vadd.f32 %v3400, %v3756
      %3791 = vst.msk [vmem:[%s201] sm:$0xff] %vm405, %v3759
      %3792 = vst.msk [vmem:[%s201 + $0x8] sm:$0xff] %vm405, %v3760
      %3793 = vst.msk [vmem:[%s201 + $0x10] sm:$0xff] %vm405, %v3761
      %3794 = vst.msk [vmem:[%s201 + $0x18] sm:$0xff] %vm405, %v3762
      %3795 = vst.msk [vmem:[%s201 + $0x20] sm:$0xff] %vm405, %v3763
      %3796 = vst.msk [vmem:[%s201 + $0x28] sm:$0xff] %vm405, %v3764
      %3797 = vst.msk [vmem:[%s201 + $0x30] sm:$0xff] %vm405, %v3765
      %3798 = vst.msk [vmem:[%s201 + $0x38] sm:$0xff] %vm405, %v3766
      %3799 = vst.msk [vmem:[%s201 + $0x40] sm:$0xff] %vm405, %v3767
      %3800 = vst.msk [vmem:[%s201 + $0x48] sm:$0xff] %vm405, %v3768
      %3801 = vst.msk [vmem:[%s201 + $0x50] sm:$0xff] %vm405, %v3769
      %3802 = vst.msk [vmem:[%s201 + $0x58] sm:$0xff] %vm405, %v3770
      %3803 = vst.msk [vmem:[%s201 + $0x60] sm:$0xff] %vm405, %v3771
      %3804 = vst.msk [vmem:[%s201 + $0x68] sm:$0xff] %vm405, %v3772
      %3805 = vst.msk [vmem:[%s201 + $0x70] sm:$0xff] %vm405, %v3773
      %3806 = vst.msk [vmem:[%s201 + $0x78] sm:$0xff] %vm405, %v3774
      %3807 = vst.msk [vmem:[%s201 + $0x80] sm:$0xff] %vm405, %v3775
      %3808 = vst.msk [vmem:[%s201 + $0x88] sm:$0xff] %vm405, %v3776
      %3809 = vst.msk [vmem:[%s201 + $0x90] sm:$0xff] %vm405, %v3777
      %3810 = vst.msk [vmem:[%s201 + $0x98] sm:$0xff] %vm405, %v3778
      %3811 = vst.msk [vmem:[%s201 + $0xa0] sm:$0xff] %vm405, %v3779
      %3812 = vst.msk [vmem:[%s201 + $0xa8] sm:$0xff] %vm405, %v3780
      %3813 = vst.msk [vmem:[%s201 + $0xb0] sm:$0xff] %vm405, %v3781
      %3814 = vst.msk [vmem:[%s201 + $0xb8] sm:$0xff] %vm405, %v3782
      %3815 = vst.msk [vmem:[%s201 + $0xc0] sm:$0xff] %vm405, %v3783
      %3816 = vst.msk [vmem:[%s201 + $0xc8] sm:$0xff] %vm405, %v3784
      %3817 = vst.msk [vmem:[%s201 + $0xd0] sm:$0xff] %vm405, %v3785
      %3818 = vst.msk [vmem:[%s201 + $0xd8] sm:$0xff] %vm405, %v3786
      %3819 = vst.msk [vmem:[%s201 + $0xe0] sm:$0xff] %vm405, %v3787
      %3820 = vst.msk [vmem:[%s201 + $0xe8] sm:$0xff] %vm405, %v3788
      %3821 = vst.msk [vmem:[%s201 + $0xf0] sm:$0xff] %vm405, %v3789
      %3822 = vst.msk [vmem:[%s201 + $0xf8] sm:$0xff] %vm405, %v3790
      %v3823 = vsel %vm405, %v3759, 0.0
      %v3824 = vsel %vm405, %v3760, 0.0
      %v3825 = vadd.f32 %v3823, %v3824
      %v3826 = vsel %vm405, %v3761, 0.0
      %v3827 = vadd.f32 %v3825, %v3826
      %v3828 = vsel %vm405, %v3762, 0.0
      %v3829 = vadd.f32 %v3827, %v3828
      %v3830 = vsel %vm405, %v3763, 0.0
      %v3831 = vadd.f32 %v3829, %v3830
      %v3832 = vsel %vm405, %v3764, 0.0
      %v3833 = vadd.f32 %v3831, %v3832
      %v3834 = vsel %vm405, %v3765, 0.0
      %v3835 = vadd.f32 %v3833, %v3834
      %v3836 = vsel %vm405, %v3766, 0.0
      %v3837 = vadd.f32 %v3835, %v3836
      %v3838 = vsel %vm405, %v3767, 0.0
      %v3839 = vadd.f32 %v3837, %v3838
      %v3840 = vsel %vm405, %v3768, 0.0
      %v3841 = vadd.f32 %v3839, %v3840
      %v3842 = vsel %vm405, %v3769, 0.0
      %v3843 = vadd.f32 %v3841, %v3842
      %v3844 = vsel %vm405, %v3770, 0.0
      %v3845 = vadd.f32 %v3843, %v3844
      %v3846 = vsel %vm405, %v3771, 0.0
      %v3847 = vadd.f32 %v3845, %v3846
      %v3848 = vsel %vm405, %v3772, 0.0
      %v3849 = vadd.f32 %v3847, %v3848
      %v3850 = vsel %vm405, %v3773, 0.0
      %v3851 = vadd.f32 %v3849, %v3850
      %v3852 = vsel %vm405, %v3774, 0.0
      %v3853 = vadd.f32 %v3851, %v3852
      %v3854 = vsel %vm405, %v3775, 0.0
      %v3855 = vadd.f32 %v3853, %v3854
      %v3856 = vsel %vm405, %v3776, 0.0
      %v3857 = vadd.f32 %v3855, %v3856
      %v3858 = vsel %vm405, %v3777, 0.0
      %v3859 = vadd.f32 %v3857, %v3858
      %v3860 = vsel %vm405, %v3778, 0.0
      %v3861 = vadd.f32 %v3859, %v3860
      %v3862 = vsel %vm405, %v3779, 0.0
      %v3863 = vadd.f32 %v3861, %v3862
      %v3864 = vsel %vm405, %v3780, 0.0
      %v3865 = vadd.f32 %v3863, %v3864
      %v3866 = vsel %vm405, %v3781, 0.0
      %v3867 = vadd.f32 %v3865, %v3866
      %v3868 = vsel %vm405, %v3782, 0.0
      %v3869 = vadd.f32 %v3867, %v3868
      %v3870 = vsel %vm405, %v3783, 0.0
      %v3871 = vadd.f32 %v3869, %v3870
      %v3872 = vsel %vm405, %v3784, 0.0
      %v3873 = vadd.f32 %v3871, %v3872
      %v3874 = vsel %vm405, %v3785, 0.0
      %v3875 = vadd.f32 %v3873, %v3874
      %v3876 = vsel %vm405, %v3786, 0.0
      %v3877 = vadd.f32 %v3875, %v3876
      %v3878 = vsel %vm405, %v3787, 0.0
      %v3879 = vadd.f32 %v3877, %v3878
      %v3880 = vsel %vm405, %v3788, 0.0
      %v3881 = vadd.f32 %v3879, %v3880
      %v3882 = vsel %vm405, %v3789, 0.0
      %v3883 = vadd.f32 %v3881, %v3882
      %v3884 = vsel %vm405, %v3790, 0.0
      %v3885 = vadd.f32 %v3883, %v3884
      %v3886 = vrot.slane %v3885, 4
      %v3887 = vadd.f32 %v3885, %v3886
      %v3888 = vrot.slane %v3887, 2
      %v3889 = vadd.f32 %v3887, %v3888
      %v3890 = vrot.slane %v3889, 1
      %v3891 = vadd.f32 %v3889, %v3890
      %v3892 = vmul.f32 %v3891, 0.00390625
      %v3893 = vsub.f32 %v3759, %v3892
      %v3894 = vsub.f32 %v3760, %v3892
      %v3895 = vsub.f32 %v3761, %v3892
      %v3896 = vsub.f32 %v3762, %v3892
      %v3897 = vsub.f32 %v3763, %v3892
      %v3898 = vsub.f32 %v3764, %v3892
      %v3899 = vsub.f32 %v3765, %v3892
      %v3900 = vsub.f32 %v3766, %v3892
      %v3901 = vsub.f32 %v3767, %v3892
      %v3902 = vsub.f32 %v3768, %v3892
      %v3903 = vsub.f32 %v3769, %v3892
      %v3904 = vsub.f32 %v3770, %v3892
      %v3905 = vsub.f32 %v3771, %v3892
      %v3906 = vsub.f32 %v3772, %v3892
      %v3907 = vsub.f32 %v3773, %v3892
      %v3908 = vsub.f32 %v3774, %v3892
      %v3909 = vsub.f32 %v3775, %v3892
      %v3910 = vsub.f32 %v3776, %v3892
      %v3911 = vsub.f32 %v3777, %v3892
      %v3912 = vsub.f32 %v3778, %v3892
      %v3913 = vsub.f32 %v3779, %v3892
      %v3914 = vsub.f32 %v3780, %v3892
      %v3915 = vsub.f32 %v3781, %v3892
      %v3916 = vsub.f32 %v3782, %v3892
      %v3917 = vsub.f32 %v3783, %v3892
      %v3918 = vsub.f32 %v3784, %v3892
      %v3919 = vsub.f32 %v3785, %v3892
      %v3920 = vsub.f32 %v3786, %v3892
      %v3921 = vsub.f32 %v3787, %v3892
      %v3922 = vsub.f32 %v3788, %v3892
      %v3923 = vsub.f32 %v3789, %v3892
      %v3924 = vsub.f32 %v3790, %v3892
      %v3925 = vmul.f32 %v3893, %v3893
      %v3926 = vmul.f32 %v3894, %v3894
      %v3927 = vmul.f32 %v3895, %v3895
      %v3928 = vmul.f32 %v3896, %v3896
      %v3929 = vmul.f32 %v3897, %v3897
      %v3930 = vmul.f32 %v3898, %v3898
      %v3931 = vmul.f32 %v3899, %v3899
      %v3932 = vmul.f32 %v3900, %v3900
      %v3933 = vmul.f32 %v3901, %v3901
      %v3934 = vmul.f32 %v3902, %v3902
      %v3935 = vmul.f32 %v3903, %v3903
      %v3936 = vmul.f32 %v3904, %v3904
      %v3937 = vmul.f32 %v3905, %v3905
      %v3938 = vmul.f32 %v3906, %v3906
      %v3939 = vmul.f32 %v3907, %v3907
      %v3940 = vmul.f32 %v3908, %v3908
      %v3941 = vmul.f32 %v3909, %v3909
      %v3942 = vmul.f32 %v3910, %v3910
      %v3943 = vmul.f32 %v3911, %v3911
      %v3944 = vmul.f32 %v3912, %v3912
      %v3945 = vmul.f32 %v3913, %v3913
      %v3946 = vmul.f32 %v3914, %v3914
      %v3947 = vmul.f32 %v3915, %v3915
      %v3948 = vmul.f32 %v3916, %v3916
      %v3949 = vmul.f32 %v3917, %v3917
      %v3950 = vmul.f32 %v3918, %v3918
      %v3951 = vmul.f32 %v3919, %v3919
      %v3952 = vmul.f32 %v3920, %v3920
      %v3953 = vmul.f32 %v3921, %v3921
      %v3954 = vmul.f32 %v3922, %v3922
      %v3955 = vmul.f32 %v3923, %v3923
      %v3956 = vmul.f32 %v3924, %v3924
      %v3957 = vsel %vm405, %v3925, 0.0
      %v3958 = vsel %vm405, %v3926, 0.0
      %v3959 = vadd.f32 %v3957, %v3958
      %v3960 = vsel %vm405, %v3927, 0.0
      %v3961 = vadd.f32 %v3959, %v3960
      %v3962 = vsel %vm405, %v3928, 0.0
      %v3963 = vadd.f32 %v3961, %v3962
      %v3964 = vsel %vm405, %v3929, 0.0
      %v3965 = vadd.f32 %v3963, %v3964
      %v3966 = vsel %vm405, %v3930, 0.0
      %v3967 = vadd.f32 %v3965, %v3966
      %v3968 = vsel %vm405, %v3931, 0.0
      %v3969 = vadd.f32 %v3967, %v3968
      %v3970 = vsel %vm405, %v3932, 0.0
      %v3971 = vadd.f32 %v3969, %v3970
      %v3972 = vsel %vm405, %v3933, 0.0
      %v3973 = vadd.f32 %v3971, %v3972
      %v3974 = vsel %vm405, %v3934, 0.0
      %v3975 = vadd.f32 %v3973, %v3974
      %v3976 = vsel %vm405, %v3935, 0.0
      %v3977 = vadd.f32 %v3975, %v3976
      %v3978 = vsel %vm405, %v3936, 0.0
      %v3979 = vadd.f32 %v3977, %v3978
      %v3980 = vsel %vm405, %v3937, 0.0
      %v3981 = vadd.f32 %v3979, %v3980
      %v3982 = vsel %vm405, %v3938, 0.0
      %v3983 = vadd.f32 %v3981, %v3982
      %v3984 = vsel %vm405, %v3939, 0.0
      %v3985 = vadd.f32 %v3983, %v3984
      %v3986 = vsel %vm405, %v3940, 0.0
      %v3987 = vadd.f32 %v3985, %v3986
      %v3988 = vsel %vm405, %v3941, 0.0
      %v3989 = vadd.f32 %v3987, %v3988
      %v3990 = vsel %vm405, %v3942, 0.0
      %v3991 = vadd.f32 %v3989, %v3990
      %v3992 = vsel %vm405, %v3943, 0.0
      %v3993 = vadd.f32 %v3991, %v3992
      %v3994 = vsel %vm405, %v3944, 0.0
      %v3995 = vadd.f32 %v3993, %v3994
      %v3996 = vsel %vm405, %v3945, 0.0
      %v3997 = vadd.f32 %v3995, %v3996
      %v3998 = vsel %vm405, %v3946, 0.0
      %v3999 = vadd.f32 %v3997, %v3998
      %v4000 = vsel %vm405, %v3947, 0.0
      %v4001 = vadd.f32 %v3999, %v4000
      %v4002 = vsel %vm405, %v3948, 0.0
      %v4003 = vadd.f32 %v4001, %v4002
      %v4004 = vsel %vm405, %v3949, 0.0
      %v4005 = vadd.f32 %v4003, %v4004
      %v4006 = vsel %vm405, %v3950, 0.0
      %v4007 = vadd.f32 %v4005, %v4006
      %v4008 = vsel %vm405, %v3951, 0.0
      %v4009 = vadd.f32 %v4007, %v4008
      %v4010 = vsel %vm405, %v3952, 0.0
      %v4011 = vadd.f32 %v4009, %v4010
      %v4012 = vsel %vm405, %v3953, 0.0
      %v4013 = vadd.f32 %v4011, %v4012
      %v4014 = vsel %vm405, %v3954, 0.0
      %v4015 = vadd.f32 %v4013, %v4014
      %v4016 = vsel %vm405, %v3955, 0.0
      %v4017 = vadd.f32 %v4015, %v4016
      %v4018 = vsel %vm405, %v3956, 0.0
      %v4019 = vadd.f32 %v4017, %v4018
      %v4020 = vrot.slane %v4019, 4
      %v4021 = vadd.f32 %v4019, %v4020
      %v4022 = vrot.slane %v4021, 2
      %v4023 = vadd.f32 %v4021, %v4022
      %v4024 = vrot.slane %v4023, 1
      %v4025 = vadd.f32 %v4023, %v4024
      %vm4026 = vcmask 24576
      %4027 = vst.msk [vmem:[%s208] sm:$0x1] %vm4026, %v3892
      %4028 = vst.msk [vmem:[%s208 + $0x1] sm:$0x1] %vm4026, %v4025
      %s4029 = sadd.s32 %s19, %s20
      %s4030 = smul.u32 32, %s4029
      %p4031 = scmp.lt.s32.totalorder %s4030, 63
      %s4032 = scalar_select %p4031, %s4030, 63
      %s4033 = smul.addr %s4032, 8
      %s4034 = scalar_lea.vmem %s2, %s4033
      %s4035 = sadd.s32 %s19, %s20
      %p4036 = scmp.lt.s32.totalorder %s4035, 1
      %s4037 = scalar_select %p4036, %s4035, 1
      %s4038 = smul.addr %s4037, 2
      %s4039 = scalar_lea.vmem %s3, %s4038
      // Predicated region
      $region33: #{basic_block_forward.3} parent=27 // pred_check
        %p4040 = pneg %p94
      $region34: #{basic_block_forward.3} parent=27 // pred_check_branch
        %4042 = sbr.rel (%p4040) target = $region36
      $region35: #{basic_block_forward.3} parent=27 // pred_region
        %s4043 = sadd.s32 %s19, %s20
        %s4044 = smul.u32 32, %s4043
      $region36: #{basic_block_forward.3} parent=27 // pred_fallthru
        _
      // Predicated region
      $region37: #{basic_block_forward.3} parent=27 // pred_check
        %p4045 = pneg %p122
      $region38: #{basic_block_forward.3} parent=27 // pred_check_branch
        %4047 = sbr.rel (%p4045) target = $region40
      $region39: #{basic_block_forward.3} parent=27 // pred_region
        %s4048 = sadd.s32 %s19, %s20
      $region40: #{basic_block_forward.3} parent=27 // pred_fallthru
        _
    $region28: #{basic_block_forward.3} parent=5 // pred_fallthru
      _
    %p4049 = scmp.le.s32.totalorder 2, %s10
    // Predicated region
    $region41: #{basic_block_forward.3} parent=5 // pred_check
      %p4050 = pneg %p4049
    $region42: #{basic_block_forward.3} parent=5 // pred_check_branch
      %4052 = sbr.rel (%p4050) target = $region44
    $region43: #{basic_block_forward.3} parent=5 // pred_region
      %s4053 = ssub.s32 %s10, 2
      // Predicated region
      $region45: #{basic_block_forward.3} parent=43 // pred_check
        %p4054 = pneg %p100
      $region46: #{basic_block_forward.3} parent=43 // pred_check_branch
        %4056 = sbr.rel (%p4054) target = $region48
      $region47: #{basic_block_forward.3} parent=43 // pred_region
        %s4057 = sadd.s32 %s21, %s22
        %s4058 = smul.u32 32, %s4057
        %p4059 = scmp.lt.s32.totalorder %s4058, 63
        %s4060 = scalar_select %p4059, %s4058, 63
        %s4061 = smul.addr %s4060, 8
        %s4062 = scalar_lea.vmem %s2, %s4061
      $region48: #{basic_block_forward.3} parent=43 // pred_fallthru
        _
      // Predicated region
      $region49: #{basic_block_forward.3} parent=43 // pred_check
        %p4063 = pneg %p128
      $region50: #{basic_block_forward.3} parent=43 // pred_check_branch
        %4065 = sbr.rel (%p4063) target = $region52
      $region51: #{basic_block_forward.3} parent=43 // pred_region
        %s4066 = sadd.s32 %s21, %s22
        %p4067 = scmp.lt.s32.totalorder %s4066, 1
        %s4068 = scalar_select %p4067, %s4066, 1
        %s4069 = smul.addr %s4068, 2
        %s4070 = scalar_lea.vmem %s3, %s4069
      $region52: #{basic_block_forward.3} parent=43 // pred_fallthru
        _
    $region44: #{basic_block_forward.3} parent=5 // pred_fallthru
      _
  $region6: #{basic_block_forward.3} parent=0 // loop_footer
    %s14 = sadd.s32 1, %s10
  $region7: #{basic_block_forward.3} parent=0 // loop_footer_branch
    %9 = sbr.rel target = $region3
  $region8: #{basic_block_forward.3} parent=0 // loop_exit
    _

// kernel: basic_block_forward.4
$region0: #{basic_block_forward.4}
  #allocation0 [shape = 'u32[]', space=smem, size = 0x4, offset = 0x4, fixed_abs, tag = 'smem constant byte address 0x4 - core index']
  #allocation1 [shape = 'u32[144,128]{1,0:T(1,128)}', space=vmem, size = 0x12000, scoped, tag = 'internal scratch']
  #allocation2 [shape = 'f32[18,18,4]{2,1,0:T(8,128)}', space=vmem, size = 0x36000, scoped, tag = 'scratch operand']
  %s0 = inlined_call_operand.vmem [shape: f32[32,16,4], index: 0, kind: input, shape index: {}]
  %s1 = inlined_call_operand.vmem [shape: f32[1,1,4], index: 1, kind: input, shape index: {}]
  %s2 = inlined_call_operand.vmem [shape: f32[1,1,4], index: 2, kind: input, shape index: {}]
  %s3 = inlined_call_operand.vmem [shape: f32[9,4,4], index: 3, kind: input, shape index: {}]
  %s4 = inlined_call_operand.vmem [shape: f32[512,4], index: 4, kind: output, shape index: {0}]
  %s5 = inlined_call_operand.vmem [shape: f32[2,2,4], index: 5, kind: output, shape index: {1}]
  %6 = xla_tuple %s4, %s5
  %s7 = sld [smem:[#allocation0]]
  $region61: #{basic_block_forward.4} parent=0
    _
  %s9 = ssub.s32 1, %s7
  %s10 = scalar_select 0, %s9, %s7
  loop: start=0, step=1, limit=4
  $region2: #{basic_block_forward.4} parent=0 // loop_pre_header
    _
  $region3: #{basic_block_forward.4} parent=0 // loop_header
    %s12 = sphi 0, %s16
    %p13 = scmp.ge.s32.totalorder %s12, 4
    %s19 = sphi 0, %s31
    %s20 = sphi 0, %s27
    %s21 = sphi 0, %s19
    %s22 = sphi 0, %s20
    %s23 = sphi 0, %s21
    %s24 = sphi 0, %s22
    %s34 = sphi 0, %s36
    %s37 = sphi 0, %s34
    %s38 = sphi 0, %s37
    %s54 = sphi 0, %s38
    %s58 = sphi 0, %s58
    %s60 = sphi 0, %s58
    %s61 = sphi 0, %s60
    %s75 = sphi 0, %s61
    %s79 = sphi 0, %s79
    %s81 = sphi 0, %s79
    %s82 = sphi 0, %s81
    %s96 = sphi 0, %s82
    %s100 = sphi 0, %s100
    %s102 = sphi 0, %s100
    %s103 = sphi 0, %s102
    %s117 = sphi 0, %s103
    %s125 = sphi 0, %s127
    %s128 = sphi 0, %s125
    %s129 = sphi 0, %s128
    %s145 = sphi 0, %s129
    %s153 = sphi 0, %s155
    %s156 = sphi 0, %s153
    %s157 = sphi 0, %s156
    %s173 = sphi 0, %s157
  $region4: #{basic_block_forward.4} parent=0 // loop_header_branch
    %15 = sbr.rel (%p13) target = $region8
  $region5: #{basic_block_forward.4} parent=0 // loop_body
    %s17 = ssub.s32 %s12, 1
    %s18 = ssub.s32 %s12, 2
    %s25 = sadd.s32 1, %s20
    %p26 = scmp.ge.s32.totalorder %s25, 1
    %s27 = scalar_select %p26, 0, %s25
    %s28 = sadd.s32 1, %s19
    %s29 = scalar_select %p26, %s28, %s19
    %p30 = scmp.ge.s32.totalorder %s29, 2
    %s31 = scalar_select %p30, 0, %s29
    %s32 = ssub.s32 %s19, %s31
    %p33 = scmp.eq.s32.totalorder %s32, 0
    %s35 = sadd.s32 %s34, 1
    %s36 = scalar_select %p33, %s34, %s35
    %p39 = pneg %p33
    %p40 = scmp.eq.s32.totalorder %s12, 1
    %p41 = por %p39, %p40
    %p42 = scmp.ne.s32.totalorder %s34, %s37
    %p43 = scmp.eq.s32.totalorder %s12, 0
    %p44 = por %p42, %p43
    %p45 = scmp.ne.s32.totalorder %s34, %s37
    %p46 = scmp.eq.s32.totalorder %s17, 1
    %p47 = por %p45, %p46
    %p48 = scmp.ne.s32.totalorder %s37, %s38
    %p49 = scmp.eq.s32.totalorder %s17, 0
    %p50 = por %p48, %p49
    %p51 = scmp.ne.s32.totalorder %s37, %s38
    %p52 = scmp.eq.s32.totalorder %s18, 1
    %p53 = por %p51, %p52
    %p55 = scmp.ne.s32.totalorder %s38, %s54
    %p56 = scmp.eq.s32.totalorder %s18, 0
    %p57 = por %p55, %p56
    %s59 = sadd.s32 %s58, 1
    %p62 = scmp.eq.s32.totalorder %s12, 1
    %p63 = scmp.ne.s32.totalorder %s58, %s60
    %p64 = scmp.eq.s32.totalorder %s12, 0
    %p65 = por %p63, %p64
    %p66 = scmp.ne.s32.totalorder %s58, %s60
    %p67 = scmp.eq.s32.totalorder %s17, 1
    %p68 = por %p66, %p67
    %p69 = scmp.ne.s32.totalorder %s60, %s61
    %p70 = scmp.eq.s32.totalorder %s17, 0
    %p71 = por %p69, %p70
    %p72 = scmp.ne.s32.totalorder %s60, %s61
    %p73 = scmp.eq.s32.totalorder %s18, 1
    %p74 = por %p72, %p73
    %p76 = scmp.ne.s32.totalorder %s61, %s75
    %p77 = scmp.eq.s32.totalorder %s18, 0
    %p78 = por %p76, %p77
    %s80 = sadd.s32 %s79, 1
    %p83 = scmp.eq.s32.totalorder %s12, 1
    %p84 = scmp.ne.s32.totalorder %s79, %s81
    %p85 = scmp.eq.s32.totalorder %s12, 0
    %p86 = por %p84, %p85
    %p87 = scmp.ne.s32.totalorder %s79, %s81
    %p88 = scmp.eq.s32.totalorder %s17, 1
    %p89 = por %p87, %p88
    %p90 = scmp.ne.s32.totalorder %s81, %s82
    %p91 = scmp.eq.s32.totalorder %s17, 0
    %p92 = por %p90, %p91
    %p93 = scmp.ne.s32.totalorder %s81, %s82
    %p94 = scmp.eq.s32.totalorder %s18, 1
    %p95 = por %p93, %p94
    %p97 = scmp.ne.s32.totalorder %s82, %s96
    %p98 = scmp.eq.s32.totalorder %s18, 0
    %p99 = por %p97, %p98
    %s101 = sadd.s32 %s100, 1
    %p104 = scmp.eq.s32.totalorder %s12, 1
    %p105 = scmp.ne.s32.totalorder %s100, %s102
    %p106 = scmp.eq.s32.totalorder %s12, 0
    %p107 = por %p105, %p106
    %p108 = scmp.ne.s32.totalorder %s100, %s102
    %p109 = scmp.eq.s32.totalorder %s17, 1
    %p110 = por %p108, %p109
    %p111 = scmp.ne.s32.totalorder %s102, %s103
    %p112 = scmp.eq.s32.totalorder %s17, 0
    %p113 = por %p111, %p112
    %p114 = scmp.ne.s32.totalorder %s102, %s103
    %p115 = scmp.eq.s32.totalorder %s18, 1
    %p116 = por %p114, %p115
    %p118 = scmp.ne.s32.totalorder %s103, %s117
    %p119 = scmp.eq.s32.totalorder %s18, 0
    %p120 = por %p118, %p119
    %s121 = sadd.s32 %s19, %s20
    %s122 = sadd.s32 %s31, %s27
    %s123 = ssub.s32 %s121, %s122
    %p124 = scmp.eq.s32.totalorder %s123, 0
    %s126 = sadd.s32 %s125, 1
    %s127 = scalar_select %p124, %s125, %s126
    %p130 = pneg %p124
    %p131 = scmp.eq.s32.totalorder %s12, 1
    %p132 = por %p130, %p131
    %p133 = scmp.ne.s32.totalorder %s125, %s128
    %p134 = scmp.eq.s32.totalorder %s12, 0
    %p135 = por %p133, %p134
    %p136 = scmp.ne.s32.totalorder %s125, %s128
    %p137 = scmp.eq.s32.totalorder %s17, 1
    %p138 = por %p136, %p137
    %p139 = scmp.ne.s32.totalorder %s128, %s129
    %p140 = scmp.eq.s32.totalorder %s17, 0
    %p141 = por %p139, %p140
    %p142 = scmp.ne.s32.totalorder %s128, %s129
    %p143 = scmp.eq.s32.totalorder %s18, 1
    %p144 = por %p142, %p143
    %p146 = scmp.ne.s32.totalorder %s129, %s145
    %p147 = scmp.eq.s32.totalorder %s18, 0
    %p148 = por %p146, %p147
    %s149 = sadd.s32 %s19, %s20
    %s150 = sadd.s32 %s31, %s27
    %s151 = ssub.s32 %s149, %s150
    %p152 = scmp.eq.s32.totalorder %s151, 0
    %s154 = sadd.s32 %s153, 1
    %s155 = scalar_select %p152, %s153, %s154
    %p158 = pneg %p152
    %p159 = scmp.eq.s32.totalorder %s12, 1
    %p160 = por %p158, %p159
    %p161 = scmp.ne.s32.totalorder %s153, %s156
    %p162 = scmp.eq.s32.totalorder %s12, 0
    %p163 = por %p161, %p162
    %p164 = scmp.ne.s32.totalorder %s153, %s156
    %p165 = scmp.eq.s32.totalorder %s17, 1
    %p166 = por %p164, %p165
    %p167 = scmp.ne.s32.totalorder %s156, %s157
    %p168 = scmp.eq.s32.totalorder %s17, 0
    %p169 = por %p167, %p168
    %p170 = scmp.ne.s32.totalorder %s156, %s157
    %p171 = scmp.eq.s32.totalorder %s18, 1
    %p172 = por %p170, %p171
    %p174 = scmp.ne.s32.totalorder %s157, %s173
    %p175 = scmp.eq.s32.totalorder %s18, 0
    %p176 = por %p174, %p175
    %p177 = scmp.le.s32.totalorder 1, %s12
    %p178 = scmp.lt.s32.totalorder %s12, 3
    %p179 = pnand %p177, %p178
    %p180 = pneg %p179
    // Predicated region
    $region9: #{basic_block_forward.4} parent=5 // pred_check
      _
    $region10: #{basic_block_forward.4} parent=5 // pred_check_branch
      %182 = sbr.rel (%p179) target = $region12
    $region11: #{basic_block_forward.4} parent=5 // pred_region
      %s183 = ssub.s32 %s12, 1
      // Predicated region
      $region13: #{basic_block_forward.4} parent=11 // pred_check
        %p184 = pneg %p71
      $region14: #{basic_block_forward.4} parent=11 // pred_check_branch
        %186 = sbr.rel (%p184) target = $region16
      $region15: #{basic_block_forward.4} parent=11 // pred_region
        _
      $region16: #{basic_block_forward.4} parent=11 // pred_fallthru
        _
      // Predicated region
      $region17: #{basic_block_forward.4} parent=11 // pred_check
        %p187 = pneg %p92
      $region18: #{basic_block_forward.4} parent=11 // pred_check_branch
        %189 = sbr.rel (%p187) target = $region20
      $region19: #{basic_block_forward.4} parent=11 // pred_region
        _
      $region20: #{basic_block_forward.4} parent=11 // pred_fallthru
        _
      // Predicated region
      $region21: #{basic_block_forward.4} parent=11 // pred_check
        %p190 = pneg %p113
      $region22: #{basic_block_forward.4} parent=11 // pred_check_branch
        %192 = sbr.rel (%p190) target = $region24
      $region23: #{basic_block_forward.4} parent=11 // pred_region
        _
      $region24: #{basic_block_forward.4} parent=11 // pred_fallthru
        _
    $region12: #{basic_block_forward.4} parent=5 // pred_fallthru
      _
    %p193 = scmp.lt.s32.totalorder %s12, 2
    // Predicated region
    $region25: #{basic_block_forward.4} parent=5 // pred_check
      %p194 = pneg %p193
    $region26: #{basic_block_forward.4} parent=5 // pred_check_branch
      %196 = sbr.rel (%p194) target = $region28
    $region27: #{basic_block_forward.4} parent=5 // pred_region
      // Predicated region
      $region29: #{basic_block_forward.4} parent=27 // pred_check
        %p197 = pneg %p44
      $region30: #{basic_block_forward.4} parent=27 // pred_check_branch
        %199 = sbr.rel (%p197) target = $region32
      $region31: #{basic_block_forward.4} parent=27 // pred_region
        %s200 = smul.u32 16, %s19
        %p201 = scmp.lt.s32.totalorder %s200, 31
        %s202 = scalar_select %p201, %s200, 31
        %s203 = smul.addr %s202, 2
        %s204 = smul.addr %s203, 8
        %s205 = scalar_lea.vmem %s0, %s204
        %s206 = smul.u32 16, %s19
      $region32: #{basic_block_forward.4} parent=27 // pred_fallthru
        _
    $region28: #{basic_block_forward.4} parent=5 // pred_fallthru
      _
    %p207 = scmp.le.s32.totalorder 1, %s12
    %p208 = scmp.lt.s32.totalorder %s12, 3
    %p209 = pnand %p207, %p208
    %p210 = pneg %p209
    // Predicated region
    $region33: #{basic_block_forward.4} parent=5 // pred_check
      _
    $region34: #{basic_block_forward.4} parent=5 // pred_check_branch
      %212 = sbr.rel (%p209) target = $region36
    $region35: #{basic_block_forward.4} parent=5 // pred_region
      %s213 = ssub.s32 %s12, 1
      %s214 = smul.u32 16, %s21
      %p215 = scmp.lt.s32.totalorder %s214, 31
      %s216 = scalar_select %p215, %s214, 31
      %s217 = smul.addr %s216, 2
      %s218 = smul.addr %s217, 8
      %s219 = scalar_lea.vmem %s0, %s218
      %p220 = pneg %p50
      %p221 = pneg %p47
      %p222 = pneg %p71
      %p223 = pneg %p68
      %p224 = pneg %p92
      %p225 = pneg %p89
      %p226 = pneg %p113
      %p227 = pneg %p110
      %p228 = pneg %p141
      %p229 = pneg %p138
      %s230 = sadd.s32 %s21, %s22
      %s231 = smul.u32 32, %s230
      %p232 = scmp.lt.s32.totalorder %s231, 63
      %s233 = scalar_select %p232, %s231, 63
      %s234 = smul.addr %s233, 8
      %s235 = scalar_lea.vmem %s4, %s234
      %p236 = pneg %p169
      %p237 = pneg %p166
      %s238 = sadd.s32 %s21, %s22
      %p239 = scmp.lt.s32.totalorder %s238, 1
      %s240 = scalar_select %p239, %s238, 1
      %s241 = smul.addr %s240, 2
      %s242 = scalar_lea.vmem %s5, %s241
      %s243 = smul.u32 16, %s21
      %p244 = scmp.lt.s32.totalorder %s243, 31
      %s245 = scalar_select %p244, %s243, 31
      %s246 = smul.addr %s245, 2
      %s247 = smul.addr %s246, 8
      %s248 = scalar_lea.vmem %s0, %s247
      %s249 = smul.u32 16, %s21
      %s250 = sadd.s32 %s21, %s22
      %s251 = smul.u32 32, %s250
      %p252 = scmp.lt.s32.totalorder %s251, 63
      %s253 = scalar_select %p252, %s251, 63
      %s254 = smul.addr %s253, 8
      %s255 = scalar_lea.vmem %s4, %s254
      %s256 = sadd.s32 %s21, %s22
      %s257 = smul.u32 32, %s256
      %s258 = sadd.s32 %s21, %s22
      %p259 = scmp.lt.s32.totalorder %s258, 1
      %s260 = scalar_select %p259, %s258, 1
      %s261 = smul.addr %s260, 2
      %s262 = scalar_lea.vmem %s5, %s261
      %s263 = sadd.s32 %s21, %s22
      %p264 = scmp.eq.s32.totalorder %s22, 0
      // Predicated region
      $region37: #{basic_block_forward.4} parent=35 // pred_check
        %p265 = pneg %p264
      $region38: #{basic_block_forward.4} parent=35 // pred_check_branch
        %267 = sbr.rel (%p265) target = $region40
      $region39: #{basic_block_forward.4} parent=35 // pred_region
        %vm268 = vcmask 31744
        %269 = vst.msk [vmem:[#allocation2] sm:$0xff] %vm268, 0.0
        %270 = vst.msk [vmem:[#allocation2 + $0x8] sm:$0xff] %vm268, 0.0
        %vm271 = vcmask 25600
        %272 = vst.msk [vmem:[#allocation2 + $0x10] sm:$0x3] %vm271, 0.0
        %273 = vst.msk [vmem:[#allocation2 + $0x18] sm:$0xff] %vm268, 0.0
        %274 = vst.msk [vmem:[#allocation2 + $0x20] sm:$0xff] %vm268, 0.0
        %275 = vst.msk [vmem:[#allocation2 + $0x28] sm:$0x3] %vm271, 0.0
        %276 = vst.msk [vmem:[#allocation2 + $0x30] sm:$0xff] %vm268, 0.0
        %277 = vst.msk [vmem:[#allocation2 + $0x38] sm:$0xff] %vm268, 0.0
        %278 = vst.msk [vmem:[#allocation2 + $0x40] sm:$0x3] %vm271, 0.0
        %279 = vst.msk [vmem:[#allocation2 + $0x48] sm:$0xff] %vm268, 0.0
        %280 = vst.msk [vmem:[#allocation2 + $0x50] sm:$0xff] %vm268, 0.0
        %281 = vst.msk [vmem:[#allocation2 + $0x58] sm:$0x3] %vm271, 0.0
        %282 = vst.msk [vmem:[#allocation2 + $0x60] sm:$0xff] %vm268, 0.0
        %283 = vst.msk [vmem:[#allocation2 + $0x68] sm:$0xff] %vm268, 0.0
        %284 = vst.msk [vmem:[#allocation2 + $0x70] sm:$0x3] %vm271, 0.0
        %285 = vst.msk [vmem:[#allocation2 + $0x78] sm:$0xff] %vm268, 0.0
        %286 = vst.msk [vmem:[#allocation2 + $0x80] sm:$0xff] %vm268, 0.0
        %287 = vst.msk [vmem:[#allocation2 + $0x88] sm:$0x3] %vm271, 0.0
        %288 = vst.msk [vmem:[#allocation2 + $0x90] sm:$0xff] %vm268, 0.0
        %289 = vst.msk [vmem:[#allocation2 + $0x98] sm:$0xff] %vm268, 0.0
        %290 = vst.msk [vmem:[#allocation2 + $0xa0] sm:$0x3] %vm271, 0.0
        %291 = vst.msk [vmem:[#allocation2 + $0xa8] sm:$0xff] %vm268, 0.0
        %292 = vst.msk [vmem:[#allocation2 + $0xb0] sm:$0xff] %vm268, 0.0
        %293 = vst.msk [vmem:[#allocation2 + $0xb8] sm:$0x3] %vm271, 0.0
        %294 = vst.msk [vmem:[#allocation2 + $0xc0] sm:$0xff] %vm268, 0.0
        %295 = vst.msk [vmem:[#allocation2 + $0xc8] sm:$0xff] %vm268, 0.0
        %296 = vst.msk [vmem:[#allocation2 + $0xd0] sm:$0x3] %vm271, 0.0
        %297 = vst.msk [vmem:[#allocation2 + $0xd8] sm:$0xff] %vm268, 0.0
        %298 = vst.msk [vmem:[#allocation2 + $0xe0] sm:$0xff] %vm268, 0.0
        %299 = vst.msk [vmem:[#allocation2 + $0xe8] sm:$0x3] %vm271, 0.0
        %300 = vst.msk [vmem:[#allocation2 + $0xf0] sm:$0xff] %vm268, 0.0
        %301 = vst.msk [vmem:[#allocation2 + $0xf8] sm:$0xff] %vm268, 0.0
        %302 = vst.msk [vmem:[#allocation2 + $0x100] sm:$0x3] %vm271, 0.0
        %303 = vst.msk [vmem:[#allocation2 + $0x108] sm:$0xff] %vm268, 0.0
        %304 = vst.msk [vmem:[#allocation2 + $0x110] sm:$0xff] %vm268, 0.0
        %305 = vst.msk [vmem:[#allocation2 + $0x118] sm:$0x3] %vm271, 0.0
        %306 = vst.msk [vmem:[#allocation2 + $0x120] sm:$0xff] %vm268, 0.0
        %307 = vst.msk [vmem:[#allocation2 + $0x128] sm:$0xff] %vm268, 0.0
        %308 = vst.msk [vmem:[#allocation2 + $0x130] sm:$0x3] %vm271, 0.0
        %309 = vst.msk [vmem:[#allocation2 + $0x138] sm:$0xff] %vm268, 0.0
        %310 = vst.msk [vmem:[#allocation2 + $0x140] sm:$0xff] %vm268, 0.0
        %311 = vst.msk [vmem:[#allocation2 + $0x148] sm:$0x3] %vm271, 0.0
        %312 = vst.msk [vmem:[#allocation2 + $0x150] sm:$0xff] %vm268, 0.0
        %313 = vst.msk [vmem:[#allocation2 + $0x158] sm:$0xff] %vm268, 0.0
        %314 = vst.msk [vmem:[#allocation2 + $0x160] sm:$0x3] %vm271, 0.0
        %315 = vst.msk [vmem:[#allocation2 + $0x168] sm:$0xff] %vm268, 0.0
        %316 = vst.msk [vmem:[#allocation2 + $0x170] sm:$0xff] %vm268, 0.0
        %317 = vst.msk [vmem:[#allocation2 + $0x178] sm:$0x3] %vm271, 0.0
        %318 = vst.msk [vmem:[#allocation2 + $0x180] sm:$0xff] %vm268, 0.0
        %319 = vst.msk [vmem:[#allocation2 + $0x188] sm:$0xff] %vm268, 0.0
        %320 = vst.msk [vmem:[#allocation2 + $0x190] sm:$0x3] %vm271, 0.0
        %321 = vst.msk [vmem:[#allocation2 + $0x198] sm:$0xff] %vm268, 0.0
        %322 = vst.msk [vmem:[#allocation2 + $0x1a0] sm:$0xff] %vm268, 0.0
        %323 = vst.msk [vmem:[#allocation2 + $0x1a8] sm:$0x3] %vm271, 0.0
        %v324 = vld [vmem:[%s248] sm:$0xff]
        %v325 = vld [vmem:[%s248 + $0x8] sm:$0xff]
        %v326 = vld [vmem:[%s248 + $0x10] sm:$0xff]
        %v327 = vld [vmem:[%s248 + $0x18] sm:$0xff]
        %v328 = vld [vmem:[%s248 + $0x20] sm:$0xff]
        %v329 = vld [vmem:[%s248 + $0x28] sm:$0xff]
        %v330 = vld [vmem:[%s248 + $0x30] sm:$0xff]
        %v331 = vld [vmem:[%s248 + $0x38] sm:$0xff]
        %v332 = vld [vmem:[%s248 + $0x40] sm:$0xff]
        %v333 = vld [vmem:[%s248 + $0x48] sm:$0xff]
        %v334 = vld [vmem:[%s248 + $0x50] sm:$0xff]
        %v335 = vld [vmem:[%s248 + $0x58] sm:$0xff]
        %v336 = vld [vmem:[%s248 + $0x60] sm:$0xff]
        %v337 = vld [vmem:[%s248 + $0x68] sm:$0xff]
        %v338 = vld [vmem:[%s248 + $0x70] sm:$0xff]
        %v339 = vld [vmem:[%s248 + $0x78] sm:$0xff]
        %v340 = vld [vmem:[%s248 + $0x80] sm:$0xff]
        %v341 = vld [vmem:[%s248 + $0x88] sm:$0xff]
        %v342 = vld [vmem:[%s248 + $0x90] sm:$0xff]
        %v343 = vld [vmem:[%s248 + $0x98] sm:$0xff]
        %v344 = vld [vmem:[%s248 + $0xa0] sm:$0xff]
        %v345 = vld [vmem:[%s248 + $0xa8] sm:$0xff]
        %v346 = vld [vmem:[%s248 + $0xb0] sm:$0xff]
        %v347 = vld [vmem:[%s248 + $0xb8] sm:$0xff]
        %v348 = vld [vmem:[%s248 + $0xc0] sm:$0xff]
        %v349 = vld [vmem:[%s248 + $0xc8] sm:$0xff]
        %v350 = vld [vmem:[%s248 + $0xd0] sm:$0xff]
        %v351 = vld [vmem:[%s248 + $0xd8] sm:$0xff]
        %v352 = vld [vmem:[%s248 + $0xe0] sm:$0xff]
        %v353 = vld [vmem:[%s248 + $0xe8] sm:$0xff]
        %v354 = vld [vmem:[%s248 + $0xf0] sm:$0xff]
        %v355 = vld [vmem:[%s248 + $0xf8] sm:$0xff]
        %v356 = vld [vmem:[%s1] sm:$0x1]
        %v358 = vlaneseq
        %v359 = vshrl.u32 %v358, 7
        %v360 = vsub.s32 0, %v359
        %v361 = vrot.slane %v356, %v360
        %v363 = vmul.f32 %v324, %v361
        %v364 = vmul.f32 %v325, %v361
        %v365 = vmul.f32 %v326, %v361
        %v366 = vmul.f32 %v327, %v361
        %v367 = vmul.f32 %v328, %v361
        %v368 = vmul.f32 %v329, %v361
        %v369 = vmul.f32 %v330, %v361
        %v370 = vmul.f32 %v331, %v361
        %v371 = vmul.f32 %v332, %v361
        %v372 = vmul.f32 %v333, %v361
        %v373 = vmul.f32 %v334, %v361
        %v374 = vmul.f32 %v335, %v361
        %v375 = vmul.f32 %v336, %v361
        %v376 = vmul.f32 %v337, %v361
        %v377 = vmul.f32 %v338, %v361
        %v378 = vmul.f32 %v339, %v361
        %v379 = vmul.f32 %v340, %v361
        %v380 = vmul.f32 %v341, %v361
        %v381 = vmul.f32 %v342, %v361
        %v382 = vmul.f32 %v343, %v361
        %v383 = vmul.f32 %v344, %v361
        %v384 = vmul.f32 %v345, %v361
        %v385 = vmul.f32 %v346, %v361
        %v386 = vmul.f32 %v347, %v361
        %v387 = vmul.f32 %v348, %v361
        %v388 = vmul.f32 %v349, %v361
        %v389 = vmul.f32 %v350, %v361
        %v390 = vmul.f32 %v351, %v361
        %v391 = vmul.f32 %v352, %v361
        %v392 = vmul.f32 %v353, %v361
        %v393 = vmul.f32 %v354, %v361
        %v394 = vmul.f32 %v355, %v361
        %v395 = vld [vmem:[%s2] sm:$0x1]
        %v397 = vlaneseq
        %v398 = vshrl.u32 %v397, 7
        %v399 = vsub.s32 0, %v398
        %v400 = vrot.slane %v395, %v399
        %v402 = vadd.f32 %v363, %v400
        %v403 = vadd.f32 %v364, %v400
        %v404 = vadd.f32 %v365, %v400
        %v405 = vadd.f32 %v366, %v400
        %v406 = vadd.f32 %v367, %v400
        %v407 = vadd.f32 %v368, %v400
        %v408 = vadd.f32 %v369, %v400
        %v409 = vadd.f32 %v370, %v400
        %v410 = vadd.f32 %v371, %v400
        %v411 = vadd.f32 %v372, %v400
        %v412 = vadd.f32 %v373, %v400
        %v413 = vadd.f32 %v374, %v400
        %v414 = vadd.f32 %v375, %v400
        %v415 = vadd.f32 %v376, %v400
        %v416 = vadd.f32 %v377, %v400
        %v417 = vadd.f32 %v378, %v400
        %v418 = vadd.f32 %v379, %v400
        %v419 = vadd.f32 %v380, %v400
        %v420 = vadd.f32 %v381, %v400
        %v421 = vadd.f32 %v382, %v400
        %v422 = vadd.f32 %v383, %v400
        %v423 = vadd.f32 %v384, %v400
        %v424 = vadd.f32 %v385, %v400
        %v425 = vadd.f32 %v386, %v400
        %v426 = vadd.f32 %v387, %v400
        %v427 = vadd.f32 %v388, %v400
        %v428 = vadd.f32 %v389, %v400
        %v429 = vadd.f32 %v390, %v400
        %v430 = vadd.f32 %v391, %v400
        %v431 = vadd.f32 %v392, %v400
        %v432 = vadd.f32 %v393, %v400
        %v433 = vadd.f32 %v394, %v400
        %v434 = vmax.f32 %v402, 0.0
        %v435 = vmax.f32 %v403, 0.0
        %v436 = vmax.f32 %v404, 0.0
        %v437 = vmax.f32 %v405, 0.0
        %v438 = vmax.f32 %v406, 0.0
        %v439 = vmax.f32 %v407, 0.0
        %v440 = vmax.f32 %v408, 0.0
        %v441 = vmax.f32 %v409, 0.0
        %v442 = vmax.f32 %v410, 0.0
        %v443 = vmax.f32 %v411, 0.0
        %v444 = vmax.f32 %v412, 0.0
        %v445 = vmax.f32 %v413, 0.0
        %v446 = vmax.f32 %v414, 0.0
        %v447 = vmax.f32 %v415, 0.0
        %v448 = vmax.f32 %v416, 0.0
        %v449 = vmax.f32 %v417, 0.0
        %v450 = vmax.f32 %v418, 0.0
        %v451 = vmax.f32 %v419, 0.0
        %v452 = vmax.f32 %v420, 0.0
        %v453 = vmax.f32 %v421, 0.0
        %v454 = vmax.f32 %v422, 0.0
        %v455 = vmax.f32 %v423, 0.0
        %v456 = vmax.f32 %v424, 0.0
        %v457 = vmax.f32 %v425, 0.0
        %v458 = vmax.f32 %v426, 0.0
        %v459 = vmax.f32 %v427, 0.0
        %v460 = vmax.f32 %v428, 0.0
        %v461 = vmax.f32 %v429, 0.0
        %v462 = vmax.f32 %v430, 0.0
        %v463 = vmax.f32 %v431, 0.0
        %v464 = vmax.f32 %v432, 0.0
        %v465 = vmax.f32 %v433, 0.0
        %s466 = scalar_lea.vmem [#allocation2], 24
        %467 = vst.msk [vmem:[%s466 + $0x1] sm:$0xff] %vm268, %v434
        %468 = vst.msk [vmem:[%s466 + $0x9] sm:$0xff] %vm268, %v435
        %469 = vst.msk [vmem:[%s466 + $0x19] sm:$0xff] %vm268, %v436
        %470 = vst.msk [vmem:[%s466 + $0x21] sm:$0xff] %vm268, %v437
        %471 = vst.msk [vmem:[%s466 + $0x31] sm:$0xff] %vm268, %v438
        %472 = vst.msk [vmem:[%s466 + $0x39] sm:$0xff] %vm268, %v439
        %473 = vst.msk [vmem:[%s466 + $0x49] sm:$0xff] %vm268, %v440
        %474 = vst.msk [vmem:[%s466 + $0x51] sm:$0xff] %vm268, %v441
        %475 = vst.msk [vmem:[%s466 + $0x61] sm:$0xff] %vm268, %v442
        %476 = vst.msk [vmem:[%s466 + $0x69] sm:$0xff] %vm268, %v443
        %477 = vst.msk [vmem:[%s466 + $0x79] sm:$0xff] %vm268, %v444
        %478 = vst.msk [vmem:[%s466 + $0x81] sm:$0xff] %vm268, %v445
        %479 = vst.msk [vmem:[%s466 + $0x91] sm:$0xff] %vm268, %v446
        %480 = vst.msk [vmem:[%s466 + $0x99] sm:$0xff] %vm268, %v447
        %481 = vst.msk [vmem:[%s466 + $0xa9] sm:$0xff] %vm268, %v448
        %482 = vst.msk [vmem:[%s466 + $0xb1] sm:$0xff] %vm268, %v449
        %483 = vst.msk [vmem:[%s466 + $0xc1] sm:$0xff] %vm268, %v450
        %484 = vst.msk [vmem:[%s466 + $0xc9] sm:$0xff] %vm268, %v451
        %485 = vst.msk [vmem:[%s466 + $0xd9] sm:$0xff] %vm268, %v452
        %486 = vst.msk [vmem:[%s466 + $0xe1] sm:$0xff] %vm268, %v453
        %487 = vst.msk [vmem:[%s466 + $0xf1] sm:$0xff] %vm268, %v454
        %488 = vst.msk [vmem:[%s466 + $0xf9] sm:$0xff] %vm268, %v455
        %489 = vst.msk [vmem:[%s466 + $0x109] sm:$0xff] %vm268, %v456
        %490 = vst.msk [vmem:[%s466 + $0x111] sm:$0xff] %vm268, %v457
        %491 = vst.msk [vmem:[%s466 + $0x121] sm:$0xff] %vm268, %v458
        %492 = vst.msk [vmem:[%s466 + $0x129] sm:$0xff] %vm268, %v459
        %493 = vst.msk [vmem:[%s466 + $0x139] sm:$0xff] %vm268, %v460
        %494 = vst.msk [vmem:[%s466 + $0x141] sm:$0xff] %vm268, %v461
        %495 = vst.msk [vmem:[%s466 + $0x151] sm:$0xff] %vm268, %v462
        %496 = vst.msk [vmem:[%s466 + $0x159] sm:$0xff] %vm268, %v463
        %497 = vst.msk [vmem:[%s466 + $0x169] sm:$0xff] %vm268, %v464
        %498 = vst.msk [vmem:[%s466 + $0x171] sm:$0xff] %vm268, %v465
      $region40: #{basic_block_forward.4} parent=35 // pred_fallthru
        _
      %s499 = smul.u32 %s22, 16
      %s500 = smul.u32 %s499, 24
      %s501 = scalar_lea.vmem [#allocation2], %s500
      %v502 = vld [vmem:[%s501] sm:$0xff]
      %v503 = vld [vmem:[%s501 + $0x8] sm:$0xff]
      %v504 = vld [vmem:[%s501 + $0x18] sm:$0xff]
      %v505 = vld [vmem:[%s501 + $0x20] sm:$0xff]
      %v506 = vld [vmem:[%s501 + $0x30] sm:$0xff]
      %v507 = vld [vmem:[%s501 + $0x38] sm:$0xff]
      %v508 = vld [vmem:[%s501 + $0x48] sm:$0xff]
      %v509 = vld [vmem:[%s501 + $0x50] sm:$0xff]
      %v510 = vld [vmem:[%s501 + $0x60] sm:$0xff]
      %v511 = vld [vmem:[%s501 + $0x68] sm:$0xff]
      %v512 = vld [vmem:[%s501 + $0x78] sm:$0xff]
      %v513 = vld [vmem:[%s501 + $0x80] sm:$0xff]
      %v514 = vld [vmem:[%s501 + $0x90] sm:$0xff]
      %v515 = vld [vmem:[%s501 + $0x98] sm:$0xff]
      %v516 = vld [vmem:[%s501 + $0xa8] sm:$0xff]
      %v517 = vld [vmem:[%s501 + $0xb0] sm:$0xff]
      %v518 = vld [vmem:[%s501 + $0xc0] sm:$0xff]
      %v519 = vld [vmem:[%s501 + $0xc8] sm:$0xff]
      %v520 = vld [vmem:[%s501 + $0xd8] sm:$0xff]
      %v521 = vld [vmem:[%s501 + $0xe0] sm:$0xff]
      %v522 = vld [vmem:[%s501 + $0xf0] sm:$0xff]
      %v523 = vld [vmem:[%s501 + $0xf8] sm:$0xff]
      %v524 = vld [vmem:[%s501 + $0x108] sm:$0xff]
      %v525 = vld [vmem:[%s501 + $0x110] sm:$0xff]
      %v526 = vld [vmem:[%s501 + $0x120] sm:$0xff]
      %v527 = vld [vmem:[%s501 + $0x128] sm:$0xff]
      %v528 = vld [vmem:[%s501 + $0x138] sm:$0xff]
      %v529 = vld [vmem:[%s501 + $0x140] sm:$0xff]
      %v530 = vld [vmem:[%s501 + $0x150] sm:$0xff]
      %v531 = vld [vmem:[%s501 + $0x158] sm:$0xff]
      %v532 = vld [vmem:[%s501 + $0x168] sm:$0xff]
      %v533 = vld [vmem:[%s501 + $0x170] sm:$0xff]
      %v534 = vld [vmem:[%s3] sm:$0xf]
      %v535 = vld [vmem:[%s501 + $0x1] sm:$0xff]
      %v536 = vld [vmem:[%s501 + $0x9] sm:$0xff]
      %v537 = vld [vmem:[%s501 + $0x19] sm:$0xff]
      %v538 = vld [vmem:[%s501 + $0x21] sm:$0xff]
      %v539 = vld [vmem:[%s501 + $0x31] sm:$0xff]
      %v540 = vld [vmem:[%s501 + $0x39] sm:$0xff]
      %v541 = vld [vmem:[%s501 + $0x49] sm:$0xff]
      %v542 = vld [vmem:[%s501 + $0x51] sm:$0xff]
      %v543 = vld [vmem:[%s501 + $0x61] sm:$0xff]
      %v544 = vld [vmem:[%s501 + $0x69] sm:$0xff]
      %v545 = vld [vmem:[%s501 + $0x79] sm:$0xff]
      %v546 = vld [vmem:[%s501 + $0x81] sm:$0xff]
      %v547 = vld [vmem:[%s501 + $0x91] sm:$0xff]
      %v548 = vld [vmem:[%s501 + $0x99] sm:$0xff]
      %v549 = vld [vmem:[%s501 + $0xa9] sm:$0xff]
      %v550 = vld [vmem:[%s501 + $0xb1] sm:$0xff]
      %v551 = vld [vmem:[%s501 + $0xc1] sm:$0xff]
      %v552 = vld [vmem:[%s501 + $0xc9] sm:$0xff]
      %v553 = vld [vmem:[%s501 + $0xd9] sm:$0xff]
      %v554 = vld [vmem:[%s501 + $0xe1] sm:$0xff]
      %v555 = vld [vmem:[%s501 + $0xf1] sm:$0xff]
      %v556 = vld [vmem:[%s501 + $0xf9] sm:$0xff]
      %v557 = vld [vmem:[%s501 + $0x109] sm:$0xff]
      %v558 = vld [vmem:[%s501 + $0x111] sm:$0xff]
      %v559 = vld [vmem:[%s501 + $0x121] sm:$0xff]
      %v560 = vld [vmem:[%s501 + $0x129] sm:$0xff]
      %v561 = vld [vmem:[%s501 + $0x139] sm:$0xff]
      %v562 = vld [vmem:[%s501 + $0x141] sm:$0xff]
      %v563 = vld [vmem:[%s501 + $0x151] sm:$0xff]
      %v564 = vld [vmem:[%s501 + $0x159] sm:$0xff]
      %v565 = vld [vmem:[%s501 + $0x169] sm:$0xff]
      %v566 = vld [vmem:[%s501 + $0x171] sm:$0xff]
      %s567 = scalar_lea.vmem %s3, 4
      %v568 = vld [vmem:[%s567] sm:$0xf]
      %vm569 = vcmask 31744
      %v571 = vsel %vm569, %v535, 0
      %v574 = vsel %vm569, %v536, 0
      %v577 = vsel %vm569, %v537, 0
      %v580 = vsel %vm569, %v538, 0
      %v583 = vsel %vm569, %v539, 0
      %v586 = vsel %vm569, %v540, 0
      %v589 = vsel %vm569, %v541, 0
      %v592 = vsel %vm569, %v542, 0
      %v595 = vsel %vm569, %v543, 0
      %v598 = vsel %vm569, %v544, 0
      %v601 = vsel %vm569, %v545, 0
      %v604 = vsel %vm569, %v546, 0
      %v607 = vsel %vm569, %v547, 0
      %v610 = vsel %vm569, %v548, 0
      %v613 = vsel %vm569, %v549, 0
      %v616 = vsel %vm569, %v550, 0
      %v619 = vsel %vm569, %v551, 0
      %v622 = vsel %vm569, %v552, 0
      %v625 = vsel %vm569, %v553, 0
      %v628 = vsel %vm569, %v554, 0
      %v631 = vsel %vm569, %v555, 0
      %v634 = vsel %vm569, %v556, 0
      %v637 = vsel %vm569, %v557, 0
      %v640 = vsel %vm569, %v558, 0
      %v643 = vsel %vm569, %v559, 0
      %v646 = vsel %vm569, %v560, 0
      %v649 = vsel %vm569, %v561, 0
      %v652 = vsel %vm569, %v562, 0
      %v655 = vsel %vm569, %v563, 0
      %v658 = vsel %vm569, %v564, 0
      %v661 = vsel %vm569, %v565, 0
      %v664 = vsel %vm569, %v566, 0
      %vm666 = vcmask 1043456
      %v668 = vsel %vm666, %v568, 0
      %670 = vmatprep.subr.mxu0 0.0
      %671 = vmatpush1.msra.mxu0 0.0
      %672 = vmatprep.subr.mxu0 0.0
      %673 = vmatpush1.msra.mxu0 0.0
      %674 = vmatprep.subr.mxu0 0.0
      %675 = vmatpush1.msra.mxu0 0.0
      %676 = vmatprep.subr.mxu0 0.0
      %677 = vmatpush1.msra.mxu0 0.0
      %678 = vmatprep.subr.mxu0 0.0
      %679 = vmatpush1.msra.mxu0 0.0
      %680 = vmatprep.subr.mxu0 0.0
      %681 = vmatpush1.msra.mxu0 0.0
      %682 = vmatprep.subr.mxu0 0.0
      %683 = vmatpush1.msra.mxu0 0.0
      %684 = vmatprep.subr.mxu0 0.0
      %685 = vmatpush1.msra.mxu0 0.0
      %686 = vmatprep.subr.mxu0 0.0
      %687 = vmatpush1.msra.mxu0 0.0
      %688 = vmatprep.subr.mxu0 0.0
      %689 = vmatpush1.msra.mxu0 0.0
      %690 = vmatprep.subr.mxu0 0.0
      %691 = vmatpush1.msra.mxu0 0.0
      %692 = vmatprep.subr.mxu0 0.0
      %693 = vmatpush1.msra.mxu0 0.0
      %694 = vmatprep.subr.mxu0 0.0
      %695 = vmatpush1.msra.mxu0 0.0
      %696 = vmatprep.subr.mxu0 0.0
      %697 = vmatpush1.msra.mxu0 0.0
      %698 = vmatprep.subr.mxu0 0.0
      %699 = vmatpush1.msra.mxu0 0.0
      %700 = vmatprep.subr.mxu0 0.0
      %701 = vmatpush1.msra.mxu0 %v668
      %702 = vmatprep.subr.mxu0 0.0
      %703 = vmatpush2.msra.mxu0 0.0
      %704 = vmatprep.subr.mxu0 0.0
      %705 = vmatpush2.msra.mxu0 0.0
      %706 = vmatprep.subr.mxu0 0.0
      %707 = vmatpush2.msra.mxu0 0.0
      %708 = vmatprep.subr.mxu0 0.0
      %709 = vmatpush2.msra.mxu0 0.0
      %710 = vmatprep.subr.mxu0 0.0
      %711 = vmatpush2.msra.mxu0 0.0
      %712 = vmatprep.subr.mxu0 0.0
      %713 = vmatpush2.msra.mxu0 0.0
      %714 = vmatprep.subr.mxu0 0.0
      %715 = vmatpush2.msra.mxu0 0.0
      %716 = vmatprep.subr.mxu0 0.0
      %717 = vmatpush2.msra.mxu0 0.0
      %718 = vmatprep.subr.mxu0 0.0
      %719 = vmatpush2.msra.mxu0 0.0
      %720 = vmatprep.subr.mxu0 0.0
      %721 = vmatpush2.msra.mxu0 0.0
      %722 = vmatprep.subr.mxu0 0.0
      %723 = vmatpush2.msra.mxu0 0.0
      %724 = vmatprep.subr.mxu0 0.0
      %725 = vmatpush2.msra.mxu0 0.0
      %726 = vmatprep.subr.mxu0 0.0
      %727 = vmatpush2.msra.mxu0 0.0
      %728 = vmatprep.subr.mxu0 0.0
      %729 = vmatpush2.msra.mxu0 0.0
      %730 = vmatprep.subr.mxu0 0.0
      %731 = vmatpush2.msra.mxu0 0.0
      %732 = vmatprep.subr.mxu0 0.0
      %733 = vmatpush2.msra.mxu0 0.0
      %734 = vmatprep.mubr.f32.mxu0 0.0
      %735 = vmatmul.mubr.f32.gmra.mxu0 %v571
      %v736 = vpop.f32.mrf.mxu0
      %v737 = vadd.f32 0.0, %v736
      %v738 = vpop.f32.mrf.mxu0
      %739 = vmatprep.mubr.f32.mxu0 0.0
      %740 = vmatmul.mubr.f32.gmra.mxu0 %v574
      %v741 = vpop.f32.mrf.mxu0
      %v742 = vadd.f32 0.0, %v741
      %v743 = vpop.f32.mrf.mxu0
      %744 = vmatprep.mubr.f32.mxu0 0.0
      %745 = vmatmul.mubr.f32.gmra.mxu0 %v577
      %v746 = vpop.f32.mrf.mxu0
      %v747 = vadd.f32 0.0, %v746
      %v748 = vpop.f32.mrf.mxu0
      %749 = vmatprep.mubr.f32.mxu0 0.0
      %750 = vmatmul.mubr.f32.gmra.mxu0 %v580
      %v751 = vpop.f32.mrf.mxu0
      %v752 = vadd.f32 0.0, %v751
      %v753 = vpop.f32.mrf.mxu0
      %754 = vmatprep.mubr.f32.mxu0 0.0
      %755 = vmatmul.mubr.f32.gmra.mxu0 %v583
      %v756 = vpop.f32.mrf.mxu0
      %v757 = vadd.f32 0.0, %v756
      %v758 = vpop.f32.mrf.mxu0
      %759 = vmatprep.mubr.f32.mxu0 0.0
      %760 = vmatmul.mubr.f32.gmra.mxu0 %v586
      %v761 = vpop.f32.mrf.mxu0
      %v762 = vadd.f32 0.0, %v761
      %v763 = vpop.f32.mrf.mxu0
      %764 = vmatprep.mubr.f32.mxu0 0.0
      %765 = vmatmul.mubr.f32.gmra.mxu0 %v589
      %v766 = vpop.f32.mrf.mxu0
      %v767 = vadd.f32 0.0, %v766
      %v768 = vpop.f32.mrf.mxu0
      %769 = vmatprep.mubr.f32.mxu0 0.0
      %770 = vmatmul.mubr.f32.gmra.mxu0 %v592
      %v771 = vpop.f32.mrf.mxu0
      %v772 = vadd.f32 0.0, %v771
      %v773 = vpop.f32.mrf.mxu0
      %774 = vmatprep.mubr.f32.mxu0 0.0
      %775 = vmatmul.mubr.f32.gmra.mxu0 %v595
      %v776 = vpop.f32.mrf.mxu0
      %v777 = vadd.f32 0.0, %v776
      %v778 = vpop.f32.mrf.mxu0
      %779 = vmatprep.mubr.f32.mxu0 0.0
      %780 = vmatmul.mubr.f32.gmra.mxu0 %v598
      %v781 = vpop.f32.mrf.mxu0
      %v782 = vadd.f32 0.0, %v781
      %v783 = vpop.f32.mrf.mxu0
      %784 = vmatprep.mubr.f32.mxu0 0.0
      %785 = vmatmul.mubr.f32.gmra.mxu0 %v601
      %v786 = vpop.f32.mrf.mxu0
      %v787 = vadd.f32 0.0, %v786
      %v788 = vpop.f32.mrf.mxu0
      %789 = vmatprep.mubr.f32.mxu0 0.0
      %790 = vmatmul.mubr.f32.gmra.mxu0 %v604
      %v791 = vpop.f32.mrf.mxu0
      %v792 = vadd.f32 0.0, %v791
      %v793 = vpop.f32.mrf.mxu0
      %794 = vmatprep.mubr.f32.mxu0 0.0
      %795 = vmatmul.mubr.f32.gmra.mxu0 %v607
      %v796 = vpop.f32.mrf.mxu0
      %v797 = vadd.f32 0.0, %v796
      %v798 = vpop.f32.mrf.mxu0
      %799 = vmatprep.mubr.f32.mxu0 0.0
      %800 = vmatmul.mubr.f32.gmra.mxu0 %v610
      %v801 = vpop.f32.mrf.mxu0
      %v802 = vadd.f32 0.0, %v801
      %v803 = vpop.f32.mrf.mxu0
      %804 = vmatprep.mubr.f32.mxu0 0.0
      %805 = vmatmul.mubr.f32.gmra.mxu0 %v613
      %v806 = vpop.f32.mrf.mxu0
      %v807 = vadd.f32 0.0, %v806
      %v808 = vpop.f32.mrf.mxu0
      %809 = vmatprep.mubr.f32.mxu0 0.0
      %810 = vmatmul.mubr.f32.gmra.mxu0 %v616
      %v811 = vpop.f32.mrf.mxu0
      %v812 = vadd.f32 0.0, %v811
      %v813 = vpop.f32.mrf.mxu0
      %814 = vmatprep.mubr.f32.mxu0 0.0
      %815 = vmatmul.mubr.f32.gmra.mxu0 %v619
      %v816 = vpop.f32.mrf.mxu0
      %v817 = vadd.f32 0.0, %v816
      %v818 = vpop.f32.mrf.mxu0
      %819 = vmatprep.mubr.f32.mxu0 0.0
      %820 = vmatmul.mubr.f32.gmra.mxu0 %v622
      %v821 = vpop.f32.mrf.mxu0
      %v822 = vadd.f32 0.0, %v821
      %v823 = vpop.f32.mrf.mxu0
      %824 = vmatprep.mubr.f32.mxu0 0.0
      %825 = vmatmul.mubr.f32.gmra.mxu0 %v625
      %v826 = vpop.f32.mrf.mxu0
      %v827 = vadd.f32 0.0, %v826
      %v828 = vpop.f32.mrf.mxu0
      %829 = vmatprep.mubr.f32.mxu0 0.0
      %830 = vmatmul.mubr.f32.gmra.mxu0 %v628
      %v831 = vpop.f32.mrf.mxu0
      %v832 = vadd.f32 0.0, %v831
      %v833 = vpop.f32.mrf.mxu0
      %834 = vmatprep.mubr.f32.mxu0 0.0
      %835 = vmatmul.mubr.f32.gmra.mxu0 %v631
      %v836 = vpop.f32.mrf.mxu0
      %v837 = vadd.f32 0.0, %v836
      %v838 = vpop.f32.mrf.mxu0
      %839 = vmatprep.mubr.f32.mxu0 0.0
      %840 = vmatmul.mubr.f32.gmra.mxu0 %v634
      %v841 = vpop.f32.mrf.mxu0
      %v842 = vadd.f32 0.0, %v841
      %v843 = vpop.f32.mrf.mxu0
      %844 = vmatprep.mubr.f32.mxu0 0.0
      %845 = vmatmul.mubr.f32.gmra.mxu0 %v637
      %v846 = vpop.f32.mrf.mxu0
      %v847 = vadd.f32 0.0, %v846
      %v848 = vpop.f32.mrf.mxu0
      %849 = vmatprep.mubr.f32.mxu0 0.0
      %850 = vmatmul.mubr.f32.gmra.mxu0 %v640
      %v851 = vpop.f32.mrf.mxu0
      %v852 = vadd.f32 0.0, %v851
      %v853 = vpop.f32.mrf.mxu0
      %854 = vmatprep.mubr.f32.mxu0 0.0
      %855 = vmatmul.mubr.f32.gmra.mxu0 %v643
      %v856 = vpop.f32.mrf.mxu0
      %v857 = vadd.f32 0.0, %v856
      %v858 = vpop.f32.mrf.mxu0
      %859 = vmatprep.mubr.f32.mxu0 0.0
      %860 = vmatmul.mubr.f32.gmra.mxu0 %v646
      %v861 = vpop.f32.mrf.mxu0
      %v862 = vadd.f32 0.0, %v861
      %v863 = vpop.f32.mrf.mxu0
      %864 = vmatprep.mubr.f32.mxu0 0.0
      %865 = vmatmul.mubr.f32.gmra.mxu0 %v649
      %v866 = vpop.f32.mrf.mxu0
      %v867 = vadd.f32 0.0, %v866
      %v868 = vpop.f32.mrf.mxu0
      %869 = vmatprep.mubr.f32.mxu0 0.0
      %870 = vmatmul.mubr.f32.gmra.mxu0 %v652
      %v871 = vpop.f32.mrf.mxu0
      %v872 = vadd.f32 0.0, %v871
      %v873 = vpop.f32.mrf.mxu0
      %874 = vmatprep.mubr.f32.mxu0 0.0
      %875 = vmatmul.mubr.f32.gmra.mxu0 %v655
      %v876 = vpop.f32.mrf.mxu0
      %v877 = vadd.f32 0.0, %v876
      %v878 = vpop.f32.mrf.mxu0
      %879 = vmatprep.mubr.f32.mxu0 0.0
      %880 = vmatmul.mubr.f32.gmra.mxu0 %v658
      %v881 = vpop.f32.mrf.mxu0
      %v882 = vadd.f32 0.0, %v881
      %v883 = vpop.f32.mrf.mxu0
      %884 = vmatprep.mubr.f32.mxu0 0.0
      %885 = vmatmul.mubr.f32.gmra.mxu0 %v661
      %v886 = vpop.f32.mrf.mxu0
      %v887 = vadd.f32 0.0, %v886
      %v888 = vpop.f32.mrf.mxu0
      %889 = vmatprep.mubr.f32.mxu0 0.0
      %890 = vmatmul.mubr.f32.gmra.mxu0 %v664
      %v891 = vpop.f32.mrf.mxu0
      %v892 = vadd.f32 0.0, %v891
      %v893 = vpop.f32.mrf.mxu0
      %894 = vdwg.mxu0
      %v896 = vsel %vm569, %v502, 0
      %v899 = vsel %vm569, %v503, 0
      %v902 = vsel %vm569, %v504, 0
      %v905 = vsel %vm569, %v505, 0
      %v908 = vsel %vm569, %v506, 0
      %v911 = vsel %vm569, %v507, 0
      %v914 = vsel %vm569, %v508, 0
      %v917 = vsel %vm569, %v509, 0
      %v920 = vsel %vm569, %v510, 0
      %v923 = vsel %vm569, %v511, 0
      %v926 = vsel %vm569, %v512, 0
      %v929 = vsel %vm569, %v513, 0
      %v932 = vsel %vm569, %v514, 0
      %v935 = vsel %vm569, %v515, 0
      %v938 = vsel %vm569, %v516, 0
      %v941 = vsel %vm569, %v517, 0
      %v944 = vsel %vm569, %v518, 0
      %v947 = vsel %vm569, %v519, 0
      %v950 = vsel %vm569, %v520, 0
      %v953 = vsel %vm569, %v521, 0
      %v956 = vsel %vm569, %v522, 0
      %v959 = vsel %vm569, %v523, 0
      %v962 = vsel %vm569, %v524, 0
      %v965 = vsel %vm569, %v525, 0
      %v968 = vsel %vm569, %v526, 0
      %v971 = vsel %vm569, %v527, 0
      %v974 = vsel %vm569, %v528, 0
      %v977 = vsel %vm569, %v529, 0
      %v980 = vsel %vm569, %v530, 0
      %v983 = vsel %vm569, %v531, 0
      %v986 = vsel %vm569, %v532, 0
      %v989 = vsel %vm569, %v533, 0
      %v992 = vsel %vm666, %v534, 0
      %994 = vmatprep.subr.mxu0 0.0
      %995 = vmatpush1.msra.mxu0 0.0
      %996 = vmatprep.subr.mxu0 0.0
      %997 = vmatpush1.msra.mxu0 0.0
      %998 = vmatprep.subr.mxu0 0.0
      %999 = vmatpush1.msra.mxu0 0.0
      %1000 = vmatprep.subr.mxu0 0.0
      %1001 = vmatpush1.msra.mxu0 0.0
      %1002 = vmatprep.subr.mxu0 0.0
      %1003 = vmatpush1.msra.mxu0 0.0
      %1004 = vmatprep.subr.mxu0 0.0
      %1005 = vmatpush1.msra.mxu0 0.0
      %1006 = vmatprep.subr.mxu0 0.0
      %1007 = vmatpush1.msra.mxu0 0.0
      %1008 = vmatprep.subr.mxu0 0.0
      %1009 = vmatpush1.msra.mxu0 0.0
      %1010 = vmatprep.subr.mxu0 0.0
      %1011 = vmatpush1.msra.mxu0 0.0
      %1012 = vmatprep.subr.mxu0 0.0
      %1013 = vmatpush1.msra.mxu0 0.0
      %1014 = vmatprep.subr.mxu0 0.0
      %1015 = vmatpush1.msra.mxu0 0.0
      %1016 = vmatprep.subr.mxu0 0.0
      %1017 = vmatpush1.msra.mxu0 0.0
      %1018 = vmatprep.subr.mxu0 0.0
      %1019 = vmatpush1.msra.mxu0 0.0
      %1020 = vmatprep.subr.mxu0 0.0
      %1021 = vmatpush1.msra.mxu0 0.0
      %1022 = vmatprep.subr.mxu0 0.0
      %1023 = vmatpush1.msra.mxu0 0.0
      %1024 = vmatprep.subr.mxu0 0.0
      %1025 = vmatpush1.msra.mxu0 %v992
      %1026 = vmatprep.subr.mxu0 0.0
      %1027 = vmatpush2.msra.mxu0 0.0
      %1028 = vmatprep.subr.mxu0 0.0
      %1029 = vmatpush2.msra.mxu0 0.0
      %1030 = vmatprep.subr.mxu0 0.0
      %1031 = vmatpush2.msra.mxu0 0.0
      %1032 = vmatprep.subr.mxu0 0.0
      %1033 = vmatpush2.msra.mxu0 0.0
      %1034 = vmatprep.subr.mxu0 0.0
      %1035 = vmatpush2.msra.mxu0 0.0
      %1036 = vmatprep.subr.mxu0 0.0
      %1037 = vmatpush2.msra.mxu0 0.0
      %1038 = vmatprep.subr.mxu0 0.0
      %1039 = vmatpush2.msra.mxu0 0.0
      %1040 = vmatprep.subr.mxu0 0.0
      %1041 = vmatpush2.msra.mxu0 0.0
      %1042 = vmatprep.subr.mxu0 0.0
      %1043 = vmatpush2.msra.mxu0 0.0
      %1044 = vmatprep.subr.mxu0 0.0
      %1045 = vmatpush2.msra.mxu0 0.0
      %1046 = vmatprep.subr.mxu0 0.0
      %1047 = vmatpush2.msra.mxu0 0.0
      %1048 = vmatprep.subr.mxu0 0.0
      %1049 = vmatpush2.msra.mxu0 0.0
      %1050 = vmatprep.subr.mxu0 0.0
      %1051 = vmatpush2.msra.mxu0 0.0
      %1052 = vmatprep.subr.mxu0 0.0
      %1053 = vmatpush2.msra.mxu0 0.0
      %1054 = vmatprep.subr.mxu0 0.0
      %1055 = vmatpush2.msra.mxu0 0.0
      %1056 = vmatprep.subr.mxu0 0.0
      %1057 = vmatpush2.msra.mxu0 0.0
      %1058 = vmatprep.mubr.f32.mxu0 0.0
      %1059 = vmatmul.mubr.f32.gmra.mxu0 %v896
      %v1060 = vpop.f32.mrf.mxu0
      %v1061 = vadd.f32 %v737, %v1060
      %v1062 = vpop.f32.mrf.mxu0
      %1063 = vmatprep.mubr.f32.mxu0 0.0
      %1064 = vmatmul.mubr.f32.gmra.mxu0 %v899
      %v1065 = vpop.f32.mrf.mxu0
      %v1066 = vadd.f32 %v742, %v1065
      %v1067 = vpop.f32.mrf.mxu0
      %1068 = vmatprep.mubr.f32.mxu0 0.0
      %1069 = vmatmul.mubr.f32.gmra.mxu0 %v902
      %v1070 = vpop.f32.mrf.mxu0
      %v1071 = vadd.f32 %v747, %v1070
      %v1072 = vpop.f32.mrf.mxu0
      %1073 = vmatprep.mubr.f32.mxu0 0.0
      %1074 = vmatmul.mubr.f32.gmra.mxu0 %v905
      %v1075 = vpop.f32.mrf.mxu0
      %v1076 = vadd.f32 %v752, %v1075
      %v1077 = vpop.f32.mrf.mxu0
      %1078 = vmatprep.mubr.f32.mxu0 0.0
      %1079 = vmatmul.mubr.f32.gmra.mxu0 %v908
      %v1080 = vpop.f32.mrf.mxu0
      %v1081 = vadd.f32 %v757, %v1080
      %v1082 = vpop.f32.mrf.mxu0
      %1083 = vmatprep.mubr.f32.mxu0 0.0
      %1084 = vmatmul.mubr.f32.gmra.mxu0 %v911
      %v1085 = vpop.f32.mrf.mxu0
      %v1086 = vadd.f32 %v762, %v1085
      %v1087 = vpop.f32.mrf.mxu0
      %1088 = vmatprep.mubr.f32.mxu0 0.0
      %1089 = vmatmul.mubr.f32.gmra.mxu0 %v914
      %v1090 = vpop.f32.mrf.mxu0
      %v1091 = vadd.f32 %v767, %v1090
      %v1092 = vpop.f32.mrf.mxu0
      %1093 = vmatprep.mubr.f32.mxu0 0.0
      %1094 = vmatmul.mubr.f32.gmra.mxu0 %v917
      %v1095 = vpop.f32.mrf.mxu0
      %v1096 = vadd.f32 %v772, %v1095
      %v1097 = vpop.f32.mrf.mxu0
      %1098 = vmatprep.mubr.f32.mxu0 0.0
      %1099 = vmatmul.mubr.f32.gmra.mxu0 %v920
      %v1100 = vpop.f32.mrf.mxu0
      %v1101 = vadd.f32 %v777, %v1100
      %v1102 = vpop.f32.mrf.mxu0
      %1103 = vmatprep.mubr.f32.mxu0 0.0
      %1104 = vmatmul.mubr.f32.gmra.mxu0 %v923
      %v1105 = vpop.f32.mrf.mxu0
      %v1106 = vadd.f32 %v782, %v1105
      %v1107 = vpop.f32.mrf.mxu0
      %1108 = vmatprep.mubr.f32.mxu0 0.0
      %1109 = vmatmul.mubr.f32.gmra.mxu0 %v926
      %v1110 = vpop.f32.mrf.mxu0
      %v1111 = vadd.f32 %v787, %v1110
      %v1112 = vpop.f32.mrf.mxu0
      %1113 = vmatprep.mubr.f32.mxu0 0.0
      %1114 = vmatmul.mubr.f32.gmra.mxu0 %v929
      %v1115 = vpop.f32.mrf.mxu0
      %v1116 = vadd.f32 %v792, %v1115
      %v1117 = vpop.f32.mrf.mxu0
      %1118 = vmatprep.mubr.f32.mxu0 0.0
      %1119 = vmatmul.mubr.f32.gmra.mxu0 %v932
      %v1120 = vpop.f32.mrf.mxu0
      %v1121 = vadd.f32 %v797, %v1120
      %v1122 = vpop.f32.mrf.mxu0
      %1123 = vmatprep.mubr.f32.mxu0 0.0
      %1124 = vmatmul.mubr.f32.gmra.mxu0 %v935
      %v1125 = vpop.f32.mrf.mxu0
      %v1126 = vadd.f32 %v802, %v1125
      %v1127 = vpop.f32.mrf.mxu0
      %1128 = vmatprep.mubr.f32.mxu0 0.0
      %1129 = vmatmul.mubr.f32.gmra.mxu0 %v938
      %v1130 = vpop.f32.mrf.mxu0
      %v1131 = vadd.f32 %v807, %v1130
      %v1132 = vpop.f32.mrf.mxu0
      %1133 = vmatprep.mubr.f32.mxu0 0.0
      %1134 = vmatmul.mubr.f32.gmra.mxu0 %v941
      %v1135 = vpop.f32.mrf.mxu0
      %v1136 = vadd.f32 %v812, %v1135
      %v1137 = vpop.f32.mrf.mxu0
      %1138 = vmatprep.mubr.f32.mxu0 0.0
      %1139 = vmatmul.mubr.f32.gmra.mxu0 %v944
      %v1140 = vpop.f32.mrf.mxu0
      %v1141 = vadd.f32 %v817, %v1140
      %v1142 = vpop.f32.mrf.mxu0
      %1143 = vmatprep.mubr.f32.mxu0 0.0
      %1144 = vmatmul.mubr.f32.gmra.mxu0 %v947
      %v1145 = vpop.f32.mrf.mxu0
      %v1146 = vadd.f32 %v822, %v1145
      %v1147 = vpop.f32.mrf.mxu0
      %1148 = vmatprep.mubr.f32.mxu0 0.0
      %1149 = vmatmul.mubr.f32.gmra.mxu0 %v950
      %v1150 = vpop.f32.mrf.mxu0
      %v1151 = vadd.f32 %v827, %v1150
      %v1152 = vpop.f32.mrf.mxu0
      %1153 = vmatprep.mubr.f32.mxu0 0.0
      %1154 = vmatmul.mubr.f32.gmra.mxu0 %v953
      %v1155 = vpop.f32.mrf.mxu0
      %v1156 = vadd.f32 %v832, %v1155
      %v1157 = vpop.f32.mrf.mxu0
      %1158 = vmatprep.mubr.f32.mxu0 0.0
      %1159 = vmatmul.mubr.f32.gmra.mxu0 %v956
      %v1160 = vpop.f32.mrf.mxu0
      %v1161 = vadd.f32 %v837, %v1160
      %v1162 = vpop.f32.mrf.mxu0
      %1163 = vmatprep.mubr.f32.mxu0 0.0
      %1164 = vmatmul.mubr.f32.gmra.mxu0 %v959
      %v1165 = vpop.f32.mrf.mxu0
      %v1166 = vadd.f32 %v842, %v1165
      %v1167 = vpop.f32.mrf.mxu0
      %1168 = vmatprep.mubr.f32.mxu0 0.0
      %1169 = vmatmul.mubr.f32.gmra.mxu0 %v962
      %v1170 = vpop.f32.mrf.mxu0
      %v1171 = vadd.f32 %v847, %v1170
      %v1172 = vpop.f32.mrf.mxu0
      %1173 = vmatprep.mubr.f32.mxu0 0.0
      %1174 = vmatmul.mubr.f32.gmra.mxu0 %v965
      %v1175 = vpop.f32.mrf.mxu0
      %v1176 = vadd.f32 %v852, %v1175
      %v1177 = vpop.f32.mrf.mxu0
      %1178 = vmatprep.mubr.f32.mxu0 0.0
      %1179 = vmatmul.mubr.f32.gmra.mxu0 %v968
      %v1180 = vpop.f32.mrf.mxu0
      %v1181 = vadd.f32 %v857, %v1180
      %v1182 = vpop.f32.mrf.mxu0
      %1183 = vmatprep.mubr.f32.mxu0 0.0
      %1184 = vmatmul.mubr.f32.gmra.mxu0 %v971
      %v1185 = vpop.f32.mrf.mxu0
      %v1186 = vadd.f32 %v862, %v1185
      %v1187 = vpop.f32.mrf.mxu0
      %1188 = vmatprep.mubr.f32.mxu0 0.0
      %1189 = vmatmul.mubr.f32.gmra.mxu0 %v974
      %v1190 = vpop.f32.mrf.mxu0
      %v1191 = vadd.f32 %v867, %v1190
      %v1192 = vpop.f32.mrf.mxu0
      %1193 = vmatprep.mubr.f32.mxu0 0.0
      %1194 = vmatmul.mubr.f32.gmra.mxu0 %v977
      %v1195 = vpop.f32.mrf.mxu0
      %v1196 = vadd.f32 %v872, %v1195
      %v1197 = vpop.f32.mrf.mxu0
      %1198 = vmatprep.mubr.f32.mxu0 0.0
      %1199 = vmatmul.mubr.f32.gmra.mxu0 %v980
      %v1200 = vpop.f32.mrf.mxu0
      %v1201 = vadd.f32 %v877, %v1200
      %v1202 = vpop.f32.mrf.mxu0
      %1203 = vmatprep.mubr.f32.mxu0 0.0
      %1204 = vmatmul.mubr.f32.gmra.mxu0 %v983
      %v1205 = vpop.f32.mrf.mxu0
      %v1206 = vadd.f32 %v882, %v1205
      %v1207 = vpop.f32.mrf.mxu0
      %1208 = vmatprep.mubr.f32.mxu0 0.0
      %1209 = vmatmul.mubr.f32.gmra.mxu0 %v986
      %v1210 = vpop.f32.mrf.mxu0
      %v1211 = vadd.f32 %v887, %v1210
      %v1212 = vpop.f32.mrf.mxu0
      %1213 = vmatprep.mubr.f32.mxu0 0.0
      %1214 = vmatmul.mubr.f32.gmra.mxu0 %v989
      %v1215 = vpop.f32.mrf.mxu0
      %v1216 = vadd.f32 %v892, %v1215
      %v1217 = vpop.f32.mrf.mxu0
      %1218 = vdwg.mxu0
      %v1219 = vld [vmem:[%s501 + $0x2] sm:$0xff]
      %v1220 = vld [vmem:[%s501 + $0xa] sm:$0xff]
      %v1221 = vld [vmem:[%s501 + $0x1a] sm:$0xff]
      %v1222 = vld [vmem:[%s501 + $0x22] sm:$0xff]
      %v1223 = vld [vmem:[%s501 + $0x32] sm:$0xff]
      %v1224 = vld [vmem:[%s501 + $0x3a] sm:$0xff]
      %v1225 = vld [vmem:[%s501 + $0x4a] sm:$0xff]
      %v1226 = vld [vmem:[%s501 + $0x52] sm:$0xff]
      %v1227 = vld [vmem:[%s501 + $0x62] sm:$0xff]
      %v1228 = vld [vmem:[%s501 + $0x6a] sm:$0xff]
      %v1229 = vld [vmem:[%s501 + $0x7a] sm:$0xff]
      %v1230 = vld [vmem:[%s501 + $0x82] sm:$0xff]
      %v1231 = vld [vmem:[%s501 + $0x92] sm:$0xff]
      %v1232 = vld [vmem:[%s501 + $0x9a] sm:$0xff]
      %v1233 = vld [vmem:[%s501 + $0xaa] sm:$0xff]
      %v1234 = vld [vmem:[%s501 + $0xb2] sm:$0xff]
      %v1235 = vld [vmem:[%s501 + $0xc2] sm:$0xff]
      %v1236 = vld [vmem:[%s501 + $0xca] sm:$0xff]
      %v1237 = vld [vmem:[%s501 + $0xda] sm:$0xff]
      %v1238 = vld [vmem:[%s501 + $0xe2] sm:$0xff]
      %v1239 = vld [vmem:[%s501 + $0xf2] sm:$0xff]
      %v1240 = vld [vmem:[%s501 + $0xfa] sm:$0xff]
      %v1241 = vld [vmem:[%s501 + $0x10a] sm:$0xff]
      %v1242 = vld [vmem:[%s501 + $0x112] sm:$0xff]
      %v1243 = vld [vmem:[%s501 + $0x122] sm:$0xff]
      %v1244 = vld [vmem:[%s501 + $0x12a] sm:$0xff]
      %v1245 = vld [vmem:[%s501 + $0x13a] sm:$0xff]
      %v1246 = vld [vmem:[%s501 + $0x142] sm:$0xff]
      %v1247 = vld [vmem:[%s501 + $0x152] sm:$0xff]
      %v1248 = vld [vmem:[%s501 + $0x15a] sm:$0xff]
      %v1249 = vld [vmem:[%s501 + $0x16a] sm:$0xff]
      %v1250 = vld [vmem:[%s501 + $0x172] sm:$0xff]
      %s1251 = scalar_lea.vmem %s3, 8
      %v1252 = vld [vmem:[%s1251] sm:$0xf]
      %v1254 = vsel %vm569, %v1219, 0
      %v1257 = vsel %vm569, %v1220, 0
      %v1260 = vsel %vm569, %v1221, 0
      %v1263 = vsel %vm569, %v1222, 0
      %v1266 = vsel %vm569, %v1223, 0
      %v1269 = vsel %vm569, %v1224, 0
      %v1272 = vsel %vm569, %v1225, 0
      %v1275 = vsel %vm569, %v1226, 0
      %v1278 = vsel %vm569, %v1227, 0
      %v1281 = vsel %vm569, %v1228, 0
      %v1284 = vsel %vm569, %v1229, 0
      %v1287 = vsel %vm569, %v1230, 0
      %v1290 = vsel %vm569, %v1231, 0
      %v1293 = vsel %vm569, %v1232, 0
      %v1296 = vsel %vm569, %v1233, 0
      %v1299 = vsel %vm569, %v1234, 0
      %v1302 = vsel %vm569, %v1235, 0
      %v1305 = vsel %vm569, %v1236, 0
      %v1308 = vsel %vm569, %v1237, 0
      %v1311 = vsel %vm569, %v1238, 0
      %v1314 = vsel %vm569, %v1239, 0
      %v1317 = vsel %vm569, %v1240, 0
      %v1320 = vsel %vm569, %v1241, 0
      %v1323 = vsel %vm569, %v1242, 0
      %v1326 = vsel %vm569, %v1243, 0
      %v1329 = vsel %vm569, %v1244, 0
      %v1332 = vsel %vm569, %v1245, 0
      %v1335 = vsel %vm569, %v1246, 0
      %v1338 = vsel %vm569, %v1247, 0
      %v1341 = vsel %vm569, %v1248, 0
      %v1344 = vsel %vm569, %v1249, 0
      %v1347 = vsel %vm569, %v1250, 0
      %v1350 = vsel %vm666, %v1252, 0
      %1352 = vmatprep.subr.mxu0 0.0
      %1353 = vmatpush1.msra.mxu0 0.0
      %1354 = vmatprep.subr.mxu0 0.0
      %1355 = vmatpush1.msra.mxu0 0.0
      %1356 = vmatprep.subr.mxu0 0.0
      %1357 = vmatpush1.msra.mxu0 0.0
      %1358 = vmatprep.subr.mxu0 0.0
      %1359 = vmatpush1.msra.mxu0 0.0
      %1360 = vmatprep.subr.mxu0 0.0
      %1361 = vmatpush1.msra.mxu0 0.0
      %1362 = vmatprep.subr.mxu0 0.0
      %1363 = vmatpush1.msra.mxu0 0.0
      %1364 = vmatprep.subr.mxu0 0.0
      %1365 = vmatpush1.msra.mxu0 0.0
      %1366 = vmatprep.subr.mxu0 0.0
      %1367 = vmatpush1.msra.mxu0 0.0
      %1368 = vmatprep.subr.mxu0 0.0
      %1369 = vmatpush1.msra.mxu0 0.0
      %1370 = vmatprep.subr.mxu0 0.0
      %1371 = vmatpush1.msra.mxu0 0.0
      %1372 = vmatprep.subr.mxu0 0.0
      %1373 = vmatpush1.msra.mxu0 0.0
      %1374 = vmatprep.subr.mxu0 0.0
      %1375 = vmatpush1.msra.mxu0 0.0
      %1376 = vmatprep.subr.mxu0 0.0
      %1377 = vmatpush1.msra.mxu0 0.0
      %1378 = vmatprep.subr.mxu0 0.0
      %1379 = vmatpush1.msra.mxu0 0.0
      %1380 = vmatprep.subr.mxu0 0.0
      %1381 = vmatpush1.msra.mxu0 0.0
      %1382 = vmatprep.subr.mxu0 0.0
      %1383 = vmatpush1.msra.mxu0 %v1350
      %1384 = vmatprep.subr.mxu0 0.0
      %1385 = vmatpush2.msra.mxu0 0.0
      %1386 = vmatprep.subr.mxu0 0.0
      %1387 = vmatpush2.msra.mxu0 0.0
      %1388 = vmatprep.subr.mxu0 0.0
      %1389 = vmatpush2.msra.mxu0 0.0
      %1390 = vmatprep.subr.mxu0 0.0
      %1391 = vmatpush2.msra.mxu0 0.0
      %1392 = vmatprep.subr.mxu0 0.0
      %1393 = vmatpush2.msra.mxu0 0.0
      %1394 = vmatprep.subr.mxu0 0.0
      %1395 = vmatpush2.msra.mxu0 0.0
      %1396 = vmatprep.subr.mxu0 0.0
      %1397 = vmatpush2.msra.mxu0 0.0
      %1398 = vmatprep.subr.mxu0 0.0
      %1399 = vmatpush2.msra.mxu0 0.0
      %1400 = vmatprep.subr.mxu0 0.0
      %1401 = vmatpush2.msra.mxu0 0.0
      %1402 = vmatprep.subr.mxu0 0.0
      %1403 = vmatpush2.msra.mxu0 0.0
      %1404 = vmatprep.subr.mxu0 0.0
      %1405 = vmatpush2.msra.mxu0 0.0
      %1406 = vmatprep.subr.mxu0 0.0
      %1407 = vmatpush2.msra.mxu0 0.0
      %1408 = vmatprep.subr.mxu0 0.0
      %1409 = vmatpush2.msra.mxu0 0.0
      %1410 = vmatprep.subr.mxu0 0.0
      %1411 = vmatpush2.msra.mxu0 0.0
      %1412 = vmatprep.subr.mxu0 0.0
      %1413 = vmatpush2.msra.mxu0 0.0
      %1414 = vmatprep.subr.mxu0 0.0
      %1415 = vmatpush2.msra.mxu0 0.0
      %1416 = vmatprep.mubr.f32.mxu0 0.0
      %1417 = vmatmul.mubr.f32.gmra.mxu0 %v1254
      %v1418 = vpop.f32.mrf.mxu0
      %v1419 = vadd.f32 0.0, %v1418
      %v1420 = vpop.f32.mrf.mxu0
      %1421 = vmatprep.mubr.f32.mxu0 0.0
      %1422 = vmatmul.mubr.f32.gmra.mxu0 %v1257
      %v1423 = vpop.f32.mrf.mxu0
      %v1424 = vadd.f32 0.0, %v1423
      %v1425 = vpop.f32.mrf.mxu0
      %1426 = vmatprep.mubr.f32.mxu0 0.0
      %1427 = vmatmul.mubr.f32.gmra.mxu0 %v1260
      %v1428 = vpop.f32.mrf.mxu0
      %v1429 = vadd.f32 0.0, %v1428
      %v1430 = vpop.f32.mrf.mxu0
      %1431 = vmatprep.mubr.f32.mxu0 0.0
      %1432 = vmatmul.mubr.f32.gmra.mxu0 %v1263
      %v1433 = vpop.f32.mrf.mxu0
      %v1434 = vadd.f32 0.0, %v1433
      %v1435 = vpop.f32.mrf.mxu0
      %1436 = vmatprep.mubr.f32.mxu0 0.0
      %1437 = vmatmul.mubr.f32.gmra.mxu0 %v1266
      %v1438 = vpop.f32.mrf.mxu0
      %v1439 = vadd.f32 0.0, %v1438
      %v1440 = vpop.f32.mrf.mxu0
      %1441 = vmatprep.mubr.f32.mxu0 0.0
      %1442 = vmatmul.mubr.f32.gmra.mxu0 %v1269
      %v1443 = vpop.f32.mrf.mxu0
      %v1444 = vadd.f32 0.0, %v1443
      %v1445 = vpop.f32.mrf.mxu0
      %1446 = vmatprep.mubr.f32.mxu0 0.0
      %1447 = vmatmul.mubr.f32.gmra.mxu0 %v1272
      %v1448 = vpop.f32.mrf.mxu0
      %v1449 = vadd.f32 0.0, %v1448
      %v1450 = vpop.f32.mrf.mxu0
      %1451 = vmatprep.mubr.f32.mxu0 0.0
      %1452 = vmatmul.mubr.f32.gmra.mxu0 %v1275
      %v1453 = vpop.f32.mrf.mxu0
      %v1454 = vadd.f32 0.0, %v1453
      %v1455 = vpop.f32.mrf.mxu0
      %1456 = vmatprep.mubr.f32.mxu0 0.0
      %1457 = vmatmul.mubr.f32.gmra.mxu0 %v1278
      %v1458 = vpop.f32.mrf.mxu0
      %v1459 = vadd.f32 0.0, %v1458
      %v1460 = vpop.f32.mrf.mxu0
      %1461 = vmatprep.mubr.f32.mxu0 0.0
      %1462 = vmatmul.mubr.f32.gmra.mxu0 %v1281
      %v1463 = vpop.f32.mrf.mxu0
      %v1464 = vadd.f32 0.0, %v1463
      %v1465 = vpop.f32.mrf.mxu0
      %1466 = vmatprep.mubr.f32.mxu0 0.0
      %1467 = vmatmul.mubr.f32.gmra.mxu0 %v1284
      %v1468 = vpop.f32.mrf.mxu0
      %v1469 = vadd.f32 0.0, %v1468
      %v1470 = vpop.f32.mrf.mxu0
      %1471 = vmatprep.mubr.f32.mxu0 0.0
      %1472 = vmatmul.mubr.f32.gmra.mxu0 %v1287
      %v1473 = vpop.f32.mrf.mxu0
      %v1474 = vadd.f32 0.0, %v1473
      %v1475 = vpop.f32.mrf.mxu0
      %1476 = vmatprep.mubr.f32.mxu0 0.0
      %1477 = vmatmul.mubr.f32.gmra.mxu0 %v1290
      %v1478 = vpop.f32.mrf.mxu0
      %v1479 = vadd.f32 0.0, %v1478
      %v1480 = vpop.f32.mrf.mxu0
      %1481 = vmatprep.mubr.f32.mxu0 0.0
      %1482 = vmatmul.mubr.f32.gmra.mxu0 %v1293
      %v1483 = vpop.f32.mrf.mxu0
      %v1484 = vadd.f32 0.0, %v1483
      %v1485 = vpop.f32.mrf.mxu0
      %1486 = vmatprep.mubr.f32.mxu0 0.0
      %1487 = vmatmul.mubr.f32.gmra.mxu0 %v1296
      %v1488 = vpop.f32.mrf.mxu0
      %v1489 = vadd.f32 0.0, %v1488
      %v1490 = vpop.f32.mrf.mxu0
      %1491 = vmatprep.mubr.f32.mxu0 0.0
      %1492 = vmatmul.mubr.f32.gmra.mxu0 %v1299
      %v1493 = vpop.f32.mrf.mxu0
      %v1494 = vadd.f32 0.0, %v1493
      %v1495 = vpop.f32.mrf.mxu0
      %1496 = vmatprep.mubr.f32.mxu0 0.0
      %1497 = vmatmul.mubr.f32.gmra.mxu0 %v1302
      %v1498 = vpop.f32.mrf.mxu0
      %v1499 = vadd.f32 0.0, %v1498
      %v1500 = vpop.f32.mrf.mxu0
      %1501 = vmatprep.mubr.f32.mxu0 0.0
      %1502 = vmatmul.mubr.f32.gmra.mxu0 %v1305
      %v1503 = vpop.f32.mrf.mxu0
      %v1504 = vadd.f32 0.0, %v1503
      %v1505 = vpop.f32.mrf.mxu0
      %1506 = vmatprep.mubr.f32.mxu0 0.0
      %1507 = vmatmul.mubr.f32.gmra.mxu0 %v1308
      %v1508 = vpop.f32.mrf.mxu0
      %v1509 = vadd.f32 0.0, %v1508
      %v1510 = vpop.f32.mrf.mxu0
      %1511 = vmatprep.mubr.f32.mxu0 0.0
      %1512 = vmatmul.mubr.f32.gmra.mxu0 %v1311
      %v1513 = vpop.f32.mrf.mxu0
      %v1514 = vadd.f32 0.0, %v1513
      %v1515 = vpop.f32.mrf.mxu0
      %1516 = vmatprep.mubr.f32.mxu0 0.0
      %1517 = vmatmul.mubr.f32.gmra.mxu0 %v1314
      %v1518 = vpop.f32.mrf.mxu0
      %v1519 = vadd.f32 0.0, %v1518
      %v1520 = vpop.f32.mrf.mxu0
      %1521 = vmatprep.mubr.f32.mxu0 0.0
      %1522 = vmatmul.mubr.f32.gmra.mxu0 %v1317
      %v1523 = vpop.f32.mrf.mxu0
      %v1524 = vadd.f32 0.0, %v1523
      %v1525 = vpop.f32.mrf.mxu0
      %1526 = vmatprep.mubr.f32.mxu0 0.0
      %1527 = vmatmul.mubr.f32.gmra.mxu0 %v1320
      %v1528 = vpop.f32.mrf.mxu0
      %v1529 = vadd.f32 0.0, %v1528
      %v1530 = vpop.f32.mrf.mxu0
      %1531 = vmatprep.mubr.f32.mxu0 0.0
      %1532 = vmatmul.mubr.f32.gmra.mxu0 %v1323
      %v1533 = vpop.f32.mrf.mxu0
      %v1534 = vadd.f32 0.0, %v1533
      %v1535 = vpop.f32.mrf.mxu0
      %1536 = vmatprep.mubr.f32.mxu0 0.0
      %1537 = vmatmul.mubr.f32.gmra.mxu0 %v1326
      %v1538 = vpop.f32.mrf.mxu0
      %v1539 = vadd.f32 0.0, %v1538
      %v1540 = vpop.f32.mrf.mxu0
      %1541 = vmatprep.mubr.f32.mxu0 0.0
      %1542 = vmatmul.mubr.f32.gmra.mxu0 %v1329
      %v1543 = vpop.f32.mrf.mxu0
      %v1544 = vadd.f32 0.0, %v1543
      %v1545 = vpop.f32.mrf.mxu0
      %1546 = vmatprep.mubr.f32.mxu0 0.0
      %1547 = vmatmul.mubr.f32.gmra.mxu0 %v1332
      %v1548 = vpop.f32.mrf.mxu0
      %v1549 = vadd.f32 0.0, %v1548
      %v1550 = vpop.f32.mrf.mxu0
      %1551 = vmatprep.mubr.f32.mxu0 0.0
      %1552 = vmatmul.mubr.f32.gmra.mxu0 %v1335
      %v1553 = vpop.f32.mrf.mxu0
      %v1554 = vadd.f32 0.0, %v1553
      %v1555 = vpop.f32.mrf.mxu0
      %1556 = vmatprep.mubr.f32.mxu0 0.0
      %1557 = vmatmul.mubr.f32.gmra.mxu0 %v1338
      %v1558 = vpop.f32.mrf.mxu0
      %v1559 = vadd.f32 0.0, %v1558
      %v1560 = vpop.f32.mrf.mxu0
      %1561 = vmatprep.mubr.f32.mxu0 0.0
      %1562 = vmatmul.mubr.f32.gmra.mxu0 %v1341
      %v1563 = vpop.f32.mrf.mxu0
      %v1564 = vadd.f32 0.0, %v1563
      %v1565 = vpop.f32.mrf.mxu0
      %1566 = vmatprep.mubr.f32.mxu0 0.0
      %1567 = vmatmul.mubr.f32.gmra.mxu0 %v1344
      %v1568 = vpop.f32.mrf.mxu0
      %v1569 = vadd.f32 0.0, %v1568
      %v1570 = vpop.f32.mrf.mxu0
      %1571 = vmatprep.mubr.f32.mxu0 0.0
      %1572 = vmatmul.mubr.f32.gmra.mxu0 %v1347
      %v1573 = vpop.f32.mrf.mxu0
      %v1574 = vadd.f32 0.0, %v1573
      %v1575 = vpop.f32.mrf.mxu0
      %1576 = vdwg.mxu0
      %v1577 = vadd.f32 %v1061, %v1419
      %v1578 = vadd.f32 %v1066, %v1424
      %v1579 = vadd.f32 %v1071, %v1429
      %v1580 = vadd.f32 %v1076, %v1434
      %v1581 = vadd.f32 %v1081, %v1439
      %v1582 = vadd.f32 %v1086, %v1444
      %v1583 = vadd.f32 %v1091, %v1449
      %v1584 = vadd.f32 %v1096, %v1454
      %v1585 = vadd.f32 %v1101, %v1459
      %v1586 = vadd.f32 %v1106, %v1464
      %v1587 = vadd.f32 %v1111, %v1469
      %v1588 = vadd.f32 %v1116, %v1474
      %v1589 = vadd.f32 %v1121, %v1479
      %v1590 = vadd.f32 %v1126, %v1484
      %v1591 = vadd.f32 %v1131, %v1489
      %v1592 = vadd.f32 %v1136, %v1494
      %v1593 = vadd.f32 %v1141, %v1499
      %v1594 = vadd.f32 %v1146, %v1504
      %v1595 = vadd.f32 %v1151, %v1509
      %v1596 = vadd.f32 %v1156, %v1514
      %v1597 = vadd.f32 %v1161, %v1519
      %v1598 = vadd.f32 %v1166, %v1524
      %v1599 = vadd.f32 %v1171, %v1529
      %v1600 = vadd.f32 %v1176, %v1534
      %v1601 = vadd.f32 %v1181, %v1539
      %v1602 = vadd.f32 %v1186, %v1544
      %v1603 = vadd.f32 %v1191, %v1549
      %v1604 = vadd.f32 %v1196, %v1554
      %v1605 = vadd.f32 %v1201, %v1559
      %v1606 = vadd.f32 %v1206, %v1564
      %v1607 = vadd.f32 %v1211, %v1569
      %v1608 = vadd.f32 %v1216, %v1574
      %s1609 = sadd.s32 %s499, 1
      %s1610 = smul.u32 %s1609, 24
      %s1611 = scalar_lea.vmem [#allocation2], %s1610
      %v1612 = vld [vmem:[%s1611] sm:$0xff]
      %v1613 = vld [vmem:[%s1611 + $0x8] sm:$0xff]
      %v1614 = vld [vmem:[%s1611 + $0x18] sm:$0xff]
      %v1615 = vld [vmem:[%s1611 + $0x20] sm:$0xff]
      %v1616 = vld [vmem:[%s1611 + $0x30] sm:$0xff]
      %v1617 = vld [vmem:[%s1611 + $0x38] sm:$0xff]
      %v1618 = vld [vmem:[%s1611 + $0x48] sm:$0xff]
      %v1619 = vld [vmem:[%s1611 + $0x50] sm:$0xff]
      %v1620 = vld [vmem:[%s1611 + $0x60] sm:$0xff]
      %v1621 = vld [vmem:[%s1611 + $0x68] sm:$0xff]
      %v1622 = vld [vmem:[%s1611 + $0x78] sm:$0xff]
      %v1623 = vld [vmem:[%s1611 + $0x80] sm:$0xff]
      %v1624 = vld [vmem:[%s1611 + $0x90] sm:$0xff]
      %v1625 = vld [vmem:[%s1611 + $0x98] sm:$0xff]
      %v1626 = vld [vmem:[%s1611 + $0xa8] sm:$0xff]
      %v1627 = vld [vmem:[%s1611 + $0xb0] sm:$0xff]
      %v1628 = vld [vmem:[%s1611 + $0xc0] sm:$0xff]
      %v1629 = vld [vmem:[%s1611 + $0xc8] sm:$0xff]
      %v1630 = vld [vmem:[%s1611 + $0xd8] sm:$0xff]
      %v1631 = vld [vmem:[%s1611 + $0xe0] sm:$0xff]
      %v1632 = vld [vmem:[%s1611 + $0xf0] sm:$0xff]
      %v1633 = vld [vmem:[%s1611 + $0xf8] sm:$0xff]
      %v1634 = vld [vmem:[%s1611 + $0x108] sm:$0xff]
      %v1635 = vld [vmem:[%s1611 + $0x110] sm:$0xff]
      %v1636 = vld [vmem:[%s1611 + $0x120] sm:$0xff]
      %v1637 = vld [vmem:[%s1611 + $0x128] sm:$0xff]
      %v1638 = vld [vmem:[%s1611 + $0x138] sm:$0xff]
      %v1639 = vld [vmem:[%s1611 + $0x140] sm:$0xff]
      %v1640 = vld [vmem:[%s1611 + $0x150] sm:$0xff]
      %v1641 = vld [vmem:[%s1611 + $0x158] sm:$0xff]
      %v1642 = vld [vmem:[%s1611 + $0x168] sm:$0xff]
      %v1643 = vld [vmem:[%s1611 + $0x170] sm:$0xff]
      %s1644 = scalar_lea.vmem %s3, 12
      %v1645 = vld [vmem:[%s1644] sm:$0xf]
      %v1647 = vsel %vm569, %v1612, 0
      %v1650 = vsel %vm569, %v1613, 0
      %v1653 = vsel %vm569, %v1614, 0
      %v1656 = vsel %vm569, %v1615, 0
      %v1659 = vsel %vm569, %v1616, 0
      %v1662 = vsel %vm569, %v1617, 0
      %v1665 = vsel %vm569, %v1618, 0
      %v1668 = vsel %vm569, %v1619, 0
      %v1671 = vsel %vm569, %v1620, 0
      %v1674 = vsel %vm569, %v1621, 0
      %v1677 = vsel %vm569, %v1622, 0
      %v1680 = vsel %vm569, %v1623, 0
      %v1683 = vsel %vm569, %v1624, 0
      %v1686 = vsel %vm569, %v1625, 0
      %v1689 = vsel %vm569, %v1626, 0
      %v1692 = vsel %vm569, %v1627, 0
      %v1695 = vsel %vm569, %v1628, 0
      %v1698 = vsel %vm569, %v1629, 0
      %v1701 = vsel %vm569, %v1630, 0
      %v1704 = vsel %vm569, %v1631, 0
      %v1707 = vsel %vm569, %v1632, 0
      %v1710 = vsel %vm569, %v1633, 0
      %v1713 = vsel %vm569, %v1634, 0
      %v1716 = vsel %vm569, %v1635, 0
      %v1719 = vsel %vm569, %v1636, 0
      %v1722 = vsel %vm569, %v1637, 0
      %v1725 = vsel %vm569, %v1638, 0
      %v1728 = vsel %vm569, %v1639, 0
      %v1731 = vsel %vm569, %v1640, 0
      %v1734 = vsel %vm569, %v1641, 0
      %v1737 = vsel %vm569, %v1642, 0
      %v1740 = vsel %vm569, %v1643, 0
      %v1743 = vsel %vm666, %v1645, 0
      %1745 = vmatprep.subr.mxu0 0.0
      %1746 = vmatpush1.msra.mxu0 0.0
      %1747 = vmatprep.subr.mxu0 0.0
      %1748 = vmatpush1.msra.mxu0 0.0
      %1749 = vmatprep.subr.mxu0 0.0
      %1750 = vmatpush1.msra.mxu0 0.0
      %1751 = vmatprep.subr.mxu0 0.0
      %1752 = vmatpush1.msra.mxu0 0.0
      %1753 = vmatprep.subr.mxu0 0.0
      %1754 = vmatpush1.msra.mxu0 0.0
      %1755 = vmatprep.subr.mxu0 0.0
      %1756 = vmatpush1.msra.mxu0 0.0
      %1757 = vmatprep.subr.mxu0 0.0
      %1758 = vmatpush1.msra.mxu0 0.0
      %1759 = vmatprep.subr.mxu0 0.0
      %1760 = vmatpush1.msra.mxu0 0.0
      %1761 = vmatprep.subr.mxu0 0.0
      %1762 = vmatpush1.msra.mxu0 0.0
      %1763 = vmatprep.subr.mxu0 0.0
      %1764 = vmatpush1.msra.mxu0 0.0
      %1765 = vmatprep.subr.mxu0 0.0
      %1766 = vmatpush1.msra.mxu0 0.0
      %1767 = vmatprep.subr.mxu0 0.0
      %1768 = vmatpush1.msra.mxu0 0.0
      %1769 = vmatprep.subr.mxu0 0.0
      %1770 = vmatpush1.msra.mxu0 0.0
      %1771 = vmatprep.subr.mxu0 0.0
      %1772 = vmatpush1.msra.mxu0 0.0
      %1773 = vmatprep.subr.mxu0 0.0
      %1774 = vmatpush1.msra.mxu0 0.0
      %1775 = vmatprep.subr.mxu0 0.0
      %1776 = vmatpush1.msra.mxu0 %v1743
      %1777 = vmatprep.subr.mxu0 0.0
      %1778 = vmatpush2.msra.mxu0 0.0
      %1779 = vmatprep.subr.mxu0 0.0
      %1780 = vmatpush2.msra.mxu0 0.0
      %1781 = vmatprep.subr.mxu0 0.0
      %1782 = vmatpush2.msra.mxu0 0.0
      %1783 = vmatprep.subr.mxu0 0.0
      %1784 = vmatpush2.msra.mxu0 0.0
      %1785 = vmatprep.subr.mxu0 0.0
      %1786 = vmatpush2.msra.mxu0 0.0
      %1787 = vmatprep.subr.mxu0 0.0
      %1788 = vmatpush2.msra.mxu0 0.0
      %1789 = vmatprep.subr.mxu0 0.0
      %1790 = vmatpush2.msra.mxu0 0.0
      %1791 = vmatprep.subr.mxu0 0.0
      %1792 = vmatpush2.msra.mxu0 0.0
      %1793 = vmatprep.subr.mxu0 0.0
      %1794 = vmatpush2.msra.mxu0 0.0
      %1795 = vmatprep.subr.mxu0 0.0
      %1796 = vmatpush2.msra.mxu0 0.0
      %1797 = vmatprep.subr.mxu0 0.0
      %1798 = vmatpush2.msra.mxu0 0.0
      %1799 = vmatprep.subr.mxu0 0.0
      %1800 = vmatpush2.msra.mxu0 0.0
      %1801 = vmatprep.subr.mxu0 0.0
      %1802 = vmatpush2.msra.mxu0 0.0
      %1803 = vmatprep.subr.mxu0 0.0
      %1804 = vmatpush2.msra.mxu0 0.0
      %1805 = vmatprep.subr.mxu0 0.0
      %1806 = vmatpush2.msra.mxu0 0.0
      %1807 = vmatprep.subr.mxu0 0.0
      %1808 = vmatpush2.msra.mxu0 0.0
      %1809 = vmatprep.mubr.f32.mxu0 0.0
      %1810 = vmatmul.mubr.f32.gmra.mxu0 %v1647
      %v1811 = vpop.f32.mrf.mxu0
      %v1812 = vadd.f32 0.0, %v1811
      %v1813 = vpop.f32.mrf.mxu0
      %1814 = vmatprep.mubr.f32.mxu0 0.0
      %1815 = vmatmul.mubr.f32.gmra.mxu0 %v1650
      %v1816 = vpop.f32.mrf.mxu0
      %v1817 = vadd.f32 0.0, %v1816
      %v1818 = vpop.f32.mrf.mxu0
      %1819 = vmatprep.mubr.f32.mxu0 0.0
      %1820 = vmatmul.mubr.f32.gmra.mxu0 %v1653
      %v1821 = vpop.f32.mrf.mxu0
      %v1822 = vadd.f32 0.0, %v1821
      %v1823 = vpop.f32.mrf.mxu0
      %1824 = vmatprep.mubr.f32.mxu0 0.0
      %1825 = vmatmul.mubr.f32.gmra.mxu0 %v1656
      %v1826 = vpop.f32.mrf.mxu0
      %v1827 = vadd.f32 0.0, %v1826
      %v1828 = vpop.f32.mrf.mxu0
      %1829 = vmatprep.mubr.f32.mxu0 0.0
      %1830 = vmatmul.mubr.f32.gmra.mxu0 %v1659
      %v1831 = vpop.f32.mrf.mxu0
      %v1832 = vadd.f32 0.0, %v1831
      %v1833 = vpop.f32.mrf.mxu0
      %1834 = vmatprep.mubr.f32.mxu0 0.0
      %1835 = vmatmul.mubr.f32.gmra.mxu0 %v1662
      %v1836 = vpop.f32.mrf.mxu0
      %v1837 = vadd.f32 0.0, %v1836
      %v1838 = vpop.f32.mrf.mxu0
      %1839 = vmatprep.mubr.f32.mxu0 0.0
      %1840 = vmatmul.mubr.f32.gmra.mxu0 %v1665
      %v1841 = vpop.f32.mrf.mxu0
      %v1842 = vadd.f32 0.0, %v1841
      %v1843 = vpop.f32.mrf.mxu0
      %1844 = vmatprep.mubr.f32.mxu0 0.0
      %1845 = vmatmul.mubr.f32.gmra.mxu0 %v1668
      %v1846 = vpop.f32.mrf.mxu0
      %v1847 = vadd.f32 0.0, %v1846
      %v1848 = vpop.f32.mrf.mxu0
      %1849 = vmatprep.mubr.f32.mxu0 0.0
      %1850 = vmatmul.mubr.f32.gmra.mxu0 %v1671
      %v1851 = vpop.f32.mrf.mxu0
      %v1852 = vadd.f32 0.0, %v1851
      %v1853 = vpop.f32.mrf.mxu0
      %1854 = vmatprep.mubr.f32.mxu0 0.0
      %1855 = vmatmul.mubr.f32.gmra.mxu0 %v1674
      %v1856 = vpop.f32.mrf.mxu0
      %v1857 = vadd.f32 0.0, %v1856
      %v1858 = vpop.f32.mrf.mxu0
      %1859 = vmatprep.mubr.f32.mxu0 0.0
      %1860 = vmatmul.mubr.f32.gmra.mxu0 %v1677
      %v1861 = vpop.f32.mrf.mxu0
      %v1862 = vadd.f32 0.0, %v1861
      %v1863 = vpop.f32.mrf.mxu0
      %1864 = vmatprep.mubr.f32.mxu0 0.0
      %1865 = vmatmul.mubr.f32.gmra.mxu0 %v1680
      %v1866 = vpop.f32.mrf.mxu0
      %v1867 = vadd.f32 0.0, %v1866
      %v1868 = vpop.f32.mrf.mxu0
      %1869 = vmatprep.mubr.f32.mxu0 0.0
      %1870 = vmatmul.mubr.f32.gmra.mxu0 %v1683
      %v1871 = vpop.f32.mrf.mxu0
      %v1872 = vadd.f32 0.0, %v1871
      %v1873 = vpop.f32.mrf.mxu0
      %1874 = vmatprep.mubr.f32.mxu0 0.0
      %1875 = vmatmul.mubr.f32.gmra.mxu0 %v1686
      %v1876 = vpop.f32.mrf.mxu0
      %v1877 = vadd.f32 0.0, %v1876
      %v1878 = vpop.f32.mrf.mxu0
      %1879 = vmatprep.mubr.f32.mxu0 0.0
      %1880 = vmatmul.mubr.f32.gmra.mxu0 %v1689
      %v1881 = vpop.f32.mrf.mxu0
      %v1882 = vadd.f32 0.0, %v1881
      %v1883 = vpop.f32.mrf.mxu0
      %1884 = vmatprep.mubr.f32.mxu0 0.0
      %1885 = vmatmul.mubr.f32.gmra.mxu0 %v1692
      %v1886 = vpop.f32.mrf.mxu0
      %v1887 = vadd.f32 0.0, %v1886
      %v1888 = vpop.f32.mrf.mxu0
      %1889 = vmatprep.mubr.f32.mxu0 0.0
      %1890 = vmatmul.mubr.f32.gmra.mxu0 %v1695
      %v1891 = vpop.f32.mrf.mxu0
      %v1892 = vadd.f32 0.0, %v1891
      %v1893 = vpop.f32.mrf.mxu0
      %1894 = vmatprep.mubr.f32.mxu0 0.0
      %1895 = vmatmul.mubr.f32.gmra.mxu0 %v1698
      %v1896 = vpop.f32.mrf.mxu0
      %v1897 = vadd.f32 0.0, %v1896
      %v1898 = vpop.f32.mrf.mxu0
      %1899 = vmatprep.mubr.f32.mxu0 0.0
      %1900 = vmatmul.mubr.f32.gmra.mxu0 %v1701
      %v1901 = vpop.f32.mrf.mxu0
      %v1902 = vadd.f32 0.0, %v1901
      %v1903 = vpop.f32.mrf.mxu0
      %1904 = vmatprep.mubr.f32.mxu0 0.0
      %1905 = vmatmul.mubr.f32.gmra.mxu0 %v1704
      %v1906 = vpop.f32.mrf.mxu0
      %v1907 = vadd.f32 0.0, %v1906
      %v1908 = vpop.f32.mrf.mxu0
      %1909 = vmatprep.mubr.f32.mxu0 0.0
      %1910 = vmatmul.mubr.f32.gmra.mxu0 %v1707
      %v1911 = vpop.f32.mrf.mxu0
      %v1912 = vadd.f32 0.0, %v1911
      %v1913 = vpop.f32.mrf.mxu0
      %1914 = vmatprep.mubr.f32.mxu0 0.0
      %1915 = vmatmul.mubr.f32.gmra.mxu0 %v1710
      %v1916 = vpop.f32.mrf.mxu0
      %v1917 = vadd.f32 0.0, %v1916
      %v1918 = vpop.f32.mrf.mxu0
      %1919 = vmatprep.mubr.f32.mxu0 0.0
      %1920 = vmatmul.mubr.f32.gmra.mxu0 %v1713
      %v1921 = vpop.f32.mrf.mxu0
      %v1922 = vadd.f32 0.0, %v1921
      %v1923 = vpop.f32.mrf.mxu0
      %1924 = vmatprep.mubr.f32.mxu0 0.0
      %1925 = vmatmul.mubr.f32.gmra.mxu0 %v1716
      %v1926 = vpop.f32.mrf.mxu0
      %v1927 = vadd.f32 0.0, %v1926
      %v1928 = vpop.f32.mrf.mxu0
      %1929 = vmatprep.mubr.f32.mxu0 0.0
      %1930 = vmatmul.mubr.f32.gmra.mxu0 %v1719
      %v1931 = vpop.f32.mrf.mxu0
      %v1932 = vadd.f32 0.0, %v1931
      %v1933 = vpop.f32.mrf.mxu0
      %1934 = vmatprep.mubr.f32.mxu0 0.0
      %1935 = vmatmul.mubr.f32.gmra.mxu0 %v1722
      %v1936 = vpop.f32.mrf.mxu0
      %v1937 = vadd.f32 0.0, %v1936
      %v1938 = vpop.f32.mrf.mxu0
      %1939 = vmatprep.mubr.f32.mxu0 0.0
      %1940 = vmatmul.mubr.f32.gmra.mxu0 %v1725
      %v1941 = vpop.f32.mrf.mxu0
      %v1942 = vadd.f32 0.0, %v1941
      %v1943 = vpop.f32.mrf.mxu0
      %1944 = vmatprep.mubr.f32.mxu0 0.0
      %1945 = vmatmul.mubr.f32.gmra.mxu0 %v1728
      %v1946 = vpop.f32.mrf.mxu0
      %v1947 = vadd.f32 0.0, %v1946
      %v1948 = vpop.f32.mrf.mxu0
      %1949 = vmatprep.mubr.f32.mxu0 0.0
      %1950 = vmatmul.mubr.f32.gmra.mxu0 %v1731
      %v1951 = vpop.f32.mrf.mxu0
      %v1952 = vadd.f32 0.0, %v1951
      %v1953 = vpop.f32.mrf.mxu0
      %1954 = vmatprep.mubr.f32.mxu0 0.0
      %1955 = vmatmul.mubr.f32.gmra.mxu0 %v1734
      %v1956 = vpop.f32.mrf.mxu0
      %v1957 = vadd.f32 0.0, %v1956
      %v1958 = vpop.f32.mrf.mxu0
      %1959 = vmatprep.mubr.f32.mxu0 0.0
      %1960 = vmatmul.mubr.f32.gmra.mxu0 %v1737
      %v1961 = vpop.f32.mrf.mxu0
      %v1962 = vadd.f32 0.0, %v1961
      %v1963 = vpop.f32.mrf.mxu0
      %1964 = vmatprep.mubr.f32.mxu0 0.0
      %1965 = vmatmul.mubr.f32.gmra.mxu0 %v1740
      %v1966 = vpop.f32.mrf.mxu0
      %v1967 = vadd.f32 0.0, %v1966
      %v1968 = vpop.f32.mrf.mxu0
      %1969 = vdwg.mxu0
      %v1970 = vadd.f32 %v1577, %v1812
      %v1971 = vadd.f32 %v1578, %v1817
      %v1972 = vadd.f32 %v1579, %v1822
      %v1973 = vadd.f32 %v1580, %v1827
      %v1974 = vadd.f32 %v1581, %v1832
      %v1975 = vadd.f32 %v1582, %v1837
      %v1976 = vadd.f32 %v1583, %v1842
      %v1977 = vadd.f32 %v1584, %v1847
      %v1978 = vadd.f32 %v1585, %v1852
      %v1979 = vadd.f32 %v1586, %v1857
      %v1980 = vadd.f32 %v1587, %v1862
      %v1981 = vadd.f32 %v1588, %v1867
      %v1982 = vadd.f32 %v1589, %v1872
      %v1983 = vadd.f32 %v1590, %v1877
      %v1984 = vadd.f32 %v1591, %v1882
      %v1985 = vadd.f32 %v1592, %v1887
      %v1986 = vadd.f32 %v1593, %v1892
      %v1987 = vadd.f32 %v1594, %v1897
      %v1988 = vadd.f32 %v1595, %v1902
      %v1989 = vadd.f32 %v1596, %v1907
      %v1990 = vadd.f32 %v1597, %v1912
      %v1991 = vadd.f32 %v1598, %v1917
      %v1992 = vadd.f32 %v1599, %v1922
      %v1993 = vadd.f32 %v1600, %v1927
      %v1994 = vadd.f32 %v1601, %v1932
      %v1995 = vadd.f32 %v1602, %v1937
      %v1996 = vadd.f32 %v1603, %v1942
      %v1997 = vadd.f32 %v1604, %v1947
      %v1998 = vadd.f32 %v1605, %v1952
      %v1999 = vadd.f32 %v1606, %v1957
      %v2000 = vadd.f32 %v1607, %v1962
      %v2001 = vadd.f32 %v1608, %v1967
      %v2002 = vld [vmem:[%s1611 + $0x1] sm:$0xff]
      %v2003 = vld [vmem:[%s1611 + $0x9] sm:$0xff]
      %v2004 = vld [vmem:[%s1611 + $0x19] sm:$0xff]
      %v2005 = vld [vmem:[%s1611 + $0x21] sm:$0xff]
      %v2006 = vld [vmem:[%s1611 + $0x31] sm:$0xff]
      %v2007 = vld [vmem:[%s1611 + $0x39] sm:$0xff]
      %v2008 = vld [vmem:[%s1611 + $0x49] sm:$0xff]
      %v2009 = vld [vmem:[%s1611 + $0x51] sm:$0xff]
      %v2010 = vld [vmem:[%s1611 + $0x61] sm:$0xff]
      %v2011 = vld [vmem:[%s1611 + $0x69] sm:$0xff]
      %v2012 = vld [vmem:[%s1611 + $0x79] sm:$0xff]
      %v2013 = vld [vmem:[%s1611 + $0x81] sm:$0xff]
      %v2014 = vld [vmem:[%s1611 + $0x91] sm:$0xff]
      %v2015 = vld [vmem:[%s1611 + $0x99] sm:$0xff]
      %v2016 = vld [vmem:[%s1611 + $0xa9] sm:$0xff]
      %v2017 = vld [vmem:[%s1611 + $0xb1] sm:$0xff]
      %v2018 = vld [vmem:[%s1611 + $0xc1] sm:$0xff]
      %v2019 = vld [vmem:[%s1611 + $0xc9] sm:$0xff]
      %v2020 = vld [vmem:[%s1611 + $0xd9] sm:$0xff]
      %v2021 = vld [vmem:[%s1611 + $0xe1] sm:$0xff]
      %v2022 = vld [vmem:[%s1611 + $0xf1] sm:$0xff]
      %v2023 = vld [vmem:[%s1611 + $0xf9] sm:$0xff]
      %v2024 = vld [vmem:[%s1611 + $0x109] sm:$0xff]
      %v2025 = vld [vmem:[%s1611 + $0x111] sm:$0xff]
      %v2026 = vld [vmem:[%s1611 + $0x121] sm:$0xff]
      %v2027 = vld [vmem:[%s1611 + $0x129] sm:$0xff]
      %v2028 = vld [vmem:[%s1611 + $0x139] sm:$0xff]
      %v2029 = vld [vmem:[%s1611 + $0x141] sm:$0xff]
      %v2030 = vld [vmem:[%s1611 + $0x151] sm:$0xff]
      %v2031 = vld [vmem:[%s1611 + $0x159] sm:$0xff]
      %v2032 = vld [vmem:[%s1611 + $0x169] sm:$0xff]
      %v2033 = vld [vmem:[%s1611 + $0x171] sm:$0xff]
      %s2034 = scalar_lea.vmem %s3, 16
      %v2035 = vld [vmem:[%s2034] sm:$0xf]
      %v2037 = vsel %vm569, %v2002, 0
      %v2040 = vsel %vm569, %v2003, 0
      %v2043 = vsel %vm569, %v2004, 0
      %v2046 = vsel %vm569, %v2005, 0
      %v2049 = vsel %vm569, %v2006, 0
      %v2052 = vsel %vm569, %v2007, 0
      %v2055 = vsel %vm569, %v2008, 0
      %v2058 = vsel %vm569, %v2009, 0
      %v2061 = vsel %vm569, %v2010, 0
      %v2064 = vsel %vm569, %v2011, 0
      %v2067 = vsel %vm569, %v2012, 0
      %v2070 = vsel %vm569, %v2013, 0
      %v2073 = vsel %vm569, %v2014, 0
      %v2076 = vsel %vm569, %v2015, 0
      %v2079 = vsel %vm569, %v2016, 0
      %v2082 = vsel %vm569, %v2017, 0
      %v2085 = vsel %vm569, %v2018, 0
      %v2088 = vsel %vm569, %v2019, 0
      %v2091 = vsel %vm569, %v2020, 0
      %v2094 = vsel %vm569, %v2021, 0
      %v2097 = vsel %vm569, %v2022, 0
      %v2100 = vsel %vm569, %v2023, 0
      %v2103 = vsel %vm569, %v2024, 0
      %v2106 = vsel %vm569, %v2025, 0
      %v2109 = vsel %vm569, %v2026, 0
      %v2112 = vsel %vm569, %v2027, 0
      %v2115 = vsel %vm569, %v2028, 0
      %v2118 = vsel %vm569, %v2029, 0
      %v2121 = vsel %vm569, %v2030, 0
      %v2124 = vsel %vm569, %v2031, 0
      %v2127 = vsel %vm569, %v2032, 0
      %v2130 = vsel %vm569, %v2033, 0
      %v2133 = vsel %vm666, %v2035, 0
      %2135 = vmatprep.subr.mxu0 0.0
      %2136 = vmatpush1.msra.mxu0 0.0
      %2137 = vmatprep.subr.mxu0 0.0
      %2138 = vmatpush1.msra.mxu0 0.0
      %2139 = vmatprep.subr.mxu0 0.0
      %2140 = vmatpush1.msra.mxu0 0.0
      %2141 = vmatprep.subr.mxu0 0.0
      %2142 = vmatpush1.msra.mxu0 0.0
      %2143 = vmatprep.subr.mxu0 0.0
      %2144 = vmatpush1.msra.mxu0 0.0
      %2145 = vmatprep.subr.mxu0 0.0
      %2146 = vmatpush1.msra.mxu0 0.0
      %2147 = vmatprep.subr.mxu0 0.0
      %2148 = vmatpush1.msra.mxu0 0.0
      %2149 = vmatprep.subr.mxu0 0.0
      %2150 = vmatpush1.msra.mxu0 0.0
      %2151 = vmatprep.subr.mxu0 0.0
      %2152 = vmatpush1.msra.mxu0 0.0
      %2153 = vmatprep.subr.mxu0 0.0
      %2154 = vmatpush1.msra.mxu0 0.0
      %2155 = vmatprep.subr.mxu0 0.0
      %2156 = vmatpush1.msra.mxu0 0.0
      %2157 = vmatprep.subr.mxu0 0.0
      %2158 = vmatpush1.msra.mxu0 0.0
      %2159 = vmatprep.subr.mxu0 0.0
      %2160 = vmatpush1.msra.mxu0 0.0
      %2161 = vmatprep.subr.mxu0 0.0
      %2162 = vmatpush1.msra.mxu0 0.0
      %2163 = vmatprep.subr.mxu0 0.0
      %2164 = vmatpush1.msra.mxu0 0.0
      %2165 = vmatprep.subr.mxu0 0.0
      %2166 = vmatpush1.msra.mxu0 %v2133
      %2167 = vmatprep.subr.mxu0 0.0
      %2168 = vmatpush2.msra.mxu0 0.0
      %2169 = vmatprep.subr.mxu0 0.0
      %2170 = vmatpush2.msra.mxu0 0.0
      %2171 = vmatprep.subr.mxu0 0.0
      %2172 = vmatpush2.msra.mxu0 0.0
      %2173 = vmatprep.subr.mxu0 0.0
      %2174 = vmatpush2.msra.mxu0 0.0
      %2175 = vmatprep.subr.mxu0 0.0
      %2176 = vmatpush2.msra.mxu0 0.0
      %2177 = vmatprep.subr.mxu0 0.0
      %2178 = vmatpush2.msra.mxu0 0.0
      %2179 = vmatprep.subr.mxu0 0.0
      %2180 = vmatpush2.msra.mxu0 0.0
      %2181 = vmatprep.subr.mxu0 0.0
      %2182 = vmatpush2.msra.mxu0 0.0
      %2183 = vmatprep.subr.mxu0 0.0
      %2184 = vmatpush2.msra.mxu0 0.0
      %2185 = vmatprep.subr.mxu0 0.0
      %2186 = vmatpush2.msra.mxu0 0.0
      %2187 = vmatprep.subr.mxu0 0.0
      %2188 = vmatpush2.msra.mxu0 0.0
      %2189 = vmatprep.subr.mxu0 0.0
      %2190 = vmatpush2.msra.mxu0 0.0
      %2191 = vmatprep.subr.mxu0 0.0
      %2192 = vmatpush2.msra.mxu0 0.0
      %2193 = vmatprep.subr.mxu0 0.0
      %2194 = vmatpush2.msra.mxu0 0.0
      %2195 = vmatprep.subr.mxu0 0.0
      %2196 = vmatpush2.msra.mxu0 0.0
      %2197 = vmatprep.subr.mxu0 0.0
      %2198 = vmatpush2.msra.mxu0 0.0
      %2199 = vmatprep.mubr.f32.mxu0 0.0
      %2200 = vmatmul.mubr.f32.gmra.mxu0 %v2037
      %v2201 = vpop.f32.mrf.mxu0
      %v2202 = vadd.f32 0.0, %v2201
      %v2203 = vpop.f32.mrf.mxu0
      %2204 = vmatprep.mubr.f32.mxu0 0.0
      %2205 = vmatmul.mubr.f32.gmra.mxu0 %v2040
      %v2206 = vpop.f32.mrf.mxu0
      %v2207 = vadd.f32 0.0, %v2206
      %v2208 = vpop.f32.mrf.mxu0
      %2209 = vmatprep.mubr.f32.mxu0 0.0
      %2210 = vmatmul.mubr.f32.gmra.mxu0 %v2043
      %v2211 = vpop.f32.mrf.mxu0
      %v2212 = vadd.f32 0.0, %v2211
      %v2213 = vpop.f32.mrf.mxu0
      %2214 = vmatprep.mubr.f32.mxu0 0.0
      %2215 = vmatmul.mubr.f32.gmra.mxu0 %v2046
      %v2216 = vpop.f32.mrf.mxu0
      %v2217 = vadd.f32 0.0, %v2216
      %v2218 = vpop.f32.mrf.mxu0
      %2219 = vmatprep.mubr.f32.mxu0 0.0
      %2220 = vmatmul.mubr.f32.gmra.mxu0 %v2049
      %v2221 = vpop.f32.mrf.mxu0
      %v2222 = vadd.f32 0.0, %v2221
      %v2223 = vpop.f32.mrf.mxu0
      %2224 = vmatprep.mubr.f32.mxu0 0.0
      %2225 = vmatmul.mubr.f32.gmra.mxu0 %v2052
      %v2226 = vpop.f32.mrf.mxu0
      %v2227 = vadd.f32 0.0, %v2226
      %v2228 = vpop.f32.mrf.mxu0
      %2229 = vmatprep.mubr.f32.mxu0 0.0
      %2230 = vmatmul.mubr.f32.gmra.mxu0 %v2055
      %v2231 = vpop.f32.mrf.mxu0
      %v2232 = vadd.f32 0.0, %v2231
      %v2233 = vpop.f32.mrf.mxu0
      %2234 = vmatprep.mubr.f32.mxu0 0.0
      %2235 = vmatmul.mubr.f32.gmra.mxu0 %v2058
      %v2236 = vpop.f32.mrf.mxu0
      %v2237 = vadd.f32 0.0, %v2236
      %v2238 = vpop.f32.mrf.mxu0
      %2239 = vmatprep.mubr.f32.mxu0 0.0
      %2240 = vmatmul.mubr.f32.gmra.mxu0 %v2061
      %v2241 = vpop.f32.mrf.mxu0
      %v2242 = vadd.f32 0.0, %v2241
      %v2243 = vpop.f32.mrf.mxu0
      %2244 = vmatprep.mubr.f32.mxu0 0.0
      %2245 = vmatmul.mubr.f32.gmra.mxu0 %v2064
      %v2246 = vpop.f32.mrf.mxu0
      %v2247 = vadd.f32 0.0, %v2246
      %v2248 = vpop.f32.mrf.mxu0
      %2249 = vmatprep.mubr.f32.mxu0 0.0
      %2250 = vmatmul.mubr.f32.gmra.mxu0 %v2067
      %v2251 = vpop.f32.mrf.mxu0
      %v2252 = vadd.f32 0.0, %v2251
      %v2253 = vpop.f32.mrf.mxu0
      %2254 = vmatprep.mubr.f32.mxu0 0.0
      %2255 = vmatmul.mubr.f32.gmra.mxu0 %v2070
      %v2256 = vpop.f32.mrf.mxu0
      %v2257 = vadd.f32 0.0, %v2256
      %v2258 = vpop.f32.mrf.mxu0
      %2259 = vmatprep.mubr.f32.mxu0 0.0
      %2260 = vmatmul.mubr.f32.gmra.mxu0 %v2073
      %v2261 = vpop.f32.mrf.mxu0
      %v2262 = vadd.f32 0.0, %v2261
      %v2263 = vpop.f32.mrf.mxu0
      %2264 = vmatprep.mubr.f32.mxu0 0.0
      %2265 = vmatmul.mubr.f32.gmra.mxu0 %v2076
      %v2266 = vpop.f32.mrf.mxu0
      %v2267 = vadd.f32 0.0, %v2266
      %v2268 = vpop.f32.mrf.mxu0
      %2269 = vmatprep.mubr.f32.mxu0 0.0
      %2270 = vmatmul.mubr.f32.gmra.mxu0 %v2079
      %v2271 = vpop.f32.mrf.mxu0
      %v2272 = vadd.f32 0.0, %v2271
      %v2273 = vpop.f32.mrf.mxu0
      %2274 = vmatprep.mubr.f32.mxu0 0.0
      %2275 = vmatmul.mubr.f32.gmra.mxu0 %v2082
      %v2276 = vpop.f32.mrf.mxu0
      %v2277 = vadd.f32 0.0, %v2276
      %v2278 = vpop.f32.mrf.mxu0
      %2279 = vmatprep.mubr.f32.mxu0 0.0
      %2280 = vmatmul.mubr.f32.gmra.mxu0 %v2085
      %v2281 = vpop.f32.mrf.mxu0
      %v2282 = vadd.f32 0.0, %v2281
      %v2283 = vpop.f32.mrf.mxu0
      %2284 = vmatprep.mubr.f32.mxu0 0.0
      %2285 = vmatmul.mubr.f32.gmra.mxu0 %v2088
      %v2286 = vpop.f32.mrf.mxu0
      %v2287 = vadd.f32 0.0, %v2286
      %v2288 = vpop.f32.mrf.mxu0
      %2289 = vmatprep.mubr.f32.mxu0 0.0
      %2290 = vmatmul.mubr.f32.gmra.mxu0 %v2091
      %v2291 = vpop.f32.mrf.mxu0
      %v2292 = vadd.f32 0.0, %v2291
      %v2293 = vpop.f32.mrf.mxu0
      %2294 = vmatprep.mubr.f32.mxu0 0.0
      %2295 = vmatmul.mubr.f32.gmra.mxu0 %v2094
      %v2296 = vpop.f32.mrf.mxu0
      %v2297 = vadd.f32 0.0, %v2296
      %v2298 = vpop.f32.mrf.mxu0
      %2299 = vmatprep.mubr.f32.mxu0 0.0
      %2300 = vmatmul.mubr.f32.gmra.mxu0 %v2097
      %v2301 = vpop.f32.mrf.mxu0
      %v2302 = vadd.f32 0.0, %v2301
      %v2303 = vpop.f32.mrf.mxu0
      %2304 = vmatprep.mubr.f32.mxu0 0.0
      %2305 = vmatmul.mubr.f32.gmra.mxu0 %v2100
      %v2306 = vpop.f32.mrf.mxu0
      %v2307 = vadd.f32 0.0, %v2306
      %v2308 = vpop.f32.mrf.mxu0
      %2309 = vmatprep.mubr.f32.mxu0 0.0
      %2310 = vmatmul.mubr.f32.gmra.mxu0 %v2103
      %v2311 = vpop.f32.mrf.mxu0
      %v2312 = vadd.f32 0.0, %v2311
      %v2313 = vpop.f32.mrf.mxu0
      %2314 = vmatprep.mubr.f32.mxu0 0.0
      %2315 = vmatmul.mubr.f32.gmra.mxu0 %v2106
      %v2316 = vpop.f32.mrf.mxu0
      %v2317 = vadd.f32 0.0, %v2316
      %v2318 = vpop.f32.mrf.mxu0
      %2319 = vmatprep.mubr.f32.mxu0 0.0
      %2320 = vmatmul.mubr.f32.gmra.mxu0 %v2109
      %v2321 = vpop.f32.mrf.mxu0
      %v2322 = vadd.f32 0.0, %v2321
      %v2323 = vpop.f32.mrf.mxu0
      %2324 = vmatprep.mubr.f32.mxu0 0.0
      %2325 = vmatmul.mubr.f32.gmra.mxu0 %v2112
      %v2326 = vpop.f32.mrf.mxu0
      %v2327 = vadd.f32 0.0, %v2326
      %v2328 = vpop.f32.mrf.mxu0
      %2329 = vmatprep.mubr.f32.mxu0 0.0
      %2330 = vmatmul.mubr.f32.gmra.mxu0 %v2115
      %v2331 = vpop.f32.mrf.mxu0
      %v2332 = vadd.f32 0.0, %v2331
      %v2333 = vpop.f32.mrf.mxu0
      %2334 = vmatprep.mubr.f32.mxu0 0.0
      %2335 = vmatmul.mubr.f32.gmra.mxu0 %v2118
      %v2336 = vpop.f32.mrf.mxu0
      %v2337 = vadd.f32 0.0, %v2336
      %v2338 = vpop.f32.mrf.mxu0
      %2339 = vmatprep.mubr.f32.mxu0 0.0
      %2340 = vmatmul.mubr.f32.gmra.mxu0 %v2121
      %v2341 = vpop.f32.mrf.mxu0
      %v2342 = vadd.f32 0.0, %v2341
      %v2343 = vpop.f32.mrf.mxu0
      %2344 = vmatprep.mubr.f32.mxu0 0.0
      %2345 = vmatmul.mubr.f32.gmra.mxu0 %v2124
      %v2346 = vpop.f32.mrf.mxu0
      %v2347 = vadd.f32 0.0, %v2346
      %v2348 = vpop.f32.mrf.mxu0
      %2349 = vmatprep.mubr.f32.mxu0 0.0
      %2350 = vmatmul.mubr.f32.gmra.mxu0 %v2127
      %v2351 = vpop.f32.mrf.mxu0
      %v2352 = vadd.f32 0.0, %v2351
      %v2353 = vpop.f32.mrf.mxu0
      %2354 = vmatprep.mubr.f32.mxu0 0.0
      %2355 = vmatmul.mubr.f32.gmra.mxu0 %v2130
      %v2356 = vpop.f32.mrf.mxu0
      %v2357 = vadd.f32 0.0, %v2356
      %v2358 = vpop.f32.mrf.mxu0
      %2359 = vdwg.mxu0
      %v2360 = vadd.f32 %v1970, %v2202
      %v2361 = vadd.f32 %v1971, %v2207
      %v2362 = vadd.f32 %v1972, %v2212
      %v2363 = vadd.f32 %v1973, %v2217
      %v2364 = vadd.f32 %v1974, %v2222
      %v2365 = vadd.f32 %v1975, %v2227
      %v2366 = vadd.f32 %v1976, %v2232
      %v2367 = vadd.f32 %v1977, %v2237
      %v2368 = vadd.f32 %v1978, %v2242
      %v2369 = vadd.f32 %v1979, %v2247
      %v2370 = vadd.f32 %v1980, %v2252
      %v2371 = vadd.f32 %v1981, %v2257
      %v2372 = vadd.f32 %v1982, %v2262
      %v2373 = vadd.f32 %v1983, %v2267
      %v2374 = vadd.f32 %v1984, %v2272
      %v2375 = vadd.f32 %v1985, %v2277
      %v2376 = vadd.f32 %v1986, %v2282
      %v2377 = vadd.f32 %v1987, %v2287
      %v2378 = vadd.f32 %v1988, %v2292
      %v2379 = vadd.f32 %v1989, %v2297
      %v2380 = vadd.f32 %v1990, %v2302
      %v2381 = vadd.f32 %v1991, %v2307
      %v2382 = vadd.f32 %v1992, %v2312
      %v2383 = vadd.f32 %v1993, %v2317
      %v2384 = vadd.f32 %v1994, %v2322
      %v2385 = vadd.f32 %v1995, %v2327
      %v2386 = vadd.f32 %v1996, %v2332
      %v2387 = vadd.f32 %v1997, %v2337
      %v2388 = vadd.f32 %v1998, %v2342
      %v2389 = vadd.f32 %v1999, %v2347
      %v2390 = vadd.f32 %v2000, %v2352
      %v2391 = vadd.f32 %v2001, %v2357
      %v2392 = vld [vmem:[%s1611 + $0x2] sm:$0xff]
      %v2393 = vld [vmem:[%s1611 + $0xa] sm:$0xff]
      %v2394 = vld [vmem:[%s1611 + $0x1a] sm:$0xff]
      %v2395 = vld [vmem:[%s1611 + $0x22] sm:$0xff]
      %v2396 = vld [vmem:[%s1611 + $0x32] sm:$0xff]
      %v2397 = vld [vmem:[%s1611 + $0x3a] sm:$0xff]
      %v2398 = vld [vmem:[%s1611 + $0x4a] sm:$0xff]
      %v2399 = vld [vmem:[%s1611 + $0x52] sm:$0xff]
      %v2400 = vld [vmem:[%s1611 + $0x62] sm:$0xff]
      %v2401 = vld [vmem:[%s1611 + $0x6a] sm:$0xff]
      %v2402 = vld [vmem:[%s1611 + $0x7a] sm:$0xff]
      %v2403 = vld [vmem:[%s1611 + $0x82] sm:$0xff]
      %v2404 = vld [vmem:[%s1611 + $0x92] sm:$0xff]
      %v2405 = vld [vmem:[%s1611 + $0x9a] sm:$0xff]
      %v2406 = vld [vmem:[%s1611 + $0xaa] sm:$0xff]
      %v2407 = vld [vmem:[%s1611 + $0xb2] sm:$0xff]
      %v2408 = vld [vmem:[%s1611 + $0xc2] sm:$0xff]
      %v2409 = vld [vmem:[%s1611 + $0xca] sm:$0xff]
      %v2410 = vld [vmem:[%s1611 + $0xda] sm:$0xff]
      %v2411 = vld [vmem:[%s1611 + $0xe2] sm:$0xff]
      %v2412 = vld [vmem:[%s1611 + $0xf2] sm:$0xff]
      %v2413 = vld [vmem:[%s1611 + $0xfa] sm:$0xff]
      %v2414 = vld [vmem:[%s1611 + $0x10a] sm:$0xff]
      %v2415 = vld [vmem:[%s1611 + $0x112] sm:$0xff]
      %v2416 = vld [vmem:[%s1611 + $0x122] sm:$0xff]
      %v2417 = vld [vmem:[%s1611 + $0x12a] sm:$0xff]
      %v2418 = vld [vmem:[%s1611 + $0x13a] sm:$0xff]
      %v2419 = vld [vmem:[%s1611 + $0x142] sm:$0xff]
      %v2420 = vld [vmem:[%s1611 + $0x152] sm:$0xff]
      %v2421 = vld [vmem:[%s1611 + $0x15a] sm:$0xff]
      %v2422 = vld [vmem:[%s1611 + $0x16a] sm:$0xff]
      %v2423 = vld [vmem:[%s1611 + $0x172] sm:$0xff]
      %s2424 = scalar_lea.vmem %s3, 20
      %v2425 = vld [vmem:[%s2424] sm:$0xf]
      %v2427 = vsel %vm569, %v2392, 0
      %v2430 = vsel %vm569, %v2393, 0
      %v2433 = vsel %vm569, %v2394, 0
      %v2436 = vsel %vm569, %v2395, 0
      %v2439 = vsel %vm569, %v2396, 0
      %v2442 = vsel %vm569, %v2397, 0
      %v2445 = vsel %vm569, %v2398, 0
      %v2448 = vsel %vm569, %v2399, 0
      %v2451 = vsel %vm569, %v2400, 0
      %v2454 = vsel %vm569, %v2401, 0
      %v2457 = vsel %vm569, %v2402, 0
      %v2460 = vsel %vm569, %v2403, 0
      %v2463 = vsel %vm569, %v2404, 0
      %v2466 = vsel %vm569, %v2405, 0
      %v2469 = vsel %vm569, %v2406, 0
      %v2472 = vsel %vm569, %v2407, 0
      %v2475 = vsel %vm569, %v2408, 0
      %v2478 = vsel %vm569, %v2409, 0
      %v2481 = vsel %vm569, %v2410, 0
      %v2484 = vsel %vm569, %v2411, 0
      %v2487 = vsel %vm569, %v2412, 0
      %v2490 = vsel %vm569, %v2413, 0
      %v2493 = vsel %vm569, %v2414, 0
      %v2496 = vsel %vm569, %v2415, 0
      %v2499 = vsel %vm569, %v2416, 0
      %v2502 = vsel %vm569, %v2417, 0
      %v2505 = vsel %vm569, %v2418, 0
      %v2508 = vsel %vm569, %v2419, 0
      %v2511 = vsel %vm569, %v2420, 0
      %v2514 = vsel %vm569, %v2421, 0
      %v2517 = vsel %vm569, %v2422, 0
      %v2520 = vsel %vm569, %v2423, 0
      %v2523 = vsel %vm666, %v2425, 0
      %2525 = vmatprep.subr.mxu0 0.0
      %2526 = vmatpush1.msra.mxu0 0.0
      %2527 = vmatprep.subr.mxu0 0.0
      %2528 = vmatpush1.msra.mxu0 0.0
      %2529 = vmatprep.subr.mxu0 0.0
      %2530 = vmatpush1.msra.mxu0 0.0
      %2531 = vmatprep.subr.mxu0 0.0
      %2532 = vmatpush1.msra.mxu0 0.0
      %2533 = vmatprep.subr.mxu0 0.0
      %2534 = vmatpush1.msra.mxu0 0.0
      %2535 = vmatprep.subr.mxu0 0.0
      %2536 = vmatpush1.msra.mxu0 0.0
      %2537 = vmatprep.subr.mxu0 0.0
      %2538 = vmatpush1.msra.mxu0 0.0
      %2539 = vmatprep.subr.mxu0 0.0
      %2540 = vmatpush1.msra.mxu0 0.0
      %2541 = vmatprep.subr.mxu0 0.0
      %2542 = vmatpush1.msra.mxu0 0.0
      %2543 = vmatprep.subr.mxu0 0.0
      %2544 = vmatpush1.msra.mxu0 0.0
      %2545 = vmatprep.subr.mxu0 0.0
      %2546 = vmatpush1.msra.mxu0 0.0
      %2547 = vmatprep.subr.mxu0 0.0
      %2548 = vmatpush1.msra.mxu0 0.0
      %2549 = vmatprep.subr.mxu0 0.0
      %2550 = vmatpush1.msra.mxu0 0.0
      %2551 = vmatprep.subr.mxu0 0.0
      %2552 = vmatpush1.msra.mxu0 0.0
      %2553 = vmatprep.subr.mxu0 0.0
      %2554 = vmatpush1.msra.mxu0 0.0
      %2555 = vmatprep.subr.mxu0 0.0
      %2556 = vmatpush1.msra.mxu0 %v2523
      %2557 = vmatprep.subr.mxu0 0.0
      %2558 = vmatpush2.msra.mxu0 0.0
      %2559 = vmatprep.subr.mxu0 0.0
      %2560 = vmatpush2.msra.mxu0 0.0
      %2561 = vmatprep.subr.mxu0 0.0
      %2562 = vmatpush2.msra.mxu0 0.0
      %2563 = vmatprep.subr.mxu0 0.0
      %2564 = vmatpush2.msra.mxu0 0.0
      %2565 = vmatprep.subr.mxu0 0.0
      %2566 = vmatpush2.msra.mxu0 0.0
      %2567 = vmatprep.subr.mxu0 0.0
      %2568 = vmatpush2.msra.mxu0 0.0
      %2569 = vmatprep.subr.mxu0 0.0
      %2570 = vmatpush2.msra.mxu0 0.0
      %2571 = vmatprep.subr.mxu0 0.0
      %2572 = vmatpush2.msra.mxu0 0.0
      %2573 = vmatprep.subr.mxu0 0.0
      %2574 = vmatpush2.msra.mxu0 0.0
      %2575 = vmatprep.subr.mxu0 0.0
      %2576 = vmatpush2.msra.mxu0 0.0
      %2577 = vmatprep.subr.mxu0 0.0
      %2578 = vmatpush2.msra.mxu0 0.0
      %2579 = vmatprep.subr.mxu0 0.0
      %2580 = vmatpush2.msra.mxu0 0.0
      %2581 = vmatprep.subr.mxu0 0.0
      %2582 = vmatpush2.msra.mxu0 0.0
      %2583 = vmatprep.subr.mxu0 0.0
      %2584 = vmatpush2.msra.mxu0 0.0
      %2585 = vmatprep.subr.mxu0 0.0
      %2586 = vmatpush2.msra.mxu0 0.0
      %2587 = vmatprep.subr.mxu0 0.0
      %2588 = vmatpush2.msra.mxu0 0.0
      %2589 = vmatprep.mubr.f32.mxu0 0.0
      %2590 = vmatmul.mubr.f32.gmra.mxu0 %v2427
      %v2591 = vpop.f32.mrf.mxu0
      %v2592 = vadd.f32 0.0, %v2591
      %v2593 = vpop.f32.mrf.mxu0
      %2594 = vmatprep.mubr.f32.mxu0 0.0
      %2595 = vmatmul.mubr.f32.gmra.mxu0 %v2430
      %v2596 = vpop.f32.mrf.mxu0
      %v2597 = vadd.f32 0.0, %v2596
      %v2598 = vpop.f32.mrf.mxu0
      %2599 = vmatprep.mubr.f32.mxu0 0.0
      %2600 = vmatmul.mubr.f32.gmra.mxu0 %v2433
      %v2601 = vpop.f32.mrf.mxu0
      %v2602 = vadd.f32 0.0, %v2601
      %v2603 = vpop.f32.mrf.mxu0
      %2604 = vmatprep.mubr.f32.mxu0 0.0
      %2605 = vmatmul.mubr.f32.gmra.mxu0 %v2436
      %v2606 = vpop.f32.mrf.mxu0
      %v2607 = vadd.f32 0.0, %v2606
      %v2608 = vpop.f32.mrf.mxu0
      %2609 = vmatprep.mubr.f32.mxu0 0.0
      %2610 = vmatmul.mubr.f32.gmra.mxu0 %v2439
      %v2611 = vpop.f32.mrf.mxu0
      %v2612 = vadd.f32 0.0, %v2611
      %v2613 = vpop.f32.mrf.mxu0
      %2614 = vmatprep.mubr.f32.mxu0 0.0
      %2615 = vmatmul.mubr.f32.gmra.mxu0 %v2442
      %v2616 = vpop.f32.mrf.mxu0
      %v2617 = vadd.f32 0.0, %v2616
      %v2618 = vpop.f32.mrf.mxu0
      %2619 = vmatprep.mubr.f32.mxu0 0.0
      %2620 = vmatmul.mubr.f32.gmra.mxu0 %v2445
      %v2621 = vpop.f32.mrf.mxu0
      %v2622 = vadd.f32 0.0, %v2621
      %v2623 = vpop.f32.mrf.mxu0
      %2624 = vmatprep.mubr.f32.mxu0 0.0
      %2625 = vmatmul.mubr.f32.gmra.mxu0 %v2448
      %v2626 = vpop.f32.mrf.mxu0
      %v2627 = vadd.f32 0.0, %v2626
      %v2628 = vpop.f32.mrf.mxu0
      %2629 = vmatprep.mubr.f32.mxu0 0.0
      %2630 = vmatmul.mubr.f32.gmra.mxu0 %v2451
      %v2631 = vpop.f32.mrf.mxu0
      %v2632 = vadd.f32 0.0, %v2631
      %v2633 = vpop.f32.mrf.mxu0
      %2634 = vmatprep.mubr.f32.mxu0 0.0
      %2635 = vmatmul.mubr.f32.gmra.mxu0 %v2454
      %v2636 = vpop.f32.mrf.mxu0
      %v2637 = vadd.f32 0.0, %v2636
      %v2638 = vpop.f32.mrf.mxu0
      %2639 = vmatprep.mubr.f32.mxu0 0.0
      %2640 = vmatmul.mubr.f32.gmra.mxu0 %v2457
      %v2641 = vpop.f32.mrf.mxu0
      %v2642 = vadd.f32 0.0, %v2641
      %v2643 = vpop.f32.mrf.mxu0
      %2644 = vmatprep.mubr.f32.mxu0 0.0
      %2645 = vmatmul.mubr.f32.gmra.mxu0 %v2460
      %v2646 = vpop.f32.mrf.mxu0
      %v2647 = vadd.f32 0.0, %v2646
      %v2648 = vpop.f32.mrf.mxu0
      %2649 = vmatprep.mubr.f32.mxu0 0.0
      %2650 = vmatmul.mubr.f32.gmra.mxu0 %v2463
      %v2651 = vpop.f32.mrf.mxu0
      %v2652 = vadd.f32 0.0, %v2651
      %v2653 = vpop.f32.mrf.mxu0
      %2654 = vmatprep.mubr.f32.mxu0 0.0
      %2655 = vmatmul.mubr.f32.gmra.mxu0 %v2466
      %v2656 = vpop.f32.mrf.mxu0
      %v2657 = vadd.f32 0.0, %v2656
      %v2658 = vpop.f32.mrf.mxu0
      %2659 = vmatprep.mubr.f32.mxu0 0.0
      %2660 = vmatmul.mubr.f32.gmra.mxu0 %v2469
      %v2661 = vpop.f32.mrf.mxu0
      %v2662 = vadd.f32 0.0, %v2661
      %v2663 = vpop.f32.mrf.mxu0
      %2664 = vmatprep.mubr.f32.mxu0 0.0
      %2665 = vmatmul.mubr.f32.gmra.mxu0 %v2472
      %v2666 = vpop.f32.mrf.mxu0
      %v2667 = vadd.f32 0.0, %v2666
      %v2668 = vpop.f32.mrf.mxu0
      %2669 = vmatprep.mubr.f32.mxu0 0.0
      %2670 = vmatmul.mubr.f32.gmra.mxu0 %v2475
      %v2671 = vpop.f32.mrf.mxu0
      %v2672 = vadd.f32 0.0, %v2671
      %v2673 = vpop.f32.mrf.mxu0
      %2674 = vmatprep.mubr.f32.mxu0 0.0
      %2675 = vmatmul.mubr.f32.gmra.mxu0 %v2478
      %v2676 = vpop.f32.mrf.mxu0
      %v2677 = vadd.f32 0.0, %v2676
      %v2678 = vpop.f32.mrf.mxu0
      %2679 = vmatprep.mubr.f32.mxu0 0.0
      %2680 = vmatmul.mubr.f32.gmra.mxu0 %v2481
      %v2681 = vpop.f32.mrf.mxu0
      %v2682 = vadd.f32 0.0, %v2681
      %v2683 = vpop.f32.mrf.mxu0
      %2684 = vmatprep.mubr.f32.mxu0 0.0
      %2685 = vmatmul.mubr.f32.gmra.mxu0 %v2484
      %v2686 = vpop.f32.mrf.mxu0
      %v2687 = vadd.f32 0.0, %v2686
      %v2688 = vpop.f32.mrf.mxu0
      %2689 = vmatprep.mubr.f32.mxu0 0.0
      %2690 = vmatmul.mubr.f32.gmra.mxu0 %v2487
      %v2691 = vpop.f32.mrf.mxu0
      %v2692 = vadd.f32 0.0, %v2691
      %v2693 = vpop.f32.mrf.mxu0
      %2694 = vmatprep.mubr.f32.mxu0 0.0
      %2695 = vmatmul.mubr.f32.gmra.mxu0 %v2490
      %v2696 = vpop.f32.mrf.mxu0
      %v2697 = vadd.f32 0.0, %v2696
      %v2698 = vpop.f32.mrf.mxu0
      %2699 = vmatprep.mubr.f32.mxu0 0.0
      %2700 = vmatmul.mubr.f32.gmra.mxu0 %v2493
      %v2701 = vpop.f32.mrf.mxu0
      %v2702 = vadd.f32 0.0, %v2701
      %v2703 = vpop.f32.mrf.mxu0
      %2704 = vmatprep.mubr.f32.mxu0 0.0
      %2705 = vmatmul.mubr.f32.gmra.mxu0 %v2496
      %v2706 = vpop.f32.mrf.mxu0
      %v2707 = vadd.f32 0.0, %v2706
      %v2708 = vpop.f32.mrf.mxu0
      %2709 = vmatprep.mubr.f32.mxu0 0.0
      %2710 = vmatmul.mubr.f32.gmra.mxu0 %v2499
      %v2711 = vpop.f32.mrf.mxu0
      %v2712 = vadd.f32 0.0, %v2711
      %v2713 = vpop.f32.mrf.mxu0
      %2714 = vmatprep.mubr.f32.mxu0 0.0
      %2715 = vmatmul.mubr.f32.gmra.mxu0 %v2502
      %v2716 = vpop.f32.mrf.mxu0
      %v2717 = vadd.f32 0.0, %v2716
      %v2718 = vpop.f32.mrf.mxu0
      %2719 = vmatprep.mubr.f32.mxu0 0.0
      %2720 = vmatmul.mubr.f32.gmra.mxu0 %v2505
      %v2721 = vpop.f32.mrf.mxu0
      %v2722 = vadd.f32 0.0, %v2721
      %v2723 = vpop.f32.mrf.mxu0
      %2724 = vmatprep.mubr.f32.mxu0 0.0
      %2725 = vmatmul.mubr.f32.gmra.mxu0 %v2508
      %v2726 = vpop.f32.mrf.mxu0
      %v2727 = vadd.f32 0.0, %v2726
      %v2728 = vpop.f32.mrf.mxu0
      %2729 = vmatprep.mubr.f32.mxu0 0.0
      %2730 = vmatmul.mubr.f32.gmra.mxu0 %v2511
      %v2731 = vpop.f32.mrf.mxu0
      %v2732 = vadd.f32 0.0, %v2731
      %v2733 = vpop.f32.mrf.mxu0
      %2734 = vmatprep.mubr.f32.mxu0 0.0
      %2735 = vmatmul.mubr.f32.gmra.mxu0 %v2514
      %v2736 = vpop.f32.mrf.mxu0
      %v2737 = vadd.f32 0.0, %v2736
      %v2738 = vpop.f32.mrf.mxu0
      %2739 = vmatprep.mubr.f32.mxu0 0.0
      %2740 = vmatmul.mubr.f32.gmra.mxu0 %v2517
      %v2741 = vpop.f32.mrf.mxu0
      %v2742 = vadd.f32 0.0, %v2741
      %v2743 = vpop.f32.mrf.mxu0
      %2744 = vmatprep.mubr.f32.mxu0 0.0
      %2745 = vmatmul.mubr.f32.gmra.mxu0 %v2520
      %v2746 = vpop.f32.mrf.mxu0
      %v2747 = vadd.f32 0.0, %v2746
      %v2748 = vpop.f32.mrf.mxu0
      %2749 = vdwg.mxu0
      %v2750 = vadd.f32 %v2360, %v2592
      %v2751 = vadd.f32 %v2361, %v2597
      %v2752 = vadd.f32 %v2362, %v2602
      %v2753 = vadd.f32 %v2363, %v2607
      %v2754 = vadd.f32 %v2364, %v2612
      %v2755 = vadd.f32 %v2365, %v2617
      %v2756 = vadd.f32 %v2366, %v2622
      %v2757 = vadd.f32 %v2367, %v2627
      %v2758 = vadd.f32 %v2368, %v2632
      %v2759 = vadd.f32 %v2369, %v2637
      %v2760 = vadd.f32 %v2370, %v2642
      %v2761 = vadd.f32 %v2371, %v2647
      %v2762 = vadd.f32 %v2372, %v2652
      %v2763 = vadd.f32 %v2373, %v2657
      %v2764 = vadd.f32 %v2374, %v2662
      %v2765 = vadd.f32 %v2375, %v2667
      %v2766 = vadd.f32 %v2376, %v2672
      %v2767 = vadd.f32 %v2377, %v2677
      %v2768 = vadd.f32 %v2378, %v2682
      %v2769 = vadd.f32 %v2379, %v2687
      %v2770 = vadd.f32 %v2380, %v2692
      %v2771 = vadd.f32 %v2381, %v2697
      %v2772 = vadd.f32 %v2382, %v2702
      %v2773 = vadd.f32 %v2383, %v2707
      %v2774 = vadd.f32 %v2384, %v2712
      %v2775 = vadd.f32 %v2385, %v2717
      %v2776 = vadd.f32 %v2386, %v2722
      %v2777 = vadd.f32 %v2387, %v2727
      %v2778 = vadd.f32 %v2388, %v2732
      %v2779 = vadd.f32 %v2389, %v2737
      %v2780 = vadd.f32 %v2390, %v2742
      %v2781 = vadd.f32 %v2391, %v2747
      %s2782 = sadd.s32 %s499, 2
      %s2783 = smul.u32 %s2782, 24
      %s2784 = scalar_lea.vmem [#allocation2], %s2783
      %v2785 = vld [vmem:[%s2784] sm:$0xff]
      %v2786 = vld [vmem:[%s2784 + $0x8] sm:$0xff]
      %v2787 = vld [vmem:[%s2784 + $0x18] sm:$0xff]
      %v2788 = vld [vmem:[%s2784 + $0x20] sm:$0xff]
      %v2789 = vld [vmem:[%s2784 + $0x30] sm:$0xff]
      %v2790 = vld [vmem:[%s2784 + $0x38] sm:$0xff]
      %v2791 = vld [vmem:[%s2784 + $0x48] sm:$0xff]
      %v2792 = vld [vmem:[%s2784 + $0x50] sm:$0xff]
      %v2793 = vld [vmem:[%s2784 + $0x60] sm:$0xff]
      %v2794 = vld [vmem:[%s2784 + $0x68] sm:$0xff]
      %v2795 = vld [vmem:[%s2784 + $0x78] sm:$0xff]
      %v2796 = vld [vmem:[%s2784 + $0x80] sm:$0xff]
      %v2797 = vld [vmem:[%s2784 + $0x90] sm:$0xff]
      %v2798 = vld [vmem:[%s2784 + $0x98] sm:$0xff]
      %v2799 = vld [vmem:[%s2784 + $0xa8] sm:$0xff]
      %v2800 = vld [vmem:[%s2784 + $0xb0] sm:$0xff]
      %v2801 = vld [vmem:[%s2784 + $0xc0] sm:$0xff]
      %v2802 = vld [vmem:[%s2784 + $0xc8] sm:$0xff]
      %v2803 = vld [vmem:[%s2784 + $0xd8] sm:$0xff]
      %v2804 = vld [vmem:[%s2784 + $0xe0] sm:$0xff]
      %v2805 = vld [vmem:[%s2784 + $0xf0] sm:$0xff]
      %v2806 = vld [vmem:[%s2784 + $0xf8] sm:$0xff]
      %v2807 = vld [vmem:[%s2784 + $0x108] sm:$0xff]
      %v2808 = vld [vmem:[%s2784 + $0x110] sm:$0xff]
      %v2809 = vld [vmem:[%s2784 + $0x120] sm:$0xff]
      %v2810 = vld [vmem:[%s2784 + $0x128] sm:$0xff]
      %v2811 = vld [vmem:[%s2784 + $0x138] sm:$0xff]
      %v2812 = vld [vmem:[%s2784 + $0x140] sm:$0xff]
      %v2813 = vld [vmem:[%s2784 + $0x150] sm:$0xff]
      %v2814 = vld [vmem:[%s2784 + $0x158] sm:$0xff]
      %v2815 = vld [vmem:[%s2784 + $0x168] sm:$0xff]
      %v2816 = vld [vmem:[%s2784 + $0x170] sm:$0xff]
      %s2817 = scalar_lea.vmem %s3, 24
      %v2818 = vld [vmem:[%s2817] sm:$0xf]
      %v2820 = vsel %vm569, %v2785, 0
      %v2823 = vsel %vm569, %v2786, 0
      %v2826 = vsel %vm569, %v2787, 0
      %v2829 = vsel %vm569, %v2788, 0
      %v2832 = vsel %vm569, %v2789, 0
      %v2835 = vsel %vm569, %v2790, 0
      %v2838 = vsel %vm569, %v2791, 0
      %v2841 = vsel %vm569, %v2792, 0
      %v2844 = vsel %vm569, %v2793, 0
      %v2847 = vsel %vm569, %v2794, 0
      %v2850 = vsel %vm569, %v2795, 0
      %v2853 = vsel %vm569, %v2796, 0
      %v2856 = vsel %vm569, %v2797, 0
      %v2859 = vsel %vm569, %v2798, 0
      %v2862 = vsel %vm569, %v2799, 0
      %v2865 = vsel %vm569, %v2800, 0
      %v2868 = vsel %vm569, %v2801, 0
      %v2871 = vsel %vm569, %v2802, 0
      %v2874 = vsel %vm569, %v2803, 0
      %v2877 = vsel %vm569, %v2804, 0
      %v2880 = vsel %vm569, %v2805, 0
      %v2883 = vsel %vm569, %v2806, 0
      %v2886 = vsel %vm569, %v2807, 0
      %v2889 = vsel %vm569, %v2808, 0
      %v2892 = vsel %vm569, %v2809, 0
      %v2895 = vsel %vm569, %v2810, 0
      %v2898 = vsel %vm569, %v2811, 0
      %v2901 = vsel %vm569, %v2812, 0
      %v2904 = vsel %vm569, %v2813, 0
      %v2907 = vsel %vm569, %v2814, 0
      %v2910 = vsel %vm569, %v2815, 0
      %v2913 = vsel %vm569, %v2816, 0
      %v2916 = vsel %vm666, %v2818, 0
      %2918 = vmatprep.subr.mxu0 0.0
      %2919 = vmatpush1.msra.mxu0 0.0
      %2920 = vmatprep.subr.mxu0 0.0
      %2921 = vmatpush1.msra.mxu0 0.0
      %2922 = vmatprep.subr.mxu0 0.0
      %2923 = vmatpush1.msra.mxu0 0.0
      %2924 = vmatprep.subr.mxu0 0.0
      %2925 = vmatpush1.msra.mxu0 0.0
      %2926 = vmatprep.subr.mxu0 0.0
      %2927 = vmatpush1.msra.mxu0 0.0
      %2928 = vmatprep.subr.mxu0 0.0
      %2929 = vmatpush1.msra.mxu0 0.0
      %2930 = vmatprep.subr.mxu0 0.0
      %2931 = vmatpush1.msra.mxu0 0.0
      %2932 = vmatprep.subr.mxu0 0.0
      %2933 = vmatpush1.msra.mxu0 0.0
      %2934 = vmatprep.subr.mxu0 0.0
      %2935 = vmatpush1.msra.mxu0 0.0
      %2936 = vmatprep.subr.mxu0 0.0
      %2937 = vmatpush1.msra.mxu0 0.0
      %2938 = vmatprep.subr.mxu0 0.0
      %2939 = vmatpush1.msra.mxu0 0.0
      %2940 = vmatprep.subr.mxu0 0.0
      %2941 = vmatpush1.msra.mxu0 0.0
      %2942 = vmatprep.subr.mxu0 0.0
      %2943 = vmatpush1.msra.mxu0 0.0
      %2944 = vmatprep.subr.mxu0 0.0
      %2945 = vmatpush1.msra.mxu0 0.0
      %2946 = vmatprep.subr.mxu0 0.0
      %2947 = vmatpush1.msra.mxu0 0.0
      %2948 = vmatprep.subr.mxu0 0.0
      %2949 = vmatpush1.msra.mxu0 %v2916
      %2950 = vmatprep.subr.mxu0 0.0
      %2951 = vmatpush2.msra.mxu0 0.0
      %2952 = vmatprep.subr.mxu0 0.0
      %2953 = vmatpush2.msra.mxu0 0.0
      %2954 = vmatprep.subr.mxu0 0.0
      %2955 = vmatpush2.msra.mxu0 0.0
      %2956 = vmatprep.subr.mxu0 0.0
      %2957 = vmatpush2.msra.mxu0 0.0
      %2958 = vmatprep.subr.mxu0 0.0
      %2959 = vmatpush2.msra.mxu0 0.0
      %2960 = vmatprep.subr.mxu0 0.0
      %2961 = vmatpush2.msra.mxu0 0.0
      %2962 = vmatprep.subr.mxu0 0.0
      %2963 = vmatpush2.msra.mxu0 0.0
      %2964 = vmatprep.subr.mxu0 0.0
      %2965 = vmatpush2.msra.mxu0 0.0
      %2966 = vmatprep.subr.mxu0 0.0
      %2967 = vmatpush2.msra.mxu0 0.0
      %2968 = vmatprep.subr.mxu0 0.0
      %2969 = vmatpush2.msra.mxu0 0.0
      %2970 = vmatprep.subr.mxu0 0.0
      %2971 = vmatpush2.msra.mxu0 0.0
      %2972 = vmatprep.subr.mxu0 0.0
      %2973 = vmatpush2.msra.mxu0 0.0
      %2974 = vmatprep.subr.mxu0 0.0
      %2975 = vmatpush2.msra.mxu0 0.0
      %2976 = vmatprep.subr.mxu0 0.0
      %2977 = vmatpush2.msra.mxu0 0.0
      %2978 = vmatprep.subr.mxu0 0.0
      %2979 = vmatpush2.msra.mxu0 0.0
      %2980 = vmatprep.subr.mxu0 0.0
      %2981 = vmatpush2.msra.mxu0 0.0
      %2982 = vmatprep.mubr.f32.mxu0 0.0
      %2983 = vmatmul.mubr.f32.gmra.mxu0 %v2820
      %v2984 = vpop.f32.mrf.mxu0
      %v2985 = vadd.f32 0.0, %v2984
      %v2986 = vpop.f32.mrf.mxu0
      %2987 = vmatprep.mubr.f32.mxu0 0.0
      %2988 = vmatmul.mubr.f32.gmra.mxu0 %v2823
      %v2989 = vpop.f32.mrf.mxu0
      %v2990 = vadd.f32 0.0, %v2989
      %v2991 = vpop.f32.mrf.mxu0
      %2992 = vmatprep.mubr.f32.mxu0 0.0
      %2993 = vmatmul.mubr.f32.gmra.mxu0 %v2826
      %v2994 = vpop.f32.mrf.mxu0
      %v2995 = vadd.f32 0.0, %v2994
      %v2996 = vpop.f32.mrf.mxu0
      %2997 = vmatprep.mubr.f32.mxu0 0.0
      %2998 = vmatmul.mubr.f32.gmra.mxu0 %v2829
      %v2999 = vpop.f32.mrf.mxu0
      %v3000 = vadd.f32 0.0, %v2999
      %v3001 = vpop.f32.mrf.mxu0
      %3002 = vmatprep.mubr.f32.mxu0 0.0
      %3003 = vmatmul.mubr.f32.gmra.mxu0 %v2832
      %v3004 = vpop.f32.mrf.mxu0
      %v3005 = vadd.f32 0.0, %v3004
      %v3006 = vpop.f32.mrf.mxu0
      %3007 = vmatprep.mubr.f32.mxu0 0.0
      %3008 = vmatmul.mubr.f32.gmra.mxu0 %v2835
      %v3009 = vpop.f32.mrf.mxu0
      %v3010 = vadd.f32 0.0, %v3009
      %v3011 = vpop.f32.mrf.mxu0
      %3012 = vmatprep.mubr.f32.mxu0 0.0
      %3013 = vmatmul.mubr.f32.gmra.mxu0 %v2838
      %v3014 = vpop.f32.mrf.mxu0
      %v3015 = vadd.f32 0.0, %v3014
      %v3016 = vpop.f32.mrf.mxu0
      %3017 = vmatprep.mubr.f32.mxu0 0.0
      %3018 = vmatmul.mubr.f32.gmra.mxu0 %v2841
      %v3019 = vpop.f32.mrf.mxu0
      %v3020 = vadd.f32 0.0, %v3019
      %v3021 = vpop.f32.mrf.mxu0
      %3022 = vmatprep.mubr.f32.mxu0 0.0
      %3023 = vmatmul.mubr.f32.gmra.mxu0 %v2844
      %v3024 = vpop.f32.mrf.mxu0
      %v3025 = vadd.f32 0.0, %v3024
      %v3026 = vpop.f32.mrf.mxu0
      %3027 = vmatprep.mubr.f32.mxu0 0.0
      %3028 = vmatmul.mubr.f32.gmra.mxu0 %v2847
      %v3029 = vpop.f32.mrf.mxu0
      %v3030 = vadd.f32 0.0, %v3029
      %v3031 = vpop.f32.mrf.mxu0
      %3032 = vmatprep.mubr.f32.mxu0 0.0
      %3033 = vmatmul.mubr.f32.gmra.mxu0 %v2850
      %v3034 = vpop.f32.mrf.mxu0
      %v3035 = vadd.f32 0.0, %v3034
      %v3036 = vpop.f32.mrf.mxu0
      %3037 = vmatprep.mubr.f32.mxu0 0.0
      %3038 = vmatmul.mubr.f32.gmra.mxu0 %v2853
      %v3039 = vpop.f32.mrf.mxu0
      %v3040 = vadd.f32 0.0, %v3039
      %v3041 = vpop.f32.mrf.mxu0
      %3042 = vmatprep.mubr.f32.mxu0 0.0
      %3043 = vmatmul.mubr.f32.gmra.mxu0 %v2856
      %v3044 = vpop.f32.mrf.mxu0
      %v3045 = vadd.f32 0.0, %v3044
      %v3046 = vpop.f32.mrf.mxu0
      %3047 = vmatprep.mubr.f32.mxu0 0.0
      %3048 = vmatmul.mubr.f32.gmra.mxu0 %v2859
      %v3049 = vpop.f32.mrf.mxu0
      %v3050 = vadd.f32 0.0, %v3049
      %v3051 = vpop.f32.mrf.mxu0
      %3052 = vmatprep.mubr.f32.mxu0 0.0
      %3053 = vmatmul.mubr.f32.gmra.mxu0 %v2862
      %v3054 = vpop.f32.mrf.mxu0
      %v3055 = vadd.f32 0.0, %v3054
      %v3056 = vpop.f32.mrf.mxu0
      %3057 = vmatprep.mubr.f32.mxu0 0.0
      %3058 = vmatmul.mubr.f32.gmra.mxu0 %v2865
      %v3059 = vpop.f32.mrf.mxu0
      %v3060 = vadd.f32 0.0, %v3059
      %v3061 = vpop.f32.mrf.mxu0
      %3062 = vmatprep.mubr.f32.mxu0 0.0
      %3063 = vmatmul.mubr.f32.gmra.mxu0 %v2868
      %v3064 = vpop.f32.mrf.mxu0
      %v3065 = vadd.f32 0.0, %v3064
      %v3066 = vpop.f32.mrf.mxu0
      %3067 = vmatprep.mubr.f32.mxu0 0.0
      %3068 = vmatmul.mubr.f32.gmra.mxu0 %v2871
      %v3069 = vpop.f32.mrf.mxu0
      %v3070 = vadd.f32 0.0, %v3069
      %v3071 = vpop.f32.mrf.mxu0
      %3072 = vmatprep.mubr.f32.mxu0 0.0
      %3073 = vmatmul.mubr.f32.gmra.mxu0 %v2874
      %v3074 = vpop.f32.mrf.mxu0
      %v3075 = vadd.f32 0.0, %v3074
      %v3076 = vpop.f32.mrf.mxu0
      %3077 = vmatprep.mubr.f32.mxu0 0.0
      %3078 = vmatmul.mubr.f32.gmra.mxu0 %v2877
      %v3079 = vpop.f32.mrf.mxu0
      %v3080 = vadd.f32 0.0, %v3079
      %v3081 = vpop.f32.mrf.mxu0
      %3082 = vmatprep.mubr.f32.mxu0 0.0
      %3083 = vmatmul.mubr.f32.gmra.mxu0 %v2880
      %v3084 = vpop.f32.mrf.mxu0
      %v3085 = vadd.f32 0.0, %v3084
      %v3086 = vpop.f32.mrf.mxu0
      %3087 = vmatprep.mubr.f32.mxu0 0.0
      %3088 = vmatmul.mubr.f32.gmra.mxu0 %v2883
      %v3089 = vpop.f32.mrf.mxu0
      %v3090 = vadd.f32 0.0, %v3089
      %v3091 = vpop.f32.mrf.mxu0
      %3092 = vmatprep.mubr.f32.mxu0 0.0
      %3093 = vmatmul.mubr.f32.gmra.mxu0 %v2886
      %v3094 = vpop.f32.mrf.mxu0
      %v3095 = vadd.f32 0.0, %v3094
      %v3096 = vpop.f32.mrf.mxu0
      %3097 = vmatprep.mubr.f32.mxu0 0.0
      %3098 = vmatmul.mubr.f32.gmra.mxu0 %v2889
      %v3099 = vpop.f32.mrf.mxu0
      %v3100 = vadd.f32 0.0, %v3099
      %v3101 = vpop.f32.mrf.mxu0
      %3102 = vmatprep.mubr.f32.mxu0 0.0
      %3103 = vmatmul.mubr.f32.gmra.mxu0 %v2892
      %v3104 = vpop.f32.mrf.mxu0
      %v3105 = vadd.f32 0.0, %v3104
      %v3106 = vpop.f32.mrf.mxu0
      %3107 = vmatprep.mubr.f32.mxu0 0.0
      %3108 = vmatmul.mubr.f32.gmra.mxu0 %v2895
      %v3109 = vpop.f32.mrf.mxu0
      %v3110 = vadd.f32 0.0, %v3109
      %v3111 = vpop.f32.mrf.mxu0
      %3112 = vmatprep.mubr.f32.mxu0 0.0
      %3113 = vmatmul.mubr.f32.gmra.mxu0 %v2898
      %v3114 = vpop.f32.mrf.mxu0
      %v3115 = vadd.f32 0.0, %v3114
      %v3116 = vpop.f32.mrf.mxu0
      %3117 = vmatprep.mubr.f32.mxu0 0.0
      %3118 = vmatmul.mubr.f32.gmra.mxu0 %v2901
      %v3119 = vpop.f32.mrf.mxu0
      %v3120 = vadd.f32 0.0, %v3119
      %v3121 = vpop.f32.mrf.mxu0
      %3122 = vmatprep.mubr.f32.mxu0 0.0
      %3123 = vmatmul.mubr.f32.gmra.mxu0 %v2904
      %v3124 = vpop.f32.mrf.mxu0
      %v3125 = vadd.f32 0.0, %v3124
      %v3126 = vpop.f32.mrf.mxu0
      %3127 = vmatprep.mubr.f32.mxu0 0.0
      %3128 = vmatmul.mubr.f32.gmra.mxu0 %v2907
      %v3129 = vpop.f32.mrf.mxu0
      %v3130 = vadd.f32 0.0, %v3129
      %v3131 = vpop.f32.mrf.mxu0
      %3132 = vmatprep.mubr.f32.mxu0 0.0
      %3133 = vmatmul.mubr.f32.gmra.mxu0 %v2910
      %v3134 = vpop.f32.mrf.mxu0
      %v3135 = vadd.f32 0.0, %v3134
      %v3136 = vpop.f32.mrf.mxu0
      %3137 = vmatprep.mubr.f32.mxu0 0.0
      %3138 = vmatmul.mubr.f32.gmra.mxu0 %v2913
      %v3139 = vpop.f32.mrf.mxu0
      %v3140 = vadd.f32 0.0, %v3139
      %v3141 = vpop.f32.mrf.mxu0
      %3142 = vdwg.mxu0
      %v3143 = vadd.f32 %v2750, %v2985
      %v3144 = vadd.f32 %v2751, %v2990
      %v3145 = vadd.f32 %v2752, %v2995
      %v3146 = vadd.f32 %v2753, %v3000
      %v3147 = vadd.f32 %v2754, %v3005
      %v3148 = vadd.f32 %v2755, %v3010
      %v3149 = vadd.f32 %v2756, %v3015
      %v3150 = vadd.f32 %v2757, %v3020
      %v3151 = vadd.f32 %v2758, %v3025
      %v3152 = vadd.f32 %v2759, %v3030
      %v3153 = vadd.f32 %v2760, %v3035
      %v3154 = vadd.f32 %v2761, %v3040
      %v3155 = vadd.f32 %v2762, %v3045
      %v3156 = vadd.f32 %v2763, %v3050
      %v3157 = vadd.f32 %v2764, %v3055
      %v3158 = vadd.f32 %v2765, %v3060
      %v3159 = vadd.f32 %v2766, %v3065
      %v3160 = vadd.f32 %v2767, %v3070
      %v3161 = vadd.f32 %v2768, %v3075
      %v3162 = vadd.f32 %v2769, %v3080
      %v3163 = vadd.f32 %v2770, %v3085
      %v3164 = vadd.f32 %v2771, %v3090
      %v3165 = vadd.f32 %v2772, %v3095
      %v3166 = vadd.f32 %v2773, %v3100
      %v3167 = vadd.f32 %v2774, %v3105
      %v3168 = vadd.f32 %v2775, %v3110
      %v3169 = vadd.f32 %v2776, %v3115
      %v3170 = vadd.f32 %v2777, %v3120
      %v3171 = vadd.f32 %v2778, %v3125
      %v3172 = vadd.f32 %v2779, %v3130
      %v3173 = vadd.f32 %v2780, %v3135
      %v3174 = vadd.f32 %v2781, %v3140
      %v3175 = vld [vmem:[%s2784 + $0x1] sm:$0xff]
      %v3176 = vld [vmem:[%s2784 + $0x9] sm:$0xff]
      %v3177 = vld [vmem:[%s2784 + $0x19] sm:$0xff]
      %v3178 = vld [vmem:[%s2784 + $0x21] sm:$0xff]
      %v3179 = vld [vmem:[%s2784 + $0x31] sm:$0xff]
      %v3180 = vld [vmem:[%s2784 + $0x39] sm:$0xff]
      %v3181 = vld [vmem:[%s2784 + $0x49] sm:$0xff]
      %v3182 = vld [vmem:[%s2784 + $0x51] sm:$0xff]
      %v3183 = vld [vmem:[%s2784 + $0x61] sm:$0xff]
      %v3184 = vld [vmem:[%s2784 + $0x69] sm:$0xff]
      %v3185 = vld [vmem:[%s2784 + $0x79] sm:$0xff]
      %v3186 = vld [vmem:[%s2784 + $0x81] sm:$0xff]
      %v3187 = vld [vmem:[%s2784 + $0x91] sm:$0xff]
      %v3188 = vld [vmem:[%s2784 + $0x99] sm:$0xff]
      %v3189 = vld [vmem:[%s2784 + $0xa9] sm:$0xff]
      %v3190 = vld [vmem:[%s2784 + $0xb1] sm:$0xff]
      %v3191 = vld [vmem:[%s2784 + $0xc1] sm:$0xff]
      %v3192 = vld [vmem:[%s2784 + $0xc9] sm:$0xff]
      %v3193 = vld [vmem:[%s2784 + $0xd9] sm:$0xff]
      %v3194 = vld [vmem:[%s2784 + $0xe1] sm:$0xff]
      %v3195 = vld [vmem:[%s2784 + $0xf1] sm:$0xff]
      %v3196 = vld [vmem:[%s2784 + $0xf9] sm:$0xff]
      %v3197 = vld [vmem:[%s2784 + $0x109] sm:$0xff]
      %v3198 = vld [vmem:[%s2784 + $0x111] sm:$0xff]
      %v3199 = vld [vmem:[%s2784 + $0x121] sm:$0xff]
      %v3200 = vld [vmem:[%s2784 + $0x129] sm:$0xff]
      %v3201 = vld [vmem:[%s2784 + $0x139] sm:$0xff]
      %v3202 = vld [vmem:[%s2784 + $0x141] sm:$0xff]
      %v3203 = vld [vmem:[%s2784 + $0x151] sm:$0xff]
      %v3204 = vld [vmem:[%s2784 + $0x159] sm:$0xff]
      %v3205 = vld [vmem:[%s2784 + $0x169] sm:$0xff]
      %v3206 = vld [vmem:[%s2784 + $0x171] sm:$0xff]
      %s3207 = scalar_lea.vmem %s3, 28
      %v3208 = vld [vmem:[%s3207] sm:$0xf]
      %v3210 = vsel %vm569, %v3175, 0
      %v3213 = vsel %vm569, %v3176, 0
      %v3216 = vsel %vm569, %v3177, 0
      %v3219 = vsel %vm569, %v3178, 0
      %v3222 = vsel %vm569, %v3179, 0
      %v3225 = vsel %vm569, %v3180, 0
      %v3228 = vsel %vm569, %v3181, 0
      %v3231 = vsel %vm569, %v3182, 0
      %v3234 = vsel %vm569, %v3183, 0
      %v3237 = vsel %vm569, %v3184, 0
      %v3240 = vsel %vm569, %v3185, 0
      %v3243 = vsel %vm569, %v3186, 0
      %v3246 = vsel %vm569, %v3187, 0
      %v3249 = vsel %vm569, %v3188, 0
      %v3252 = vsel %vm569, %v3189, 0
      %v3255 = vsel %vm569, %v3190, 0
      %v3258 = vsel %vm569, %v3191, 0
      %v3261 = vsel %vm569, %v3192, 0
      %v3264 = vsel %vm569, %v3193, 0
      %v3267 = vsel %vm569, %v3194, 0
      %v3270 = vsel %vm569, %v3195, 0
      %v3273 = vsel %vm569, %v3196, 0
      %v3276 = vsel %vm569, %v3197, 0
      %v3279 = vsel %vm569, %v3198, 0
      %v3282 = vsel %vm569, %v3199, 0
      %v3285 = vsel %vm569, %v3200, 0
      %v3288 = vsel %vm569, %v3201, 0
      %v3291 = vsel %vm569, %v3202, 0
      %v3294 = vsel %vm569, %v3203, 0
      %v3297 = vsel %vm569, %v3204, 0
      %v3300 = vsel %vm569, %v3205, 0
      %v3303 = vsel %vm569, %v3206, 0
      %v3306 = vsel %vm666, %v3208, 0
      %3308 = vmatprep.subr.mxu0 0.0
      %3309 = vmatpush1.msra.mxu0 0.0
      %3310 = vmatprep.subr.mxu0 0.0
      %3311 = vmatpush1.msra.mxu0 0.0
      %3312 = vmatprep.subr.mxu0 0.0
      %3313 = vmatpush1.msra.mxu0 0.0
      %3314 = vmatprep.subr.mxu0 0.0
      %3315 = vmatpush1.msra.mxu0 0.0
      %3316 = vmatprep.subr.mxu0 0.0
      %3317 = vmatpush1.msra.mxu0 0.0
      %3318 = vmatprep.subr.mxu0 0.0
      %3319 = vmatpush1.msra.mxu0 0.0
      %3320 = vmatprep.subr.mxu0 0.0
      %3321 = vmatpush1.msra.mxu0 0.0
      %3322 = vmatprep.subr.mxu0 0.0
      %3323 = vmatpush1.msra.mxu0 0.0
      %3324 = vmatprep.subr.mxu0 0.0
      %3325 = vmatpush1.msra.mxu0 0.0
      %3326 = vmatprep.subr.mxu0 0.0
      %3327 = vmatpush1.msra.mxu0 0.0
      %3328 = vmatprep.subr.mxu0 0.0
      %3329 = vmatpush1.msra.mxu0 0.0
      %3330 = vmatprep.subr.mxu0 0.0
      %3331 = vmatpush1.msra.mxu0 0.0
      %3332 = vmatprep.subr.mxu0 0.0
      %3333 = vmatpush1.msra.mxu0 0.0
      %3334 = vmatprep.subr.mxu0 0.0
      %3335 = vmatpush1.msra.mxu0 0.0
      %3336 = vmatprep.subr.mxu0 0.0
      %3337 = vmatpush1.msra.mxu0 0.0
      %3338 = vmatprep.subr.mxu0 0.0
      %3339 = vmatpush1.msra.mxu0 %v3306
      %3340 = vmatprep.subr.mxu0 0.0
      %3341 = vmatpush2.msra.mxu0 0.0
      %3342 = vmatprep.subr.mxu0 0.0
      %3343 = vmatpush2.msra.mxu0 0.0
      %3344 = vmatprep.subr.mxu0 0.0
      %3345 = vmatpush2.msra.mxu0 0.0
      %3346 = vmatprep.subr.mxu0 0.0
      %3347 = vmatpush2.msra.mxu0 0.0
      %3348 = vmatprep.subr.mxu0 0.0
      %3349 = vmatpush2.msra.mxu0 0.0
      %3350 = vmatprep.subr.mxu0 0.0
      %3351 = vmatpush2.msra.mxu0 0.0
      %3352 = vmatprep.subr.mxu0 0.0
      %3353 = vmatpush2.msra.mxu0 0.0
      %3354 = vmatprep.subr.mxu0 0.0
      %3355 = vmatpush2.msra.mxu0 0.0
      %3356 = vmatprep.subr.mxu0 0.0
      %3357 = vmatpush2.msra.mxu0 0.0
      %3358 = vmatprep.subr.mxu0 0.0
      %3359 = vmatpush2.msra.mxu0 0.0
      %3360 = vmatprep.subr.mxu0 0.0
      %3361 = vmatpush2.msra.mxu0 0.0
      %3362 = vmatprep.subr.mxu0 0.0
      %3363 = vmatpush2.msra.mxu0 0.0
      %3364 = vmatprep.subr.mxu0 0.0
      %3365 = vmatpush2.msra.mxu0 0.0
      %3366 = vmatprep.subr.mxu0 0.0
      %3367 = vmatpush2.msra.mxu0 0.0
      %3368 = vmatprep.subr.mxu0 0.0
      %3369 = vmatpush2.msra.mxu0 0.0
      %3370 = vmatprep.subr.mxu0 0.0
      %3371 = vmatpush2.msra.mxu0 0.0
      %3372 = vmatprep.mubr.f32.mxu0 0.0
      %3373 = vmatmul.mubr.f32.gmra.mxu0 %v3210
      %v3374 = vpop.f32.mrf.mxu0
      %v3375 = vadd.f32 0.0, %v3374
      %v3376 = vpop.f32.mrf.mxu0
      %3377 = vmatprep.mubr.f32.mxu0 0.0
      %3378 = vmatmul.mubr.f32.gmra.mxu0 %v3213
      %v3379 = vpop.f32.mrf.mxu0
      %v3380 = vadd.f32 0.0, %v3379
      %v3381 = vpop.f32.mrf.mxu0
      %3382 = vmatprep.mubr.f32.mxu0 0.0
      %3383 = vmatmul.mubr.f32.gmra.mxu0 %v3216
      %v3384 = vpop.f32.mrf.mxu0
      %v3385 = vadd.f32 0.0, %v3384
      %v3386 = vpop.f32.mrf.mxu0
      %3387 = vmatprep.mubr.f32.mxu0 0.0
      %3388 = vmatmul.mubr.f32.gmra.mxu0 %v3219
      %v3389 = vpop.f32.mrf.mxu0
      %v3390 = vadd.f32 0.0, %v3389
      %v3391 = vpop.f32.mrf.mxu0
      %3392 = vmatprep.mubr.f32.mxu0 0.0
      %3393 = vmatmul.mubr.f32.gmra.mxu0 %v3222
      %v3394 = vpop.f32.mrf.mxu0
      %v3395 = vadd.f32 0.0, %v3394
      %v3396 = vpop.f32.mrf.mxu0
      %3397 = vmatprep.mubr.f32.mxu0 0.0
      %3398 = vmatmul.mubr.f32.gmra.mxu0 %v3225
      %v3399 = vpop.f32.mrf.mxu0
      %v3400 = vadd.f32 0.0, %v3399
      %v3401 = vpop.f32.mrf.mxu0
      %3402 = vmatprep.mubr.f32.mxu0 0.0
      %3403 = vmatmul.mubr.f32.gmra.mxu0 %v3228
      %v3404 = vpop.f32.mrf.mxu0
      %v3405 = vadd.f32 0.0, %v3404
      %v3406 = vpop.f32.mrf.mxu0
      %3407 = vmatprep.mubr.f32.mxu0 0.0
      %3408 = vmatmul.mubr.f32.gmra.mxu0 %v3231
      %v3409 = vpop.f32.mrf.mxu0
      %v3410 = vadd.f32 0.0, %v3409
      %v3411 = vpop.f32.mrf.mxu0
      %3412 = vmatprep.mubr.f32.mxu0 0.0
      %3413 = vmatmul.mubr.f32.gmra.mxu0 %v3234
      %v3414 = vpop.f32.mrf.mxu0
      %v3415 = vadd.f32 0.0, %v3414
      %v3416 = vpop.f32.mrf.mxu0
      %3417 = vmatprep.mubr.f32.mxu0 0.0
      %3418 = vmatmul.mubr.f32.gmra.mxu0 %v3237
      %v3419 = vpop.f32.mrf.mxu0
      %v3420 = vadd.f32 0.0, %v3419
      %v3421 = vpop.f32.mrf.mxu0
      %3422 = vmatprep.mubr.f32.mxu0 0.0
      %3423 = vmatmul.mubr.f32.gmra.mxu0 %v3240
      %v3424 = vpop.f32.mrf.mxu0
      %v3425 = vadd.f32 0.0, %v3424
      %v3426 = vpop.f32.mrf.mxu0
      %3427 = vmatprep.mubr.f32.mxu0 0.0
      %3428 = vmatmul.mubr.f32.gmra.mxu0 %v3243
      %v3429 = vpop.f32.mrf.mxu0
      %v3430 = vadd.f32 0.0, %v3429
      %v3431 = vpop.f32.mrf.mxu0
      %3432 = vmatprep.mubr.f32.mxu0 0.0
      %3433 = vmatmul.mubr.f32.gmra.mxu0 %v3246
      %v3434 = vpop.f32.mrf.mxu0
      %v3435 = vadd.f32 0.0, %v3434
      %v3436 = vpop.f32.mrf.mxu0
      %3437 = vmatprep.mubr.f32.mxu0 0.0
      %3438 = vmatmul.mubr.f32.gmra.mxu0 %v3249
      %v3439 = vpop.f32.mrf.mxu0
      %v3440 = vadd.f32 0.0, %v3439
      %v3441 = vpop.f32.mrf.mxu0
      %3442 = vmatprep.mubr.f32.mxu0 0.0
      %3443 = vmatmul.mubr.f32.gmra.mxu0 %v3252
      %v3444 = vpop.f32.mrf.mxu0
      %v3445 = vadd.f32 0.0, %v3444
      %v3446 = vpop.f32.mrf.mxu0
      %3447 = vmatprep.mubr.f32.mxu0 0.0
      %3448 = vmatmul.mubr.f32.gmra.mxu0 %v3255
      %v3449 = vpop.f32.mrf.mxu0
      %v3450 = vadd.f32 0.0, %v3449
      %v3451 = vpop.f32.mrf.mxu0
      %3452 = vmatprep.mubr.f32.mxu0 0.0
      %3453 = vmatmul.mubr.f32.gmra.mxu0 %v3258
      %v3454 = vpop.f32.mrf.mxu0
      %v3455 = vadd.f32 0.0, %v3454
      %v3456 = vpop.f32.mrf.mxu0
      %3457 = vmatprep.mubr.f32.mxu0 0.0
      %3458 = vmatmul.mubr.f32.gmra.mxu0 %v3261
      %v3459 = vpop.f32.mrf.mxu0
      %v3460 = vadd.f32 0.0, %v3459
      %v3461 = vpop.f32.mrf.mxu0
      %3462 = vmatprep.mubr.f32.mxu0 0.0
      %3463 = vmatmul.mubr.f32.gmra.mxu0 %v3264
      %v3464 = vpop.f32.mrf.mxu0
      %v3465 = vadd.f32 0.0, %v3464
      %v3466 = vpop.f32.mrf.mxu0
      %3467 = vmatprep.mubr.f32.mxu0 0.0
      %3468 = vmatmul.mubr.f32.gmra.mxu0 %v3267
      %v3469 = vpop.f32.mrf.mxu0
      %v3470 = vadd.f32 0.0, %v3469
      %v3471 = vpop.f32.mrf.mxu0
      %3472 = vmatprep.mubr.f32.mxu0 0.0
      %3473 = vmatmul.mubr.f32.gmra.mxu0 %v3270
      %v3474 = vpop.f32.mrf.mxu0
      %v3475 = vadd.f32 0.0, %v3474
      %v3476 = vpop.f32.mrf.mxu0
      %3477 = vmatprep.mubr.f32.mxu0 0.0
      %3478 = vmatmul.mubr.f32.gmra.mxu0 %v3273
      %v3479 = vpop.f32.mrf.mxu0
      %v3480 = vadd.f32 0.0, %v3479
      %v3481 = vpop.f32.mrf.mxu0
      %3482 = vmatprep.mubr.f32.mxu0 0.0
      %3483 = vmatmul.mubr.f32.gmra.mxu0 %v3276
      %v3484 = vpop.f32.mrf.mxu0
      %v3485 = vadd.f32 0.0, %v3484
      %v3486 = vpop.f32.mrf.mxu0
      %3487 = vmatprep.mubr.f32.mxu0 0.0
      %3488 = vmatmul.mubr.f32.gmra.mxu0 %v3279
      %v3489 = vpop.f32.mrf.mxu0
      %v3490 = vadd.f32 0.0, %v3489
      %v3491 = vpop.f32.mrf.mxu0
      %3492 = vmatprep.mubr.f32.mxu0 0.0
      %3493 = vmatmul.mubr.f32.gmra.mxu0 %v3282
      %v3494 = vpop.f32.mrf.mxu0
      %v3495 = vadd.f32 0.0, %v3494
      %v3496 = vpop.f32.mrf.mxu0
      %3497 = vmatprep.mubr.f32.mxu0 0.0
      %3498 = vmatmul.mubr.f32.gmra.mxu0 %v3285
      %v3499 = vpop.f32.mrf.mxu0
      %v3500 = vadd.f32 0.0, %v3499
      %v3501 = vpop.f32.mrf.mxu0
      %3502 = vmatprep.mubr.f32.mxu0 0.0
      %3503 = vmatmul.mubr.f32.gmra.mxu0 %v3288
      %v3504 = vpop.f32.mrf.mxu0
      %v3505 = vadd.f32 0.0, %v3504
      %v3506 = vpop.f32.mrf.mxu0
      %3507 = vmatprep.mubr.f32.mxu0 0.0
      %3508 = vmatmul.mubr.f32.gmra.mxu0 %v3291
      %v3509 = vpop.f32.mrf.mxu0
      %v3510 = vadd.f32 0.0, %v3509
      %v3511 = vpop.f32.mrf.mxu0
      %3512 = vmatprep.mubr.f32.mxu0 0.0
      %3513 = vmatmul.mubr.f32.gmra.mxu0 %v3294
      %v3514 = vpop.f32.mrf.mxu0
      %v3515 = vadd.f32 0.0, %v3514
      %v3516 = vpop.f32.mrf.mxu0
      %3517 = vmatprep.mubr.f32.mxu0 0.0
      %3518 = vmatmul.mubr.f32.gmra.mxu0 %v3297
      %v3519 = vpop.f32.mrf.mxu0
      %v3520 = vadd.f32 0.0, %v3519
      %v3521 = vpop.f32.mrf.mxu0
      %3522 = vmatprep.mubr.f32.mxu0 0.0
      %3523 = vmatmul.mubr.f32.gmra.mxu0 %v3300
      %v3524 = vpop.f32.mrf.mxu0
      %v3525 = vadd.f32 0.0, %v3524
      %v3526 = vpop.f32.mrf.mxu0
      %3527 = vmatprep.mubr.f32.mxu0 0.0
      %3528 = vmatmul.mubr.f32.gmra.mxu0 %v3303
      %v3529 = vpop.f32.mrf.mxu0
      %v3530 = vadd.f32 0.0, %v3529
      %v3531 = vpop.f32.mrf.mxu0
      %3532 = vdwg.mxu0
      %v3533 = vadd.f32 %v3143, %v3375
      %v3534 = vadd.f32 %v3144, %v3380
      %v3535 = vadd.f32 %v3145, %v3385
      %v3536 = vadd.f32 %v3146, %v3390
      %v3537 = vadd.f32 %v3147, %v3395
      %v3538 = vadd.f32 %v3148, %v3400
      %v3539 = vadd.f32 %v3149, %v3405
      %v3540 = vadd.f32 %v3150, %v3410
      %v3541 = vadd.f32 %v3151, %v3415
      %v3542 = vadd.f32 %v3152, %v3420
      %v3543 = vadd.f32 %v3153, %v3425
      %v3544 = vadd.f32 %v3154, %v3430
      %v3545 = vadd.f32 %v3155, %v3435
      %v3546 = vadd.f32 %v3156, %v3440
      %v3547 = vadd.f32 %v3157, %v3445
      %v3548 = vadd.f32 %v3158, %v3450
      %v3549 = vadd.f32 %v3159, %v3455
      %v3550 = vadd.f32 %v3160, %v3460
      %v3551 = vadd.f32 %v3161, %v3465
      %v3552 = vadd.f32 %v3162, %v3470
      %v3553 = vadd.f32 %v3163, %v3475
      %v3554 = vadd.f32 %v3164, %v3480
      %v3555 = vadd.f32 %v3165, %v3485
      %v3556 = vadd.f32 %v3166, %v3490
      %v3557 = vadd.f32 %v3167, %v3495
      %v3558 = vadd.f32 %v3168, %v3500
      %v3559 = vadd.f32 %v3169, %v3505
      %v3560 = vadd.f32 %v3170, %v3510
      %v3561 = vadd.f32 %v3171, %v3515
      %v3562 = vadd.f32 %v3172, %v3520
      %v3563 = vadd.f32 %v3173, %v3525
      %v3564 = vadd.f32 %v3174, %v3530
      %v3565 = vld [vmem:[%s2784 + $0x2] sm:$0xff]
      %v3566 = vld [vmem:[%s2784 + $0xa] sm:$0xff]
      %v3567 = vld [vmem:[%s2784 + $0x1a] sm:$0xff]
      %v3568 = vld [vmem:[%s2784 + $0x22] sm:$0xff]
      %v3569 = vld [vmem:[%s2784 + $0x32] sm:$0xff]
      %v3570 = vld [vmem:[%s2784 + $0x3a] sm:$0xff]
      %v3571 = vld [vmem:[%s2784 + $0x4a] sm:$0xff]
      %v3572 = vld [vmem:[%s2784 + $0x52] sm:$0xff]
      %v3573 = vld [vmem:[%s2784 + $0x62] sm:$0xff]
      %v3574 = vld [vmem:[%s2784 + $0x6a] sm:$0xff]
      %v3575 = vld [vmem:[%s2784 + $0x7a] sm:$0xff]
      %v3576 = vld [vmem:[%s2784 + $0x82] sm:$0xff]
      %v3577 = vld [vmem:[%s2784 + $0x92] sm:$0xff]
      %v3578 = vld [vmem:[%s2784 + $0x9a] sm:$0xff]
      %v3579 = vld [vmem:[%s2784 + $0xaa] sm:$0xff]
      %v3580 = vld [vmem:[%s2784 + $0xb2] sm:$0xff]
      %v3581 = vld [vmem:[%s2784 + $0xc2] sm:$0xff]
      %v3582 = vld [vmem:[%s2784 + $0xca] sm:$0xff]
      %v3583 = vld [vmem:[%s2784 + $0xda] sm:$0xff]
      %v3584 = vld [vmem:[%s2784 + $0xe2] sm:$0xff]
      %v3585 = vld [vmem:[%s2784 + $0xf2] sm:$0xff]
      %v3586 = vld [vmem:[%s2784 + $0xfa] sm:$0xff]
      %v3587 = vld [vmem:[%s2784 + $0x10a] sm:$0xff]
      %v3588 = vld [vmem:[%s2784 + $0x112] sm:$0xff]
      %v3589 = vld [vmem:[%s2784 + $0x122] sm:$0xff]
      %v3590 = vld [vmem:[%s2784 + $0x12a] sm:$0xff]
      %v3591 = vld [vmem:[%s2784 + $0x13a] sm:$0xff]
      %v3592 = vld [vmem:[%s2784 + $0x142] sm:$0xff]
      %v3593 = vld [vmem:[%s2784 + $0x152] sm:$0xff]
      %v3594 = vld [vmem:[%s2784 + $0x15a] sm:$0xff]
      %v3595 = vld [vmem:[%s2784 + $0x16a] sm:$0xff]
      %v3596 = vld [vmem:[%s2784 + $0x172] sm:$0xff]
      %s3597 = scalar_lea.vmem %s3, 32
      %v3598 = vld [vmem:[%s3597] sm:$0xf]
      %v3600 = vsel %vm569, %v3565, 0
      %v3603 = vsel %vm569, %v3566, 0
      %v3606 = vsel %vm569, %v3567, 0
      %v3609 = vsel %vm569, %v3568, 0
      %v3612 = vsel %vm569, %v3569, 0
      %v3615 = vsel %vm569, %v3570, 0
      %v3618 = vsel %vm569, %v3571, 0
      %v3621 = vsel %vm569, %v3572, 0
      %v3624 = vsel %vm569, %v3573, 0
      %v3627 = vsel %vm569, %v3574, 0
      %v3630 = vsel %vm569, %v3575, 0
      %v3633 = vsel %vm569, %v3576, 0
      %v3636 = vsel %vm569, %v3577, 0
      %v3639 = vsel %vm569, %v3578, 0
      %v3642 = vsel %vm569, %v3579, 0
      %v3645 = vsel %vm569, %v3580, 0
      %v3648 = vsel %vm569, %v3581, 0
      %v3651 = vsel %vm569, %v3582, 0
      %v3654 = vsel %vm569, %v3583, 0
      %v3657 = vsel %vm569, %v3584, 0
      %v3660 = vsel %vm569, %v3585, 0
      %v3663 = vsel %vm569, %v3586, 0
      %v3666 = vsel %vm569, %v3587, 0
      %v3669 = vsel %vm569, %v3588, 0
      %v3672 = vsel %vm569, %v3589, 0
      %v3675 = vsel %vm569, %v3590, 0
      %v3678 = vsel %vm569, %v3591, 0
      %v3681 = vsel %vm569, %v3592, 0
      %v3684 = vsel %vm569, %v3593, 0
      %v3687 = vsel %vm569, %v3594, 0
      %v3690 = vsel %vm569, %v3595, 0
      %v3693 = vsel %vm569, %v3596, 0
      %v3696 = vsel %vm666, %v3598, 0
      %3698 = vmatprep.subr.mxu0 0.0
      %3699 = vmatpush1.msra.mxu0 0.0
      %3700 = vmatprep.subr.mxu0 0.0
      %3701 = vmatpush1.msra.mxu0 0.0
      %3702 = vmatprep.subr.mxu0 0.0
      %3703 = vmatpush1.msra.mxu0 0.0
      %3704 = vmatprep.subr.mxu0 0.0
      %3705 = vmatpush1.msra.mxu0 0.0
      %3706 = vmatprep.subr.mxu0 0.0
      %3707 = vmatpush1.msra.mxu0 0.0
      %3708 = vmatprep.subr.mxu0 0.0
      %3709 = vmatpush1.msra.mxu0 0.0
      %3710 = vmatprep.subr.mxu0 0.0
      %3711 = vmatpush1.msra.mxu0 0.0
      %3712 = vmatprep.subr.mxu0 0.0
      %3713 = vmatpush1.msra.mxu0 0.0
      %3714 = vmatprep.subr.mxu0 0.0
      %3715 = vmatpush1.msra.mxu0 0.0
      %3716 = vmatprep.subr.mxu0 0.0
      %3717 = vmatpush1.msra.mxu0 0.0
      %3718 = vmatprep.subr.mxu0 0.0
      %3719 = vmatpush1.msra.mxu0 0.0
      %3720 = vmatprep.subr.mxu0 0.0
      %3721 = vmatpush1.msra.mxu0 0.0
      %3722 = vmatprep.subr.mxu0 0.0
      %3723 = vmatpush1.msra.mxu0 0.0
      %3724 = vmatprep.subr.mxu0 0.0
      %3725 = vmatpush1.msra.mxu0 0.0
      %3726 = vmatprep.subr.mxu0 0.0
      %3727 = vmatpush1.msra.mxu0 0.0
      %3728 = vmatprep.subr.mxu0 0.0
      %3729 = vmatpush1.msra.mxu0 %v3696
      %3730 = vmatprep.subr.mxu0 0.0
      %3731 = vmatpush2.msra.mxu0 0.0
      %3732 = vmatprep.subr.mxu0 0.0
      %3733 = vmatpush2.msra.mxu0 0.0
      %3734 = vmatprep.subr.mxu0 0.0
      %3735 = vmatpush2.msra.mxu0 0.0
      %3736 = vmatprep.subr.mxu0 0.0
      %3737 = vmatpush2.msra.mxu0 0.0
      %3738 = vmatprep.subr.mxu0 0.0
      %3739 = vmatpush2.msra.mxu0 0.0
      %3740 = vmatprep.subr.mxu0 0.0
      %3741 = vmatpush2.msra.mxu0 0.0
      %3742 = vmatprep.subr.mxu0 0.0
      %3743 = vmatpush2.msra.mxu0 0.0
      %3744 = vmatprep.subr.mxu0 0.0
      %3745 = vmatpush2.msra.mxu0 0.0
      %3746 = vmatprep.subr.mxu0 0.0
      %3747 = vmatpush2.msra.mxu0 0.0
      %3748 = vmatprep.subr.mxu0 0.0
      %3749 = vmatpush2.msra.mxu0 0.0
      %3750 = vmatprep.subr.mxu0 0.0
      %3751 = vmatpush2.msra.mxu0 0.0
      %3752 = vmatprep.subr.mxu0 0.0
      %3753 = vmatpush2.msra.mxu0 0.0
      %3754 = vmatprep.subr.mxu0 0.0
      %3755 = vmatpush2.msra.mxu0 0.0
      %3756 = vmatprep.subr.mxu0 0.0
      %3757 = vmatpush2.msra.mxu0 0.0
      %3758 = vmatprep.subr.mxu0 0.0
      %3759 = vmatpush2.msra.mxu0 0.0
      %3760 = vmatprep.subr.mxu0 0.0
      %3761 = vmatpush2.msra.mxu0 0.0
      %3762 = vmatprep.mubr.f32.mxu0 0.0
      %3763 = vmatmul.mubr.f32.gmra.mxu0 %v3600
      %v3764 = vpop.f32.mrf.mxu0
      %v3765 = vadd.f32 0.0, %v3764
      %v3766 = vpop.f32.mrf.mxu0
      %3767 = vmatprep.mubr.f32.mxu0 0.0
      %3768 = vmatmul.mubr.f32.gmra.mxu0 %v3603
      %v3769 = vpop.f32.mrf.mxu0
      %v3770 = vadd.f32 0.0, %v3769
      %v3771 = vpop.f32.mrf.mxu0
      %3772 = vmatprep.mubr.f32.mxu0 0.0
      %3773 = vmatmul.mubr.f32.gmra.mxu0 %v3606
      %v3774 = vpop.f32.mrf.mxu0
      %v3775 = vadd.f32 0.0, %v3774
      %v3776 = vpop.f32.mrf.mxu0
      %3777 = vmatprep.mubr.f32.mxu0 0.0
      %3778 = vmatmul.mubr.f32.gmra.mxu0 %v3609
      %v3779 = vpop.f32.mrf.mxu0
      %v3780 = vadd.f32 0.0, %v3779
      %v3781 = vpop.f32.mrf.mxu0
      %3782 = vmatprep.mubr.f32.mxu0 0.0
      %3783 = vmatmul.mubr.f32.gmra.mxu0 %v3612
      %v3784 = vpop.f32.mrf.mxu0
      %v3785 = vadd.f32 0.0, %v3784
      %v3786 = vpop.f32.mrf.mxu0
      %3787 = vmatprep.mubr.f32.mxu0 0.0
      %3788 = vmatmul.mubr.f32.gmra.mxu0 %v3615
      %v3789 = vpop.f32.mrf.mxu0
      %v3790 = vadd.f32 0.0, %v3789
      %v3791 = vpop.f32.mrf.mxu0
      %3792 = vmatprep.mubr.f32.mxu0 0.0
      %3793 = vmatmul.mubr.f32.gmra.mxu0 %v3618
      %v3794 = vpop.f32.mrf.mxu0
      %v3795 = vadd.f32 0.0, %v3794
      %v3796 = vpop.f32.mrf.mxu0
      %3797 = vmatprep.mubr.f32.mxu0 0.0
      %3798 = vmatmul.mubr.f32.gmra.mxu0 %v3621
      %v3799 = vpop.f32.mrf.mxu0
      %v3800 = vadd.f32 0.0, %v3799
      %v3801 = vpop.f32.mrf.mxu0
      %3802 = vmatprep.mubr.f32.mxu0 0.0
      %3803 = vmatmul.mubr.f32.gmra.mxu0 %v3624
      %v3804 = vpop.f32.mrf.mxu0
      %v3805 = vadd.f32 0.0, %v3804
      %v3806 = vpop.f32.mrf.mxu0
      %3807 = vmatprep.mubr.f32.mxu0 0.0
      %3808 = vmatmul.mubr.f32.gmra.mxu0 %v3627
      %v3809 = vpop.f32.mrf.mxu0
      %v3810 = vadd.f32 0.0, %v3809
      %v3811 = vpop.f32.mrf.mxu0
      %3812 = vmatprep.mubr.f32.mxu0 0.0
      %3813 = vmatmul.mubr.f32.gmra.mxu0 %v3630
      %v3814 = vpop.f32.mrf.mxu0
      %v3815 = vadd.f32 0.0, %v3814
      %v3816 = vpop.f32.mrf.mxu0
      %3817 = vmatprep.mubr.f32.mxu0 0.0
      %3818 = vmatmul.mubr.f32.gmra.mxu0 %v3633
      %v3819 = vpop.f32.mrf.mxu0
      %v3820 = vadd.f32 0.0, %v3819
      %v3821 = vpop.f32.mrf.mxu0
      %3822 = vmatprep.mubr.f32.mxu0 0.0
      %3823 = vmatmul.mubr.f32.gmra.mxu0 %v3636
      %v3824 = vpop.f32.mrf.mxu0
      %v3825 = vadd.f32 0.0, %v3824
      %v3826 = vpop.f32.mrf.mxu0
      %3827 = vmatprep.mubr.f32.mxu0 0.0
      %3828 = vmatmul.mubr.f32.gmra.mxu0 %v3639
      %v3829 = vpop.f32.mrf.mxu0
      %v3830 = vadd.f32 0.0, %v3829
      %v3831 = vpop.f32.mrf.mxu0
      %3832 = vmatprep.mubr.f32.mxu0 0.0
      %3833 = vmatmul.mubr.f32.gmra.mxu0 %v3642
      %v3834 = vpop.f32.mrf.mxu0
      %v3835 = vadd.f32 0.0, %v3834
      %v3836 = vpop.f32.mrf.mxu0
      %3837 = vmatprep.mubr.f32.mxu0 0.0
      %3838 = vmatmul.mubr.f32.gmra.mxu0 %v3645
      %v3839 = vpop.f32.mrf.mxu0
      %v3840 = vadd.f32 0.0, %v3839
      %v3841 = vpop.f32.mrf.mxu0
      %3842 = vmatprep.mubr.f32.mxu0 0.0
      %3843 = vmatmul.mubr.f32.gmra.mxu0 %v3648
      %v3844 = vpop.f32.mrf.mxu0
      %v3845 = vadd.f32 0.0, %v3844
      %v3846 = vpop.f32.mrf.mxu0
      %3847 = vmatprep.mubr.f32.mxu0 0.0
      %3848 = vmatmul.mubr.f32.gmra.mxu0 %v3651
      %v3849 = vpop.f32.mrf.mxu0
      %v3850 = vadd.f32 0.0, %v3849
      %v3851 = vpop.f32.mrf.mxu0
      %3852 = vmatprep.mubr.f32.mxu0 0.0
      %3853 = vmatmul.mubr.f32.gmra.mxu0 %v3654
      %v3854 = vpop.f32.mrf.mxu0
      %v3855 = vadd.f32 0.0, %v3854
      %v3856 = vpop.f32.mrf.mxu0
      %3857 = vmatprep.mubr.f32.mxu0 0.0
      %3858 = vmatmul.mubr.f32.gmra.mxu0 %v3657
      %v3859 = vpop.f32.mrf.mxu0
      %v3860 = vadd.f32 0.0, %v3859
      %v3861 = vpop.f32.mrf.mxu0
      %3862 = vmatprep.mubr.f32.mxu0 0.0
      %3863 = vmatmul.mubr.f32.gmra.mxu0 %v3660
      %v3864 = vpop.f32.mrf.mxu0
      %v3865 = vadd.f32 0.0, %v3864
      %v3866 = vpop.f32.mrf.mxu0
      %3867 = vmatprep.mubr.f32.mxu0 0.0
      %3868 = vmatmul.mubr.f32.gmra.mxu0 %v3663
      %v3869 = vpop.f32.mrf.mxu0
      %v3870 = vadd.f32 0.0, %v3869
      %v3871 = vpop.f32.mrf.mxu0
      %3872 = vmatprep.mubr.f32.mxu0 0.0
      %3873 = vmatmul.mubr.f32.gmra.mxu0 %v3666
      %v3874 = vpop.f32.mrf.mxu0
      %v3875 = vadd.f32 0.0, %v3874
      %v3876 = vpop.f32.mrf.mxu0
      %3877 = vmatprep.mubr.f32.mxu0 0.0
      %3878 = vmatmul.mubr.f32.gmra.mxu0 %v3669
      %v3879 = vpop.f32.mrf.mxu0
      %v3880 = vadd.f32 0.0, %v3879
      %v3881 = vpop.f32.mrf.mxu0
      %3882 = vmatprep.mubr.f32.mxu0 0.0
      %3883 = vmatmul.mubr.f32.gmra.mxu0 %v3672
      %v3884 = vpop.f32.mrf.mxu0
      %v3885 = vadd.f32 0.0, %v3884
      %v3886 = vpop.f32.mrf.mxu0
      %3887 = vmatprep.mubr.f32.mxu0 0.0
      %3888 = vmatmul.mubr.f32.gmra.mxu0 %v3675
      %v3889 = vpop.f32.mrf.mxu0
      %v3890 = vadd.f32 0.0, %v3889
      %v3891 = vpop.f32.mrf.mxu0
      %3892 = vmatprep.mubr.f32.mxu0 0.0
      %3893 = vmatmul.mubr.f32.gmra.mxu0 %v3678
      %v3894 = vpop.f32.mrf.mxu0
      %v3895 = vadd.f32 0.0, %v3894
      %v3896 = vpop.f32.mrf.mxu0
      %3897 = vmatprep.mubr.f32.mxu0 0.0
      %3898 = vmatmul.mubr.f32.gmra.mxu0 %v3681
      %v3899 = vpop.f32.mrf.mxu0
      %v3900 = vadd.f32 0.0, %v3899
      %v3901 = vpop.f32.mrf.mxu0
      %3902 = vmatprep.mubr.f32.mxu0 0.0
      %3903 = vmatmul.mubr.f32.gmra.mxu0 %v3684
      %v3904 = vpop.f32.mrf.mxu0
      %v3905 = vadd.f32 0.0, %v3904
      %v3906 = vpop.f32.mrf.mxu0
      %3907 = vmatprep.mubr.f32.mxu0 0.0
      %3908 = vmatmul.mubr.f32.gmra.mxu0 %v3687
      %v3909 = vpop.f32.mrf.mxu0
      %v3910 = vadd.f32 0.0, %v3909
      %v3911 = vpop.f32.mrf.mxu0
      %3912 = vmatprep.mubr.f32.mxu0 0.0
      %3913 = vmatmul.mubr.f32.gmra.mxu0 %v3690
      %v3914 = vpop.f32.mrf.mxu0
      %v3915 = vadd.f32 0.0, %v3914
      %v3916 = vpop.f32.mrf.mxu0
      %3917 = vmatprep.mubr.f32.mxu0 0.0
      %3918 = vmatmul.mubr.f32.gmra.mxu0 %v3693
      %v3919 = vpop.f32.mrf.mxu0
      %v3920 = vadd.f32 0.0, %v3919
      %v3921 = vpop.f32.mrf.mxu0
      %3922 = vdwg.mxu0
      %v3923 = vadd.f32 %v3533, %v3765
      %v3924 = vadd.f32 %v3534, %v3770
      %v3925 = vadd.f32 %v3535, %v3775
      %v3926 = vadd.f32 %v3536, %v3780
      %v3927 = vadd.f32 %v3537, %v3785
      %v3928 = vadd.f32 %v3538, %v3790
      %v3929 = vadd.f32 %v3539, %v3795
      %v3930 = vadd.f32 %v3540, %v3800
      %v3931 = vadd.f32 %v3541, %v3805
      %v3932 = vadd.f32 %v3542, %v3810
      %v3933 = vadd.f32 %v3543, %v3815
      %v3934 = vadd.f32 %v3544, %v3820
      %v3935 = vadd.f32 %v3545, %v3825
      %v3936 = vadd.f32 %v3546, %v3830
      %v3937 = vadd.f32 %v3547, %v3835
      %v3938 = vadd.f32 %v3548, %v3840
      %v3939 = vadd.f32 %v3549, %v3845
      %v3940 = vadd.f32 %v3550, %v3850
      %v3941 = vadd.f32 %v3551, %v3855
      %v3942 = vadd.f32 %v3552, %v3860
      %v3943 = vadd.f32 %v3553, %v3865
      %v3944 = vadd.f32 %v3554, %v3870
      %v3945 = vadd.f32 %v3555, %v3875
      %v3946 = vadd.f32 %v3556, %v3880
      %v3947 = vadd.f32 %v3557, %v3885
      %v3948 = vadd.f32 %v3558, %v3890
      %v3949 = vadd.f32 %v3559, %v3895
      %v3950 = vadd.f32 %v3560, %v3900
      %v3951 = vadd.f32 %v3561, %v3905
      %v3952 = vadd.f32 %v3562, %v3910
      %v3953 = vadd.f32 %v3563, %v3915
      %v3954 = vadd.f32 %v3564, %v3920
      %3955 = vst.msk [vmem:[%s255] sm:$0xff] %vm569, %v3923
      %3956 = vst.msk [vmem:[%s255 + $0x8] sm:$0xff] %vm569, %v3924
      %3957 = vst.msk [vmem:[%s255 + $0x10] sm:$0xff] %vm569, %v3925
      %3958 = vst.msk [vmem:[%s255 + $0x18] sm:$0xff] %vm569, %v3926
      %3959 = vst.msk [vmem:[%s255 + $0x20] sm:$0xff] %vm569, %v3927
      %3960 = vst.msk [vmem:[%s255 + $0x28] sm:$0xff] %vm569, %v3928
      %3961 = vst.msk [vmem:[%s255 + $0x30] sm:$0xff] %vm569, %v3929
      %3962 = vst.msk [vmem:[%s255 + $0x38] sm:$0xff] %vm569, %v3930
      %3963 = vst.msk [vmem:[%s255 + $0x40] sm:$0xff] %vm569, %v3931
      %3964 = vst.msk [vmem:[%s255 + $0x48] sm:$0xff] %vm569, %v3932
      %3965 = vst.msk [vmem:[%s255 + $0x50] sm:$0xff] %vm569, %v3933
      %3966 = vst.msk [vmem:[%s255 + $0x58] sm:$0xff] %vm569, %v3934
      %3967 = vst.msk [vmem:[%s255 + $0x60] sm:$0xff] %vm569, %v3935
      %3968 = vst.msk [vmem:[%s255 + $0x68] sm:$0xff] %vm569, %v3936
      %3969 = vst.msk [vmem:[%s255 + $0x70] sm:$0xff] %vm569, %v3937
      %3970 = vst.msk [vmem:[%s255 + $0x78] sm:$0xff] %vm569, %v3938
      %3971 = vst.msk [vmem:[%s255 + $0x80] sm:$0xff] %vm569, %v3939
      %3972 = vst.msk [vmem:[%s255 + $0x88] sm:$0xff] %vm569, %v3940
      %3973 = vst.msk [vmem:[%s255 + $0x90] sm:$0xff] %vm569, %v3941
      %3974 = vst.msk [vmem:[%s255 + $0x98] sm:$0xff] %vm569, %v3942
      %3975 = vst.msk [vmem:[%s255 + $0xa0] sm:$0xff] %vm569, %v3943
      %3976 = vst.msk [vmem:[%s255 + $0xa8] sm:$0xff] %vm569, %v3944
      %3977 = vst.msk [vmem:[%s255 + $0xb0] sm:$0xff] %vm569, %v3945
      %3978 = vst.msk [vmem:[%s255 + $0xb8] sm:$0xff] %vm569, %v3946
      %3979 = vst.msk [vmem:[%s255 + $0xc0] sm:$0xff] %vm569, %v3947
      %3980 = vst.msk [vmem:[%s255 + $0xc8] sm:$0xff] %vm569, %v3948
      %3981 = vst.msk [vmem:[%s255 + $0xd0] sm:$0xff] %vm569, %v3949
      %3982 = vst.msk [vmem:[%s255 + $0xd8] sm:$0xff] %vm569, %v3950
      %3983 = vst.msk [vmem:[%s255 + $0xe0] sm:$0xff] %vm569, %v3951
      %3984 = vst.msk [vmem:[%s255 + $0xe8] sm:$0xff] %vm569, %v3952
      %3985 = vst.msk [vmem:[%s255 + $0xf0] sm:$0xff] %vm569, %v3953
      %3986 = vst.msk [vmem:[%s255 + $0xf8] sm:$0xff] %vm569, %v3954
      %v3987 = vsel %vm569, %v3923, 0.0
      %v3988 = vsel %vm569, %v3924, 0.0
      %v3989 = vadd.f32 %v3987, %v3988
      %v3990 = vsel %vm569, %v3925, 0.0
      %v3991 = vadd.f32 %v3989, %v3990
      %v3992 = vsel %vm569, %v3926, 0.0
      %v3993 = vadd.f32 %v3991, %v3992
      %v3994 = vsel %vm569, %v3927, 0.0
      %v3995 = vadd.f32 %v3993, %v3994
      %v3996 = vsel %vm569, %v3928, 0.0
      %v3997 = vadd.f32 %v3995, %v3996
      %v3998 = vsel %vm569, %v3929, 0.0
      %v3999 = vadd.f32 %v3997, %v3998
      %v4000 = vsel %vm569, %v3930, 0.0
      %v4001 = vadd.f32 %v3999, %v4000
      %v4002 = vsel %vm569, %v3931, 0.0
      %v4003 = vadd.f32 %v4001, %v4002
      %v4004 = vsel %vm569, %v3932, 0.0
      %v4005 = vadd.f32 %v4003, %v4004
      %v4006 = vsel %vm569, %v3933, 0.0
      %v4007 = vadd.f32 %v4005, %v4006
      %v4008 = vsel %vm569, %v3934, 0.0
      %v4009 = vadd.f32 %v4007, %v4008
      %v4010 = vsel %vm569, %v3935, 0.0
      %v4011 = vadd.f32 %v4009, %v4010
      %v4012 = vsel %vm569, %v3936, 0.0
      %v4013 = vadd.f32 %v4011, %v4012
      %v4014 = vsel %vm569, %v3937, 0.0
      %v4015 = vadd.f32 %v4013, %v4014
      %v4016 = vsel %vm569, %v3938, 0.0
      %v4017 = vadd.f32 %v4015, %v4016
      %v4018 = vsel %vm569, %v3939, 0.0
      %v4019 = vadd.f32 %v4017, %v4018
      %v4020 = vsel %vm569, %v3940, 0.0
      %v4021 = vadd.f32 %v4019, %v4020
      %v4022 = vsel %vm569, %v3941, 0.0
      %v4023 = vadd.f32 %v4021, %v4022
      %v4024 = vsel %vm569, %v3942, 0.0
      %v4025 = vadd.f32 %v4023, %v4024
      %v4026 = vsel %vm569, %v3943, 0.0
      %v4027 = vadd.f32 %v4025, %v4026
      %v4028 = vsel %vm569, %v3944, 0.0
      %v4029 = vadd.f32 %v4027, %v4028
      %v4030 = vsel %vm569, %v3945, 0.0
      %v4031 = vadd.f32 %v4029, %v4030
      %v4032 = vsel %vm569, %v3946, 0.0
      %v4033 = vadd.f32 %v4031, %v4032
      %v4034 = vsel %vm569, %v3947, 0.0
      %v4035 = vadd.f32 %v4033, %v4034
      %v4036 = vsel %vm569, %v3948, 0.0
      %v4037 = vadd.f32 %v4035, %v4036
      %v4038 = vsel %vm569, %v3949, 0.0
      %v4039 = vadd.f32 %v4037, %v4038
      %v4040 = vsel %vm569, %v3950, 0.0
      %v4041 = vadd.f32 %v4039, %v4040
      %v4042 = vsel %vm569, %v3951, 0.0
      %v4043 = vadd.f32 %v4041, %v4042
      %v4044 = vsel %vm569, %v3952, 0.0
      %v4045 = vadd.f32 %v4043, %v4044
      %v4046 = vsel %vm569, %v3953, 0.0
      %v4047 = vadd.f32 %v4045, %v4046
      %v4048 = vsel %vm569, %v3954, 0.0
      %v4049 = vadd.f32 %v4047, %v4048
      %v4050 = vrot.slane %v4049, 4
      %v4051 = vadd.f32 %v4049, %v4050
      %v4052 = vrot.slane %v4051, 2
      %v4053 = vadd.f32 %v4051, %v4052
      %v4054 = vrot.slane %v4053, 1
      %v4055 = vadd.f32 %v4053, %v4054
      %v4056 = vmul.f32 %v4055, 0.00390625
      %v4057 = vsub.f32 %v3923, %v4056
      %v4058 = vsub.f32 %v3924, %v4056
      %v4059 = vsub.f32 %v3925, %v4056
      %v4060 = vsub.f32 %v3926, %v4056
      %v4061 = vsub.f32 %v3927, %v4056
      %v4062 = vsub.f32 %v3928, %v4056
      %v4063 = vsub.f32 %v3929, %v4056
      %v4064 = vsub.f32 %v3930, %v4056
      %v4065 = vsub.f32 %v3931, %v4056
      %v4066 = vsub.f32 %v3932, %v4056
      %v4067 = vsub.f32 %v3933, %v4056
      %v4068 = vsub.f32 %v3934, %v4056
      %v4069 = vsub.f32 %v3935, %v4056
      %v4070 = vsub.f32 %v3936, %v4056
      %v4071 = vsub.f32 %v3937, %v4056
      %v4072 = vsub.f32 %v3938, %v4056
      %v4073 = vsub.f32 %v3939, %v4056
      %v4074 = vsub.f32 %v3940, %v4056
      %v4075 = vsub.f32 %v3941, %v4056
      %v4076 = vsub.f32 %v3942, %v4056
      %v4077 = vsub.f32 %v3943, %v4056
      %v4078 = vsub.f32 %v3944, %v4056
      %v4079 = vsub.f32 %v3945, %v4056
      %v4080 = vsub.f32 %v3946, %v4056
      %v4081 = vsub.f32 %v3947, %v4056
      %v4082 = vsub.f32 %v3948, %v4056
      %v4083 = vsub.f32 %v3949, %v4056
      %v4084 = vsub.f32 %v3950, %v4056
      %v4085 = vsub.f32 %v3951, %v4056
      %v4086 = vsub.f32 %v3952, %v4056
      %v4087 = vsub.f32 %v3953, %v4056
      %v4088 = vsub.f32 %v3954, %v4056
      %v4089 = vmul.f32 %v4057, %v4057
      %v4090 = vmul.f32 %v4058, %v4058
      %v4091 = vmul.f32 %v4059, %v4059
      %v4092 = vmul.f32 %v4060, %v4060
      %v4093 = vmul.f32 %v4061, %v4061
      %v4094 = vmul.f32 %v4062, %v4062
      %v4095 = vmul.f32 %v4063, %v4063
      %v4096 = vmul.f32 %v4064, %v4064
      %v4097 = vmul.f32 %v4065, %v4065
      %v4098 = vmul.f32 %v4066, %v4066
      %v4099 = vmul.f32 %v4067, %v4067
      %v4100 = vmul.f32 %v4068, %v4068
      %v4101 = vmul.f32 %v4069, %v4069
      %v4102 = vmul.f32 %v4070, %v4070
      %v4103 = vmul.f32 %v4071, %v4071
      %v4104 = vmul.f32 %v4072, %v4072
      %v4105 = vmul.f32 %v4073, %v4073
      %v4106 = vmul.f32 %v4074, %v4074
      %v4107 = vmul.f32 %v4075, %v4075
      %v4108 = vmul.f32 %v4076, %v4076
      %v4109 = vmul.f32 %v4077, %v4077
      %v4110 = vmul.f32 %v4078, %v4078
      %v4111 = vmul.f32 %v4079, %v4079
      %v4112 = vmul.f32 %v4080, %v4080
      %v4113 = vmul.f32 %v4081, %v4081
      %v4114 = vmul.f32 %v4082, %v4082
      %v4115 = vmul.f32 %v4083, %v4083
      %v4116 = vmul.f32 %v4084, %v4084
      %v4117 = vmul.f32 %v4085, %v4085
      %v4118 = vmul.f32 %v4086, %v4086
      %v4119 = vmul.f32 %v4087, %v4087
      %v4120 = vmul.f32 %v4088, %v4088
      %v4121 = vsel %vm569, %v4089, 0.0
      %v4122 = vsel %vm569, %v4090, 0.0
      %v4123 = vadd.f32 %v4121, %v4122
      %v4124 = vsel %vm569, %v4091, 0.0
      %v4125 = vadd.f32 %v4123, %v4124
      %v4126 = vsel %vm569, %v4092, 0.0
      %v4127 = vadd.f32 %v4125, %v4126
      %v4128 = vsel %vm569, %v4093, 0.0
      %v4129 = vadd.f32 %v4127, %v4128
      %v4130 = vsel %vm569, %v4094, 0.0
      %v4131 = vadd.f32 %v4129, %v4130
      %v4132 = vsel %vm569, %v4095, 0.0
      %v4133 = vadd.f32 %v4131, %v4132
      %v4134 = vsel %vm569, %v4096, 0.0
      %v4135 = vadd.f32 %v4133, %v4134
      %v4136 = vsel %vm569, %v4097, 0.0
      %v4137 = vadd.f32 %v4135, %v4136
      %v4138 = vsel %vm569, %v4098, 0.0
      %v4139 = vadd.f32 %v4137, %v4138
      %v4140 = vsel %vm569, %v4099, 0.0
      %v4141 = vadd.f32 %v4139, %v4140
      %v4142 = vsel %vm569, %v4100, 0.0
      %v4143 = vadd.f32 %v4141, %v4142
      %v4144 = vsel %vm569, %v4101, 0.0
      %v4145 = vadd.f32 %v4143, %v4144
      %v4146 = vsel %vm569, %v4102, 0.0
      %v4147 = vadd.f32 %v4145, %v4146
      %v4148 = vsel %vm569, %v4103, 0.0
      %v4149 = vadd.f32 %v4147, %v4148
      %v4150 = vsel %vm569, %v4104, 0.0
      %v4151 = vadd.f32 %v4149, %v4150
      %v4152 = vsel %vm569, %v4105, 0.0
      %v4153 = vadd.f32 %v4151, %v4152
      %v4154 = vsel %vm569, %v4106, 0.0
      %v4155 = vadd.f32 %v4153, %v4154
      %v4156 = vsel %vm569, %v4107, 0.0
      %v4157 = vadd.f32 %v4155, %v4156
      %v4158 = vsel %vm569, %v4108, 0.0
      %v4159 = vadd.f32 %v4157, %v4158
      %v4160 = vsel %vm569, %v4109, 0.0
      %v4161 = vadd.f32 %v4159, %v4160
      %v4162 = vsel %vm569, %v4110, 0.0
      %v4163 = vadd.f32 %v4161, %v4162
      %v4164 = vsel %vm569, %v4111, 0.0
      %v4165 = vadd.f32 %v4163, %v4164
      %v4166 = vsel %vm569, %v4112, 0.0
      %v4167 = vadd.f32 %v4165, %v4166
      %v4168 = vsel %vm569, %v4113, 0.0
      %v4169 = vadd.f32 %v4167, %v4168
      %v4170 = vsel %vm569, %v4114, 0.0
      %v4171 = vadd.f32 %v4169, %v4170
      %v4172 = vsel %vm569, %v4115, 0.0
      %v4173 = vadd.f32 %v4171, %v4172
      %v4174 = vsel %vm569, %v4116, 0.0
      %v4175 = vadd.f32 %v4173, %v4174
      %v4176 = vsel %vm569, %v4117, 0.0
      %v4177 = vadd.f32 %v4175, %v4176
      %v4178 = vsel %vm569, %v4118, 0.0
      %v4179 = vadd.f32 %v4177, %v4178
      %v4180 = vsel %vm569, %v4119, 0.0
      %v4181 = vadd.f32 %v4179, %v4180
      %v4182 = vsel %vm569, %v4120, 0.0
      %v4183 = vadd.f32 %v4181, %v4182
      %v4184 = vrot.slane %v4183, 4
      %v4185 = vadd.f32 %v4183, %v4184
      %v4186 = vrot.slane %v4185, 2
      %v4187 = vadd.f32 %v4185, %v4186
      %v4188 = vrot.slane %v4187, 1
      %v4189 = vadd.f32 %v4187, %v4188
      %vm4190 = vcmask 24576
      %4191 = vst.msk [vmem:[%s262] sm:$0x1] %vm4190, %v4056
      %4192 = vst.msk [vmem:[%s262 + $0x1] sm:$0x1] %vm4190, %v4189
      %s4193 = sadd.s32 %s21, %s22
      %s4194 = smul.u32 32, %s4193
      %p4195 = scmp.lt.s32.totalorder %s4194, 63
      %s4196 = scalar_select %p4195, %s4194, 63
      %s4197 = smul.addr %s4196, 8
      %s4198 = scalar_lea.vmem %s4, %s4197
      %s4199 = sadd.s32 %s21, %s22
      %p4200 = scmp.lt.s32.totalorder %s4199, 1
      %s4201 = scalar_select %p4200, %s4199, 1
      %s4202 = smul.addr %s4201, 2
      %s4203 = scalar_lea.vmem %s5, %s4202
      // Predicated region
      $region41: #{basic_block_forward.4} parent=35 // pred_check
        %p4204 = pneg %p138
      $region42: #{basic_block_forward.4} parent=35 // pred_check_branch
        %4206 = sbr.rel (%p4204) target = $region44
      $region43: #{basic_block_forward.4} parent=35 // pred_region
        %s4207 = sadd.s32 %s21, %s22
        %s4208 = smul.u32 32, %s4207
      $region44: #{basic_block_forward.4} parent=35 // pred_fallthru
        _
      // Predicated region
      $region45: #{basic_block_forward.4} parent=35 // pred_check
        %p4209 = pneg %p166
      $region46: #{basic_block_forward.4} parent=35 // pred_check_branch
        %4211 = sbr.rel (%p4209) target = $region48
      $region47: #{basic_block_forward.4} parent=35 // pred_region
        %s4212 = sadd.s32 %s21, %s22
      $region48: #{basic_block_forward.4} parent=35 // pred_fallthru
        _
    $region36: #{basic_block_forward.4} parent=5 // pred_fallthru
      _
    %p4213 = scmp.le.s32.totalorder 2, %s12
    // Predicated region
    $region49: #{basic_block_forward.4} parent=5 // pred_check
      %p4214 = pneg %p4213
    $region50: #{basic_block_forward.4} parent=5 // pred_check_branch
      %4216 = sbr.rel (%p4214) target = $region52
    $region51: #{basic_block_forward.4} parent=5 // pred_region
      %s4217 = ssub.s32 %s12, 2
      // Predicated region
      $region53: #{basic_block_forward.4} parent=51 // pred_check
        %p4218 = pneg %p144
      $region54: #{basic_block_forward.4} parent=51 // pred_check_branch
        %4220 = sbr.rel (%p4218) target = $region56
      $region55: #{basic_block_forward.4} parent=51 // pred_region
        %s4221 = sadd.s32 %s23, %s24
        %s4222 = smul.u32 32, %s4221
        %p4223 = scmp.lt.s32.totalorder %s4222, 63
        %s4224 = scalar_select %p4223, %s4222, 63
        %s4225 = smul.addr %s4224, 8
        %s4226 = scalar_lea.vmem %s4, %s4225
      $region56: #{basic_block_forward.4} parent=51 // pred_fallthru
        _
      // Predicated region
      $region57: #{basic_block_forward.4} parent=51 // pred_check
        %p4227 = pneg %p172
      $region58: #{basic_block_forward.4} parent=51 // pred_check_branch
        %4229 = sbr.rel (%p4227) target = $region60
      $region59: #{basic_block_forward.4} parent=51 // pred_region
        %s4230 = sadd.s32 %s23, %s24
        %p4231 = scmp.lt.s32.totalorder %s4230, 1
        %s4232 = scalar_select %p4231, %s4230, 1
        %s4233 = smul.addr %s4232, 2
        %s4234 = scalar_lea.vmem %s5, %s4233
      $region60: #{basic_block_forward.4} parent=51 // pred_fallthru
        _
    $region52: #{basic_block_forward.4} parent=5 // pred_fallthru
      _
  $region6: #{basic_block_forward.4} parent=0 // loop_footer
    %s16 = sadd.s32 1, %s12
  $region7: #{basic_block_forward.4} parent=0 // loop_footer_branch
    %11 = sbr.rel target = $region3
  $region8: #{basic_block_forward.4} parent=0 // loop_exit
    _

</llo_original>
